<compile_context>
chip_gen: v6e
topology: v6e:2x2x1
jax: 0.10.0
libtpu: 0.0.40
codegen_flags: <defaults>
</compile_context>

<pallas_src>
import jax
import jax.numpy as jnp
from jax.experimental import pallas as pl
from jax.experimental.pallas import tpu as pltpu

MESSAGE = "HelloWorld"
MESSAGE_LENGTH = len(MESSAGE)  # 10
OUT_PAD = 128                  # lane-dense padded output width
EPS = 1e-5

D1, D2, D3 = 2048, 1024, 512

# ---- offsets into the packed (1, PACKED_LEN) small-parameter vector ----------
# All segment sizes are multiples of 128, so every slice below is lane-aligned.
_OFF_G1 = 0
_OFF_BE1 = _OFF_G1 + D1
_OFF_G2 = _OFF_BE1 + D1
_OFF_BE2 = _OFF_G2 + D2
_OFF_G3 = _OFF_BE2 + D2
_OFF_BE3 = _OFF_G3 + D3
_OFF_B4 = _OFF_BE3 + D3
PACKED_LEN = _OFF_B4 + OUT_PAD  # 7296 (multiple of 128)


def _bn_relu(h, gamma, beta):
    # BatchNorm1d (training mode: batch stats, biased variance) + ReLU, all in f32.
    mean = jnp.mean(h, axis=0, keepdims=True)
    var = jnp.mean((h - mean) * (h - mean), axis=0, keepdims=True)
    hn = (h - mean) * jax.lax.rsqrt(var + EPS)
    return jnp.maximum(hn * gamma + beta, 0.0)


def decoder_kernel(x_ref, p_ref, w1_ref, w2_hbm, w3_hbm, w4_hbm, o_ref,
                   w2_buf, w3_buf, w4_buf, sem):
    f32 = jnp.float32
    bf16 = jnp.bfloat16

    # Kick off the big weight streams immediately so fc1/BN1 (and later layers)
    # overlap the HBM transfers.  Each copy is waited on right before its matmul.
    cp2 = pltpu.make_async_copy(w2_hbm, w2_buf, sem.at[0])
    cp3 = pltpu.make_async_copy(w3_hbm, w3_buf, sem.at[1])
    cp4 = pltpu.make_async_copy(w4_hbm, w4_buf, sem.at[2])
    cp2.start()
    cp3.start()
    cp4.start()

    def seg(off, n):
        # Static, 128-aligned slice of the packed small-parameter vector.
        return p_ref[:, off:off + n]

    x = x_ref[...]  # (B, 3) float32

    # fc1 -> bn1 -> relu.  Native bf16 MXU matmul, f32 accumulation.
    # (fc1..fc3 biases are dropped: a per-feature shift before batch-stat BN cancels.)
    h = jnp.dot(x.astype(bf16), w1_ref[...], preferred_element_type=f32)
    h = _bn_relu(h, seg(_OFF_G1, D1), seg(_OFF_BE1, D1))

    # fc2 -> bn2 -> relu
    cp2.wait()
    h = jnp.dot(h.astype(bf16), w2_buf[...], preferred_element_type=f32)
    h = _bn_relu(h, seg(_OFF_G2, D2), seg(_OFF_BE2, D2))

    # fc3 -> bn3 -> relu
    cp3.wait()
    h = jnp.dot(h.astype(bf16), w3_buf[...], preferred_element_type=f32)
    h = _bn_relu(h, seg(_OFF_G3, D3), seg(_OFF_BE3, D3))

    # fc4 (padded to 128 output lanes; no bn / activation)
    cp4.wait()
    o_ref[...] = (jnp.dot(h.astype(bf16), w4_buf[...], preferred_element_type=f32)
                  + seg(_OFF_B4, OUT_PAD))


def _full_spec(shape):
    # Whole array as one block (these arrays are small and VMEM-resident).
    return pl.BlockSpec(shape, lambda: tuple(0 for _ in shape))


def decoder_forward(x, kernel_params):
    """kernel_params = (w1_bf16, w2_bf16, w3_bf16, w4pad_bf16, packed_f32)."""
    w1, w2, w3, w4p, packed = kernel_params
    B = x.shape[0]

    hbm_spec = pl.BlockSpec(memory_space=pl.ANY)  # raw HBM ref, DMA'd manually

    out = pl.pallas_call(
        decoder_kernel,
        out_shape=jax.ShapeDtypeStruct((B, OUT_PAD), jnp.float32),
        grid_spec=pltpu.PrefetchScalarGridSpec(
            num_scalar_prefetch=0,
            grid=(),  # single invocation: whole problem fits in VMEM
            in_specs=[
                _full_spec(x.shape),       # x       -> VMEM (auto)
                _full_spec(packed.shape),  # packed  -> VMEM (auto)
                _full_spec(w1.shape),      # w1 (12 KiB) -> VMEM (auto)
                hbm_spec,                  # w2 (4 MiB)  -> manual DMA
                hbm_spec,                  # w3 (1 MiB)  -> manual DMA
                hbm_spec,                  # w4p (128 KiB) -> manual DMA
            ],
            out_specs=_full_spec((B, OUT_PAD)),
            scratch_shapes=[
                pltpu.VMEM((D1, D2), jnp.bfloat16),       # w2 landing buffer
                pltpu.VMEM((D2, D3), jnp.bfloat16),       # w3 landing buffer
                pltpu.VMEM((D3, OUT_PAD), jnp.bfloat16),  # w4 landing buffer
                pltpu.SemaphoreType.DMA((3,)),
            ],
        ),
        # ~6 MiB actually used; 16 MiB leaves headroom on every generation.
        compiler_params=pltpu.CompilerParams(vmem_limit_bytes=16 << 20),
    )(x, packed, w1, w2, w3, w4p)
    return out[:, :MESSAGE_LENGTH]


# ----------------------------- init / packing --------------------------------

def init_raw_params(key):
    """f32 params matching the PyTorch layer shapes (Linear weight as (in, out))."""
    dims = [(3, D1), (D1, D2), (D2, D3), (D3, MESSAGE_LENGTH)]
    keys = jax.random.split(key, len(dims) * 2)
    ws, bs = [], []
    for idx, (fan_in, fan_out) in enumerate(dims):
        bound = 1.0 / jnp.sqrt(float(fan_in))
        w = jax.random.uniform(keys[2 * idx], (fan_in, fan_out),
                               minval=-bound, maxval=bound, dtype=jnp.float32)
        b = jax.random.uniform(keys[2 * idx + 1], (1, fan_out),
                               minval=-bound, maxval=bound, dtype=jnp.float32)
        ws.append(w)
        bs.append(b)
    gammas = [jnp.ones((1, d), jnp.float32) for d in (D1, D2, D3)]
    betas = [jnp.zeros((1, d), jnp.float32) for d in (D1, D2, D3)]
    return ws, bs, gammas, betas


def pack_params(raw):
    """bf16 weights (fc4 lane-padded to 128) + one packed f32 small-param vector."""
    ws, bs, gammas, betas = raw
    w1, w2, w3, w4 = ws
    _, _, _, b4 = bs
    g1, g2, g3 = gammas
    be1, be2, be3 = betas

    w4p = jnp.zeros((D3, OUT_PAD), jnp.float32).at[:, :MESSAGE_LENGTH].set(w4)
    b4p = jnp.zeros((1, OUT_PAD), jnp.float32).at[:, :MESSAGE_LENGTH].set(b4)

    # b1/b2/b3 are intentionally NOT packed: they cancel under batch-stat BatchNorm.
    packed = jnp.concatenate([g1, be1, g2, be2, g3, be3, b4p], axis=-1)
    assert packed.shape == (1, PACKED_LEN)

    return (w1.astype(jnp.bfloat16), w2.astype(jnp.bfloat16),
            w3.astype(jnp.bfloat16), w4p.astype(jnp.bfloat16), packed)


# ------------------------------- reference -----------------------------------

def decoder_reference(x, raw):
    """Pure-JAX reference with the same bf16 matmul numerics as the kernel
    (bf16 weights AND bf16 activations into each dot, f32 accumulation), but
    keeping the fc1-fc3 biases to demonstrate they are no-ops before BN."""
    ws, bs, gammas, betas = raw
    bf16, f32 = jnp.bfloat16, jnp.float32
    w1, w2, w3, w4 = [w.astype(bf16) for w in ws]
    b1, b2, b3, b4 = bs
    g1, g2, g3 = gammas
    be1, be2, be3 = betas

    def mm(a, w):
        return jnp.dot(a.astype(bf16), w, preferred_element_type=f32)

    def bn_relu(h, g, be):
        m = jnp.mean(h, axis=0, keepdims=True)
        v = jnp.mean((h - m) * (h - m), axis=0, keepdims=True)
        hn = (h - m) * jax.lax.rsqrt(v + EPS)
        return jnp.maximum(hn * g + be, 0.0)

    h = bn_relu(mm(x, w1) + b1, g1, be1)
    h = bn_relu(mm(h, w2) + b2, g2, be2)
    h = bn_relu(mm(h, w3) + b3, g3, be3)
    return mm(h, w4) + b4


if __name__ == "__main__":
    key = jax.random.PRNGKey(0)
    pkey, xkey = jax.random.split(key)

    raw = init_raw_params(pkey)
    kernel_params = pack_params(raw)
    x = jax.random.normal(xkey, (8, 3), dtype=jnp.float32)  # batch=8, input dim=3

    out = decoder_forward(x, kernel_params)
    out = jax.block_until_ready(out)

    ref = decoder_reference(x, raw)
    assert out.shape == (8, MESSAGE_LENGTH)
    assert jnp.allclose(out, ref, atol=2e-3, rtol=2e-3), "mismatch vs JAX reference"

    print("KERNEL_OK")
</pallas_src>

<mosaic_0001>
module attributes {stable_mosaic.version = 11 : i64} {
  func.func @decoder_kernel(%arg0: memref<8x3xf32, #tpu.memory_space<vmem>>, %arg1: memref<1x7296xf32, #tpu.memory_space<vmem>>, %arg2: memref<3x2048xbf16, #tpu.memory_space<vmem>>, %arg3: memref<2048x1024xbf16, #tpu.memory_space<any>>, %arg4: memref<1024x512xbf16, #tpu.memory_space<any>>, %arg5: memref<512x128xbf16, #tpu.memory_space<any>>, %arg6: memref<8x128xf32, #tpu.memory_space<vmem>>, %arg7: memref<2048x1024xbf16, #tpu.memory_space<vmem>>, %arg8: memref<1024x512xbf16, #tpu.memory_space<vmem>>, %arg9: memref<512x128xbf16, #tpu.memory_space<vmem>>, %arg10: memref<3x!tpu.dma_semaphore, #tpu.memory_space<semaphore_mem>>) attributes {dimension_semantics = [], scalar_prefetch = 0 : i64, scratch_operands = 4 : i64, tpu.core_type = #tpu.core_type<tc>} {
    %c0_i32 = arith.constant 0 : i32
    %0 = tpu.memref_slice %arg10[%c0_i32] : memref<3x!tpu.dma_semaphore, #tpu.memory_space<semaphore_mem>> -> memref<1x!tpu.dma_semaphore, #tpu.memory_space<semaphore_mem>>
    %1 = tpu.memref_squeeze %0 : memref<1x!tpu.dma_semaphore, #tpu.memory_space<semaphore_mem>> -> memref<!tpu.dma_semaphore, #tpu.memory_space<semaphore_mem>>
    tpu.enqueue_dma source(%arg3 : memref<2048x1024xbf16, #tpu.memory_space<any>>) target(%arg7 : memref<2048x1024xbf16, #tpu.memory_space<vmem>>) target_semaphore(%1 : memref<!tpu.dma_semaphore, #tpu.memory_space<semaphore_mem>>)
    %c1_i32 = arith.constant 1 : i32
    %2 = tpu.memref_slice %arg10[%c1_i32] : memref<3x!tpu.dma_semaphore, #tpu.memory_space<semaphore_mem>> -> memref<1x!tpu.dma_semaphore, #tpu.memory_space<semaphore_mem>>
    %3 = tpu.memref_squeeze %2 : memref<1x!tpu.dma_semaphore, #tpu.memory_space<semaphore_mem>> -> memref<!tpu.dma_semaphore, #tpu.memory_space<semaphore_mem>>
    tpu.enqueue_dma source(%arg4 : memref<1024x512xbf16, #tpu.memory_space<any>>) target(%arg8 : memref<1024x512xbf16, #tpu.memory_space<vmem>>) target_semaphore(%3 : memref<!tpu.dma_semaphore, #tpu.memory_space<semaphore_mem>>)
    %c2_i32 = arith.constant 2 : i32
    %4 = tpu.memref_slice %arg10[%c2_i32] : memref<3x!tpu.dma_semaphore, #tpu.memory_space<semaphore_mem>> -> memref<1x!tpu.dma_semaphore, #tpu.memory_space<semaphore_mem>>
    %5 = tpu.memref_squeeze %4 : memref<1x!tpu.dma_semaphore, #tpu.memory_space<semaphore_mem>> -> memref<!tpu.dma_semaphore, #tpu.memory_space<semaphore_mem>>
    tpu.enqueue_dma source(%arg5 : memref<512x128xbf16, #tpu.memory_space<any>>) target(%arg9 : memref<512x128xbf16, #tpu.memory_space<vmem>>) target_semaphore(%5 : memref<!tpu.dma_semaphore, #tpu.memory_space<semaphore_mem>>)
    %c0 = arith.constant 0 : index
    %c0_0 = arith.constant 0 : index
    %6 = vector.load %arg0[%c0, %c0_0] : memref<8x3xf32, #tpu.memory_space<vmem>>, vector<8x3xf32>
    %7 = arith.truncf %6 : vector<8x3xf32> to vector<8x3xbf16>
    %c0_1 = arith.constant 0 : index
    %c0_2 = arith.constant 0 : index
    %8 = vector.load %arg2[%c0_1, %c0_2] : memref<3x2048xbf16, #tpu.memory_space<vmem>>, vector<3x2048xbf16>
    %cst = arith.constant dense<0.000000e+00> : vector<8x2048xf32>
    %9 = tpu.matmul %7, %8, %cst {dimension_numbers = #tpu.dot_dimension_numbers<[1], [0], [0], [1], [0, 0, 1, 1], [], []>} : vector<8x3xbf16>, vector<3x2048xbf16>, vector<8x2048xf32> -> vector<8x2048xf32>
    %c0_3 = arith.constant 0 : index
    %c0_4 = arith.constant 0 : index
    %10 = vector.load %arg1[%c0_3, %c0_4] : memref<1x7296xf32, #tpu.memory_space<vmem>>, vector<1x2048xf32>
    %c0_5 = arith.constant 0 : index
    %c2048 = arith.constant 2048 : index
    %11 = vector.load %arg1[%c0_5, %c2048] : memref<1x7296xf32, #tpu.memory_space<vmem>>, vector<1x2048xf32>
    %cst_6 = arith.constant dense<0.000000e+00> : vector<2048xf32>
    %12 = vector.multi_reduction <add>, %9, %cst_6 [0] : vector<8x2048xf32> to vector<2048xf32>
    %13 = vector.shape_cast %12 : vector<2048xf32> to vector<1x2048xf32>
    %cst_7 = arith.constant 8.000000e+00 : f32
    %14 = vector.broadcast %cst_7 : f32 to vector<1x2048xf32>
    %15 = arith.divf %13, %14 : vector<1x2048xf32>
    %16 = vector.broadcast %15 : vector<1x2048xf32> to vector<8x2048xf32>
    %17 = arith.subf %9, %16 : vector<8x2048xf32>
    %18 = vector.broadcast %15 : vector<1x2048xf32> to vector<8x2048xf32>
    %19 = arith.subf %9, %18 : vector<8x2048xf32>
    %20 = arith.mulf %17, %19 : vector<8x2048xf32>
    %cst_8 = arith.constant dense<0.000000e+00> : vector<2048xf32>
    %21 = vector.multi_reduction <add>, %20, %cst_8 [0] : vector<8x2048xf32> to vector<2048xf32>
    %22 = vector.shape_cast %21 : vector<2048xf32> to vector<1x2048xf32>
    %cst_9 = arith.constant 8.000000e+00 : f32
    %23 = vector.broadcast %cst_9 : f32 to vector<1x2048xf32>
    %24 = arith.divf %22, %23 : vector<1x2048xf32>
    %25 = vector.broadcast %15 : vector<1x2048xf32> to vector<8x2048xf32>
    %26 = arith.subf %9, %25 : vector<8x2048xf32>
    %cst_10 = arith.constant 9.99999974E-6 : f32
    %27 = vector.broadcast %cst_10 : f32 to vector<1x2048xf32>
    %28 = arith.addf %24, %27 : vector<1x2048xf32>
    %29 = math.rsqrt %28 : vector<1x2048xf32>
    %30 = vector.broadcast %29 : vector<1x2048xf32> to vector<8x2048xf32>
    %31 = arith.mulf %26, %30 : vector<8x2048xf32>
    %32 = vector.broadcast %10 : vector<1x2048xf32> to vector<8x2048xf32>
    %33 = arith.mulf %31, %32 : vector<8x2048xf32>
    %34 = vector.broadcast %11 : vector<1x2048xf32> to vector<8x2048xf32>
    %35 = arith.addf %33, %34 : vector<8x2048xf32>
    %cst_11 = arith.constant 0.000000e+00 : f32
    %36 = vector.broadcast %cst_11 : f32 to vector<8x2048xf32>
    %37 = arith.maximumf %35, %36 : vector<8x2048xf32>
    %c0_i32_12 = arith.constant 0 : i32
    %38 = tpu.memref_slice %arg10[%c0_i32_12] : memref<3x!tpu.dma_semaphore, #tpu.memory_space<semaphore_mem>> -> memref<1x!tpu.dma_semaphore, #tpu.memory_space<semaphore_mem>>
    %39 = tpu.memref_squeeze %38 : memref<1x!tpu.dma_semaphore, #tpu.memory_space<semaphore_mem>> -> memref<!tpu.dma_semaphore, #tpu.memory_space<semaphore_mem>>
    tpu.wait_dma2 semaphore(%39 : memref<!tpu.dma_semaphore, #tpu.memory_space<semaphore_mem>>) src(%arg3 : memref<2048x1024xbf16, #tpu.memory_space<any>>) dst(%arg7 : memref<2048x1024xbf16, #tpu.memory_space<vmem>>)
    %40 = arith.truncf %37 : vector<8x2048xf32> to vector<8x2048xbf16>
    %c0_13 = arith.constant 0 : index
    %c0_14 = arith.constant 0 : index
    %41 = vector.load %arg7[%c0_13, %c0_14] : memref<2048x1024xbf16, #tpu.memory_space<vmem>>, vector<2048x1024xbf16>
    %cst_15 = arith.constant dense<0.000000e+00> : vector<8x1024xf32>
    %42 = tpu.matmul %40, %41, %cst_15 {dimension_numbers = #tpu.dot_dimension_numbers<[1], [0], [0], [1], [0, 0, 1, 1], [], []>} : vector<8x2048xbf16>, vector<2048x1024xbf16>, vector<8x1024xf32> -> vector<8x1024xf32>
    %c0_16 = arith.constant 0 : index
    %c4096 = arith.constant 4096 : index
    %43 = vector.load %arg1[%c0_16, %c4096] : memref<1x7296xf32, #tpu.memory_space<vmem>>, vector<1x1024xf32>
    %c0_17 = arith.constant 0 : index
    %c5120 = arith.constant 5120 : index
    %44 = vector.load %arg1[%c0_17, %c5120] : memref<1x7296xf32, #tpu.memory_space<vmem>>, vector<1x1024xf32>
    %cst_18 = arith.constant dense<0.000000e+00> : vector<1024xf32>
    %45 = vector.multi_reduction <add>, %42, %cst_18 [0] : vector<8x1024xf32> to vector<1024xf32>
    %46 = vector.shape_cast %45 : vector<1024xf32> to vector<1x1024xf32>
    %cst_19 = arith.constant 8.000000e+00 : f32
    %47 = vector.broadcast %cst_19 : f32 to vector<1x1024xf32>
    %48 = arith.divf %46, %47 : vector<1x1024xf32>
    %49 = vector.broadcast %48 : vector<1x1024xf32> to vector<8x1024xf32>
    %50 = arith.subf %42, %49 : vector<8x1024xf32>
    %51 = vector.broadcast %48 : vector<1x1024xf32> to vector<8x1024xf32>
    %52 = arith.subf %42, %51 : vector<8x1024xf32>
    %53 = arith.mulf %50, %52 : vector<8x1024xf32>
    %cst_20 = arith.constant dense<0.000000e+00> : vector<1024xf32>
    %54 = vector.multi_reduction <add>, %53, %cst_20 [0] : vector<8x1024xf32> to vector<1024xf32>
    %55 = vector.shape_cast %54 : vector<1024xf32> to vector<1x1024xf32>
    %cst_21 = arith.constant 8.000000e+00 : f32
    %56 = vector.broadcast %cst_21 : f32 to vector<1x1024xf32>
    %57 = arith.divf %55, %56 : vector<1x1024xf32>
    %58 = vector.broadcast %48 : vector<1x1024xf32> to vector<8x1024xf32>
    %59 = arith.subf %42, %58 : vector<8x1024xf32>
    %cst_22 = arith.constant 9.99999974E-6 : f32
    %60 = vector.broadcast %cst_22 : f32 to vector<1x1024xf32>
    %61 = arith.addf %57, %60 : vector<1x1024xf32>
    %62 = math.rsqrt %61 : vector<1x1024xf32>
    %63 = vector.broadcast %62 : vector<1x1024xf32> to vector<8x1024xf32>
    %64 = arith.mulf %59, %63 : vector<8x1024xf32>
    %65 = vector.broadcast %43 : vector<1x1024xf32> to vector<8x1024xf32>
    %66 = arith.mulf %64, %65 : vector<8x1024xf32>
    %67 = vector.broadcast %44 : vector<1x1024xf32> to vector<8x1024xf32>
    %68 = arith.addf %66, %67 : vector<8x1024xf32>
    %cst_23 = arith.constant 0.000000e+00 : f32
    %69 = vector.broadcast %cst_23 : f32 to vector<8x1024xf32>
    %70 = arith.maximumf %68, %69 : vector<8x1024xf32>
    %c1_i32_24 = arith.constant 1 : i32
    %71 = tpu.memref_slice %arg10[%c1_i32_24] : memref<3x!tpu.dma_semaphore, #tpu.memory_space<semaphore_mem>> -> memref<1x!tpu.dma_semaphore, #tpu.memory_space<semaphore_mem>>
    %72 = tpu.memref_squeeze %71 : memref<1x!tpu.dma_semaphore, #tpu.memory_space<semaphore_mem>> -> memref<!tpu.dma_semaphore, #tpu.memory_space<semaphore_mem>>
    tpu.wait_dma2 semaphore(%72 : memref<!tpu.dma_semaphore, #tpu.memory_space<semaphore_mem>>) src(%arg4 : memref<1024x512xbf16, #tpu.memory_space<any>>) dst(%arg8 : memref<1024x512xbf16, #tpu.memory_space<vmem>>)
    %73 = arith.truncf %70 : vector<8x1024xf32> to vector<8x1024xbf16>
    %c0_25 = arith.constant 0 : index
    %c0_26 = arith.constant 0 : index
    %74 = vector.load %arg8[%c0_25, %c0_26] : memref<1024x512xbf16, #tpu.memory_space<vmem>>, vector<1024x512xbf16>
    %cst_27 = arith.constant dense<0.000000e+00> : vector<8x512xf32>
    %75 = tpu.matmul %73, %74, %cst_27 {dimension_numbers = #tpu.dot_dimension_numbers<[1], [0], [0], [1], [0, 0, 1, 1], [], []>} : vector<8x1024xbf16>, vector<1024x512xbf16>, vector<8x512xf32> -> vector<8x512xf32>
    %c0_28 = arith.constant 0 : index
    %c6144 = arith.constant 6144 : index
    %76 = vector.load %arg1[%c0_28, %c6144] : memref<1x7296xf32, #tpu.memory_space<vmem>>, vector<1x512xf32>
    %c0_29 = arith.constant 0 : index
    %c6656 = arith.constant 6656 : index
    %77 = vector.load %arg1[%c0_29, %c6656] : memref<1x7296xf32, #tpu.memory_space<vmem>>, vector<1x512xf32>
    %cst_30 = arith.constant dense<0.000000e+00> : vector<512xf32>
    %78 = vector.multi_reduction <add>, %75, %cst_30 [0] : vector<8x512xf32> to vector<512xf32>
    %79 = vector.shape_cast %78 : vector<512xf32> to vector<1x512xf32>
    %cst_31 = arith.constant 8.000000e+00 : f32
    %80 = vector.broadcast %cst_31 : f32 to vector<1x512xf32>
    %81 = arith.divf %79, %80 : vector<1x512xf32>
    %82 = vector.broadcast %81 : vector<1x512xf32> to vector<8x512xf32>
    %83 = arith.subf %75, %82 : vector<8x512xf32>
    %84 = vector.broadcast %81 : vector<1x512xf32> to vector<8x512xf32>
    %85 = arith.subf %75, %84 : vector<8x512xf32>
    %86 = arith.mulf %83, %85 : vector<8x512xf32>
    %cst_32 = arith.constant dense<0.000000e+00> : vector<512xf32>
    %87 = vector.multi_reduction <add>, %86, %cst_32 [0] : vector<8x512xf32> to vector<512xf32>
    %88 = vector.shape_cast %87 : vector<512xf32> to vector<1x512xf32>
    %cst_33 = arith.constant 8.000000e+00 : f32
    %89 = vector.broadcast %cst_33 : f32 to vector<1x512xf32>
    %90 = arith.divf %88, %89 : vector<1x512xf32>
    %91 = vector.broadcast %81 : vector<1x512xf32> to vector<8x512xf32>
    %92 = arith.subf %75, %91 : vector<8x512xf32>
    %cst_34 = arith.constant 9.99999974E-6 : f32
    %93 = vector.broadcast %cst_34 : f32 to vector<1x512xf32>
    %94 = arith.addf %90, %93 : vector<1x512xf32>
    %95 = math.rsqrt %94 : vector<1x512xf32>
    %96 = vector.broadcast %95 : vector<1x512xf32> to vector<8x512xf32>
    %97 = arith.mulf %92, %96 : vector<8x512xf32>
    %98 = vector.broadcast %76 : vector<1x512xf32> to vector<8x512xf32>
    %99 = arith.mulf %97, %98 : vector<8x512xf32>
    %100 = vector.broadcast %77 : vector<1x512xf32> to vector<8x512xf32>
    %101 = arith.addf %99, %100 : vector<8x512xf32>
    %cst_35 = arith.constant 0.000000e+00 : f32
    %102 = vector.broadcast %cst_35 : f32 to vector<8x512xf32>
    %103 = arith.maximumf %101, %102 : vector<8x512xf32>
    %c2_i32_36 = arith.constant 2 : i32
    %104 = tpu.memref_slice %arg10[%c2_i32_36] : memref<3x!tpu.dma_semaphore, #tpu.memory_space<semaphore_mem>> -> memref<1x!tpu.dma_semaphore, #tpu.memory_space<semaphore_mem>>
    %105 = tpu.memref_squeeze %104 : memref<1x!tpu.dma_semaphore, #tpu.memory_space<semaphore_mem>> -> memref<!tpu.dma_semaphore, #tpu.memory_space<semaphore_mem>>
    tpu.wait_dma2 semaphore(%105 : memref<!tpu.dma_semaphore, #tpu.memory_space<semaphore_mem>>) src(%arg5 : memref<512x128xbf16, #tpu.memory_space<any>>) dst(%arg9 : memref<512x128xbf16, #tpu.memory_space<vmem>>)
    %106 = arith.truncf %103 : vector<8x512xf32> to vector<8x512xbf16>
    %c0_37 = arith.constant 0 : index
    %c0_38 = arith.constant 0 : index
    %107 = vector.load %arg9[%c0_37, %c0_38] : memref<512x128xbf16, #tpu.memory_space<vmem>>, vector<512x128xbf16>
    %cst_39 = arith.constant dense<0.000000e+00> : vector<8x128xf32>
    %108 = tpu.matmul %106, %107, %cst_39 {dimension_numbers = #tpu.dot_dimension_numbers<[1], [0], [0], [1], [0, 0, 1, 1], [], []>} : vector<8x512xbf16>, vector<512x128xbf16>, vector<8x128xf32> -> vector<8x128xf32>
    %c0_40 = arith.constant 0 : index
    %c7168 = arith.constant 7168 : index
    %109 = vector.load %arg1[%c0_40, %c7168] : memref<1x7296xf32, #tpu.memory_space<vmem>>, vector<1x128xf32>
    %110 = vector.broadcast %109 : vector<1x128xf32> to vector<8x128xf32>
    %111 = arith.addf %108, %110 : vector<8x128xf32>
    %c0_41 = arith.constant 0 : index
    %c0_42 = arith.constant 0 : index
    %112 = vector.load %arg6[%c0_41, %c0_42] : memref<8x128xf32, #tpu.memory_space<vmem>>, vector<8x128xf32>
    tpu.vector_store %arg6[%c0_41, %c0_42], %111 {strides = array<i32>} : memref<8x128xf32, #tpu.memory_space<vmem>>, vector<8x128xf32>,
    return
  }
}

</mosaic_0001>

<llo_original>
// kernel: tpu_custom_call.1
$region0: #{tpu_custom_call.1}
  #allocation0 [shape = 'u32[]', space=smem, size = 0x4, offset = 0x4, fixed_abs, tag = 'smem constant byte address 0x4 - core index']
  #allocation1 [shape = 'u32[144,128]{1,0:T(1,128)}', space=vmem, size = 0x12000, scoped, tag = 'internal scratch']
  #allocation2 [shape = 'bf16[2048,1024]{1,0:T(8,128)(2,1)}', space=vmem, size = 0x400000, scoped, tag = 'scratch operand']
  #allocation3 [shape = 'bf16[1024,512]{1,0:T(8,128)(2,1)}', space=vmem, size = 0x100000, scoped, tag = 'scratch operand']
  #allocation4 [shape = 'bf16[512,128]{1,0:T(8,128)(2,1)}', space=vmem, size = 0x20000, scoped, tag = 'scratch operand']
  #allocation5 [shape = 's32[3]{0}', space=sflag, size = 0xc, scoped, tag = 'scratch operand']
  #allocation12 [shape = 's32[]', space=sflag, size = 0x4, offset = 0, fixed_abs, tag = 'sflag constant byte address 0x0 - dummy sync flag']
  #allocation13 [shape = 's32[]', space=sflag, size = 0x4, offset = 0, fixed_abs, tag = 'sflag constant byte address 0x0 - dummy sync flag']
  #allocation14 [shape = 'u32[]', space=smem, size = 0x4, offset = 0x44, fixed_abs, tag = 'smem constant byte address 0x44 - assertion arg 0']
  #allocation15 [shape = 'u32[]', space=smem, size = 0x4, offset = 0x48, fixed_abs, tag = 'smem constant byte address 0x48 - assertion arg 1']
  #allocation16 [shape = 's32[]', space=sflag, size = 0x4, offset = 0, fixed_abs, tag = 'sflag constant byte address 0x0 - dummy sync flag']
  #allocation17 [shape = 's32[]', space=sflag, size = 0x4, offset = 0, fixed_abs, tag = 'sflag constant byte address 0x0 - dummy sync flag']
  #allocation18 [shape = 's32[]', space=sflag, size = 0x4, offset = 0, fixed_abs, tag = 'sflag constant byte address 0x0 - dummy sync flag']
  #allocation19 [shape = 's32[]', space=sflag, size = 0x4, offset = 0, fixed_abs, tag = 'sflag constant byte address 0x0 - dummy sync flag']
  %s0 = inlined_call_operand.vmem [shape: f32[8,3], index: 0, kind: input, shape index: {}]
  %s1 = inlined_call_operand.hbm [shape: f32[1,7296], index: 1, kind: input, shape index: {}]
  %s2 = inlined_call_operand.hbm [shape: bf16[3,2048], index: 2, kind: input, shape index: {}]
  %s3 = inlined_call_operand.hbm [shape: bf16[2048,1024], index: 3, kind: input, shape index: {}]
  %s4 = inlined_call_operand.hbm [shape: bf16[1024,512], index: 4, kind: input, shape index: {}]
  %s5 = inlined_call_operand.hbm [shape: bf16[512,128], index: 5, kind: input, shape index: {}]
  %s6 = inlined_call_operand.hbm [shape: f32[8,128], index: 6, kind: output, shape index: {}]
  %s7 = sld [smem:[#allocation0]]
  $region42: #{tpu_custom_call.1} parent=0
    _
  %s9 = ssub.s32 1, %s7
  %s10 = scalar_select 0, %s9, %s7
  $region1: #{tpu_custom_call.1} parent=0
    #allocation6 [shape = 'u8[29184]{0}', space=vmem, size = 0x7400, scoped, tag = 'input window, operand 1, single buffered']
    #allocation7 [shape = 's32[1]{0}', space=sflag, size = 0x4, scoped, tag = 'scoped memory for tpu_custom_call.1']
    #allocation8 [shape = 's32[1]{0}', space=sflag, size = 0x4, scoped, tag = 'scoped memory for tpu_custom_call.1']
    #allocation9 [shape = 'u8[16384]{0}', space=vmem, size = 0x4000, scoped, tag = 'input window, operand 2, single buffered']
    #allocation10 [shape = 's32[1]{0}', space=sflag, size = 0x4, scoped, tag = 'scoped memory for tpu_custom_call.1']
    #allocation11 [shape = 'u8[4096]{0}', space=vmem, size = 0x1000, scoped, tag = 'output window, operand 0, single buffered']
    %11 = vsyncpa [#allocation7], 0
    %12 = vsyncpa [#allocation10], 0
    %13 = vsyncpa [#allocation8], 0
    // Predicated region
    $region2: #{tpu_custom_call.1} parent=1 // pred_check
      _
    $region3: #{tpu_custom_call.1} parent=1 // pred_check_branch
      %15 = sbr.rel (0) target = $region5
    $region4: #{tpu_custom_call.1} parent=1 // pred_region
      _
    $region5: #{tpu_custom_call.1} parent=1 // pred_fallthru
      _
    // Predicated region
    $region6: #{tpu_custom_call.1} parent=1 // pred_check
      _
    $region7: #{tpu_custom_call.1} parent=1 // pred_check_branch
      %17 = sbr.rel (0) target = $region9
    $region8: #{tpu_custom_call.1} parent=1 // pred_region
      %s19 = ssub.s32 912, 912
      %20 = vsyncadd [#allocation7], %s19
      %s22 = sshll.u32 [#allocation6], 4
      %s23 = int_to_ptr.vmem [resolvable:$true] %s22
      %25 = dma.hbm_to_vmem [thread:$0]  %s1, 912, %s23, [#allocation7]
    $region9: #{tpu_custom_call.1} parent=1 // pred_fallthru
      _
    // Predicated region
    $region10: #{tpu_custom_call.1} parent=1 // pred_check
      _
    $region11: #{tpu_custom_call.1} parent=1 // pred_check_branch
      %27 = sbr.rel (0) target = $region13
    $region12: #{tpu_custom_call.1} parent=1 // pred_region
      %s29 = ssub.s32 512, 512
      %30 = vsyncadd [#allocation10], %s29
      %s32 = sshll.u32 [#allocation9], 4
      %s33 = int_to_ptr.vmem [resolvable:$true] %s32
      %35 = dma.hbm_to_vmem [thread:$0]  %s2, 512, %s33, [#allocation10]
    $region13: #{tpu_custom_call.1} parent=1 // pred_fallthru
      _
    // Predicated region
    $region14: #{tpu_custom_call.1} parent=1 // pred_check
      _
    $region15: #{tpu_custom_call.1} parent=1 // pred_check_branch
      %37 = sbr.rel (0) target = $region17
    $region16: #{tpu_custom_call.1} parent=1 // pred_region
      %38 = dma.done [#allocation7], 912
    $region17: #{tpu_custom_call.1} parent=1 // pred_fallthru
      _
    // Predicated region
    $region18: #{tpu_custom_call.1} parent=1 // pred_check
      _
    $region19: #{tpu_custom_call.1} parent=1 // pred_check_branch
      %40 = sbr.rel (0) target = $region21
    $region20: #{tpu_custom_call.1} parent=1 // pred_region
      %41 = dma.done [#allocation10], 512
    $region21: #{tpu_custom_call.1} parent=1 // pred_fallthru
      _
    // Predicated region
    $region22: #{tpu_custom_call.1} parent=1 // pred_check
      _
    $region23: #{tpu_custom_call.1} parent=1 // pred_check_branch
      %44 = sbr.rel target = $region25
    $region24: #{tpu_custom_call.1} parent=1 // pred_region
      %45 = sst [smem:[#allocation14]] [#allocation13]
      %46 = sst [smem:[#allocation15]] [#allocation12]
    $region25: #{tpu_custom_call.1} parent=1 // pred_fallthru
      _
    %48 = shalt.err (0)
    %s50 = sshll.u32 [#allocation2], 4
    %s51 = int_to_ptr.vmem [resolvable:$true] %s50
    %53 = dma.hbm_to_vmem [thread:$0]  %s3, 131072, %s51, [#allocation5]
    %s54 = scalar_lea.sflag [#allocation5], 1
    // Predicated region
    $region26: #{tpu_custom_call.1} parent=1 // pred_check
      _
    $region27: #{tpu_custom_call.1} parent=1 // pred_check_branch
      %56 = sbr.rel target = $region29
    $region28: #{tpu_custom_call.1} parent=1 // pred_region
      %57 = sst [smem:[#allocation14]] [#allocation17]
      %58 = sst [smem:[#allocation15]] [#allocation16]
    $region29: #{tpu_custom_call.1} parent=1 // pred_fallthru
      _
    %60 = shalt.err (0)
    %s62 = sshll.u32 [#allocation3], 4
    %s63 = int_to_ptr.vmem [resolvable:$true] %s62
    %65 = dma.hbm_to_vmem [thread:$0]  %s4, 32768, %s63, %s54
    %s66 = scalar_lea.sflag [#allocation5], 2
    // Predicated region
    $region30: #{tpu_custom_call.1} parent=1 // pred_check
      _
    $region31: #{tpu_custom_call.1} parent=1 // pred_check_branch
      %68 = sbr.rel target = $region33
    $region32: #{tpu_custom_call.1} parent=1 // pred_region
      %69 = sst [smem:[#allocation14]] [#allocation19]
      %70 = sst [smem:[#allocation15]] [#allocation18]
    $region33: #{tpu_custom_call.1} parent=1 // pred_fallthru
      _
    %72 = shalt.err (0)
    %s74 = sshll.u32 [#allocation4], 4
    %s75 = int_to_ptr.vmem [resolvable:$true] %s74
    %77 = dma.hbm_to_vmem [thread:$0]  %s5, 4096, %s75, %s66
    %v78 = vld [vmem:[%s0] sm:$0xff]
    %v79 = vpack.c.bf16 %v78, %v78
    %v80 = vld [vmem:[#allocation9] sm:$0xff]
    %v81 = vld [vmem:[#allocation9 + $0x8] sm:$0xff]
    %v82 = vld [vmem:[#allocation9 + $0x10] sm:$0xff]
    %v83 = vld [vmem:[#allocation9 + $0x18] sm:$0xff]
    %v88 = vcombine.high %v80, %v80
    %v90 = vunpack.c.l.s4 1983009808
    %v91 = vunpack.c.0.s8 %v90
    %v92 = vlaneseq
    %v93 = vshrl.u32 %v92, 7
    %v94 = vsub.s32 %v91, %v93
    %v95 = vrot.slane %v80, %v94
    %v97 = vunpack.c.l.s4 1983009808
    %v98 = vunpack.c.0.s8 %v97
    %v99 = vlaneseq
    %v100 = vshrl.u32 %v99, 7
    %v101 = vsub.s32 %v98, %v100
    %v102 = vrot.slane %v88, %v101
    %v103 = vcombine.high %v95, %v95
    %v104 = vcombine.high %v102, %v102
    %v105 = vcombine.high %v81, %v81
    %v107 = vunpack.c.l.s4 1983009808
    %v108 = vunpack.c.0.s8 %v107
    %v109 = vlaneseq
    %v110 = vshrl.u32 %v109, 7
    %v111 = vsub.s32 %v108, %v110
    %v112 = vrot.slane %v81, %v111
    %v114 = vunpack.c.l.s4 1983009808
    %v115 = vunpack.c.0.s8 %v114
    %v116 = vlaneseq
    %v117 = vshrl.u32 %v116, 7
    %v118 = vsub.s32 %v115, %v117
    %v119 = vrot.slane %v105, %v118
    %v120 = vcombine.high %v112, %v112
    %v121 = vcombine.high %v119, %v119
    %v122 = vcombine.high %v82, %v82
    %v124 = vunpack.c.l.s4 1983009808
    %v125 = vunpack.c.0.s8 %v124
    %v126 = vlaneseq
    %v127 = vshrl.u32 %v126, 7
    %v128 = vsub.s32 %v125, %v127
    %v129 = vrot.slane %v82, %v128
    %v131 = vunpack.c.l.s4 1983009808
    %v132 = vunpack.c.0.s8 %v131
    %v133 = vlaneseq
    %v134 = vshrl.u32 %v133, 7
    %v135 = vsub.s32 %v132, %v134
    %v136 = vrot.slane %v122, %v135
    %v137 = vcombine.high %v129, %v129
    %v138 = vcombine.high %v136, %v136
    %v139 = vcombine.high %v83, %v83
    %v141 = vunpack.c.l.s4 1983009808
    %v142 = vunpack.c.0.s8 %v141
    %v143 = vlaneseq
    %v144 = vshrl.u32 %v143, 7
    %v145 = vsub.s32 %v142, %v144
    %v146 = vrot.slane %v83, %v145
    %v148 = vunpack.c.l.s4 1983009808
    %v149 = vunpack.c.0.s8 %v148
    %v150 = vlaneseq
    %v151 = vshrl.u32 %v150, 7
    %v152 = vsub.s32 %v149, %v151
    %v153 = vrot.slane %v139, %v152
    %v154 = vcombine.high %v146, %v146
    %v155 = vcombine.high %v153, %v153
    %vm156 = vcmask 23552
    %v158 = vsel %vm156, %v79, 0
    %vm160 = vcmask 1040384
    %vm161 = vcmask 1041408
    %v162 = vsel %vm160, 4294967295, 65535
    %v163 = vsel %vm161, %v162, 0
    %v165 = vand.u32 %v95, %v163
    %v168 = vand.u32 %v103, %v163
    %v171 = vand.u32 %v102, %v163
    %v174 = vand.u32 %v104, %v163
    %v177 = vand.u32 %v112, %v163
    %v180 = vand.u32 %v120, %v163
    %v183 = vand.u32 %v119, %v163
    %v186 = vand.u32 %v121, %v163
    %v189 = vand.u32 %v129, %v163
    %v192 = vand.u32 %v137, %v163
    %v195 = vand.u32 %v136, %v163
    %v198 = vand.u32 %v138, %v163
    %v201 = vand.u32 %v146, %v163
    %v204 = vand.u32 %v154, %v163
    %v207 = vand.u32 %v153, %v163
    %v210 = vand.u32 %v155, %v163
    %212 = vmatprep.subr.bf16.mxu0 0
    %213 = vmatpush1.bf16.msra.mxu0 0
    %214 = vmatprep.subr.bf16.mxu0 0
    %215 = vmatpush1.bf16.msra.mxu0 0
    %216 = vmatprep.subr.bf16.mxu0 0
    %217 = vmatpush1.bf16.msra.mxu0 0
    %218 = vmatprep.subr.bf16.mxu0 0
    %219 = vmatpush1.bf16.msra.mxu0 0
    %220 = vmatprep.subr.bf16.mxu0 0
    %221 = vmatpush1.bf16.msra.mxu0 0
    %222 = vmatprep.subr.bf16.mxu0 0
    %223 = vmatpush1.bf16.msra.mxu0 0
    %224 = vmatprep.subr.bf16.mxu0 0
    %225 = vmatpush1.bf16.msra.mxu0 0
    %226 = vmatprep.subr.bf16.mxu0 %v168
    %227 = vmatpush1.bf16.msra.mxu0 %v165
    %228 = vmatprep.subr.bf16.mxu0 0
    %229 = vmatpush2.bf16.msra.mxu0 0
    %230 = vmatprep.subr.bf16.mxu0 0
    %231 = vmatpush2.bf16.msra.mxu0 0
    %232 = vmatprep.subr.bf16.mxu0 0
    %233 = vmatpush2.bf16.msra.mxu0 0
    %234 = vmatprep.subr.bf16.mxu0 0
    %235 = vmatpush2.bf16.msra.mxu0 0
    %236 = vmatprep.subr.bf16.mxu0 0
    %237 = vmatpush2.bf16.msra.mxu0 0
    %238 = vmatprep.subr.bf16.mxu0 0
    %239 = vmatpush2.bf16.msra.mxu0 0
    %240 = vmatprep.subr.bf16.mxu0 0
    %241 = vmatpush2.bf16.msra.mxu0 0
    %242 = vmatprep.subr.bf16.mxu0 0
    %243 = vmatpush2.bf16.msra.mxu0 0
    %244 = vmatprep.mubr.bf16.mxu0 0
    %245 = vmatmul.mubr.bf16.gmra.mxu0 %v158
    %v246 = vpop.f32.mrf.mxu0
    %v247 = vadd.f32 0.0, %v246
    %v248 = vpop.f32.mrf.mxu0
    %v249 = vadd.f32 0.0, %v248
    %v250 = vpop.f32.mrf.mxu0
    %v251 = vpop.f32.mrf.mxu0
    %252 = vdwg.mxu0
    %253 = vmatprep.subr.bf16.mxu0 0
    %254 = vmatpush1.bf16.msra.mxu0 0
    %255 = vmatprep.subr.bf16.mxu0 0
    %256 = vmatpush1.bf16.msra.mxu0 0
    %257 = vmatprep.subr.bf16.mxu0 0
    %258 = vmatpush1.bf16.msra.mxu0 0
    %259 = vmatprep.subr.bf16.mxu0 0
    %260 = vmatpush1.bf16.msra.mxu0 0
    %261 = vmatprep.subr.bf16.mxu0 0
    %262 = vmatpush1.bf16.msra.mxu0 0
    %263 = vmatprep.subr.bf16.mxu0 0
    %264 = vmatpush1.bf16.msra.mxu0 0
    %265 = vmatprep.subr.bf16.mxu0 0
    %266 = vmatpush1.bf16.msra.mxu0 0
    %267 = vmatprep.subr.bf16.mxu0 %v174
    %268 = vmatpush1.bf16.msra.mxu0 %v171
    %269 = vmatprep.subr.bf16.mxu0 0
    %270 = vmatpush2.bf16.msra.mxu0 0
    %271 = vmatprep.subr.bf16.mxu0 0
    %272 = vmatpush2.bf16.msra.mxu0 0
    %273 = vmatprep.subr.bf16.mxu0 0
    %274 = vmatpush2.bf16.msra.mxu0 0
    %275 = vmatprep.subr.bf16.mxu0 0
    %276 = vmatpush2.bf16.msra.mxu0 0
    %277 = vmatprep.subr.bf16.mxu0 0
    %278 = vmatpush2.bf16.msra.mxu0 0
    %279 = vmatprep.subr.bf16.mxu0 0
    %280 = vmatpush2.bf16.msra.mxu0 0
    %281 = vmatprep.subr.bf16.mxu0 0
    %282 = vmatpush2.bf16.msra.mxu0 0
    %283 = vmatprep.subr.bf16.mxu0 0
    %284 = vmatpush2.bf16.msra.mxu0 0
    %285 = vmatprep.mubr.bf16.mxu0 0
    %286 = vmatmul.mubr.bf16.gmra.mxu0 %v158
    %v287 = vpop.f32.mrf.mxu0
    %v288 = vadd.f32 0.0, %v287
    %v289 = vpop.f32.mrf.mxu0
    %v290 = vadd.f32 0.0, %v289
    %v291 = vpop.f32.mrf.mxu0
    %v292 = vpop.f32.mrf.mxu0
    %293 = vdwg.mxu0
    %294 = vmatprep.subr.bf16.mxu0 0
    %295 = vmatpush1.bf16.msra.mxu0 0
    %296 = vmatprep.subr.bf16.mxu0 0
    %297 = vmatpush1.bf16.msra.mxu0 0
    %298 = vmatprep.subr.bf16.mxu0 0
    %299 = vmatpush1.bf16.msra.mxu0 0
    %300 = vmatprep.subr.bf16.mxu0 0
    %301 = vmatpush1.bf16.msra.mxu0 0
    %302 = vmatprep.subr.bf16.mxu0 0
    %303 = vmatpush1.bf16.msra.mxu0 0
    %304 = vmatprep.subr.bf16.mxu0 0
    %305 = vmatpush1.bf16.msra.mxu0 0
    %306 = vmatprep.subr.bf16.mxu0 0
    %307 = vmatpush1.bf16.msra.mxu0 0
    %308 = vmatprep.subr.bf16.mxu0 %v180
    %309 = vmatpush1.bf16.msra.mxu0 %v177
    %310 = vmatprep.subr.bf16.mxu0 0
    %311 = vmatpush2.bf16.msra.mxu0 0
    %312 = vmatprep.subr.bf16.mxu0 0
    %313 = vmatpush2.bf16.msra.mxu0 0
    %314 = vmatprep.subr.bf16.mxu0 0
    %315 = vmatpush2.bf16.msra.mxu0 0
    %316 = vmatprep.subr.bf16.mxu0 0
    %317 = vmatpush2.bf16.msra.mxu0 0
    %318 = vmatprep.subr.bf16.mxu0 0
    %319 = vmatpush2.bf16.msra.mxu0 0
    %320 = vmatprep.subr.bf16.mxu0 0
    %321 = vmatpush2.bf16.msra.mxu0 0
    %322 = vmatprep.subr.bf16.mxu0 0
    %323 = vmatpush2.bf16.msra.mxu0 0
    %324 = vmatprep.subr.bf16.mxu0 0
    %325 = vmatpush2.bf16.msra.mxu0 0
    %326 = vmatprep.mubr.bf16.mxu0 0
    %327 = vmatmul.mubr.bf16.gmra.mxu0 %v158
    %v328 = vpop.f32.mrf.mxu0
    %v329 = vadd.f32 0.0, %v328
    %v330 = vpop.f32.mrf.mxu0
    %v331 = vadd.f32 0.0, %v330
    %v332 = vpop.f32.mrf.mxu0
    %v333 = vpop.f32.mrf.mxu0
    %334 = vdwg.mxu0
    %335 = vmatprep.subr.bf16.mxu0 0
    %336 = vmatpush1.bf16.msra.mxu0 0
    %337 = vmatprep.subr.bf16.mxu0 0
    %338 = vmatpush1.bf16.msra.mxu0 0
    %339 = vmatprep.subr.bf16.mxu0 0
    %340 = vmatpush1.bf16.msra.mxu0 0
    %341 = vmatprep.subr.bf16.mxu0 0
    %342 = vmatpush1.bf16.msra.mxu0 0
    %343 = vmatprep.subr.bf16.mxu0 0
    %344 = vmatpush1.bf16.msra.mxu0 0
    %345 = vmatprep.subr.bf16.mxu0 0
    %346 = vmatpush1.bf16.msra.mxu0 0
    %347 = vmatprep.subr.bf16.mxu0 0
    %348 = vmatpush1.bf16.msra.mxu0 0
    %349 = vmatprep.subr.bf16.mxu0 %v186
    %350 = vmatpush1.bf16.msra.mxu0 %v183
    %351 = vmatprep.subr.bf16.mxu0 0
    %352 = vmatpush2.bf16.msra.mxu0 0
    %353 = vmatprep.subr.bf16.mxu0 0
    %354 = vmatpush2.bf16.msra.mxu0 0
    %355 = vmatprep.subr.bf16.mxu0 0
    %356 = vmatpush2.bf16.msra.mxu0 0
    %357 = vmatprep.subr.bf16.mxu0 0
    %358 = vmatpush2.bf16.msra.mxu0 0
    %359 = vmatprep.subr.bf16.mxu0 0
    %360 = vmatpush2.bf16.msra.mxu0 0
    %361 = vmatprep.subr.bf16.mxu0 0
    %362 = vmatpush2.bf16.msra.mxu0 0
    %363 = vmatprep.subr.bf16.mxu0 0
    %364 = vmatpush2.bf16.msra.mxu0 0
    %365 = vmatprep.subr.bf16.mxu0 0
    %366 = vmatpush2.bf16.msra.mxu0 0
    %367 = vmatprep.mubr.bf16.mxu0 0
    %368 = vmatmul.mubr.bf16.gmra.mxu0 %v158
    %v369 = vpop.f32.mrf.mxu0
    %v370 = vadd.f32 0.0, %v369
    %v371 = vpop.f32.mrf.mxu0
    %v372 = vadd.f32 0.0, %v371
    %v373 = vpop.f32.mrf.mxu0
    %v374 = vpop.f32.mrf.mxu0
    %375 = vdwg.mxu0
    %376 = vmatprep.subr.bf16.mxu0 0
    %377 = vmatpush1.bf16.msra.mxu0 0
    %378 = vmatprep.subr.bf16.mxu0 0
    %379 = vmatpush1.bf16.msra.mxu0 0
    %380 = vmatprep.subr.bf16.mxu0 0
    %381 = vmatpush1.bf16.msra.mxu0 0
    %382 = vmatprep.subr.bf16.mxu0 0
    %383 = vmatpush1.bf16.msra.mxu0 0
    %384 = vmatprep.subr.bf16.mxu0 0
    %385 = vmatpush1.bf16.msra.mxu0 0
    %386 = vmatprep.subr.bf16.mxu0 0
    %387 = vmatpush1.bf16.msra.mxu0 0
    %388 = vmatprep.subr.bf16.mxu0 0
    %389 = vmatpush1.bf16.msra.mxu0 0
    %390 = vmatprep.subr.bf16.mxu0 %v192
    %391 = vmatpush1.bf16.msra.mxu0 %v189
    %392 = vmatprep.subr.bf16.mxu0 0
    %393 = vmatpush2.bf16.msra.mxu0 0
    %394 = vmatprep.subr.bf16.mxu0 0
    %395 = vmatpush2.bf16.msra.mxu0 0
    %396 = vmatprep.subr.bf16.mxu0 0
    %397 = vmatpush2.bf16.msra.mxu0 0
    %398 = vmatprep.subr.bf16.mxu0 0
    %399 = vmatpush2.bf16.msra.mxu0 0
    %400 = vmatprep.subr.bf16.mxu0 0
    %401 = vmatpush2.bf16.msra.mxu0 0
    %402 = vmatprep.subr.bf16.mxu0 0
    %403 = vmatpush2.bf16.msra.mxu0 0
    %404 = vmatprep.subr.bf16.mxu0 0
    %405 = vmatpush2.bf16.msra.mxu0 0
    %406 = vmatprep.subr.bf16.mxu0 0
    %407 = vmatpush2.bf16.msra.mxu0 0
    %408 = vmatprep.mubr.bf16.mxu0 0
    %409 = vmatmul.mubr.bf16.gmra.mxu0 %v158
    %v410 = vpop.f32.mrf.mxu0
    %v411 = vadd.f32 0.0, %v410
    %v412 = vpop.f32.mrf.mxu0
    %v413 = vadd.f32 0.0, %v412
    %v414 = vpop.f32.mrf.mxu0
    %v415 = vpop.f32.mrf.mxu0
    %416 = vdwg.mxu0
    %417 = vmatprep.subr.bf16.mxu0 0
    %418 = vmatpush1.bf16.msra.mxu0 0
    %419 = vmatprep.subr.bf16.mxu0 0
    %420 = vmatpush1.bf16.msra.mxu0 0
    %421 = vmatprep.subr.bf16.mxu0 0
    %422 = vmatpush1.bf16.msra.mxu0 0
    %423 = vmatprep.subr.bf16.mxu0 0
    %424 = vmatpush1.bf16.msra.mxu0 0
    %425 = vmatprep.subr.bf16.mxu0 0
    %426 = vmatpush1.bf16.msra.mxu0 0
    %427 = vmatprep.subr.bf16.mxu0 0
    %428 = vmatpush1.bf16.msra.mxu0 0
    %429 = vmatprep.subr.bf16.mxu0 0
    %430 = vmatpush1.bf16.msra.mxu0 0
    %431 = vmatprep.subr.bf16.mxu0 %v198
    %432 = vmatpush1.bf16.msra.mxu0 %v195
    %433 = vmatprep.subr.bf16.mxu0 0
    %434 = vmatpush2.bf16.msra.mxu0 0
    %435 = vmatprep.subr.bf16.mxu0 0
    %436 = vmatpush2.bf16.msra.mxu0 0
    %437 = vmatprep.subr.bf16.mxu0 0
    %438 = vmatpush2.bf16.msra.mxu0 0
    %439 = vmatprep.subr.bf16.mxu0 0
    %440 = vmatpush2.bf16.msra.mxu0 0
    %441 = vmatprep.subr.bf16.mxu0 0
    %442 = vmatpush2.bf16.msra.mxu0 0
    %443 = vmatprep.subr.bf16.mxu0 0
    %444 = vmatpush2.bf16.msra.mxu0 0
    %445 = vmatprep.subr.bf16.mxu0 0
    %446 = vmatpush2.bf16.msra.mxu0 0
    %447 = vmatprep.subr.bf16.mxu0 0
    %448 = vmatpush2.bf16.msra.mxu0 0
    %449 = vmatprep.mubr.bf16.mxu0 0
    %450 = vmatmul.mubr.bf16.gmra.mxu0 %v158
    %v451 = vpop.f32.mrf.mxu0
    %v452 = vadd.f32 0.0, %v451
    %v453 = vpop.f32.mrf.mxu0
    %v454 = vadd.f32 0.0, %v453
    %v455 = vpop.f32.mrf.mxu0
    %v456 = vpop.f32.mrf.mxu0
    %457 = vdwg.mxu0
    %458 = vmatprep.subr.bf16.mxu0 0
    %459 = vmatpush1.bf16.msra.mxu0 0
    %460 = vmatprep.subr.bf16.mxu0 0
    %461 = vmatpush1.bf16.msra.mxu0 0
    %462 = vmatprep.subr.bf16.mxu0 0
    %463 = vmatpush1.bf16.msra.mxu0 0
    %464 = vmatprep.subr.bf16.mxu0 0
    %465 = vmatpush1.bf16.msra.mxu0 0
    %466 = vmatprep.subr.bf16.mxu0 0
    %467 = vmatpush1.bf16.msra.mxu0 0
    %468 = vmatprep.subr.bf16.mxu0 0
    %469 = vmatpush1.bf16.msra.mxu0 0
    %470 = vmatprep.subr.bf16.mxu0 0
    %471 = vmatpush1.bf16.msra.mxu0 0
    %472 = vmatprep.subr.bf16.mxu0 %v204
    %473 = vmatpush1.bf16.msra.mxu0 %v201
    %474 = vmatprep.subr.bf16.mxu0 0
    %475 = vmatpush2.bf16.msra.mxu0 0
    %476 = vmatprep.subr.bf16.mxu0 0
    %477 = vmatpush2.bf16.msra.mxu0 0
    %478 = vmatprep.subr.bf16.mxu0 0
    %479 = vmatpush2.bf16.msra.mxu0 0
    %480 = vmatprep.subr.bf16.mxu0 0
    %481 = vmatpush2.bf16.msra.mxu0 0
    %482 = vmatprep.subr.bf16.mxu0 0
    %483 = vmatpush2.bf16.msra.mxu0 0
    %484 = vmatprep.subr.bf16.mxu0 0
    %485 = vmatpush2.bf16.msra.mxu0 0
    %486 = vmatprep.subr.bf16.mxu0 0
    %487 = vmatpush2.bf16.msra.mxu0 0
    %488 = vmatprep.subr.bf16.mxu0 0
    %489 = vmatpush2.bf16.msra.mxu0 0
    %490 = vmatprep.mubr.bf16.mxu0 0
    %491 = vmatmul.mubr.bf16.gmra.mxu0 %v158
    %v492 = vpop.f32.mrf.mxu0
    %v493 = vadd.f32 0.0, %v492
    %v494 = vpop.f32.mrf.mxu0
    %v495 = vadd.f32 0.0, %v494
    %v496 = vpop.f32.mrf.mxu0
    %v497 = vpop.f32.mrf.mxu0
    %498 = vdwg.mxu0
    %499 = vmatprep.subr.bf16.mxu0 0
    %500 = vmatpush1.bf16.msra.mxu0 0
    %501 = vmatprep.subr.bf16.mxu0 0
    %502 = vmatpush1.bf16.msra.mxu0 0
    %503 = vmatprep.subr.bf16.mxu0 0
    %504 = vmatpush1.bf16.msra.mxu0 0
    %505 = vmatprep.subr.bf16.mxu0 0
    %506 = vmatpush1.bf16.msra.mxu0 0
    %507 = vmatprep.subr.bf16.mxu0 0
    %508 = vmatpush1.bf16.msra.mxu0 0
    %509 = vmatprep.subr.bf16.mxu0 0
    %510 = vmatpush1.bf16.msra.mxu0 0
    %511 = vmatprep.subr.bf16.mxu0 0
    %512 = vmatpush1.bf16.msra.mxu0 0
    %513 = vmatprep.subr.bf16.mxu0 %v210
    %514 = vmatpush1.bf16.msra.mxu0 %v207
    %515 = vmatprep.subr.bf16.mxu0 0
    %516 = vmatpush2.bf16.msra.mxu0 0
    %517 = vmatprep.subr.bf16.mxu0 0
    %518 = vmatpush2.bf16.msra.mxu0 0
    %519 = vmatprep.subr.bf16.mxu0 0
    %520 = vmatpush2.bf16.msra.mxu0 0
    %521 = vmatprep.subr.bf16.mxu0 0
    %522 = vmatpush2.bf16.msra.mxu0 0
    %523 = vmatprep.subr.bf16.mxu0 0
    %524 = vmatpush2.bf16.msra.mxu0 0
    %525 = vmatprep.subr.bf16.mxu0 0
    %526 = vmatpush2.bf16.msra.mxu0 0
    %527 = vmatprep.subr.bf16.mxu0 0
    %528 = vmatpush2.bf16.msra.mxu0 0
    %529 = vmatprep.subr.bf16.mxu0 0
    %530 = vmatpush2.bf16.msra.mxu0 0
    %531 = vmatprep.mubr.bf16.mxu0 0
    %532 = vmatmul.mubr.bf16.gmra.mxu0 %v158
    %v533 = vpop.f32.mrf.mxu0
    %v534 = vadd.f32 0.0, %v533
    %v535 = vpop.f32.mrf.mxu0
    %v536 = vadd.f32 0.0, %v535
    %v537 = vpop.f32.mrf.mxu0
    %v538 = vpop.f32.mrf.mxu0
    %539 = vdwg.mxu0
    %v540 = vld [vmem:[#allocation6] sm:$0xff]
    %v541 = vld [vmem:[#allocation6 + $0x8] sm:$0xff]
    %v542 = vld [vmem:[#allocation6 + $0x10] sm:$0xff]
    %v543 = vld [vmem:[#allocation6 + $0x18] sm:$0xff]
    %v544 = vrot.slane %v247, 4
    %v545 = vadd.f32 %v247, %v544
    %v546 = vrot.slane %v545, 2
    %v547 = vadd.f32 %v545, %v546
    %v548 = vrot.slane %v547, 1
    %v549 = vadd.f32 %v547, %v548
    %v550 = vrot.slane %v249, 4
    %v551 = vadd.f32 %v249, %v550
    %v552 = vrot.slane %v551, 2
    %v553 = vadd.f32 %v551, %v552
    %v554 = vrot.slane %v553, 1
    %v555 = vadd.f32 %v553, %v554
    %v556 = vrot.slane %v288, 4
    %v557 = vadd.f32 %v288, %v556
    %v558 = vrot.slane %v557, 2
    %v559 = vadd.f32 %v557, %v558
    %v560 = vrot.slane %v559, 1
    %v561 = vadd.f32 %v559, %v560
    %v562 = vrot.slane %v290, 4
    %v563 = vadd.f32 %v290, %v562
    %v564 = vrot.slane %v563, 2
    %v565 = vadd.f32 %v563, %v564
    %v566 = vrot.slane %v565, 1
    %v567 = vadd.f32 %v565, %v566
    %v568 = vrot.slane %v329, 4
    %v569 = vadd.f32 %v329, %v568
    %v570 = vrot.slane %v569, 2
    %v571 = vadd.f32 %v569, %v570
    %v572 = vrot.slane %v571, 1
    %v573 = vadd.f32 %v571, %v572
    %v574 = vrot.slane %v331, 4
    %v575 = vadd.f32 %v331, %v574
    %v576 = vrot.slane %v575, 2
    %v577 = vadd.f32 %v575, %v576
    %v578 = vrot.slane %v577, 1
    %v579 = vadd.f32 %v577, %v578
    %v580 = vrot.slane %v370, 4
    %v581 = vadd.f32 %v370, %v580
    %v582 = vrot.slane %v581, 2
    %v583 = vadd.f32 %v581, %v582
    %v584 = vrot.slane %v583, 1
    %v585 = vadd.f32 %v583, %v584
    %v586 = vrot.slane %v372, 4
    %v587 = vadd.f32 %v372, %v586
    %v588 = vrot.slane %v587, 2
    %v589 = vadd.f32 %v587, %v588
    %v590 = vrot.slane %v589, 1
    %v591 = vadd.f32 %v589, %v590
    %v592 = vrot.slane %v411, 4
    %v593 = vadd.f32 %v411, %v592
    %v594 = vrot.slane %v593, 2
    %v595 = vadd.f32 %v593, %v594
    %v596 = vrot.slane %v595, 1
    %v597 = vadd.f32 %v595, %v596
    %v598 = vrot.slane %v413, 4
    %v599 = vadd.f32 %v413, %v598
    %v600 = vrot.slane %v599, 2
    %v601 = vadd.f32 %v599, %v600
    %v602 = vrot.slane %v601, 1
    %v603 = vadd.f32 %v601, %v602
    %v604 = vrot.slane %v452, 4
    %v605 = vadd.f32 %v452, %v604
    %v606 = vrot.slane %v605, 2
    %v607 = vadd.f32 %v605, %v606
    %v608 = vrot.slane %v607, 1
    %v609 = vadd.f32 %v607, %v608
    %v610 = vrot.slane %v454, 4
    %v611 = vadd.f32 %v454, %v610
    %v612 = vrot.slane %v611, 2
    %v613 = vadd.f32 %v611, %v612
    %v614 = vrot.slane %v613, 1
    %v615 = vadd.f32 %v613, %v614
    %v616 = vrot.slane %v493, 4
    %v617 = vadd.f32 %v493, %v616
    %v618 = vrot.slane %v617, 2
    %v619 = vadd.f32 %v617, %v618
    %v620 = vrot.slane %v619, 1
    %v621 = vadd.f32 %v619, %v620
    %v622 = vrot.slane %v495, 4
    %v623 = vadd.f32 %v495, %v622
    %v624 = vrot.slane %v623, 2
    %v625 = vadd.f32 %v623, %v624
    %v626 = vrot.slane %v625, 1
    %v627 = vadd.f32 %v625, %v626
    %v628 = vrot.slane %v534, 4
    %v629 = vadd.f32 %v534, %v628
    %v630 = vrot.slane %v629, 2
    %v631 = vadd.f32 %v629, %v630
    %v632 = vrot.slane %v631, 1
    %v633 = vadd.f32 %v631, %v632
    %v634 = vrot.slane %v536, 4
    %v635 = vadd.f32 %v536, %v634
    %v636 = vrot.slane %v635, 2
    %v637 = vadd.f32 %v635, %v636
    %v638 = vrot.slane %v637, 1
    %v639 = vadd.f32 %v637, %v638
    %v640 = vrcp.pop 8.0
    %v641 = vmul.f32 %v549, %v640
    %v642 = vmul.f32 %v555, %v640
    %v643 = vmul.f32 %v561, %v640
    %v644 = vmul.f32 %v567, %v640
    %v645 = vmul.f32 %v573, %v640
    %v646 = vmul.f32 %v579, %v640
    %v647 = vmul.f32 %v585, %v640
    %v648 = vmul.f32 %v591, %v640
    %v649 = vmul.f32 %v597, %v640
    %v650 = vmul.f32 %v603, %v640
    %v651 = vmul.f32 %v609, %v640
    %v652 = vmul.f32 %v615, %v640
    %v653 = vmul.f32 %v621, %v640
    %v654 = vmul.f32 %v627, %v640
    %v655 = vmul.f32 %v633, %v640
    %v656 = vmul.f32 %v639, %v640
    %v657 = vsub.f32 %v247, %v641
    %v658 = vsub.f32 %v249, %v642
    %v659 = vsub.f32 %v288, %v643
    %v660 = vsub.f32 %v290, %v644
    %v661 = vsub.f32 %v329, %v645
    %v662 = vsub.f32 %v331, %v646
    %v663 = vsub.f32 %v370, %v647
    %v664 = vsub.f32 %v372, %v648
    %v665 = vsub.f32 %v411, %v649
    %v666 = vsub.f32 %v413, %v650
    %v667 = vsub.f32 %v452, %v651
    %v668 = vsub.f32 %v454, %v652
    %v669 = vsub.f32 %v493, %v653
    %v670 = vsub.f32 %v495, %v654
    %v671 = vsub.f32 %v534, %v655
    %v672 = vsub.f32 %v536, %v656
    %v673 = vmul.f32 %v657, %v657
    %v674 = vmul.f32 %v658, %v658
    %v675 = vmul.f32 %v659, %v659
    %v676 = vmul.f32 %v660, %v660
    %v677 = vmul.f32 %v661, %v661
    %v678 = vmul.f32 %v662, %v662
    %v679 = vmul.f32 %v663, %v663
    %v680 = vmul.f32 %v664, %v664
    %v681 = vmul.f32 %v665, %v665
    %v682 = vmul.f32 %v666, %v666
    %v683 = vmul.f32 %v667, %v667
    %v684 = vmul.f32 %v668, %v668
    %v685 = vmul.f32 %v669, %v669
    %v686 = vmul.f32 %v670, %v670
    %v687 = vmul.f32 %v671, %v671
    %v688 = vmul.f32 %v672, %v672
    %v689 = vrot.slane %v673, 4
    %v690 = vadd.f32 %v673, %v689
    %v691 = vrot.slane %v690, 2
    %v692 = vadd.f32 %v690, %v691
    %v693 = vrot.slane %v692, 1
    %v694 = vadd.f32 %v692, %v693
    %v695 = vrot.slane %v674, 4
    %v696 = vadd.f32 %v674, %v695
    %v697 = vrot.slane %v696, 2
    %v698 = vadd.f32 %v696, %v697
    %v699 = vrot.slane %v698, 1
    %v700 = vadd.f32 %v698, %v699
    %v701 = vrot.slane %v675, 4
    %v702 = vadd.f32 %v675, %v701
    %v703 = vrot.slane %v702, 2
    %v704 = vadd.f32 %v702, %v703
    %v705 = vrot.slane %v704, 1
    %v706 = vadd.f32 %v704, %v705
    %v707 = vrot.slane %v676, 4
    %v708 = vadd.f32 %v676, %v707
    %v709 = vrot.slane %v708, 2
    %v710 = vadd.f32 %v708, %v709
    %v711 = vrot.slane %v710, 1
    %v712 = vadd.f32 %v710, %v711
    %v713 = vrot.slane %v677, 4
    %v714 = vadd.f32 %v677, %v713
    %v715 = vrot.slane %v714, 2
    %v716 = vadd.f32 %v714, %v715
    %v717 = vrot.slane %v716, 1
    %v718 = vadd.f32 %v716, %v717
    %v719 = vrot.slane %v678, 4
    %v720 = vadd.f32 %v678, %v719
    %v721 = vrot.slane %v720, 2
    %v722 = vadd.f32 %v720, %v721
    %v723 = vrot.slane %v722, 1
    %v724 = vadd.f32 %v722, %v723
    %v725 = vrot.slane %v679, 4
    %v726 = vadd.f32 %v679, %v725
    %v727 = vrot.slane %v726, 2
    %v728 = vadd.f32 %v726, %v727
    %v729 = vrot.slane %v728, 1
    %v730 = vadd.f32 %v728, %v729
    %v731 = vrot.slane %v680, 4
    %v732 = vadd.f32 %v680, %v731
    %v733 = vrot.slane %v732, 2
    %v734 = vadd.f32 %v732, %v733
    %v735 = vrot.slane %v734, 1
    %v736 = vadd.f32 %v734, %v735
    %v737 = vrot.slane %v681, 4
    %v738 = vadd.f32 %v681, %v737
    %v739 = vrot.slane %v738, 2
    %v740 = vadd.f32 %v738, %v739
    %v741 = vrot.slane %v740, 1
    %v742 = vadd.f32 %v740, %v741
    %v743 = vrot.slane %v682, 4
    %v744 = vadd.f32 %v682, %v743
    %v745 = vrot.slane %v744, 2
    %v746 = vadd.f32 %v744, %v745
    %v747 = vrot.slane %v746, 1
    %v748 = vadd.f32 %v746, %v747
    %v749 = vrot.slane %v683, 4
    %v750 = vadd.f32 %v683, %v749
    %v751 = vrot.slane %v750, 2
    %v752 = vadd.f32 %v750, %v751
    %v753 = vrot.slane %v752, 1
    %v754 = vadd.f32 %v752, %v753
    %v755 = vrot.slane %v684, 4
    %v756 = vadd.f32 %v684, %v755
    %v757 = vrot.slane %v756, 2
    %v758 = vadd.f32 %v756, %v757
    %v759 = vrot.slane %v758, 1
    %v760 = vadd.f32 %v758, %v759
    %v761 = vrot.slane %v685, 4
    %v762 = vadd.f32 %v685, %v761
    %v763 = vrot.slane %v762, 2
    %v764 = vadd.f32 %v762, %v763
    %v765 = vrot.slane %v764, 1
    %v766 = vadd.f32 %v764, %v765
    %v767 = vrot.slane %v686, 4
    %v768 = vadd.f32 %v686, %v767
    %v769 = vrot.slane %v768, 2
    %v770 = vadd.f32 %v768, %v769
    %v771 = vrot.slane %v770, 1
    %v772 = vadd.f32 %v770, %v771
    %v773 = vrot.slane %v687, 4
    %v774 = vadd.f32 %v687, %v773
    %v775 = vrot.slane %v774, 2
    %v776 = vadd.f32 %v774, %v775
    %v777 = vrot.slane %v776, 1
    %v778 = vadd.f32 %v776, %v777
    %v779 = vrot.slane %v688, 4
    %v780 = vadd.f32 %v688, %v779
    %v781 = vrot.slane %v780, 2
    %v782 = vadd.f32 %v780, %v781
    %v783 = vrot.slane %v782, 1
    %v784 = vadd.f32 %v782, %v783
    %v785 = vmul.f32 %v694, %v640
    %v786 = vmul.f32 %v700, %v640
    %v787 = vmul.f32 %v706, %v640
    %v788 = vmul.f32 %v712, %v640
    %v789 = vmul.f32 %v718, %v640
    %v790 = vmul.f32 %v724, %v640
    %v791 = vmul.f32 %v730, %v640
    %v792 = vmul.f32 %v736, %v640
    %v793 = vmul.f32 %v742, %v640
    %v794 = vmul.f32 %v748, %v640
    %v795 = vmul.f32 %v754, %v640
    %v796 = vmul.f32 %v760, %v640
    %v797 = vmul.f32 %v766, %v640
    %v798 = vmul.f32 %v772, %v640
    %v799 = vmul.f32 %v778, %v640
    %v800 = vmul.f32 %v784, %v640
    %v801 = vadd.f32 %v785, 1e-05
    %v802 = vadd.f32 %v786, 1e-05
    %v803 = vadd.f32 %v787, 1e-05
    %v804 = vadd.f32 %v788, 1e-05
    %v805 = vadd.f32 %v789, 1e-05
    %v806 = vadd.f32 %v790, 1e-05
    %v807 = vadd.f32 %v791, 1e-05
    %v808 = vadd.f32 %v792, 1e-05
    %v809 = vadd.f32 %v793, 1e-05
    %v810 = vadd.f32 %v794, 1e-05
    %v811 = vadd.f32 %v795, 1e-05
    %v812 = vadd.f32 %v796, 1e-05
    %v813 = vadd.f32 %v797, 1e-05
    %v814 = vadd.f32 %v798, 1e-05
    %v815 = vadd.f32 %v799, 1e-05
    %v816 = vadd.f32 %v800, 1e-05
    %v817 = vrsqrt.pop %v801
    %v818 = vrsqrt.pop %v802
    %v819 = vrsqrt.pop %v803
    %v820 = vrsqrt.pop %v804
    %v821 = vrsqrt.pop %v805
    %v822 = vrsqrt.pop %v806
    %v823 = vrsqrt.pop %v807
    %v824 = vrsqrt.pop %v808
    %v825 = vrsqrt.pop %v809
    %v826 = vrsqrt.pop %v810
    %v827 = vrsqrt.pop %v811
    %v828 = vrsqrt.pop %v812
    %v829 = vrsqrt.pop %v813
    %v830 = vrsqrt.pop %v814
    %v831 = vrsqrt.pop %v815
    %v832 = vrsqrt.pop %v816
    %v833 = vmul.f32 %v657, %v817
    %v834 = vmul.f32 %v658, %v818
    %v835 = vmul.f32 %v659, %v819
    %v836 = vmul.f32 %v660, %v820
    %v837 = vmul.f32 %v661, %v821
    %v838 = vmul.f32 %v662, %v822
    %v839 = vmul.f32 %v663, %v823
    %v840 = vmul.f32 %v664, %v824
    %v841 = vmul.f32 %v665, %v825
    %v842 = vmul.f32 %v666, %v826
    %v843 = vmul.f32 %v667, %v827
    %v844 = vmul.f32 %v668, %v828
    %v845 = vmul.f32 %v669, %v829
    %v846 = vmul.f32 %v670, %v830
    %v847 = vmul.f32 %v671, %v831
    %v848 = vmul.f32 %v672, %v832
    %v851 = vlaneseq
    %v852 = vshrl.u32 %v851, 7
    %v853 = vsub.s32 0, %v852
    %v854 = vrot.slane %v540, %v853
    %v855 = vlaneseq
    %v856 = vshrl.u32 %v855, 7
    %v857 = vsub.s32 1, %v856
    %v858 = vrot.slane %v540, %v857
    %v859 = vlaneseq
    %v860 = vshrl.u32 %v859, 7
    %v861 = vsub.s32 2, %v860
    %v862 = vrot.slane %v540, %v861
    %v863 = vlaneseq
    %v864 = vshrl.u32 %v863, 7
    %v865 = vsub.s32 3, %v864
    %v866 = vrot.slane %v540, %v865
    %v867 = vlaneseq
    %v868 = vshrl.u32 %v867, 7
    %v869 = vsub.s32 4, %v868
    %v870 = vrot.slane %v540, %v869
    %v871 = vlaneseq
    %v872 = vshrl.u32 %v871, 7
    %v873 = vsub.s32 5, %v872
    %v874 = vrot.slane %v540, %v873
    %v875 = vlaneseq
    %v876 = vshrl.u32 %v875, 7
    %v877 = vsub.s32 6, %v876
    %v878 = vrot.slane %v540, %v877
    %v879 = vlaneseq
    %v880 = vshrl.u32 %v879, 7
    %v881 = vsub.s32 7, %v880
    %v882 = vrot.slane %v540, %v881
    %v883 = vlaneseq
    %v884 = vshrl.u32 %v883, 7
    %v885 = vsub.s32 0, %v884
    %v886 = vrot.slane %v541, %v885
    %v887 = vlaneseq
    %v888 = vshrl.u32 %v887, 7
    %v889 = vsub.s32 1, %v888
    %v890 = vrot.slane %v541, %v889
    %v891 = vlaneseq
    %v892 = vshrl.u32 %v891, 7
    %v893 = vsub.s32 2, %v892
    %v894 = vrot.slane %v541, %v893
    %v895 = vlaneseq
    %v896 = vshrl.u32 %v895, 7
    %v897 = vsub.s32 3, %v896
    %v898 = vrot.slane %v541, %v897
    %v899 = vlaneseq
    %v900 = vshrl.u32 %v899, 7
    %v901 = vsub.s32 4, %v900
    %v902 = vrot.slane %v541, %v901
    %v903 = vlaneseq
    %v904 = vshrl.u32 %v903, 7
    %v905 = vsub.s32 5, %v904
    %v906 = vrot.slane %v541, %v905
    %v907 = vlaneseq
    %v908 = vshrl.u32 %v907, 7
    %v909 = vsub.s32 6, %v908
    %v910 = vrot.slane %v541, %v909
    %v911 = vlaneseq
    %v912 = vshrl.u32 %v911, 7
    %v913 = vsub.s32 7, %v912
    %v914 = vrot.slane %v541, %v913
    %v931 = vmul.f32 %v833, %v854
    %v932 = vmul.f32 %v834, %v858
    %v933 = vmul.f32 %v835, %v862
    %v934 = vmul.f32 %v836, %v866
    %v935 = vmul.f32 %v837, %v870
    %v936 = vmul.f32 %v838, %v874
    %v937 = vmul.f32 %v839, %v878
    %v938 = vmul.f32 %v840, %v882
    %v939 = vmul.f32 %v841, %v886
    %v940 = vmul.f32 %v842, %v890
    %v941 = vmul.f32 %v843, %v894
    %v942 = vmul.f32 %v844, %v898
    %v943 = vmul.f32 %v845, %v902
    %v944 = vmul.f32 %v846, %v906
    %v945 = vmul.f32 %v847, %v910
    %v946 = vmul.f32 %v848, %v914
    %v949 = vlaneseq
    %v950 = vshrl.u32 %v949, 7
    %v951 = vsub.s32 0, %v950
    %v952 = vrot.slane %v542, %v951
    %v953 = vlaneseq
    %v954 = vshrl.u32 %v953, 7
    %v955 = vsub.s32 1, %v954
    %v956 = vrot.slane %v542, %v955
    %v957 = vlaneseq
    %v958 = vshrl.u32 %v957, 7
    %v959 = vsub.s32 2, %v958
    %v960 = vrot.slane %v542, %v959
    %v961 = vlaneseq
    %v962 = vshrl.u32 %v961, 7
    %v963 = vsub.s32 3, %v962
    %v964 = vrot.slane %v542, %v963
    %v965 = vlaneseq
    %v966 = vshrl.u32 %v965, 7
    %v967 = vsub.s32 4, %v966
    %v968 = vrot.slane %v542, %v967
    %v969 = vlaneseq
    %v970 = vshrl.u32 %v969, 7
    %v971 = vsub.s32 5, %v970
    %v972 = vrot.slane %v542, %v971
    %v973 = vlaneseq
    %v974 = vshrl.u32 %v973, 7
    %v975 = vsub.s32 6, %v974
    %v976 = vrot.slane %v542, %v975
    %v977 = vlaneseq
    %v978 = vshrl.u32 %v977, 7
    %v979 = vsub.s32 7, %v978
    %v980 = vrot.slane %v542, %v979
    %v981 = vlaneseq
    %v982 = vshrl.u32 %v981, 7
    %v983 = vsub.s32 0, %v982
    %v984 = vrot.slane %v543, %v983
    %v985 = vlaneseq
    %v986 = vshrl.u32 %v985, 7
    %v987 = vsub.s32 1, %v986
    %v988 = vrot.slane %v543, %v987
    %v989 = vlaneseq
    %v990 = vshrl.u32 %v989, 7
    %v991 = vsub.s32 2, %v990
    %v992 = vrot.slane %v543, %v991
    %v993 = vlaneseq
    %v994 = vshrl.u32 %v993, 7
    %v995 = vsub.s32 3, %v994
    %v996 = vrot.slane %v543, %v995
    %v997 = vlaneseq
    %v998 = vshrl.u32 %v997, 7
    %v999 = vsub.s32 4, %v998
    %v1000 = vrot.slane %v543, %v999
    %v1001 = vlaneseq
    %v1002 = vshrl.u32 %v1001, 7
    %v1003 = vsub.s32 5, %v1002
    %v1004 = vrot.slane %v543, %v1003
    %v1005 = vlaneseq
    %v1006 = vshrl.u32 %v1005, 7
    %v1007 = vsub.s32 6, %v1006
    %v1008 = vrot.slane %v543, %v1007
    %v1009 = vlaneseq
    %v1010 = vshrl.u32 %v1009, 7
    %v1011 = vsub.s32 7, %v1010
    %v1012 = vrot.slane %v543, %v1011
    %v1029 = vadd.f32 %v931, %v952
    %v1030 = vadd.f32 %v932, %v956
    %v1031 = vadd.f32 %v933, %v960
    %v1032 = vadd.f32 %v934, %v964
    %v1033 = vadd.f32 %v935, %v968
    %v1034 = vadd.f32 %v936, %v972
    %v1035 = vadd.f32 %v937, %v976
    %v1036 = vadd.f32 %v938, %v980
    %v1037 = vadd.f32 %v939, %v984
    %v1038 = vadd.f32 %v940, %v988
    %v1039 = vadd.f32 %v941, %v992
    %v1040 = vadd.f32 %v942, %v996
    %v1041 = vadd.f32 %v943, %v1000
    %v1042 = vadd.f32 %v944, %v1004
    %v1043 = vadd.f32 %v945, %v1008
    %v1044 = vadd.f32 %v946, %v1012
    %v1045 = vmax.f32 %v1029, 0.0
    %v1046 = vmax.f32 %v1030, 0.0
    %v1047 = vmax.f32 %v1031, 0.0
    %v1048 = vmax.f32 %v1032, 0.0
    %v1049 = vmax.f32 %v1033, 0.0
    %v1050 = vmax.f32 %v1034, 0.0
    %v1051 = vmax.f32 %v1035, 0.0
    %v1052 = vmax.f32 %v1036, 0.0
    %v1053 = vmax.f32 %v1037, 0.0
    %v1054 = vmax.f32 %v1038, 0.0
    %v1055 = vmax.f32 %v1039, 0.0
    %v1056 = vmax.f32 %v1040, 0.0
    %v1057 = vmax.f32 %v1041, 0.0
    %v1058 = vmax.f32 %v1042, 0.0
    %v1059 = vmax.f32 %v1043, 0.0
    %v1060 = vmax.f32 %v1044, 0.0
    %s1061 = smul.u32 4, 256
    %s1062 = smul.u32 %s1061, 8
    %s1063 = sshll.u32 %s1062, 4
    %1064 = dma.done [#allocation5], %s1063
    %v1065 = vpack.c.bf16 %v1045, %v1045
    %v1066 = vpack.c.bf16 %v1046, %v1046
    %v1067 = vpack.c.bf16 %v1047, %v1047
    %v1068 = vpack.c.bf16 %v1048, %v1048
    %v1069 = vpack.c.bf16 %v1049, %v1049
    %v1070 = vpack.c.bf16 %v1050, %v1050
    %v1071 = vpack.c.bf16 %v1051, %v1051
    %v1072 = vpack.c.bf16 %v1052, %v1052
    %v1073 = vpack.c.bf16 %v1053, %v1053
    %v1074 = vpack.c.bf16 %v1054, %v1054
    %v1075 = vpack.c.bf16 %v1055, %v1055
    %v1076 = vpack.c.bf16 %v1056, %v1056
    %v1077 = vpack.c.bf16 %v1057, %v1057
    %v1078 = vpack.c.bf16 %v1058, %v1058
    %v1079 = vpack.c.bf16 %v1059, %v1059
    %v1080 = vpack.c.bf16 %v1060, %v1060
    %v1081 = vld [vmem:[#allocation2] sm:$0xff]
    %v1082 = vld [vmem:[#allocation2 + $0x8] sm:$0xff]
    %v1083 = vld [vmem:[#allocation2 + $0x10] sm:$0xff]
    %v1084 = vld [vmem:[#allocation2 + $0x18] sm:$0xff]
    %v1085 = vld [vmem:[#allocation2 + $0x20] sm:$0xff]
    %v1086 = vld [vmem:[#allocation2 + $0x28] sm:$0xff]
    %v1087 = vld [vmem:[#allocation2 + $0x30] sm:$0xff]
    %v1088 = vld [vmem:[#allocation2 + $0x38] sm:$0xff]
    %v1089 = vld [vmem:[#allocation2 + $0x40] sm:$0xff]
    %v1090 = vld [vmem:[#allocation2 + $0x48] sm:$0xff]
    %v1091 = vld [vmem:[#allocation2 + $0x50] sm:$0xff]
    %v1092 = vld [vmem:[#allocation2 + $0x58] sm:$0xff]
    %v1093 = vld [vmem:[#allocation2 + $0x60] sm:$0xff]
    %v1094 = vld [vmem:[#allocation2 + $0x68] sm:$0xff]
    %v1095 = vld [vmem:[#allocation2 + $0x70] sm:$0xff]
    %v1096 = vld [vmem:[#allocation2 + $0x78] sm:$0xff]
    %v1097 = vld [vmem:[#allocation2 + $0x80] sm:$0xff]
    %v1098 = vld [vmem:[#allocation2 + $0x88] sm:$0xff]
    %v1099 = vld [vmem:[#allocation2 + $0x90] sm:$0xff]
    %v1100 = vld [vmem:[#allocation2 + $0x98] sm:$0xff]
    %v1101 = vld [vmem:[#allocation2 + $0xa0] sm:$0xff]
    %v1102 = vld [vmem:[#allocation2 + $0xa8] sm:$0xff]
    %v1103 = vld [vmem:[#allocation2 + $0xb0] sm:$0xff]
    %v1104 = vld [vmem:[#allocation2 + $0xb8] sm:$0xff]
    %v1105 = vld [vmem:[#allocation2 + $0xc0] sm:$0xff]
    %v1106 = vld [vmem:[#allocation2 + $0xc8] sm:$0xff]
    %v1107 = vld [vmem:[#allocation2 + $0xd0] sm:$0xff]
    %v1108 = vld [vmem:[#allocation2 + $0xd8] sm:$0xff]
    %v1109 = vld [vmem:[#allocation2 + $0xe0] sm:$0xff]
    %v1110 = vld [vmem:[#allocation2 + $0xe8] sm:$0xff]
    %v1111 = vld [vmem:[#allocation2 + $0xf0] sm:$0xff]
    %v1112 = vld [vmem:[#allocation2 + $0xf8] sm:$0xff]
    %v1113 = vld [vmem:[#allocation2 + $0x100] sm:$0xff]
    %v1114 = vld [vmem:[#allocation2 + $0x108] sm:$0xff]
    %v1115 = vld [vmem:[#allocation2 + $0x110] sm:$0xff]
    %v1116 = vld [vmem:[#allocation2 + $0x118] sm:$0xff]
    %v1117 = vld [vmem:[#allocation2 + $0x120] sm:$0xff]
    %v1118 = vld [vmem:[#allocation2 + $0x128] sm:$0xff]
    %v1119 = vld [vmem:[#allocation2 + $0x130] sm:$0xff]
    %v1120 = vld [vmem:[#allocation2 + $0x138] sm:$0xff]
    %v1121 = vld [vmem:[#allocation2 + $0x140] sm:$0xff]
    %v1122 = vld [vmem:[#allocation2 + $0x148] sm:$0xff]
    %v1123 = vld [vmem:[#allocation2 + $0x150] sm:$0xff]
    %v1124 = vld [vmem:[#allocation2 + $0x158] sm:$0xff]
    %v1125 = vld [vmem:[#allocation2 + $0x160] sm:$0xff]
    %v1126 = vld [vmem:[#allocation2 + $0x168] sm:$0xff]
    %v1127 = vld [vmem:[#allocation2 + $0x170] sm:$0xff]
    %v1128 = vld [vmem:[#allocation2 + $0x178] sm:$0xff]
    %v1129 = vld [vmem:[#allocation2 + $0x180] sm:$0xff]
    %v1130 = vld [vmem:[#allocation2 + $0x188] sm:$0xff]
    %v1131 = vld [vmem:[#allocation2 + $0x190] sm:$0xff]
    %v1132 = vld [vmem:[#allocation2 + $0x198] sm:$0xff]
    %v1133 = vld [vmem:[#allocation2 + $0x1a0] sm:$0xff]
    %v1134 = vld [vmem:[#allocation2 + $0x1a8] sm:$0xff]
    %v1135 = vld [vmem:[#allocation2 + $0x1b0] sm:$0xff]
    %v1136 = vld [vmem:[#allocation2 + $0x1b8] sm:$0xff]
    %v1137 = vld [vmem:[#allocation2 + $0x1c0] sm:$0xff]
    %v1138 = vld [vmem:[#allocation2 + $0x1c8] sm:$0xff]
    %v1139 = vld [vmem:[#allocation2 + $0x1d0] sm:$0xff]
    %v1140 = vld [vmem:[#allocation2 + $0x1d8] sm:$0xff]
    %v1141 = vld [vmem:[#allocation2 + $0x1e0] sm:$0xff]
    %v1142 = vld [vmem:[#allocation2 + $0x1e8] sm:$0xff]
    %v1143 = vld [vmem:[#allocation2 + $0x1f0] sm:$0xff]
    %v1144 = vld [vmem:[#allocation2 + $0x1f8] sm:$0xff]
    %v1145 = vld [vmem:[#allocation2 + $0x200] sm:$0xff]
    %v1146 = vld [vmem:[#allocation2 + $0x208] sm:$0xff]
    %v1147 = vld [vmem:[#allocation2 + $0x210] sm:$0xff]
    %v1148 = vld [vmem:[#allocation2 + $0x218] sm:$0xff]
    %v1149 = vld [vmem:[#allocation2 + $0x220] sm:$0xff]
    %v1150 = vld [vmem:[#allocation2 + $0x228] sm:$0xff]
    %v1151 = vld [vmem:[#allocation2 + $0x230] sm:$0xff]
    %v1152 = vld [vmem:[#allocation2 + $0x238] sm:$0xff]
    %v1153 = vld [vmem:[#allocation2 + $0x240] sm:$0xff]
    %v1154 = vld [vmem:[#allocation2 + $0x248] sm:$0xff]
    %v1155 = vld [vmem:[#allocation2 + $0x250] sm:$0xff]
    %v1156 = vld [vmem:[#allocation2 + $0x258] sm:$0xff]
    %v1157 = vld [vmem:[#allocation2 + $0x260] sm:$0xff]
    %v1158 = vld [vmem:[#allocation2 + $0x268] sm:$0xff]
    %v1159 = vld [vmem:[#allocation2 + $0x270] sm:$0xff]
    %v1160 = vld [vmem:[#allocation2 + $0x278] sm:$0xff]
    %v1161 = vld [vmem:[#allocation2 + $0x280] sm:$0xff]
    %v1162 = vld [vmem:[#allocation2 + $0x288] sm:$0xff]
    %v1163 = vld [vmem:[#allocation2 + $0x290] sm:$0xff]
    %v1164 = vld [vmem:[#allocation2 + $0x298] sm:$0xff]
    %v1165 = vld [vmem:[#allocation2 + $0x2a0] sm:$0xff]
    %v1166 = vld [vmem:[#allocation2 + $0x2a8] sm:$0xff]
    %v1167 = vld [vmem:[#allocation2 + $0x2b0] sm:$0xff]
    %v1168 = vld [vmem:[#allocation2 + $0x2b8] sm:$0xff]
    %v1169 = vld [vmem:[#allocation2 + $0x2c0] sm:$0xff]
    %v1170 = vld [vmem:[#allocation2 + $0x2c8] sm:$0xff]
    %v1171 = vld [vmem:[#allocation2 + $0x2d0] sm:$0xff]
    %v1172 = vld [vmem:[#allocation2 + $0x2d8] sm:$0xff]
    %v1173 = vld [vmem:[#allocation2 + $0x2e0] sm:$0xff]
    %v1174 = vld [vmem:[#allocation2 + $0x2e8] sm:$0xff]
    %v1175 = vld [vmem:[#allocation2 + $0x2f0] sm:$0xff]
    %v1176 = vld [vmem:[#allocation2 + $0x2f8] sm:$0xff]
    %v1177 = vld [vmem:[#allocation2 + $0x300] sm:$0xff]
    %v1178 = vld [vmem:[#allocation2 + $0x308] sm:$0xff]
    %v1179 = vld [vmem:[#allocation2 + $0x310] sm:$0xff]
    %v1180 = vld [vmem:[#allocation2 + $0x318] sm:$0xff]
    %v1181 = vld [vmem:[#allocation2 + $0x320] sm:$0xff]
    %v1182 = vld [vmem:[#allocation2 + $0x328] sm:$0xff]
    %v1183 = vld [vmem:[#allocation2 + $0x330] sm:$0xff]
    %v1184 = vld [vmem:[#allocation2 + $0x338] sm:$0xff]
    %v1185 = vld [vmem:[#allocation2 + $0x340] sm:$0xff]
    %v1186 = vld [vmem:[#allocation2 + $0x348] sm:$0xff]
    %v1187 = vld [vmem:[#allocation2 + $0x350] sm:$0xff]
    %v1188 = vld [vmem:[#allocation2 + $0x358] sm:$0xff]
    %v1189 = vld [vmem:[#allocation2 + $0x360] sm:$0xff]
    %v1190 = vld [vmem:[#allocation2 + $0x368] sm:$0xff]
    %v1191 = vld [vmem:[#allocation2 + $0x370] sm:$0xff]
    %v1192 = vld [vmem:[#allocation2 + $0x378] sm:$0xff]
    %v1193 = vld [vmem:[#allocation2 + $0x380] sm:$0xff]
    %v1194 = vld [vmem:[#allocation2 + $0x388] sm:$0xff]
    %v1195 = vld [vmem:[#allocation2 + $0x390] sm:$0xff]
    %v1196 = vld [vmem:[#allocation2 + $0x398] sm:$0xff]
    %v1197 = vld [vmem:[#allocation2 + $0x3a0] sm:$0xff]
    %v1198 = vld [vmem:[#allocation2 + $0x3a8] sm:$0xff]
    %v1199 = vld [vmem:[#allocation2 + $0x3b0] sm:$0xff]
    %v1200 = vld [vmem:[#allocation2 + $0x3b8] sm:$0xff]
    %v1201 = vld [vmem:[#allocation2 + $0x3c0] sm:$0xff]
    %v1202 = vld [vmem:[#allocation2 + $0x3c8] sm:$0xff]
    %v1203 = vld [vmem:[#allocation2 + $0x3d0] sm:$0xff]
    %v1204 = vld [vmem:[#allocation2 + $0x3d8] sm:$0xff]
    %v1205 = vld [vmem:[#allocation2 + $0x3e0] sm:$0xff]
    %v1206 = vld [vmem:[#allocation2 + $0x3e8] sm:$0xff]
    %v1207 = vld [vmem:[#allocation2 + $0x3f0] sm:$0xff]
    %v1208 = vld [vmem:[#allocation2 + $0x3f8] sm:$0xff]
    %v1209 = vld [vmem:[#allocation2 + $0x400] sm:$0xff]
    %v1210 = vld [vmem:[#allocation2 + $0x408] sm:$0xff]
    %v1211 = vld [vmem:[#allocation2 + $0x410] sm:$0xff]
    %v1212 = vld [vmem:[#allocation2 + $0x418] sm:$0xff]
    %v1213 = vld [vmem:[#allocation2 + $0x420] sm:$0xff]
    %v1214 = vld [vmem:[#allocation2 + $0x428] sm:$0xff]
    %v1215 = vld [vmem:[#allocation2 + $0x430] sm:$0xff]
    %v1216 = vld [vmem:[#allocation2 + $0x438] sm:$0xff]
    %v1217 = vld [vmem:[#allocation2 + $0x440] sm:$0xff]
    %v1218 = vld [vmem:[#allocation2 + $0x448] sm:$0xff]
    %v1219 = vld [vmem:[#allocation2 + $0x450] sm:$0xff]
    %v1220 = vld [vmem:[#allocation2 + $0x458] sm:$0xff]
    %v1221 = vld [vmem:[#allocation2 + $0x460] sm:$0xff]
    %v1222 = vld [vmem:[#allocation2 + $0x468] sm:$0xff]
    %v1223 = vld [vmem:[#allocation2 + $0x470] sm:$0xff]
    %v1224 = vld [vmem:[#allocation2 + $0x478] sm:$0xff]
    %v1225 = vld [vmem:[#allocation2 + $0x480] sm:$0xff]
    %v1226 = vld [vmem:[#allocation2 + $0x488] sm:$0xff]
    %v1227 = vld [vmem:[#allocation2 + $0x490] sm:$0xff]
    %v1228 = vld [vmem:[#allocation2 + $0x498] sm:$0xff]
    %v1229 = vld [vmem:[#allocation2 + $0x4a0] sm:$0xff]
    %v1230 = vld [vmem:[#allocation2 + $0x4a8] sm:$0xff]
    %v1231 = vld [vmem:[#allocation2 + $0x4b0] sm:$0xff]
    %v1232 = vld [vmem:[#allocation2 + $0x4b8] sm:$0xff]
    %v1233 = vld [vmem:[#allocation2 + $0x4c0] sm:$0xff]
    %v1234 = vld [vmem:[#allocation2 + $0x4c8] sm:$0xff]
    %v1235 = vld [vmem:[#allocation2 + $0x4d0] sm:$0xff]
    %v1236 = vld [vmem:[#allocation2 + $0x4d8] sm:$0xff]
    %v1237 = vld [vmem:[#allocation2 + $0x4e0] sm:$0xff]
    %v1238 = vld [vmem:[#allocation2 + $0x4e8] sm:$0xff]
    %v1239 = vld [vmem:[#allocation2 + $0x4f0] sm:$0xff]
    %v1240 = vld [vmem:[#allocation2 + $0x4f8] sm:$0xff]
    %v1241 = vld [vmem:[#allocation2 + $0x500] sm:$0xff]
    %v1242 = vld [vmem:[#allocation2 + $0x508] sm:$0xff]
    %v1243 = vld [vmem:[#allocation2 + $0x510] sm:$0xff]
    %v1244 = vld [vmem:[#allocation2 + $0x518] sm:$0xff]
    %v1245 = vld [vmem:[#allocation2 + $0x520] sm:$0xff]
    %v1246 = vld [vmem:[#allocation2 + $0x528] sm:$0xff]
    %v1247 = vld [vmem:[#allocation2 + $0x530] sm:$0xff]
    %v1248 = vld [vmem:[#allocation2 + $0x538] sm:$0xff]
    %v1249 = vld [vmem:[#allocation2 + $0x540] sm:$0xff]
    %v1250 = vld [vmem:[#allocation2 + $0x548] sm:$0xff]
    %v1251 = vld [vmem:[#allocation2 + $0x550] sm:$0xff]
    %v1252 = vld [vmem:[#allocation2 + $0x558] sm:$0xff]
    %v1253 = vld [vmem:[#allocation2 + $0x560] sm:$0xff]
    %v1254 = vld [vmem:[#allocation2 + $0x568] sm:$0xff]
    %v1255 = vld [vmem:[#allocation2 + $0x570] sm:$0xff]
    %v1256 = vld [vmem:[#allocation2 + $0x578] sm:$0xff]
    %v1257 = vld [vmem:[#allocation2 + $0x580] sm:$0xff]
    %v1258 = vld [vmem:[#allocation2 + $0x588] sm:$0xff]
    %v1259 = vld [vmem:[#allocation2 + $0x590] sm:$0xff]
    %v1260 = vld [vmem:[#allocation2 + $0x598] sm:$0xff]
    %v1261 = vld [vmem:[#allocation2 + $0x5a0] sm:$0xff]
    %v1262 = vld [vmem:[#allocation2 + $0x5a8] sm:$0xff]
    %v1263 = vld [vmem:[#allocation2 + $0x5b0] sm:$0xff]
    %v1264 = vld [vmem:[#allocation2 + $0x5b8] sm:$0xff]
    %v1265 = vld [vmem:[#allocation2 + $0x5c0] sm:$0xff]
    %v1266 = vld [vmem:[#allocation2 + $0x5c8] sm:$0xff]
    %v1267 = vld [vmem:[#allocation2 + $0x5d0] sm:$0xff]
    %v1268 = vld [vmem:[#allocation2 + $0x5d8] sm:$0xff]
    %v1269 = vld [vmem:[#allocation2 + $0x5e0] sm:$0xff]
    %v1270 = vld [vmem:[#allocation2 + $0x5e8] sm:$0xff]
    %v1271 = vld [vmem:[#allocation2 + $0x5f0] sm:$0xff]
    %v1272 = vld [vmem:[#allocation2 + $0x5f8] sm:$0xff]
    %v1273 = vld [vmem:[#allocation2 + $0x600] sm:$0xff]
    %v1274 = vld [vmem:[#allocation2 + $0x608] sm:$0xff]
    %v1275 = vld [vmem:[#allocation2 + $0x610] sm:$0xff]
    %v1276 = vld [vmem:[#allocation2 + $0x618] sm:$0xff]
    %v1277 = vld [vmem:[#allocation2 + $0x620] sm:$0xff]
    %v1278 = vld [vmem:[#allocation2 + $0x628] sm:$0xff]
    %v1279 = vld [vmem:[#allocation2 + $0x630] sm:$0xff]
    %v1280 = vld [vmem:[#allocation2 + $0x638] sm:$0xff]
    %v1281 = vld [vmem:[#allocation2 + $0x640] sm:$0xff]
    %v1282 = vld [vmem:[#allocation2 + $0x648] sm:$0xff]
    %v1283 = vld [vmem:[#allocation2 + $0x650] sm:$0xff]
    %v1284 = vld [vmem:[#allocation2 + $0x658] sm:$0xff]
    %v1285 = vld [vmem:[#allocation2 + $0x660] sm:$0xff]
    %v1286 = vld [vmem:[#allocation2 + $0x668] sm:$0xff]
    %v1287 = vld [vmem:[#allocation2 + $0x670] sm:$0xff]
    %v1288 = vld [vmem:[#allocation2 + $0x678] sm:$0xff]
    %v1289 = vld [vmem:[#allocation2 + $0x680] sm:$0xff]
    %v1290 = vld [vmem:[#allocation2 + $0x688] sm:$0xff]
    %v1291 = vld [vmem:[#allocation2 + $0x690] sm:$0xff]
    %v1292 = vld [vmem:[#allocation2 + $0x698] sm:$0xff]
    %v1293 = vld [vmem:[#allocation2 + $0x6a0] sm:$0xff]
    %v1294 = vld [vmem:[#allocation2 + $0x6a8] sm:$0xff]
    %v1295 = vld [vmem:[#allocation2 + $0x6b0] sm:$0xff]
    %v1296 = vld [vmem:[#allocation2 + $0x6b8] sm:$0xff]
    %v1297 = vld [vmem:[#allocation2 + $0x6c0] sm:$0xff]
    %v1298 = vld [vmem:[#allocation2 + $0x6c8] sm:$0xff]
    %v1299 = vld [vmem:[#allocation2 + $0x6d0] sm:$0xff]
    %v1300 = vld [vmem:[#allocation2 + $0x6d8] sm:$0xff]
    %v1301 = vld [vmem:[#allocation2 + $0x6e0] sm:$0xff]
    %v1302 = vld [vmem:[#allocation2 + $0x6e8] sm:$0xff]
    %v1303 = vld [vmem:[#allocation2 + $0x6f0] sm:$0xff]
    %v1304 = vld [vmem:[#allocation2 + $0x6f8] sm:$0xff]
    %v1305 = vld [vmem:[#allocation2 + $0x700] sm:$0xff]
    %v1306 = vld [vmem:[#allocation2 + $0x708] sm:$0xff]
    %v1307 = vld [vmem:[#allocation2 + $0x710] sm:$0xff]
    %v1308 = vld [vmem:[#allocation2 + $0x718] sm:$0xff]
    %v1309 = vld [vmem:[#allocation2 + $0x720] sm:$0xff]
    %v1310 = vld [vmem:[#allocation2 + $0x728] sm:$0xff]
    %v1311 = vld [vmem:[#allocation2 + $0x730] sm:$0xff]
    %v1312 = vld [vmem:[#allocation2 + $0x738] sm:$0xff]
    %v1313 = vld [vmem:[#allocation2 + $0x740] sm:$0xff]
    %v1314 = vld [vmem:[#allocation2 + $0x748] sm:$0xff]
    %v1315 = vld [vmem:[#allocation2 + $0x750] sm:$0xff]
    %v1316 = vld [vmem:[#allocation2 + $0x758] sm:$0xff]
    %v1317 = vld [vmem:[#allocation2 + $0x760] sm:$0xff]
    %v1318 = vld [vmem:[#allocation2 + $0x768] sm:$0xff]
    %v1319 = vld [vmem:[#allocation2 + $0x770] sm:$0xff]
    %v1320 = vld [vmem:[#allocation2 + $0x778] sm:$0xff]
    %v1321 = vld [vmem:[#allocation2 + $0x780] sm:$0xff]
    %v1322 = vld [vmem:[#allocation2 + $0x788] sm:$0xff]
    %v1323 = vld [vmem:[#allocation2 + $0x790] sm:$0xff]
    %v1324 = vld [vmem:[#allocation2 + $0x798] sm:$0xff]
    %v1325 = vld [vmem:[#allocation2 + $0x7a0] sm:$0xff]
    %v1326 = vld [vmem:[#allocation2 + $0x7a8] sm:$0xff]
    %v1327 = vld [vmem:[#allocation2 + $0x7b0] sm:$0xff]
    %v1328 = vld [vmem:[#allocation2 + $0x7b8] sm:$0xff]
    %v1329 = vld [vmem:[#allocation2 + $0x7c0] sm:$0xff]
    %v1330 = vld [vmem:[#allocation2 + $0x7c8] sm:$0xff]
    %v1331 = vld [vmem:[#allocation2 + $0x7d0] sm:$0xff]
    %v1332 = vld [vmem:[#allocation2 + $0x7d8] sm:$0xff]
    %v1333 = vld [vmem:[#allocation2 + $0x7e0] sm:$0xff]
    %v1334 = vld [vmem:[#allocation2 + $0x7e8] sm:$0xff]
    %v1335 = vld [vmem:[#allocation2 + $0x7f0] sm:$0xff]
    %v1336 = vld [vmem:[#allocation2 + $0x7f8] sm:$0xff]
    %v1337 = vld [vmem:[#allocation2 + $0x800] sm:$0xff]
    %v1338 = vld [vmem:[#allocation2 + $0x808] sm:$0xff]
    %v1339 = vld [vmem:[#allocation2 + $0x810] sm:$0xff]
    %v1340 = vld [vmem:[#allocation2 + $0x818] sm:$0xff]
    %v1341 = vld [vmem:[#allocation2 + $0x820] sm:$0xff]
    %v1342 = vld [vmem:[#allocation2 + $0x828] sm:$0xff]
    %v1343 = vld [vmem:[#allocation2 + $0x830] sm:$0xff]
    %v1344 = vld [vmem:[#allocation2 + $0x838] sm:$0xff]
    %v1345 = vld [vmem:[#allocation2 + $0x840] sm:$0xff]
    %v1346 = vld [vmem:[#allocation2 + $0x848] sm:$0xff]
    %v1347 = vld [vmem:[#allocation2 + $0x850] sm:$0xff]
    %v1348 = vld [vmem:[#allocation2 + $0x858] sm:$0xff]
    %v1349 = vld [vmem:[#allocation2 + $0x860] sm:$0xff]
    %v1350 = vld [vmem:[#allocation2 + $0x868] sm:$0xff]
    %v1351 = vld [vmem:[#allocation2 + $0x870] sm:$0xff]
    %v1352 = vld [vmem:[#allocation2 + $0x878] sm:$0xff]
    %v1353 = vld [vmem:[#allocation2 + $0x880] sm:$0xff]
    %v1354 = vld [vmem:[#allocation2 + $0x888] sm:$0xff]
    %v1355 = vld [vmem:[#allocation2 + $0x890] sm:$0xff]
    %v1356 = vld [vmem:[#allocation2 + $0x898] sm:$0xff]
    %v1357 = vld [vmem:[#allocation2 + $0x8a0] sm:$0xff]
    %v1358 = vld [vmem:[#allocation2 + $0x8a8] sm:$0xff]
    %v1359 = vld [vmem:[#allocation2 + $0x8b0] sm:$0xff]
    %v1360 = vld [vmem:[#allocation2 + $0x8b8] sm:$0xff]
    %v1361 = vld [vmem:[#allocation2 + $0x8c0] sm:$0xff]
    %v1362 = vld [vmem:[#allocation2 + $0x8c8] sm:$0xff]
    %v1363 = vld [vmem:[#allocation2 + $0x8d0] sm:$0xff]
    %v1364 = vld [vmem:[#allocation2 + $0x8d8] sm:$0xff]
    %v1365 = vld [vmem:[#allocation2 + $0x8e0] sm:$0xff]
    %v1366 = vld [vmem:[#allocation2 + $0x8e8] sm:$0xff]
    %v1367 = vld [vmem:[#allocation2 + $0x8f0] sm:$0xff]
    %v1368 = vld [vmem:[#allocation2 + $0x8f8] sm:$0xff]
    %v1369 = vld [vmem:[#allocation2 + $0x900] sm:$0xff]
    %v1370 = vld [vmem:[#allocation2 + $0x908] sm:$0xff]
    %v1371 = vld [vmem:[#allocation2 + $0x910] sm:$0xff]
    %v1372 = vld [vmem:[#allocation2 + $0x918] sm:$0xff]
    %v1373 = vld [vmem:[#allocation2 + $0x920] sm:$0xff]
    %v1374 = vld [vmem:[#allocation2 + $0x928] sm:$0xff]
    %v1375 = vld [vmem:[#allocation2 + $0x930] sm:$0xff]
    %v1376 = vld [vmem:[#allocation2 + $0x938] sm:$0xff]
    %v1377 = vld [vmem:[#allocation2 + $0x940] sm:$0xff]
    %v1378 = vld [vmem:[#allocation2 + $0x948] sm:$0xff]
    %v1379 = vld [vmem:[#allocation2 + $0x950] sm:$0xff]
    %v1380 = vld [vmem:[#allocation2 + $0x958] sm:$0xff]
    %v1381 = vld [vmem:[#allocation2 + $0x960] sm:$0xff]
    %v1382 = vld [vmem:[#allocation2 + $0x968] sm:$0xff]
    %v1383 = vld [vmem:[#allocation2 + $0x970] sm:$0xff]
    %v1384 = vld [vmem:[#allocation2 + $0x978] sm:$0xff]
    %v1385 = vld [vmem:[#allocation2 + $0x980] sm:$0xff]
    %v1386 = vld [vmem:[#allocation2 + $0x988] sm:$0xff]
    %v1387 = vld [vmem:[#allocation2 + $0x990] sm:$0xff]
    %v1388 = vld [vmem:[#allocation2 + $0x998] sm:$0xff]
    %v1389 = vld [vmem:[#allocation2 + $0x9a0] sm:$0xff]
    %v1390 = vld [vmem:[#allocation2 + $0x9a8] sm:$0xff]
    %v1391 = vld [vmem:[#allocation2 + $0x9b0] sm:$0xff]
    %v1392 = vld [vmem:[#allocation2 + $0x9b8] sm:$0xff]
    %v1393 = vld [vmem:[#allocation2 + $0x9c0] sm:$0xff]
    %v1394 = vld [vmem:[#allocation2 + $0x9c8] sm:$0xff]
    %v1395 = vld [vmem:[#allocation2 + $0x9d0] sm:$0xff]
    %v1396 = vld [vmem:[#allocation2 + $0x9d8] sm:$0xff]
    %v1397 = vld [vmem:[#allocation2 + $0x9e0] sm:$0xff]
    %v1398 = vld [vmem:[#allocation2 + $0x9e8] sm:$0xff]
    %v1399 = vld [vmem:[#allocation2 + $0x9f0] sm:$0xff]
    %v1400 = vld [vmem:[#allocation2 + $0x9f8] sm:$0xff]
    %v1401 = vld [vmem:[#allocation2 + $0xa00] sm:$0xff]
    %v1402 = vld [vmem:[#allocation2 + $0xa08] sm:$0xff]
    %v1403 = vld [vmem:[#allocation2 + $0xa10] sm:$0xff]
    %v1404 = vld [vmem:[#allocation2 + $0xa18] sm:$0xff]
    %v1405 = vld [vmem:[#allocation2 + $0xa20] sm:$0xff]
    %v1406 = vld [vmem:[#allocation2 + $0xa28] sm:$0xff]
    %v1407 = vld [vmem:[#allocation2 + $0xa30] sm:$0xff]
    %v1408 = vld [vmem:[#allocation2 + $0xa38] sm:$0xff]
    %v1409 = vld [vmem:[#allocation2 + $0xa40] sm:$0xff]
    %v1410 = vld [vmem:[#allocation2 + $0xa48] sm:$0xff]
    %v1411 = vld [vmem:[#allocation2 + $0xa50] sm:$0xff]
    %v1412 = vld [vmem:[#allocation2 + $0xa58] sm:$0xff]
    %v1413 = vld [vmem:[#allocation2 + $0xa60] sm:$0xff]
    %v1414 = vld [vmem:[#allocation2 + $0xa68] sm:$0xff]
    %v1415 = vld [vmem:[#allocation2 + $0xa70] sm:$0xff]
    %v1416 = vld [vmem:[#allocation2 + $0xa78] sm:$0xff]
    %v1417 = vld [vmem:[#allocation2 + $0xa80] sm:$0xff]
    %v1418 = vld [vmem:[#allocation2 + $0xa88] sm:$0xff]
    %v1419 = vld [vmem:[#allocation2 + $0xa90] sm:$0xff]
    %v1420 = vld [vmem:[#allocation2 + $0xa98] sm:$0xff]
    %v1421 = vld [vmem:[#allocation2 + $0xaa0] sm:$0xff]
    %v1422 = vld [vmem:[#allocation2 + $0xaa8] sm:$0xff]
    %v1423 = vld [vmem:[#allocation2 + $0xab0] sm:$0xff]
    %v1424 = vld [vmem:[#allocation2 + $0xab8] sm:$0xff]
    %v1425 = vld [vmem:[#allocation2 + $0xac0] sm:$0xff]
    %v1426 = vld [vmem:[#allocation2 + $0xac8] sm:$0xff]
    %v1427 = vld [vmem:[#allocation2 + $0xad0] sm:$0xff]
    %v1428 = vld [vmem:[#allocation2 + $0xad8] sm:$0xff]
    %v1429 = vld [vmem:[#allocation2 + $0xae0] sm:$0xff]
    %v1430 = vld [vmem:[#allocation2 + $0xae8] sm:$0xff]
    %v1431 = vld [vmem:[#allocation2 + $0xaf0] sm:$0xff]
    %v1432 = vld [vmem:[#allocation2 + $0xaf8] sm:$0xff]
    %v1433 = vld [vmem:[#allocation2 + $0xb00] sm:$0xff]
    %v1434 = vld [vmem:[#allocation2 + $0xb08] sm:$0xff]
    %v1435 = vld [vmem:[#allocation2 + $0xb10] sm:$0xff]
    %v1436 = vld [vmem:[#allocation2 + $0xb18] sm:$0xff]
    %v1437 = vld [vmem:[#allocation2 + $0xb20] sm:$0xff]
    %v1438 = vld [vmem:[#allocation2 + $0xb28] sm:$0xff]
    %v1439 = vld [vmem:[#allocation2 + $0xb30] sm:$0xff]
    %v1440 = vld [vmem:[#allocation2 + $0xb38] sm:$0xff]
    %v1441 = vld [vmem:[#allocation2 + $0xb40] sm:$0xff]
    %v1442 = vld [vmem:[#allocation2 + $0xb48] sm:$0xff]
    %v1443 = vld [vmem:[#allocation2 + $0xb50] sm:$0xff]
    %v1444 = vld [vmem:[#allocation2 + $0xb58] sm:$0xff]
    %v1445 = vld [vmem:[#allocation2 + $0xb60] sm:$0xff]
    %v1446 = vld [vmem:[#allocation2 + $0xb68] sm:$0xff]
    %v1447 = vld [vmem:[#allocation2 + $0xb70] sm:$0xff]
    %v1448 = vld [vmem:[#allocation2 + $0xb78] sm:$0xff]
    %v1449 = vld [vmem:[#allocation2 + $0xb80] sm:$0xff]
    %v1450 = vld [vmem:[#allocation2 + $0xb88] sm:$0xff]
    %v1451 = vld [vmem:[#allocation2 + $0xb90] sm:$0xff]
    %v1452 = vld [vmem:[#allocation2 + $0xb98] sm:$0xff]
    %v1453 = vld [vmem:[#allocation2 + $0xba0] sm:$0xff]
    %v1454 = vld [vmem:[#allocation2 + $0xba8] sm:$0xff]
    %v1455 = vld [vmem:[#allocation2 + $0xbb0] sm:$0xff]
    %v1456 = vld [vmem:[#allocation2 + $0xbb8] sm:$0xff]
    %v1457 = vld [vmem:[#allocation2 + $0xbc0] sm:$0xff]
    %v1458 = vld [vmem:[#allocation2 + $0xbc8] sm:$0xff]
    %v1459 = vld [vmem:[#allocation2 + $0xbd0] sm:$0xff]
    %v1460 = vld [vmem:[#allocation2 + $0xbd8] sm:$0xff]
    %v1461 = vld [vmem:[#allocation2 + $0xbe0] sm:$0xff]
    %v1462 = vld [vmem:[#allocation2 + $0xbe8] sm:$0xff]
    %v1463 = vld [vmem:[#allocation2 + $0xbf0] sm:$0xff]
    %v1464 = vld [vmem:[#allocation2 + $0xbf8] sm:$0xff]
    %v1465 = vld [vmem:[#allocation2 + $0xc00] sm:$0xff]
    %v1466 = vld [vmem:[#allocation2 + $0xc08] sm:$0xff]
    %v1467 = vld [vmem:[#allocation2 + $0xc10] sm:$0xff]
    %v1468 = vld [vmem:[#allocation2 + $0xc18] sm:$0xff]
    %v1469 = vld [vmem:[#allocation2 + $0xc20] sm:$0xff]
    %v1470 = vld [vmem:[#allocation2 + $0xc28] sm:$0xff]
    %v1471 = vld [vmem:[#allocation2 + $0xc30] sm:$0xff]
    %v1472 = vld [vmem:[#allocation2 + $0xc38] sm:$0xff]
    %v1473 = vld [vmem:[#allocation2 + $0xc40] sm:$0xff]
    %v1474 = vld [vmem:[#allocation2 + $0xc48] sm:$0xff]
    %v1475 = vld [vmem:[#allocation2 + $0xc50] sm:$0xff]
    %v1476 = vld [vmem:[#allocation2 + $0xc58] sm:$0xff]
    %v1477 = vld [vmem:[#allocation2 + $0xc60] sm:$0xff]
    %v1478 = vld [vmem:[#allocation2 + $0xc68] sm:$0xff]
    %v1479 = vld [vmem:[#allocation2 + $0xc70] sm:$0xff]
    %v1480 = vld [vmem:[#allocation2 + $0xc78] sm:$0xff]
    %v1481 = vld [vmem:[#allocation2 + $0xc80] sm:$0xff]
    %v1482 = vld [vmem:[#allocation2 + $0xc88] sm:$0xff]
    %v1483 = vld [vmem:[#allocation2 + $0xc90] sm:$0xff]
    %v1484 = vld [vmem:[#allocation2 + $0xc98] sm:$0xff]
    %v1485 = vld [vmem:[#allocation2 + $0xca0] sm:$0xff]
    %v1486 = vld [vmem:[#allocation2 + $0xca8] sm:$0xff]
    %v1487 = vld [vmem:[#allocation2 + $0xcb0] sm:$0xff]
    %v1488 = vld [vmem:[#allocation2 + $0xcb8] sm:$0xff]
    %v1489 = vld [vmem:[#allocation2 + $0xcc0] sm:$0xff]
    %v1490 = vld [vmem:[#allocation2 + $0xcc8] sm:$0xff]
    %v1491 = vld [vmem:[#allocation2 + $0xcd0] sm:$0xff]
    %v1492 = vld [vmem:[#allocation2 + $0xcd8] sm:$0xff]
    %v1493 = vld [vmem:[#allocation2 + $0xce0] sm:$0xff]
    %v1494 = vld [vmem:[#allocation2 + $0xce8] sm:$0xff]
    %v1495 = vld [vmem:[#allocation2 + $0xcf0] sm:$0xff]
    %v1496 = vld [vmem:[#allocation2 + $0xcf8] sm:$0xff]
    %v1497 = vld [vmem:[#allocation2 + $0xd00] sm:$0xff]
    %v1498 = vld [vmem:[#allocation2 + $0xd08] sm:$0xff]
    %v1499 = vld [vmem:[#allocation2 + $0xd10] sm:$0xff]
    %v1500 = vld [vmem:[#allocation2 + $0xd18] sm:$0xff]
    %v1501 = vld [vmem:[#allocation2 + $0xd20] sm:$0xff]
    %v1502 = vld [vmem:[#allocation2 + $0xd28] sm:$0xff]
    %v1503 = vld [vmem:[#allocation2 + $0xd30] sm:$0xff]
    %v1504 = vld [vmem:[#allocation2 + $0xd38] sm:$0xff]
    %v1505 = vld [vmem:[#allocation2 + $0xd40] sm:$0xff]
    %v1506 = vld [vmem:[#allocation2 + $0xd48] sm:$0xff]
    %v1507 = vld [vmem:[#allocation2 + $0xd50] sm:$0xff]
    %v1508 = vld [vmem:[#allocation2 + $0xd58] sm:$0xff]
    %v1509 = vld [vmem:[#allocation2 + $0xd60] sm:$0xff]
    %v1510 = vld [vmem:[#allocation2 + $0xd68] sm:$0xff]
    %v1511 = vld [vmem:[#allocation2 + $0xd70] sm:$0xff]
    %v1512 = vld [vmem:[#allocation2 + $0xd78] sm:$0xff]
    %v1513 = vld [vmem:[#allocation2 + $0xd80] sm:$0xff]
    %v1514 = vld [vmem:[#allocation2 + $0xd88] sm:$0xff]
    %v1515 = vld [vmem:[#allocation2 + $0xd90] sm:$0xff]
    %v1516 = vld [vmem:[#allocation2 + $0xd98] sm:$0xff]
    %v1517 = vld [vmem:[#allocation2 + $0xda0] sm:$0xff]
    %v1518 = vld [vmem:[#allocation2 + $0xda8] sm:$0xff]
    %v1519 = vld [vmem:[#allocation2 + $0xdb0] sm:$0xff]
    %v1520 = vld [vmem:[#allocation2 + $0xdb8] sm:$0xff]
    %v1521 = vld [vmem:[#allocation2 + $0xdc0] sm:$0xff]
    %v1522 = vld [vmem:[#allocation2 + $0xdc8] sm:$0xff]
    %v1523 = vld [vmem:[#allocation2 + $0xdd0] sm:$0xff]
    %v1524 = vld [vmem:[#allocation2 + $0xdd8] sm:$0xff]
    %v1525 = vld [vmem:[#allocation2 + $0xde0] sm:$0xff]
    %v1526 = vld [vmem:[#allocation2 + $0xde8] sm:$0xff]
    %v1527 = vld [vmem:[#allocation2 + $0xdf0] sm:$0xff]
    %v1528 = vld [vmem:[#allocation2 + $0xdf8] sm:$0xff]
    %v1529 = vld [vmem:[#allocation2 + $0xe00] sm:$0xff]
    %v1530 = vld [vmem:[#allocation2 + $0xe08] sm:$0xff]
    %v1531 = vld [vmem:[#allocation2 + $0xe10] sm:$0xff]
    %v1532 = vld [vmem:[#allocation2 + $0xe18] sm:$0xff]
    %v1533 = vld [vmem:[#allocation2 + $0xe20] sm:$0xff]
    %v1534 = vld [vmem:[#allocation2 + $0xe28] sm:$0xff]
    %v1535 = vld [vmem:[#allocation2 + $0xe30] sm:$0xff]
    %v1536 = vld [vmem:[#allocation2 + $0xe38] sm:$0xff]
    %v1537 = vld [vmem:[#allocation2 + $0xe40] sm:$0xff]
    %v1538 = vld [vmem:[#allocation2 + $0xe48] sm:$0xff]
    %v1539 = vld [vmem:[#allocation2 + $0xe50] sm:$0xff]
    %v1540 = vld [vmem:[#allocation2 + $0xe58] sm:$0xff]
    %v1541 = vld [vmem:[#allocation2 + $0xe60] sm:$0xff]
    %v1542 = vld [vmem:[#allocation2 + $0xe68] sm:$0xff]
    %v1543 = vld [vmem:[#allocation2 + $0xe70] sm:$0xff]
    %v1544 = vld [vmem:[#allocation2 + $0xe78] sm:$0xff]
    %v1545 = vld [vmem:[#allocation2 + $0xe80] sm:$0xff]
    %v1546 = vld [vmem:[#allocation2 + $0xe88] sm:$0xff]
    %v1547 = vld [vmem:[#allocation2 + $0xe90] sm:$0xff]
    %v1548 = vld [vmem:[#allocation2 + $0xe98] sm:$0xff]
    %v1549 = vld [vmem:[#allocation2 + $0xea0] sm:$0xff]
    %v1550 = vld [vmem:[#allocation2 + $0xea8] sm:$0xff]
    %v1551 = vld [vmem:[#allocation2 + $0xeb0] sm:$0xff]
    %v1552 = vld [vmem:[#allocation2 + $0xeb8] sm:$0xff]
    %v1553 = vld [vmem:[#allocation2 + $0xec0] sm:$0xff]
    %v1554 = vld [vmem:[#allocation2 + $0xec8] sm:$0xff]
    %v1555 = vld [vmem:[#allocation2 + $0xed0] sm:$0xff]
    %v1556 = vld [vmem:[#allocation2 + $0xed8] sm:$0xff]
    %v1557 = vld [vmem:[#allocation2 + $0xee0] sm:$0xff]
    %v1558 = vld [vmem:[#allocation2 + $0xee8] sm:$0xff]
    %v1559 = vld [vmem:[#allocation2 + $0xef0] sm:$0xff]
    %v1560 = vld [vmem:[#allocation2 + $0xef8] sm:$0xff]
    %v1561 = vld [vmem:[#allocation2 + $0xf00] sm:$0xff]
    %v1562 = vld [vmem:[#allocation2 + $0xf08] sm:$0xff]
    %v1563 = vld [vmem:[#allocation2 + $0xf10] sm:$0xff]
    %v1564 = vld [vmem:[#allocation2 + $0xf18] sm:$0xff]
    %v1565 = vld [vmem:[#allocation2 + $0xf20] sm:$0xff]
    %v1566 = vld [vmem:[#allocation2 + $0xf28] sm:$0xff]
    %v1567 = vld [vmem:[#allocation2 + $0xf30] sm:$0xff]
    %v1568 = vld [vmem:[#allocation2 + $0xf38] sm:$0xff]
    %v1569 = vld [vmem:[#allocation2 + $0xf40] sm:$0xff]
    %v1570 = vld [vmem:[#allocation2 + $0xf48] sm:$0xff]
    %v1571 = vld [vmem:[#allocation2 + $0xf50] sm:$0xff]
    %v1572 = vld [vmem:[#allocation2 + $0xf58] sm:$0xff]
    %v1573 = vld [vmem:[#allocation2 + $0xf60] sm:$0xff]
    %v1574 = vld [vmem:[#allocation2 + $0xf68] sm:$0xff]
    %v1575 = vld [vmem:[#allocation2 + $0xf70] sm:$0xff]
    %v1576 = vld [vmem:[#allocation2 + $0xf78] sm:$0xff]
    %v1577 = vld [vmem:[#allocation2 + $0xf80] sm:$0xff]
    %v1578 = vld [vmem:[#allocation2 + $0xf88] sm:$0xff]
    %v1579 = vld [vmem:[#allocation2 + $0xf90] sm:$0xff]
    %v1580 = vld [vmem:[#allocation2 + $0xf98] sm:$0xff]
    %v1581 = vld [vmem:[#allocation2 + $0xfa0] sm:$0xff]
    %v1582 = vld [vmem:[#allocation2 + $0xfa8] sm:$0xff]
    %v1583 = vld [vmem:[#allocation2 + $0xfb0] sm:$0xff]
    %v1584 = vld [vmem:[#allocation2 + $0xfb8] sm:$0xff]
    %v1585 = vld [vmem:[#allocation2 + $0xfc0] sm:$0xff]
    %v1586 = vld [vmem:[#allocation2 + $0xfc8] sm:$0xff]
    %v1587 = vld [vmem:[#allocation2 + $0xfd0] sm:$0xff]
    %v1588 = vld [vmem:[#allocation2 + $0xfd8] sm:$0xff]
    %v1589 = vld [vmem:[#allocation2 + $0xfe0] sm:$0xff]
    %v1590 = vld [vmem:[#allocation2 + $0xfe8] sm:$0xff]
    %v1591 = vld [vmem:[#allocation2 + $0xff0] sm:$0xff]
    %v1592 = vld [vmem:[#allocation2 + $0xff8] sm:$0xff]
    %v1593 = vld [vmem:[#allocation2 + $0x1000] sm:$0xff]
    %v1594 = vld [vmem:[#allocation2 + $0x1008] sm:$0xff]
    %v1595 = vld [vmem:[#allocation2 + $0x1010] sm:$0xff]
    %v1596 = vld [vmem:[#allocation2 + $0x1018] sm:$0xff]
    %v1597 = vld [vmem:[#allocation2 + $0x1020] sm:$0xff]
    %v1598 = vld [vmem:[#allocation2 + $0x1028] sm:$0xff]
    %v1599 = vld [vmem:[#allocation2 + $0x1030] sm:$0xff]
    %v1600 = vld [vmem:[#allocation2 + $0x1038] sm:$0xff]
    %v1601 = vld [vmem:[#allocation2 + $0x1040] sm:$0xff]
    %v1602 = vld [vmem:[#allocation2 + $0x1048] sm:$0xff]
    %v1603 = vld [vmem:[#allocation2 + $0x1050] sm:$0xff]
    %v1604 = vld [vmem:[#allocation2 + $0x1058] sm:$0xff]
    %v1605 = vld [vmem:[#allocation2 + $0x1060] sm:$0xff]
    %v1606 = vld [vmem:[#allocation2 + $0x1068] sm:$0xff]
    %v1607 = vld [vmem:[#allocation2 + $0x1070] sm:$0xff]
    %v1608 = vld [vmem:[#allocation2 + $0x1078] sm:$0xff]
    %v1609 = vld [vmem:[#allocation2 + $0x1080] sm:$0xff]
    %v1610 = vld [vmem:[#allocation2 + $0x1088] sm:$0xff]
    %v1611 = vld [vmem:[#allocation2 + $0x1090] sm:$0xff]
    %v1612 = vld [vmem:[#allocation2 + $0x1098] sm:$0xff]
    %v1613 = vld [vmem:[#allocation2 + $0x10a0] sm:$0xff]
    %v1614 = vld [vmem:[#allocation2 + $0x10a8] sm:$0xff]
    %v1615 = vld [vmem:[#allocation2 + $0x10b0] sm:$0xff]
    %v1616 = vld [vmem:[#allocation2 + $0x10b8] sm:$0xff]
    %v1617 = vld [vmem:[#allocation2 + $0x10c0] sm:$0xff]
    %v1618 = vld [vmem:[#allocation2 + $0x10c8] sm:$0xff]
    %v1619 = vld [vmem:[#allocation2 + $0x10d0] sm:$0xff]
    %v1620 = vld [vmem:[#allocation2 + $0x10d8] sm:$0xff]
    %v1621 = vld [vmem:[#allocation2 + $0x10e0] sm:$0xff]
    %v1622 = vld [vmem:[#allocation2 + $0x10e8] sm:$0xff]
    %v1623 = vld [vmem:[#allocation2 + $0x10f0] sm:$0xff]
    %v1624 = vld [vmem:[#allocation2 + $0x10f8] sm:$0xff]
    %v1625 = vld [vmem:[#allocation2 + $0x1100] sm:$0xff]
    %v1626 = vld [vmem:[#allocation2 + $0x1108] sm:$0xff]
    %v1627 = vld [vmem:[#allocation2 + $0x1110] sm:$0xff]
    %v1628 = vld [vmem:[#allocation2 + $0x1118] sm:$0xff]
    %v1629 = vld [vmem:[#allocation2 + $0x1120] sm:$0xff]
    %v1630 = vld [vmem:[#allocation2 + $0x1128] sm:$0xff]
    %v1631 = vld [vmem:[#allocation2 + $0x1130] sm:$0xff]
    %v1632 = vld [vmem:[#allocation2 + $0x1138] sm:$0xff]
    %v1633 = vld [vmem:[#allocation2 + $0x1140] sm:$0xff]
    %v1634 = vld [vmem:[#allocation2 + $0x1148] sm:$0xff]
    %v1635 = vld [vmem:[#allocation2 + $0x1150] sm:$0xff]
    %v1636 = vld [vmem:[#allocation2 + $0x1158] sm:$0xff]
    %v1637 = vld [vmem:[#allocation2 + $0x1160] sm:$0xff]
    %v1638 = vld [vmem:[#allocation2 + $0x1168] sm:$0xff]
    %v1639 = vld [vmem:[#allocation2 + $0x1170] sm:$0xff]
    %v1640 = vld [vmem:[#allocation2 + $0x1178] sm:$0xff]
    %v1641 = vld [vmem:[#allocation2 + $0x1180] sm:$0xff]
    %v1642 = vld [vmem:[#allocation2 + $0x1188] sm:$0xff]
    %v1643 = vld [vmem:[#allocation2 + $0x1190] sm:$0xff]
    %v1644 = vld [vmem:[#allocation2 + $0x1198] sm:$0xff]
    %v1645 = vld [vmem:[#allocation2 + $0x11a0] sm:$0xff]
    %v1646 = vld [vmem:[#allocation2 + $0x11a8] sm:$0xff]
    %v1647 = vld [vmem:[#allocation2 + $0x11b0] sm:$0xff]
    %v1648 = vld [vmem:[#allocation2 + $0x11b8] sm:$0xff]
    %v1649 = vld [vmem:[#allocation2 + $0x11c0] sm:$0xff]
    %v1650 = vld [vmem:[#allocation2 + $0x11c8] sm:$0xff]
    %v1651 = vld [vmem:[#allocation2 + $0x11d0] sm:$0xff]
    %v1652 = vld [vmem:[#allocation2 + $0x11d8] sm:$0xff]
    %v1653 = vld [vmem:[#allocation2 + $0x11e0] sm:$0xff]
    %v1654 = vld [vmem:[#allocation2 + $0x11e8] sm:$0xff]
    %v1655 = vld [vmem:[#allocation2 + $0x11f0] sm:$0xff]
    %v1656 = vld [vmem:[#allocation2 + $0x11f8] sm:$0xff]
    %v1657 = vld [vmem:[#allocation2 + $0x1200] sm:$0xff]
    %v1658 = vld [vmem:[#allocation2 + $0x1208] sm:$0xff]
    %v1659 = vld [vmem:[#allocation2 + $0x1210] sm:$0xff]
    %v1660 = vld [vmem:[#allocation2 + $0x1218] sm:$0xff]
    %v1661 = vld [vmem:[#allocation2 + $0x1220] sm:$0xff]
    %v1662 = vld [vmem:[#allocation2 + $0x1228] sm:$0xff]
    %v1663 = vld [vmem:[#allocation2 + $0x1230] sm:$0xff]
    %v1664 = vld [vmem:[#allocation2 + $0x1238] sm:$0xff]
    %v1665 = vld [vmem:[#allocation2 + $0x1240] sm:$0xff]
    %v1666 = vld [vmem:[#allocation2 + $0x1248] sm:$0xff]
    %v1667 = vld [vmem:[#allocation2 + $0x1250] sm:$0xff]
    %v1668 = vld [vmem:[#allocation2 + $0x1258] sm:$0xff]
    %v1669 = vld [vmem:[#allocation2 + $0x1260] sm:$0xff]
    %v1670 = vld [vmem:[#allocation2 + $0x1268] sm:$0xff]
    %v1671 = vld [vmem:[#allocation2 + $0x1270] sm:$0xff]
    %v1672 = vld [vmem:[#allocation2 + $0x1278] sm:$0xff]
    %v1673 = vld [vmem:[#allocation2 + $0x1280] sm:$0xff]
    %v1674 = vld [vmem:[#allocation2 + $0x1288] sm:$0xff]
    %v1675 = vld [vmem:[#allocation2 + $0x1290] sm:$0xff]
    %v1676 = vld [vmem:[#allocation2 + $0x1298] sm:$0xff]
    %v1677 = vld [vmem:[#allocation2 + $0x12a0] sm:$0xff]
    %v1678 = vld [vmem:[#allocation2 + $0x12a8] sm:$0xff]
    %v1679 = vld [vmem:[#allocation2 + $0x12b0] sm:$0xff]
    %v1680 = vld [vmem:[#allocation2 + $0x12b8] sm:$0xff]
    %v1681 = vld [vmem:[#allocation2 + $0x12c0] sm:$0xff]
    %v1682 = vld [vmem:[#allocation2 + $0x12c8] sm:$0xff]
    %v1683 = vld [vmem:[#allocation2 + $0x12d0] sm:$0xff]
    %v1684 = vld [vmem:[#allocation2 + $0x12d8] sm:$0xff]
    %v1685 = vld [vmem:[#allocation2 + $0x12e0] sm:$0xff]
    %v1686 = vld [vmem:[#allocation2 + $0x12e8] sm:$0xff]
    %v1687 = vld [vmem:[#allocation2 + $0x12f0] sm:$0xff]
    %v1688 = vld [vmem:[#allocation2 + $0x12f8] sm:$0xff]
    %v1689 = vld [vmem:[#allocation2 + $0x1300] sm:$0xff]
    %v1690 = vld [vmem:[#allocation2 + $0x1308] sm:$0xff]
    %v1691 = vld [vmem:[#allocation2 + $0x1310] sm:$0xff]
    %v1692 = vld [vmem:[#allocation2 + $0x1318] sm:$0xff]
    %v1693 = vld [vmem:[#allocation2 + $0x1320] sm:$0xff]
    %v1694 = vld [vmem:[#allocation2 + $0x1328] sm:$0xff]
    %v1695 = vld [vmem:[#allocation2 + $0x1330] sm:$0xff]
    %v1696 = vld [vmem:[#allocation2 + $0x1338] sm:$0xff]
    %v1697 = vld [vmem:[#allocation2 + $0x1340] sm:$0xff]
    %v1698 = vld [vmem:[#allocation2 + $0x1348] sm:$0xff]
    %v1699 = vld [vmem:[#allocation2 + $0x1350] sm:$0xff]
    %v1700 = vld [vmem:[#allocation2 + $0x1358] sm:$0xff]
    %v1701 = vld [vmem:[#allocation2 + $0x1360] sm:$0xff]
    %v1702 = vld [vmem:[#allocation2 + $0x1368] sm:$0xff]
    %v1703 = vld [vmem:[#allocation2 + $0x1370] sm:$0xff]
    %v1704 = vld [vmem:[#allocation2 + $0x1378] sm:$0xff]
    %v1705 = vld [vmem:[#allocation2 + $0x1380] sm:$0xff]
    %v1706 = vld [vmem:[#allocation2 + $0x1388] sm:$0xff]
    %v1707 = vld [vmem:[#allocation2 + $0x1390] sm:$0xff]
    %v1708 = vld [vmem:[#allocation2 + $0x1398] sm:$0xff]
    %v1709 = vld [vmem:[#allocation2 + $0x13a0] sm:$0xff]
    %v1710 = vld [vmem:[#allocation2 + $0x13a8] sm:$0xff]
    %v1711 = vld [vmem:[#allocation2 + $0x13b0] sm:$0xff]
    %v1712 = vld [vmem:[#allocation2 + $0x13b8] sm:$0xff]
    %v1713 = vld [vmem:[#allocation2 + $0x13c0] sm:$0xff]
    %v1714 = vld [vmem:[#allocation2 + $0x13c8] sm:$0xff]
    %v1715 = vld [vmem:[#allocation2 + $0x13d0] sm:$0xff]
    %v1716 = vld [vmem:[#allocation2 + $0x13d8] sm:$0xff]
    %v1717 = vld [vmem:[#allocation2 + $0x13e0] sm:$0xff]
    %v1718 = vld [vmem:[#allocation2 + $0x13e8] sm:$0xff]
    %v1719 = vld [vmem:[#allocation2 + $0x13f0] sm:$0xff]
    %v1720 = vld [vmem:[#allocation2 + $0x13f8] sm:$0xff]
    %v1721 = vld [vmem:[#allocation2 + $0x1400] sm:$0xff]
    %v1722 = vld [vmem:[#allocation2 + $0x1408] sm:$0xff]
    %v1723 = vld [vmem:[#allocation2 + $0x1410] sm:$0xff]
    %v1724 = vld [vmem:[#allocation2 + $0x1418] sm:$0xff]
    %v1725 = vld [vmem:[#allocation2 + $0x1420] sm:$0xff]
    %v1726 = vld [vmem:[#allocation2 + $0x1428] sm:$0xff]
    %v1727 = vld [vmem:[#allocation2 + $0x1430] sm:$0xff]
    %v1728 = vld [vmem:[#allocation2 + $0x1438] sm:$0xff]
    %v1729 = vld [vmem:[#allocation2 + $0x1440] sm:$0xff]
    %v1730 = vld [vmem:[#allocation2 + $0x1448] sm:$0xff]
    %v1731 = vld [vmem:[#allocation2 + $0x1450] sm:$0xff]
    %v1732 = vld [vmem:[#allocation2 + $0x1458] sm:$0xff]
    %v1733 = vld [vmem:[#allocation2 + $0x1460] sm:$0xff]
    %v1734 = vld [vmem:[#allocation2 + $0x1468] sm:$0xff]
    %v1735 = vld [vmem:[#allocation2 + $0x1470] sm:$0xff]
    %v1736 = vld [vmem:[#allocation2 + $0x1478] sm:$0xff]
    %v1737 = vld [vmem:[#allocation2 + $0x1480] sm:$0xff]
    %v1738 = vld [vmem:[#allocation2 + $0x1488] sm:$0xff]
    %v1739 = vld [vmem:[#allocation2 + $0x1490] sm:$0xff]
    %v1740 = vld [vmem:[#allocation2 + $0x1498] sm:$0xff]
    %v1741 = vld [vmem:[#allocation2 + $0x14a0] sm:$0xff]
    %v1742 = vld [vmem:[#allocation2 + $0x14a8] sm:$0xff]
    %v1743 = vld [vmem:[#allocation2 + $0x14b0] sm:$0xff]
    %v1744 = vld [vmem:[#allocation2 + $0x14b8] sm:$0xff]
    %v1745 = vld [vmem:[#allocation2 + $0x14c0] sm:$0xff]
    %v1746 = vld [vmem:[#allocation2 + $0x14c8] sm:$0xff]
    %v1747 = vld [vmem:[#allocation2 + $0x14d0] sm:$0xff]
    %v1748 = vld [vmem:[#allocation2 + $0x14d8] sm:$0xff]
    %v1749 = vld [vmem:[#allocation2 + $0x14e0] sm:$0xff]
    %v1750 = vld [vmem:[#allocation2 + $0x14e8] sm:$0xff]
    %v1751 = vld [vmem:[#allocation2 + $0x14f0] sm:$0xff]
    %v1752 = vld [vmem:[#allocation2 + $0x14f8] sm:$0xff]
    %v1753 = vld [vmem:[#allocation2 + $0x1500] sm:$0xff]
    %v1754 = vld [vmem:[#allocation2 + $0x1508] sm:$0xff]
    %v1755 = vld [vmem:[#allocation2 + $0x1510] sm:$0xff]
    %v1756 = vld [vmem:[#allocation2 + $0x1518] sm:$0xff]
    %v1757 = vld [vmem:[#allocation2 + $0x1520] sm:$0xff]
    %v1758 = vld [vmem:[#allocation2 + $0x1528] sm:$0xff]
    %v1759 = vld [vmem:[#allocation2 + $0x1530] sm:$0xff]
    %v1760 = vld [vmem:[#allocation2 + $0x1538] sm:$0xff]
    %v1761 = vld [vmem:[#allocation2 + $0x1540] sm:$0xff]
    %v1762 = vld [vmem:[#allocation2 + $0x1548] sm:$0xff]
    %v1763 = vld [vmem:[#allocation2 + $0x1550] sm:$0xff]
    %v1764 = vld [vmem:[#allocation2 + $0x1558] sm:$0xff]
    %v1765 = vld [vmem:[#allocation2 + $0x1560] sm:$0xff]
    %v1766 = vld [vmem:[#allocation2 + $0x1568] sm:$0xff]
    %v1767 = vld [vmem:[#allocation2 + $0x1570] sm:$0xff]
    %v1768 = vld [vmem:[#allocation2 + $0x1578] sm:$0xff]
    %v1769 = vld [vmem:[#allocation2 + $0x1580] sm:$0xff]
    %v1770 = vld [vmem:[#allocation2 + $0x1588] sm:$0xff]
    %v1771 = vld [vmem:[#allocation2 + $0x1590] sm:$0xff]
    %v1772 = vld [vmem:[#allocation2 + $0x1598] sm:$0xff]
    %v1773 = vld [vmem:[#allocation2 + $0x15a0] sm:$0xff]
    %v1774 = vld [vmem:[#allocation2 + $0x15a8] sm:$0xff]
    %v1775 = vld [vmem:[#allocation2 + $0x15b0] sm:$0xff]
    %v1776 = vld [vmem:[#allocation2 + $0x15b8] sm:$0xff]
    %v1777 = vld [vmem:[#allocation2 + $0x15c0] sm:$0xff]
    %v1778 = vld [vmem:[#allocation2 + $0x15c8] sm:$0xff]
    %v1779 = vld [vmem:[#allocation2 + $0x15d0] sm:$0xff]
    %v1780 = vld [vmem:[#allocation2 + $0x15d8] sm:$0xff]
    %v1781 = vld [vmem:[#allocation2 + $0x15e0] sm:$0xff]
    %v1782 = vld [vmem:[#allocation2 + $0x15e8] sm:$0xff]
    %v1783 = vld [vmem:[#allocation2 + $0x15f0] sm:$0xff]
    %v1784 = vld [vmem:[#allocation2 + $0x15f8] sm:$0xff]
    %v1785 = vld [vmem:[#allocation2 + $0x1600] sm:$0xff]
    %v1786 = vld [vmem:[#allocation2 + $0x1608] sm:$0xff]
    %v1787 = vld [vmem:[#allocation2 + $0x1610] sm:$0xff]
    %v1788 = vld [vmem:[#allocation2 + $0x1618] sm:$0xff]
    %v1789 = vld [vmem:[#allocation2 + $0x1620] sm:$0xff]
    %v1790 = vld [vmem:[#allocation2 + $0x1628] sm:$0xff]
    %v1791 = vld [vmem:[#allocation2 + $0x1630] sm:$0xff]
    %v1792 = vld [vmem:[#allocation2 + $0x1638] sm:$0xff]
    %v1793 = vld [vmem:[#allocation2 + $0x1640] sm:$0xff]
    %v1794 = vld [vmem:[#allocation2 + $0x1648] sm:$0xff]
    %v1795 = vld [vmem:[#allocation2 + $0x1650] sm:$0xff]
    %v1796 = vld [vmem:[#allocation2 + $0x1658] sm:$0xff]
    %v1797 = vld [vmem:[#allocation2 + $0x1660] sm:$0xff]
    %v1798 = vld [vmem:[#allocation2 + $0x1668] sm:$0xff]
    %v1799 = vld [vmem:[#allocation2 + $0x1670] sm:$0xff]
    %v1800 = vld [vmem:[#allocation2 + $0x1678] sm:$0xff]
    %v1801 = vld [vmem:[#allocation2 + $0x1680] sm:$0xff]
    %v1802 = vld [vmem:[#allocation2 + $0x1688] sm:$0xff]
    %v1803 = vld [vmem:[#allocation2 + $0x1690] sm:$0xff]
    %v1804 = vld [vmem:[#allocation2 + $0x1698] sm:$0xff]
    %v1805 = vld [vmem:[#allocation2 + $0x16a0] sm:$0xff]
    %v1806 = vld [vmem:[#allocation2 + $0x16a8] sm:$0xff]
    %v1807 = vld [vmem:[#allocation2 + $0x16b0] sm:$0xff]
    %v1808 = vld [vmem:[#allocation2 + $0x16b8] sm:$0xff]
    %v1809 = vld [vmem:[#allocation2 + $0x16c0] sm:$0xff]
    %v1810 = vld [vmem:[#allocation2 + $0x16c8] sm:$0xff]
    %v1811 = vld [vmem:[#allocation2 + $0x16d0] sm:$0xff]
    %v1812 = vld [vmem:[#allocation2 + $0x16d8] sm:$0xff]
    %v1813 = vld [vmem:[#allocation2 + $0x16e0] sm:$0xff]
    %v1814 = vld [vmem:[#allocation2 + $0x16e8] sm:$0xff]
    %v1815 = vld [vmem:[#allocation2 + $0x16f0] sm:$0xff]
    %v1816 = vld [vmem:[#allocation2 + $0x16f8] sm:$0xff]
    %v1817 = vld [vmem:[#allocation2 + $0x1700] sm:$0xff]
    %v1818 = vld [vmem:[#allocation2 + $0x1708] sm:$0xff]
    %v1819 = vld [vmem:[#allocation2 + $0x1710] sm:$0xff]
    %v1820 = vld [vmem:[#allocation2 + $0x1718] sm:$0xff]
    %v1821 = vld [vmem:[#allocation2 + $0x1720] sm:$0xff]
    %v1822 = vld [vmem:[#allocation2 + $0x1728] sm:$0xff]
    %v1823 = vld [vmem:[#allocation2 + $0x1730] sm:$0xff]
    %v1824 = vld [vmem:[#allocation2 + $0x1738] sm:$0xff]
    %v1825 = vld [vmem:[#allocation2 + $0x1740] sm:$0xff]
    %v1826 = vld [vmem:[#allocation2 + $0x1748] sm:$0xff]
    %v1827 = vld [vmem:[#allocation2 + $0x1750] sm:$0xff]
    %v1828 = vld [vmem:[#allocation2 + $0x1758] sm:$0xff]
    %v1829 = vld [vmem:[#allocation2 + $0x1760] sm:$0xff]
    %v1830 = vld [vmem:[#allocation2 + $0x1768] sm:$0xff]
    %v1831 = vld [vmem:[#allocation2 + $0x1770] sm:$0xff]
    %v1832 = vld [vmem:[#allocation2 + $0x1778] sm:$0xff]
    %v1833 = vld [vmem:[#allocation2 + $0x1780] sm:$0xff]
    %v1834 = vld [vmem:[#allocation2 + $0x1788] sm:$0xff]
    %v1835 = vld [vmem:[#allocation2 + $0x1790] sm:$0xff]
    %v1836 = vld [vmem:[#allocation2 + $0x1798] sm:$0xff]
    %v1837 = vld [vmem:[#allocation2 + $0x17a0] sm:$0xff]
    %v1838 = vld [vmem:[#allocation2 + $0x17a8] sm:$0xff]
    %v1839 = vld [vmem:[#allocation2 + $0x17b0] sm:$0xff]
    %v1840 = vld [vmem:[#allocation2 + $0x17b8] sm:$0xff]
    %v1841 = vld [vmem:[#allocation2 + $0x17c0] sm:$0xff]
    %v1842 = vld [vmem:[#allocation2 + $0x17c8] sm:$0xff]
    %v1843 = vld [vmem:[#allocation2 + $0x17d0] sm:$0xff]
    %v1844 = vld [vmem:[#allocation2 + $0x17d8] sm:$0xff]
    %v1845 = vld [vmem:[#allocation2 + $0x17e0] sm:$0xff]
    %v1846 = vld [vmem:[#allocation2 + $0x17e8] sm:$0xff]
    %v1847 = vld [vmem:[#allocation2 + $0x17f0] sm:$0xff]
    %v1848 = vld [vmem:[#allocation2 + $0x17f8] sm:$0xff]
    %v1849 = vld [vmem:[#allocation2 + $0x1800] sm:$0xff]
    %v1850 = vld [vmem:[#allocation2 + $0x1808] sm:$0xff]
    %v1851 = vld [vmem:[#allocation2 + $0x1810] sm:$0xff]
    %v1852 = vld [vmem:[#allocation2 + $0x1818] sm:$0xff]
    %v1853 = vld [vmem:[#allocation2 + $0x1820] sm:$0xff]
    %v1854 = vld [vmem:[#allocation2 + $0x1828] sm:$0xff]
    %v1855 = vld [vmem:[#allocation2 + $0x1830] sm:$0xff]
    %v1856 = vld [vmem:[#allocation2 + $0x1838] sm:$0xff]
    %v1857 = vld [vmem:[#allocation2 + $0x1840] sm:$0xff]
    %v1858 = vld [vmem:[#allocation2 + $0x1848] sm:$0xff]
    %v1859 = vld [vmem:[#allocation2 + $0x1850] sm:$0xff]
    %v1860 = vld [vmem:[#allocation2 + $0x1858] sm:$0xff]
    %v1861 = vld [vmem:[#allocation2 + $0x1860] sm:$0xff]
    %v1862 = vld [vmem:[#allocation2 + $0x1868] sm:$0xff]
    %v1863 = vld [vmem:[#allocation2 + $0x1870] sm:$0xff]
    %v1864 = vld [vmem:[#allocation2 + $0x1878] sm:$0xff]
    %v1865 = vld [vmem:[#allocation2 + $0x1880] sm:$0xff]
    %v1866 = vld [vmem:[#allocation2 + $0x1888] sm:$0xff]
    %v1867 = vld [vmem:[#allocation2 + $0x1890] sm:$0xff]
    %v1868 = vld [vmem:[#allocation2 + $0x1898] sm:$0xff]
    %v1869 = vld [vmem:[#allocation2 + $0x18a0] sm:$0xff]
    %v1870 = vld [vmem:[#allocation2 + $0x18a8] sm:$0xff]
    %v1871 = vld [vmem:[#allocation2 + $0x18b0] sm:$0xff]
    %v1872 = vld [vmem:[#allocation2 + $0x18b8] sm:$0xff]
    %v1873 = vld [vmem:[#allocation2 + $0x18c0] sm:$0xff]
    %v1874 = vld [vmem:[#allocation2 + $0x18c8] sm:$0xff]
    %v1875 = vld [vmem:[#allocation2 + $0x18d0] sm:$0xff]
    %v1876 = vld [vmem:[#allocation2 + $0x18d8] sm:$0xff]
    %v1877 = vld [vmem:[#allocation2 + $0x18e0] sm:$0xff]
    %v1878 = vld [vmem:[#allocation2 + $0x18e8] sm:$0xff]
    %v1879 = vld [vmem:[#allocation2 + $0x18f0] sm:$0xff]
    %v1880 = vld [vmem:[#allocation2 + $0x18f8] sm:$0xff]
    %v1881 = vld [vmem:[#allocation2 + $0x1900] sm:$0xff]
    %v1882 = vld [vmem:[#allocation2 + $0x1908] sm:$0xff]
    %v1883 = vld [vmem:[#allocation2 + $0x1910] sm:$0xff]
    %v1884 = vld [vmem:[#allocation2 + $0x1918] sm:$0xff]
    %v1885 = vld [vmem:[#allocation2 + $0x1920] sm:$0xff]
    %v1886 = vld [vmem:[#allocation2 + $0x1928] sm:$0xff]
    %v1887 = vld [vmem:[#allocation2 + $0x1930] sm:$0xff]
    %v1888 = vld [vmem:[#allocation2 + $0x1938] sm:$0xff]
    %v1889 = vld [vmem:[#allocation2 + $0x1940] sm:$0xff]
    %v1890 = vld [vmem:[#allocation2 + $0x1948] sm:$0xff]
    %v1891 = vld [vmem:[#allocation2 + $0x1950] sm:$0xff]
    %v1892 = vld [vmem:[#allocation2 + $0x1958] sm:$0xff]
    %v1893 = vld [vmem:[#allocation2 + $0x1960] sm:$0xff]
    %v1894 = vld [vmem:[#allocation2 + $0x1968] sm:$0xff]
    %v1895 = vld [vmem:[#allocation2 + $0x1970] sm:$0xff]
    %v1896 = vld [vmem:[#allocation2 + $0x1978] sm:$0xff]
    %v1897 = vld [vmem:[#allocation2 + $0x1980] sm:$0xff]
    %v1898 = vld [vmem:[#allocation2 + $0x1988] sm:$0xff]
    %v1899 = vld [vmem:[#allocation2 + $0x1990] sm:$0xff]
    %v1900 = vld [vmem:[#allocation2 + $0x1998] sm:$0xff]
    %v1901 = vld [vmem:[#allocation2 + $0x19a0] sm:$0xff]
    %v1902 = vld [vmem:[#allocation2 + $0x19a8] sm:$0xff]
    %v1903 = vld [vmem:[#allocation2 + $0x19b0] sm:$0xff]
    %v1904 = vld [vmem:[#allocation2 + $0x19b8] sm:$0xff]
    %v1905 = vld [vmem:[#allocation2 + $0x19c0] sm:$0xff]
    %v1906 = vld [vmem:[#allocation2 + $0x19c8] sm:$0xff]
    %v1907 = vld [vmem:[#allocation2 + $0x19d0] sm:$0xff]
    %v1908 = vld [vmem:[#allocation2 + $0x19d8] sm:$0xff]
    %v1909 = vld [vmem:[#allocation2 + $0x19e0] sm:$0xff]
    %v1910 = vld [vmem:[#allocation2 + $0x19e8] sm:$0xff]
    %v1911 = vld [vmem:[#allocation2 + $0x19f0] sm:$0xff]
    %v1912 = vld [vmem:[#allocation2 + $0x19f8] sm:$0xff]
    %v1913 = vld [vmem:[#allocation2 + $0x1a00] sm:$0xff]
    %v1914 = vld [vmem:[#allocation2 + $0x1a08] sm:$0xff]
    %v1915 = vld [vmem:[#allocation2 + $0x1a10] sm:$0xff]
    %v1916 = vld [vmem:[#allocation2 + $0x1a18] sm:$0xff]
    %v1917 = vld [vmem:[#allocation2 + $0x1a20] sm:$0xff]
    %v1918 = vld [vmem:[#allocation2 + $0x1a28] sm:$0xff]
    %v1919 = vld [vmem:[#allocation2 + $0x1a30] sm:$0xff]
    %v1920 = vld [vmem:[#allocation2 + $0x1a38] sm:$0xff]
    %v1921 = vld [vmem:[#allocation2 + $0x1a40] sm:$0xff]
    %v1922 = vld [vmem:[#allocation2 + $0x1a48] sm:$0xff]
    %v1923 = vld [vmem:[#allocation2 + $0x1a50] sm:$0xff]
    %v1924 = vld [vmem:[#allocation2 + $0x1a58] sm:$0xff]
    %v1925 = vld [vmem:[#allocation2 + $0x1a60] sm:$0xff]
    %v1926 = vld [vmem:[#allocation2 + $0x1a68] sm:$0xff]
    %v1927 = vld [vmem:[#allocation2 + $0x1a70] sm:$0xff]
    %v1928 = vld [vmem:[#allocation2 + $0x1a78] sm:$0xff]
    %v1929 = vld [vmem:[#allocation2 + $0x1a80] sm:$0xff]
    %v1930 = vld [vmem:[#allocation2 + $0x1a88] sm:$0xff]
    %v1931 = vld [vmem:[#allocation2 + $0x1a90] sm:$0xff]
    %v1932 = vld [vmem:[#allocation2 + $0x1a98] sm:$0xff]
    %v1933 = vld [vmem:[#allocation2 + $0x1aa0] sm:$0xff]
    %v1934 = vld [vmem:[#allocation2 + $0x1aa8] sm:$0xff]
    %v1935 = vld [vmem:[#allocation2 + $0x1ab0] sm:$0xff]
    %v1936 = vld [vmem:[#allocation2 + $0x1ab8] sm:$0xff]
    %v1937 = vld [vmem:[#allocation2 + $0x1ac0] sm:$0xff]
    %v1938 = vld [vmem:[#allocation2 + $0x1ac8] sm:$0xff]
    %v1939 = vld [vmem:[#allocation2 + $0x1ad0] sm:$0xff]
    %v1940 = vld [vmem:[#allocation2 + $0x1ad8] sm:$0xff]
    %v1941 = vld [vmem:[#allocation2 + $0x1ae0] sm:$0xff]
    %v1942 = vld [vmem:[#allocation2 + $0x1ae8] sm:$0xff]
    %v1943 = vld [vmem:[#allocation2 + $0x1af0] sm:$0xff]
    %v1944 = vld [vmem:[#allocation2 + $0x1af8] sm:$0xff]
    %v1945 = vld [vmem:[#allocation2 + $0x1b00] sm:$0xff]
    %v1946 = vld [vmem:[#allocation2 + $0x1b08] sm:$0xff]
    %v1947 = vld [vmem:[#allocation2 + $0x1b10] sm:$0xff]
    %v1948 = vld [vmem:[#allocation2 + $0x1b18] sm:$0xff]
    %v1949 = vld [vmem:[#allocation2 + $0x1b20] sm:$0xff]
    %v1950 = vld [vmem:[#allocation2 + $0x1b28] sm:$0xff]
    %v1951 = vld [vmem:[#allocation2 + $0x1b30] sm:$0xff]
    %v1952 = vld [vmem:[#allocation2 + $0x1b38] sm:$0xff]
    %v1953 = vld [vmem:[#allocation2 + $0x1b40] sm:$0xff]
    %v1954 = vld [vmem:[#allocation2 + $0x1b48] sm:$0xff]
    %v1955 = vld [vmem:[#allocation2 + $0x1b50] sm:$0xff]
    %v1956 = vld [vmem:[#allocation2 + $0x1b58] sm:$0xff]
    %v1957 = vld [vmem:[#allocation2 + $0x1b60] sm:$0xff]
    %v1958 = vld [vmem:[#allocation2 + $0x1b68] sm:$0xff]
    %v1959 = vld [vmem:[#allocation2 + $0x1b70] sm:$0xff]
    %v1960 = vld [vmem:[#allocation2 + $0x1b78] sm:$0xff]
    %v1961 = vld [vmem:[#allocation2 + $0x1b80] sm:$0xff]
    %v1962 = vld [vmem:[#allocation2 + $0x1b88] sm:$0xff]
    %v1963 = vld [vmem:[#allocation2 + $0x1b90] sm:$0xff]
    %v1964 = vld [vmem:[#allocation2 + $0x1b98] sm:$0xff]
    %v1965 = vld [vmem:[#allocation2 + $0x1ba0] sm:$0xff]
    %v1966 = vld [vmem:[#allocation2 + $0x1ba8] sm:$0xff]
    %v1967 = vld [vmem:[#allocation2 + $0x1bb0] sm:$0xff]
    %v1968 = vld [vmem:[#allocation2 + $0x1bb8] sm:$0xff]
    %v1969 = vld [vmem:[#allocation2 + $0x1bc0] sm:$0xff]
    %v1970 = vld [vmem:[#allocation2 + $0x1bc8] sm:$0xff]
    %v1971 = vld [vmem:[#allocation2 + $0x1bd0] sm:$0xff]
    %v1972 = vld [vmem:[#allocation2 + $0x1bd8] sm:$0xff]
    %v1973 = vld [vmem:[#allocation2 + $0x1be0] sm:$0xff]
    %v1974 = vld [vmem:[#allocation2 + $0x1be8] sm:$0xff]
    %v1975 = vld [vmem:[#allocation2 + $0x1bf0] sm:$0xff]
    %v1976 = vld [vmem:[#allocation2 + $0x1bf8] sm:$0xff]
    %v1977 = vld [vmem:[#allocation2 + $0x1c00] sm:$0xff]
    %v1978 = vld [vmem:[#allocation2 + $0x1c08] sm:$0xff]
    %v1979 = vld [vmem:[#allocation2 + $0x1c10] sm:$0xff]
    %v1980 = vld [vmem:[#allocation2 + $0x1c18] sm:$0xff]
    %v1981 = vld [vmem:[#allocation2 + $0x1c20] sm:$0xff]
    %v1982 = vld [vmem:[#allocation2 + $0x1c28] sm:$0xff]
    %v1983 = vld [vmem:[#allocation2 + $0x1c30] sm:$0xff]
    %v1984 = vld [vmem:[#allocation2 + $0x1c38] sm:$0xff]
    %v1985 = vld [vmem:[#allocation2 + $0x1c40] sm:$0xff]
    %v1986 = vld [vmem:[#allocation2 + $0x1c48] sm:$0xff]
    %v1987 = vld [vmem:[#allocation2 + $0x1c50] sm:$0xff]
    %v1988 = vld [vmem:[#allocation2 + $0x1c58] sm:$0xff]
    %v1989 = vld [vmem:[#allocation2 + $0x1c60] sm:$0xff]
    %v1990 = vld [vmem:[#allocation2 + $0x1c68] sm:$0xff]
    %v1991 = vld [vmem:[#allocation2 + $0x1c70] sm:$0xff]
    %v1992 = vld [vmem:[#allocation2 + $0x1c78] sm:$0xff]
    %v1993 = vld [vmem:[#allocation2 + $0x1c80] sm:$0xff]
    %v1994 = vld [vmem:[#allocation2 + $0x1c88] sm:$0xff]
    %v1995 = vld [vmem:[#allocation2 + $0x1c90] sm:$0xff]
    %v1996 = vld [vmem:[#allocation2 + $0x1c98] sm:$0xff]
    %v1997 = vld [vmem:[#allocation2 + $0x1ca0] sm:$0xff]
    %v1998 = vld [vmem:[#allocation2 + $0x1ca8] sm:$0xff]
    %v1999 = vld [vmem:[#allocation2 + $0x1cb0] sm:$0xff]
    %v2000 = vld [vmem:[#allocation2 + $0x1cb8] sm:$0xff]
    %v2001 = vld [vmem:[#allocation2 + $0x1cc0] sm:$0xff]
    %v2002 = vld [vmem:[#allocation2 + $0x1cc8] sm:$0xff]
    %v2003 = vld [vmem:[#allocation2 + $0x1cd0] sm:$0xff]
    %v2004 = vld [vmem:[#allocation2 + $0x1cd8] sm:$0xff]
    %v2005 = vld [vmem:[#allocation2 + $0x1ce0] sm:$0xff]
    %v2006 = vld [vmem:[#allocation2 + $0x1ce8] sm:$0xff]
    %v2007 = vld [vmem:[#allocation2 + $0x1cf0] sm:$0xff]
    %v2008 = vld [vmem:[#allocation2 + $0x1cf8] sm:$0xff]
    %v2009 = vld [vmem:[#allocation2 + $0x1d00] sm:$0xff]
    %v2010 = vld [vmem:[#allocation2 + $0x1d08] sm:$0xff]
    %v2011 = vld [vmem:[#allocation2 + $0x1d10] sm:$0xff]
    %v2012 = vld [vmem:[#allocation2 + $0x1d18] sm:$0xff]
    %v2013 = vld [vmem:[#allocation2 + $0x1d20] sm:$0xff]
    %v2014 = vld [vmem:[#allocation2 + $0x1d28] sm:$0xff]
    %v2015 = vld [vmem:[#allocation2 + $0x1d30] sm:$0xff]
    %v2016 = vld [vmem:[#allocation2 + $0x1d38] sm:$0xff]
    %v2017 = vld [vmem:[#allocation2 + $0x1d40] sm:$0xff]
    %v2018 = vld [vmem:[#allocation2 + $0x1d48] sm:$0xff]
    %v2019 = vld [vmem:[#allocation2 + $0x1d50] sm:$0xff]
    %v2020 = vld [vmem:[#allocation2 + $0x1d58] sm:$0xff]
    %v2021 = vld [vmem:[#allocation2 + $0x1d60] sm:$0xff]
    %v2022 = vld [vmem:[#allocation2 + $0x1d68] sm:$0xff]
    %v2023 = vld [vmem:[#allocation2 + $0x1d70] sm:$0xff]
    %v2024 = vld [vmem:[#allocation2 + $0x1d78] sm:$0xff]
    %v2025 = vld [vmem:[#allocation2 + $0x1d80] sm:$0xff]
    %v2026 = vld [vmem:[#allocation2 + $0x1d88] sm:$0xff]
    %v2027 = vld [vmem:[#allocation2 + $0x1d90] sm:$0xff]
    %v2028 = vld [vmem:[#allocation2 + $0x1d98] sm:$0xff]
    %v2029 = vld [vmem:[#allocation2 + $0x1da0] sm:$0xff]
    %v2030 = vld [vmem:[#allocation2 + $0x1da8] sm:$0xff]
    %v2031 = vld [vmem:[#allocation2 + $0x1db0] sm:$0xff]
    %v2032 = vld [vmem:[#allocation2 + $0x1db8] sm:$0xff]
    %v2033 = vld [vmem:[#allocation2 + $0x1dc0] sm:$0xff]
    %v2034 = vld [vmem:[#allocation2 + $0x1dc8] sm:$0xff]
    %v2035 = vld [vmem:[#allocation2 + $0x1dd0] sm:$0xff]
    %v2036 = vld [vmem:[#allocation2 + $0x1dd8] sm:$0xff]
    %v2037 = vld [vmem:[#allocation2 + $0x1de0] sm:$0xff]
    %v2038 = vld [vmem:[#allocation2 + $0x1de8] sm:$0xff]
    %v2039 = vld [vmem:[#allocation2 + $0x1df0] sm:$0xff]
    %v2040 = vld [vmem:[#allocation2 + $0x1df8] sm:$0xff]
    %v2041 = vld [vmem:[#allocation2 + $0x1e00] sm:$0xff]
    %v2042 = vld [vmem:[#allocation2 + $0x1e08] sm:$0xff]
    %v2043 = vld [vmem:[#allocation2 + $0x1e10] sm:$0xff]
    %v2044 = vld [vmem:[#allocation2 + $0x1e18] sm:$0xff]
    %v2045 = vld [vmem:[#allocation2 + $0x1e20] sm:$0xff]
    %v2046 = vld [vmem:[#allocation2 + $0x1e28] sm:$0xff]
    %v2047 = vld [vmem:[#allocation2 + $0x1e30] sm:$0xff]
    %v2048 = vld [vmem:[#allocation2 + $0x1e38] sm:$0xff]
    %v2049 = vld [vmem:[#allocation2 + $0x1e40] sm:$0xff]
    %v2050 = vld [vmem:[#allocation2 + $0x1e48] sm:$0xff]
    %v2051 = vld [vmem:[#allocation2 + $0x1e50] sm:$0xff]
    %v2052 = vld [vmem:[#allocation2 + $0x1e58] sm:$0xff]
    %v2053 = vld [vmem:[#allocation2 + $0x1e60] sm:$0xff]
    %v2054 = vld [vmem:[#allocation2 + $0x1e68] sm:$0xff]
    %v2055 = vld [vmem:[#allocation2 + $0x1e70] sm:$0xff]
    %v2056 = vld [vmem:[#allocation2 + $0x1e78] sm:$0xff]
    %v2057 = vld [vmem:[#allocation2 + $0x1e80] sm:$0xff]
    %v2058 = vld [vmem:[#allocation2 + $0x1e88] sm:$0xff]
    %v2059 = vld [vmem:[#allocation2 + $0x1e90] sm:$0xff]
    %v2060 = vld [vmem:[#allocation2 + $0x1e98] sm:$0xff]
    %v2061 = vld [vmem:[#allocation2 + $0x1ea0] sm:$0xff]
    %v2062 = vld [vmem:[#allocation2 + $0x1ea8] sm:$0xff]
    %v2063 = vld [vmem:[#allocation2 + $0x1eb0] sm:$0xff]
    %v2064 = vld [vmem:[#allocation2 + $0x1eb8] sm:$0xff]
    %v2065 = vld [vmem:[#allocation2 + $0x1ec0] sm:$0xff]
    %v2066 = vld [vmem:[#allocation2 + $0x1ec8] sm:$0xff]
    %v2067 = vld [vmem:[#allocation2 + $0x1ed0] sm:$0xff]
    %v2068 = vld [vmem:[#allocation2 + $0x1ed8] sm:$0xff]
    %v2069 = vld [vmem:[#allocation2 + $0x1ee0] sm:$0xff]
    %v2070 = vld [vmem:[#allocation2 + $0x1ee8] sm:$0xff]
    %v2071 = vld [vmem:[#allocation2 + $0x1ef0] sm:$0xff]
    %v2072 = vld [vmem:[#allocation2 + $0x1ef8] sm:$0xff]
    %v2073 = vld [vmem:[#allocation2 + $0x1f00] sm:$0xff]
    %v2074 = vld [vmem:[#allocation2 + $0x1f08] sm:$0xff]
    %v2075 = vld [vmem:[#allocation2 + $0x1f10] sm:$0xff]
    %v2076 = vld [vmem:[#allocation2 + $0x1f18] sm:$0xff]
    %v2077 = vld [vmem:[#allocation2 + $0x1f20] sm:$0xff]
    %v2078 = vld [vmem:[#allocation2 + $0x1f28] sm:$0xff]
    %v2079 = vld [vmem:[#allocation2 + $0x1f30] sm:$0xff]
    %v2080 = vld [vmem:[#allocation2 + $0x1f38] sm:$0xff]
    %v2081 = vld [vmem:[#allocation2 + $0x1f40] sm:$0xff]
    %v2082 = vld [vmem:[#allocation2 + $0x1f48] sm:$0xff]
    %v2083 = vld [vmem:[#allocation2 + $0x1f50] sm:$0xff]
    %v2084 = vld [vmem:[#allocation2 + $0x1f58] sm:$0xff]
    %v2085 = vld [vmem:[#allocation2 + $0x1f60] sm:$0xff]
    %v2086 = vld [vmem:[#allocation2 + $0x1f68] sm:$0xff]
    %v2087 = vld [vmem:[#allocation2 + $0x1f70] sm:$0xff]
    %v2088 = vld [vmem:[#allocation2 + $0x1f78] sm:$0xff]
    %v2089 = vld [vmem:[#allocation2 + $0x1f80] sm:$0xff]
    %v2090 = vld [vmem:[#allocation2 + $0x1f88] sm:$0xff]
    %v2091 = vld [vmem:[#allocation2 + $0x1f90] sm:$0xff]
    %v2092 = vld [vmem:[#allocation2 + $0x1f98] sm:$0xff]
    %v2093 = vld [vmem:[#allocation2 + $0x1fa0] sm:$0xff]
    %v2094 = vld [vmem:[#allocation2 + $0x1fa8] sm:$0xff]
    %v2095 = vld [vmem:[#allocation2 + $0x1fb0] sm:$0xff]
    %v2096 = vld [vmem:[#allocation2 + $0x1fb8] sm:$0xff]
    %v2097 = vld [vmem:[#allocation2 + $0x1fc0] sm:$0xff]
    %v2098 = vld [vmem:[#allocation2 + $0x1fc8] sm:$0xff]
    %v2099 = vld [vmem:[#allocation2 + $0x1fd0] sm:$0xff]
    %v2100 = vld [vmem:[#allocation2 + $0x1fd8] sm:$0xff]
    %v2101 = vld [vmem:[#allocation2 + $0x1fe0] sm:$0xff]
    %v2102 = vld [vmem:[#allocation2 + $0x1fe8] sm:$0xff]
    %v2103 = vld [vmem:[#allocation2 + $0x1ff0] sm:$0xff]
    %v2104 = vld [vmem:[#allocation2 + $0x1ff8] sm:$0xff]
    %v3129 = vunpack.c.l.b16 %v1081
    %v3130 = vunpack.c.h.b16 %v1081
    %v3131 = vunpack.c.l.b16 %v1082
    %v3132 = vunpack.c.h.b16 %v1082
    %v3133 = vunpack.c.l.b16 %v1083
    %v3134 = vunpack.c.h.b16 %v1083
    %v3135 = vunpack.c.l.b16 %v1084
    %v3136 = vunpack.c.h.b16 %v1084
    %v3137 = vunpack.c.l.b16 %v1085
    %v3138 = vunpack.c.h.b16 %v1085
    %v3139 = vunpack.c.l.b16 %v1086
    %v3140 = vunpack.c.h.b16 %v1086
    %v3141 = vunpack.c.l.b16 %v1087
    %v3142 = vunpack.c.h.b16 %v1087
    %v3143 = vunpack.c.l.b16 %v1088
    %v3144 = vunpack.c.h.b16 %v1088
    %v3145 = vunpack.c.l.b16 %v1089
    %v3146 = vunpack.c.h.b16 %v1089
    %v3147 = vunpack.c.l.b16 %v1090
    %v3148 = vunpack.c.h.b16 %v1090
    %v3149 = vunpack.c.l.b16 %v1091
    %v3150 = vunpack.c.h.b16 %v1091
    %v3151 = vunpack.c.l.b16 %v1092
    %v3152 = vunpack.c.h.b16 %v1092
    %v3153 = vunpack.c.l.b16 %v1093
    %v3154 = vunpack.c.h.b16 %v1093
    %v3155 = vunpack.c.l.b16 %v1094
    %v3156 = vunpack.c.h.b16 %v1094
    %v3157 = vunpack.c.l.b16 %v1095
    %v3158 = vunpack.c.h.b16 %v1095
    %v3159 = vunpack.c.l.b16 %v1096
    %v3160 = vunpack.c.h.b16 %v1096
    %v3161 = vunpack.c.l.b16 %v1097
    %v3162 = vunpack.c.h.b16 %v1097
    %v3163 = vunpack.c.l.b16 %v1098
    %v3164 = vunpack.c.h.b16 %v1098
    %v3165 = vunpack.c.l.b16 %v1099
    %v3166 = vunpack.c.h.b16 %v1099
    %v3167 = vunpack.c.l.b16 %v1100
    %v3168 = vunpack.c.h.b16 %v1100
    %v3169 = vunpack.c.l.b16 %v1101
    %v3170 = vunpack.c.h.b16 %v1101
    %v3171 = vunpack.c.l.b16 %v1102
    %v3172 = vunpack.c.h.b16 %v1102
    %v3173 = vunpack.c.l.b16 %v1103
    %v3174 = vunpack.c.h.b16 %v1103
    %v3175 = vunpack.c.l.b16 %v1104
    %v3176 = vunpack.c.h.b16 %v1104
    %v3177 = vunpack.c.l.b16 %v1105
    %v3178 = vunpack.c.h.b16 %v1105
    %v3179 = vunpack.c.l.b16 %v1106
    %v3180 = vunpack.c.h.b16 %v1106
    %v3181 = vunpack.c.l.b16 %v1107
    %v3182 = vunpack.c.h.b16 %v1107
    %v3183 = vunpack.c.l.b16 %v1108
    %v3184 = vunpack.c.h.b16 %v1108
    %v3185 = vunpack.c.l.b16 %v1109
    %v3186 = vunpack.c.h.b16 %v1109
    %v3187 = vunpack.c.l.b16 %v1110
    %v3188 = vunpack.c.h.b16 %v1110
    %v3189 = vunpack.c.l.b16 %v1111
    %v3190 = vunpack.c.h.b16 %v1111
    %v3191 = vunpack.c.l.b16 %v1112
    %v3192 = vunpack.c.h.b16 %v1112
    %v3193 = vunpack.c.l.b16 %v1113
    %v3194 = vunpack.c.h.b16 %v1113
    %v3195 = vunpack.c.l.b16 %v1114
    %v3196 = vunpack.c.h.b16 %v1114
    %v3197 = vunpack.c.l.b16 %v1115
    %v3198 = vunpack.c.h.b16 %v1115
    %v3199 = vunpack.c.l.b16 %v1116
    %v3200 = vunpack.c.h.b16 %v1116
    %v3201 = vunpack.c.l.b16 %v1117
    %v3202 = vunpack.c.h.b16 %v1117
    %v3203 = vunpack.c.l.b16 %v1118
    %v3204 = vunpack.c.h.b16 %v1118
    %v3205 = vunpack.c.l.b16 %v1119
    %v3206 = vunpack.c.h.b16 %v1119
    %v3207 = vunpack.c.l.b16 %v1120
    %v3208 = vunpack.c.h.b16 %v1120
    %v3209 = vunpack.c.l.b16 %v1121
    %v3210 = vunpack.c.h.b16 %v1121
    %v3211 = vunpack.c.l.b16 %v1122
    %v3212 = vunpack.c.h.b16 %v1122
    %v3213 = vunpack.c.l.b16 %v1123
    %v3214 = vunpack.c.h.b16 %v1123
    %v3215 = vunpack.c.l.b16 %v1124
    %v3216 = vunpack.c.h.b16 %v1124
    %v3217 = vunpack.c.l.b16 %v1125
    %v3218 = vunpack.c.h.b16 %v1125
    %v3219 = vunpack.c.l.b16 %v1126
    %v3220 = vunpack.c.h.b16 %v1126
    %v3221 = vunpack.c.l.b16 %v1127
    %v3222 = vunpack.c.h.b16 %v1127
    %v3223 = vunpack.c.l.b16 %v1128
    %v3224 = vunpack.c.h.b16 %v1128
    %v3225 = vunpack.c.l.b16 %v1129
    %v3226 = vunpack.c.h.b16 %v1129
    %v3227 = vunpack.c.l.b16 %v1130
    %v3228 = vunpack.c.h.b16 %v1130
    %v3229 = vunpack.c.l.b16 %v1131
    %v3230 = vunpack.c.h.b16 %v1131
    %v3231 = vunpack.c.l.b16 %v1132
    %v3232 = vunpack.c.h.b16 %v1132
    %v3233 = vunpack.c.l.b16 %v1133
    %v3234 = vunpack.c.h.b16 %v1133
    %v3235 = vunpack.c.l.b16 %v1134
    %v3236 = vunpack.c.h.b16 %v1134
    %v3237 = vunpack.c.l.b16 %v1135
    %v3238 = vunpack.c.h.b16 %v1135
    %v3239 = vunpack.c.l.b16 %v1136
    %v3240 = vunpack.c.h.b16 %v1136
    %v3241 = vunpack.c.l.b16 %v1137
    %v3242 = vunpack.c.h.b16 %v1137
    %v3243 = vunpack.c.l.b16 %v1138
    %v3244 = vunpack.c.h.b16 %v1138
    %v3245 = vunpack.c.l.b16 %v1139
    %v3246 = vunpack.c.h.b16 %v1139
    %v3247 = vunpack.c.l.b16 %v1140
    %v3248 = vunpack.c.h.b16 %v1140
    %v3249 = vunpack.c.l.b16 %v1141
    %v3250 = vunpack.c.h.b16 %v1141
    %v3251 = vunpack.c.l.b16 %v1142
    %v3252 = vunpack.c.h.b16 %v1142
    %v3253 = vunpack.c.l.b16 %v1143
    %v3254 = vunpack.c.h.b16 %v1143
    %v3255 = vunpack.c.l.b16 %v1144
    %v3256 = vunpack.c.h.b16 %v1144
    %v3257 = vunpack.c.l.b16 %v1145
    %v3258 = vunpack.c.h.b16 %v1145
    %v3259 = vunpack.c.l.b16 %v1146
    %v3260 = vunpack.c.h.b16 %v1146
    %v3261 = vunpack.c.l.b16 %v1147
    %v3262 = vunpack.c.h.b16 %v1147
    %v3263 = vunpack.c.l.b16 %v1148
    %v3264 = vunpack.c.h.b16 %v1148
    %v3265 = vunpack.c.l.b16 %v1149
    %v3266 = vunpack.c.h.b16 %v1149
    %v3267 = vunpack.c.l.b16 %v1150
    %v3268 = vunpack.c.h.b16 %v1150
    %v3269 = vunpack.c.l.b16 %v1151
    %v3270 = vunpack.c.h.b16 %v1151
    %v3271 = vunpack.c.l.b16 %v1152
    %v3272 = vunpack.c.h.b16 %v1152
    %v3273 = vunpack.c.l.b16 %v1153
    %v3274 = vunpack.c.h.b16 %v1153
    %v3275 = vunpack.c.l.b16 %v1154
    %v3276 = vunpack.c.h.b16 %v1154
    %v3277 = vunpack.c.l.b16 %v1155
    %v3278 = vunpack.c.h.b16 %v1155
    %v3279 = vunpack.c.l.b16 %v1156
    %v3280 = vunpack.c.h.b16 %v1156
    %v3281 = vunpack.c.l.b16 %v1157
    %v3282 = vunpack.c.h.b16 %v1157
    %v3283 = vunpack.c.l.b16 %v1158
    %v3284 = vunpack.c.h.b16 %v1158
    %v3285 = vunpack.c.l.b16 %v1159
    %v3286 = vunpack.c.h.b16 %v1159
    %v3287 = vunpack.c.l.b16 %v1160
    %v3288 = vunpack.c.h.b16 %v1160
    %v3289 = vunpack.c.l.b16 %v1161
    %v3290 = vunpack.c.h.b16 %v1161
    %v3291 = vunpack.c.l.b16 %v1162
    %v3292 = vunpack.c.h.b16 %v1162
    %v3293 = vunpack.c.l.b16 %v1163
    %v3294 = vunpack.c.h.b16 %v1163
    %v3295 = vunpack.c.l.b16 %v1164
    %v3296 = vunpack.c.h.b16 %v1164
    %v3297 = vunpack.c.l.b16 %v1165
    %v3298 = vunpack.c.h.b16 %v1165
    %v3299 = vunpack.c.l.b16 %v1166
    %v3300 = vunpack.c.h.b16 %v1166
    %v3301 = vunpack.c.l.b16 %v1167
    %v3302 = vunpack.c.h.b16 %v1167
    %v3303 = vunpack.c.l.b16 %v1168
    %v3304 = vunpack.c.h.b16 %v1168
    %v3305 = vunpack.c.l.b16 %v1169
    %v3306 = vunpack.c.h.b16 %v1169
    %v3307 = vunpack.c.l.b16 %v1170
    %v3308 = vunpack.c.h.b16 %v1170
    %v3309 = vunpack.c.l.b16 %v1171
    %v3310 = vunpack.c.h.b16 %v1171
    %v3311 = vunpack.c.l.b16 %v1172
    %v3312 = vunpack.c.h.b16 %v1172
    %v3313 = vunpack.c.l.b16 %v1173
    %v3314 = vunpack.c.h.b16 %v1173
    %v3315 = vunpack.c.l.b16 %v1174
    %v3316 = vunpack.c.h.b16 %v1174
    %v3317 = vunpack.c.l.b16 %v1175
    %v3318 = vunpack.c.h.b16 %v1175
    %v3319 = vunpack.c.l.b16 %v1176
    %v3320 = vunpack.c.h.b16 %v1176
    %v3321 = vunpack.c.l.b16 %v1177
    %v3322 = vunpack.c.h.b16 %v1177
    %v3323 = vunpack.c.l.b16 %v1178
    %v3324 = vunpack.c.h.b16 %v1178
    %v3325 = vunpack.c.l.b16 %v1179
    %v3326 = vunpack.c.h.b16 %v1179
    %v3327 = vunpack.c.l.b16 %v1180
    %v3328 = vunpack.c.h.b16 %v1180
    %v3329 = vunpack.c.l.b16 %v1181
    %v3330 = vunpack.c.h.b16 %v1181
    %v3331 = vunpack.c.l.b16 %v1182
    %v3332 = vunpack.c.h.b16 %v1182
    %v3333 = vunpack.c.l.b16 %v1183
    %v3334 = vunpack.c.h.b16 %v1183
    %v3335 = vunpack.c.l.b16 %v1184
    %v3336 = vunpack.c.h.b16 %v1184
    %v3337 = vunpack.c.l.b16 %v1185
    %v3338 = vunpack.c.h.b16 %v1185
    %v3339 = vunpack.c.l.b16 %v1186
    %v3340 = vunpack.c.h.b16 %v1186
    %v3341 = vunpack.c.l.b16 %v1187
    %v3342 = vunpack.c.h.b16 %v1187
    %v3343 = vunpack.c.l.b16 %v1188
    %v3344 = vunpack.c.h.b16 %v1188
    %v3345 = vunpack.c.l.b16 %v1189
    %v3346 = vunpack.c.h.b16 %v1189
    %v3347 = vunpack.c.l.b16 %v1190
    %v3348 = vunpack.c.h.b16 %v1190
    %v3349 = vunpack.c.l.b16 %v1191
    %v3350 = vunpack.c.h.b16 %v1191
    %v3351 = vunpack.c.l.b16 %v1192
    %v3352 = vunpack.c.h.b16 %v1192
    %v3353 = vunpack.c.l.b16 %v1193
    %v3354 = vunpack.c.h.b16 %v1193
    %v3355 = vunpack.c.l.b16 %v1194
    %v3356 = vunpack.c.h.b16 %v1194
    %v3357 = vunpack.c.l.b16 %v1195
    %v3358 = vunpack.c.h.b16 %v1195
    %v3359 = vunpack.c.l.b16 %v1196
    %v3360 = vunpack.c.h.b16 %v1196
    %v3361 = vunpack.c.l.b16 %v1197
    %v3362 = vunpack.c.h.b16 %v1197
    %v3363 = vunpack.c.l.b16 %v1198
    %v3364 = vunpack.c.h.b16 %v1198
    %v3365 = vunpack.c.l.b16 %v1199
    %v3366 = vunpack.c.h.b16 %v1199
    %v3367 = vunpack.c.l.b16 %v1200
    %v3368 = vunpack.c.h.b16 %v1200
    %v3369 = vunpack.c.l.b16 %v1201
    %v3370 = vunpack.c.h.b16 %v1201
    %v3371 = vunpack.c.l.b16 %v1202
    %v3372 = vunpack.c.h.b16 %v1202
    %v3373 = vunpack.c.l.b16 %v1203
    %v3374 = vunpack.c.h.b16 %v1203
    %v3375 = vunpack.c.l.b16 %v1204
    %v3376 = vunpack.c.h.b16 %v1204
    %v3377 = vunpack.c.l.b16 %v1205
    %v3378 = vunpack.c.h.b16 %v1205
    %v3379 = vunpack.c.l.b16 %v1206
    %v3380 = vunpack.c.h.b16 %v1206
    %v3381 = vunpack.c.l.b16 %v1207
    %v3382 = vunpack.c.h.b16 %v1207
    %v3383 = vunpack.c.l.b16 %v1208
    %v3384 = vunpack.c.h.b16 %v1208
    %v3385 = vunpack.c.l.b16 %v1209
    %v3386 = vunpack.c.h.b16 %v1209
    %v3387 = vunpack.c.l.b16 %v1210
    %v3388 = vunpack.c.h.b16 %v1210
    %v3389 = vunpack.c.l.b16 %v1211
    %v3390 = vunpack.c.h.b16 %v1211
    %v3391 = vunpack.c.l.b16 %v1212
    %v3392 = vunpack.c.h.b16 %v1212
    %v3393 = vunpack.c.l.b16 %v1213
    %v3394 = vunpack.c.h.b16 %v1213
    %v3395 = vunpack.c.l.b16 %v1214
    %v3396 = vunpack.c.h.b16 %v1214
    %v3397 = vunpack.c.l.b16 %v1215
    %v3398 = vunpack.c.h.b16 %v1215
    %v3399 = vunpack.c.l.b16 %v1216
    %v3400 = vunpack.c.h.b16 %v1216
    %v3401 = vunpack.c.l.b16 %v1217
    %v3402 = vunpack.c.h.b16 %v1217
    %v3403 = vunpack.c.l.b16 %v1218
    %v3404 = vunpack.c.h.b16 %v1218
    %v3405 = vunpack.c.l.b16 %v1219
    %v3406 = vunpack.c.h.b16 %v1219
    %v3407 = vunpack.c.l.b16 %v1220
    %v3408 = vunpack.c.h.b16 %v1220
    %v3409 = vunpack.c.l.b16 %v1221
    %v3410 = vunpack.c.h.b16 %v1221
    %v3411 = vunpack.c.l.b16 %v1222
    %v3412 = vunpack.c.h.b16 %v1222
    %v3413 = vunpack.c.l.b16 %v1223
    %v3414 = vunpack.c.h.b16 %v1223
    %v3415 = vunpack.c.l.b16 %v1224
    %v3416 = vunpack.c.h.b16 %v1224
    %v3417 = vunpack.c.l.b16 %v1225
    %v3418 = vunpack.c.h.b16 %v1225
    %v3419 = vunpack.c.l.b16 %v1226
    %v3420 = vunpack.c.h.b16 %v1226
    %v3421 = vunpack.c.l.b16 %v1227
    %v3422 = vunpack.c.h.b16 %v1227
    %v3423 = vunpack.c.l.b16 %v1228
    %v3424 = vunpack.c.h.b16 %v1228
    %v3425 = vunpack.c.l.b16 %v1229
    %v3426 = vunpack.c.h.b16 %v1229
    %v3427 = vunpack.c.l.b16 %v1230
    %v3428 = vunpack.c.h.b16 %v1230
    %v3429 = vunpack.c.l.b16 %v1231
    %v3430 = vunpack.c.h.b16 %v1231
    %v3431 = vunpack.c.l.b16 %v1232
    %v3432 = vunpack.c.h.b16 %v1232
    %v3433 = vunpack.c.l.b16 %v1233
    %v3434 = vunpack.c.h.b16 %v1233
    %v3435 = vunpack.c.l.b16 %v1234
    %v3436 = vunpack.c.h.b16 %v1234
    %v3437 = vunpack.c.l.b16 %v1235
    %v3438 = vunpack.c.h.b16 %v1235
    %v3439 = vunpack.c.l.b16 %v1236
    %v3440 = vunpack.c.h.b16 %v1236
    %v3441 = vunpack.c.l.b16 %v1237
    %v3442 = vunpack.c.h.b16 %v1237
    %v3443 = vunpack.c.l.b16 %v1238
    %v3444 = vunpack.c.h.b16 %v1238
    %v3445 = vunpack.c.l.b16 %v1239
    %v3446 = vunpack.c.h.b16 %v1239
    %v3447 = vunpack.c.l.b16 %v1240
    %v3448 = vunpack.c.h.b16 %v1240
    %v3449 = vunpack.c.l.b16 %v1241
    %v3450 = vunpack.c.h.b16 %v1241
    %v3451 = vunpack.c.l.b16 %v1242
    %v3452 = vunpack.c.h.b16 %v1242
    %v3453 = vunpack.c.l.b16 %v1243
    %v3454 = vunpack.c.h.b16 %v1243
    %v3455 = vunpack.c.l.b16 %v1244
    %v3456 = vunpack.c.h.b16 %v1244
    %v3457 = vunpack.c.l.b16 %v1245
    %v3458 = vunpack.c.h.b16 %v1245
    %v3459 = vunpack.c.l.b16 %v1246
    %v3460 = vunpack.c.h.b16 %v1246
    %v3461 = vunpack.c.l.b16 %v1247
    %v3462 = vunpack.c.h.b16 %v1247
    %v3463 = vunpack.c.l.b16 %v1248
    %v3464 = vunpack.c.h.b16 %v1248
    %v3465 = vunpack.c.l.b16 %v1249
    %v3466 = vunpack.c.h.b16 %v1249
    %v3467 = vunpack.c.l.b16 %v1250
    %v3468 = vunpack.c.h.b16 %v1250
    %v3469 = vunpack.c.l.b16 %v1251
    %v3470 = vunpack.c.h.b16 %v1251
    %v3471 = vunpack.c.l.b16 %v1252
    %v3472 = vunpack.c.h.b16 %v1252
    %v3473 = vunpack.c.l.b16 %v1253
    %v3474 = vunpack.c.h.b16 %v1253
    %v3475 = vunpack.c.l.b16 %v1254
    %v3476 = vunpack.c.h.b16 %v1254
    %v3477 = vunpack.c.l.b16 %v1255
    %v3478 = vunpack.c.h.b16 %v1255
    %v3479 = vunpack.c.l.b16 %v1256
    %v3480 = vunpack.c.h.b16 %v1256
    %v3481 = vunpack.c.l.b16 %v1257
    %v3482 = vunpack.c.h.b16 %v1257
    %v3483 = vunpack.c.l.b16 %v1258
    %v3484 = vunpack.c.h.b16 %v1258
    %v3485 = vunpack.c.l.b16 %v1259
    %v3486 = vunpack.c.h.b16 %v1259
    %v3487 = vunpack.c.l.b16 %v1260
    %v3488 = vunpack.c.h.b16 %v1260
    %v3489 = vunpack.c.l.b16 %v1261
    %v3490 = vunpack.c.h.b16 %v1261
    %v3491 = vunpack.c.l.b16 %v1262
    %v3492 = vunpack.c.h.b16 %v1262
    %v3493 = vunpack.c.l.b16 %v1263
    %v3494 = vunpack.c.h.b16 %v1263
    %v3495 = vunpack.c.l.b16 %v1264
    %v3496 = vunpack.c.h.b16 %v1264
    %v3497 = vunpack.c.l.b16 %v1265
    %v3498 = vunpack.c.h.b16 %v1265
    %v3499 = vunpack.c.l.b16 %v1266
    %v3500 = vunpack.c.h.b16 %v1266
    %v3501 = vunpack.c.l.b16 %v1267
    %v3502 = vunpack.c.h.b16 %v1267
    %v3503 = vunpack.c.l.b16 %v1268
    %v3504 = vunpack.c.h.b16 %v1268
    %v3505 = vunpack.c.l.b16 %v1269
    %v3506 = vunpack.c.h.b16 %v1269
    %v3507 = vunpack.c.l.b16 %v1270
    %v3508 = vunpack.c.h.b16 %v1270
    %v3509 = vunpack.c.l.b16 %v1271
    %v3510 = vunpack.c.h.b16 %v1271
    %v3511 = vunpack.c.l.b16 %v1272
    %v3512 = vunpack.c.h.b16 %v1272
    %v3513 = vunpack.c.l.b16 %v1273
    %v3514 = vunpack.c.h.b16 %v1273
    %v3515 = vunpack.c.l.b16 %v1274
    %v3516 = vunpack.c.h.b16 %v1274
    %v3517 = vunpack.c.l.b16 %v1275
    %v3518 = vunpack.c.h.b16 %v1275
    %v3519 = vunpack.c.l.b16 %v1276
    %v3520 = vunpack.c.h.b16 %v1276
    %v3521 = vunpack.c.l.b16 %v1277
    %v3522 = vunpack.c.h.b16 %v1277
    %v3523 = vunpack.c.l.b16 %v1278
    %v3524 = vunpack.c.h.b16 %v1278
    %v3525 = vunpack.c.l.b16 %v1279
    %v3526 = vunpack.c.h.b16 %v1279
    %v3527 = vunpack.c.l.b16 %v1280
    %v3528 = vunpack.c.h.b16 %v1280
    %v3529 = vunpack.c.l.b16 %v1281
    %v3530 = vunpack.c.h.b16 %v1281
    %v3531 = vunpack.c.l.b16 %v1282
    %v3532 = vunpack.c.h.b16 %v1282
    %v3533 = vunpack.c.l.b16 %v1283
    %v3534 = vunpack.c.h.b16 %v1283
    %v3535 = vunpack.c.l.b16 %v1284
    %v3536 = vunpack.c.h.b16 %v1284
    %v3537 = vunpack.c.l.b16 %v1285
    %v3538 = vunpack.c.h.b16 %v1285
    %v3539 = vunpack.c.l.b16 %v1286
    %v3540 = vunpack.c.h.b16 %v1286
    %v3541 = vunpack.c.l.b16 %v1287
    %v3542 = vunpack.c.h.b16 %v1287
    %v3543 = vunpack.c.l.b16 %v1288
    %v3544 = vunpack.c.h.b16 %v1288
    %v3545 = vunpack.c.l.b16 %v1289
    %v3546 = vunpack.c.h.b16 %v1289
    %v3547 = vunpack.c.l.b16 %v1290
    %v3548 = vunpack.c.h.b16 %v1290
    %v3549 = vunpack.c.l.b16 %v1291
    %v3550 = vunpack.c.h.b16 %v1291
    %v3551 = vunpack.c.l.b16 %v1292
    %v3552 = vunpack.c.h.b16 %v1292
    %v3553 = vunpack.c.l.b16 %v1293
    %v3554 = vunpack.c.h.b16 %v1293
    %v3555 = vunpack.c.l.b16 %v1294
    %v3556 = vunpack.c.h.b16 %v1294
    %v3557 = vunpack.c.l.b16 %v1295
    %v3558 = vunpack.c.h.b16 %v1295
    %v3559 = vunpack.c.l.b16 %v1296
    %v3560 = vunpack.c.h.b16 %v1296
    %v3561 = vunpack.c.l.b16 %v1297
    %v3562 = vunpack.c.h.b16 %v1297
    %v3563 = vunpack.c.l.b16 %v1298
    %v3564 = vunpack.c.h.b16 %v1298
    %v3565 = vunpack.c.l.b16 %v1299
    %v3566 = vunpack.c.h.b16 %v1299
    %v3567 = vunpack.c.l.b16 %v1300
    %v3568 = vunpack.c.h.b16 %v1300
    %v3569 = vunpack.c.l.b16 %v1301
    %v3570 = vunpack.c.h.b16 %v1301
    %v3571 = vunpack.c.l.b16 %v1302
    %v3572 = vunpack.c.h.b16 %v1302
    %v3573 = vunpack.c.l.b16 %v1303
    %v3574 = vunpack.c.h.b16 %v1303
    %v3575 = vunpack.c.l.b16 %v1304
    %v3576 = vunpack.c.h.b16 %v1304
    %v3577 = vunpack.c.l.b16 %v1305
    %v3578 = vunpack.c.h.b16 %v1305
    %v3579 = vunpack.c.l.b16 %v1306
    %v3580 = vunpack.c.h.b16 %v1306
    %v3581 = vunpack.c.l.b16 %v1307
    %v3582 = vunpack.c.h.b16 %v1307
    %v3583 = vunpack.c.l.b16 %v1308
    %v3584 = vunpack.c.h.b16 %v1308
    %v3585 = vunpack.c.l.b16 %v1309
    %v3586 = vunpack.c.h.b16 %v1309
    %v3587 = vunpack.c.l.b16 %v1310
    %v3588 = vunpack.c.h.b16 %v1310
    %v3589 = vunpack.c.l.b16 %v1311
    %v3590 = vunpack.c.h.b16 %v1311
    %v3591 = vunpack.c.l.b16 %v1312
    %v3592 = vunpack.c.h.b16 %v1312
    %v3593 = vunpack.c.l.b16 %v1313
    %v3594 = vunpack.c.h.b16 %v1313
    %v3595 = vunpack.c.l.b16 %v1314
    %v3596 = vunpack.c.h.b16 %v1314
    %v3597 = vunpack.c.l.b16 %v1315
    %v3598 = vunpack.c.h.b16 %v1315
    %v3599 = vunpack.c.l.b16 %v1316
    %v3600 = vunpack.c.h.b16 %v1316
    %v3601 = vunpack.c.l.b16 %v1317
    %v3602 = vunpack.c.h.b16 %v1317
    %v3603 = vunpack.c.l.b16 %v1318
    %v3604 = vunpack.c.h.b16 %v1318
    %v3605 = vunpack.c.l.b16 %v1319
    %v3606 = vunpack.c.h.b16 %v1319
    %v3607 = vunpack.c.l.b16 %v1320
    %v3608 = vunpack.c.h.b16 %v1320
    %v3609 = vunpack.c.l.b16 %v1321
    %v3610 = vunpack.c.h.b16 %v1321
    %v3611 = vunpack.c.l.b16 %v1322
    %v3612 = vunpack.c.h.b16 %v1322
    %v3613 = vunpack.c.l.b16 %v1323
    %v3614 = vunpack.c.h.b16 %v1323
    %v3615 = vunpack.c.l.b16 %v1324
    %v3616 = vunpack.c.h.b16 %v1324
    %v3617 = vunpack.c.l.b16 %v1325
    %v3618 = vunpack.c.h.b16 %v1325
    %v3619 = vunpack.c.l.b16 %v1326
    %v3620 = vunpack.c.h.b16 %v1326
    %v3621 = vunpack.c.l.b16 %v1327
    %v3622 = vunpack.c.h.b16 %v1327
    %v3623 = vunpack.c.l.b16 %v1328
    %v3624 = vunpack.c.h.b16 %v1328
    %v3625 = vunpack.c.l.b16 %v1329
    %v3626 = vunpack.c.h.b16 %v1329
    %v3627 = vunpack.c.l.b16 %v1330
    %v3628 = vunpack.c.h.b16 %v1330
    %v3629 = vunpack.c.l.b16 %v1331
    %v3630 = vunpack.c.h.b16 %v1331
    %v3631 = vunpack.c.l.b16 %v1332
    %v3632 = vunpack.c.h.b16 %v1332
    %v3633 = vunpack.c.l.b16 %v1333
    %v3634 = vunpack.c.h.b16 %v1333
    %v3635 = vunpack.c.l.b16 %v1334
    %v3636 = vunpack.c.h.b16 %v1334
    %v3637 = vunpack.c.l.b16 %v1335
    %v3638 = vunpack.c.h.b16 %v1335
    %v3639 = vunpack.c.l.b16 %v1336
    %v3640 = vunpack.c.h.b16 %v1336
    %v3641 = vunpack.c.l.b16 %v1337
    %v3642 = vunpack.c.h.b16 %v1337
    %v3643 = vunpack.c.l.b16 %v1338
    %v3644 = vunpack.c.h.b16 %v1338
    %v3645 = vunpack.c.l.b16 %v1339
    %v3646 = vunpack.c.h.b16 %v1339
    %v3647 = vunpack.c.l.b16 %v1340
    %v3648 = vunpack.c.h.b16 %v1340
    %v3649 = vunpack.c.l.b16 %v1341
    %v3650 = vunpack.c.h.b16 %v1341
    %v3651 = vunpack.c.l.b16 %v1342
    %v3652 = vunpack.c.h.b16 %v1342
    %v3653 = vunpack.c.l.b16 %v1343
    %v3654 = vunpack.c.h.b16 %v1343
    %v3655 = vunpack.c.l.b16 %v1344
    %v3656 = vunpack.c.h.b16 %v1344
    %v3657 = vunpack.c.l.b16 %v1345
    %v3658 = vunpack.c.h.b16 %v1345
    %v3659 = vunpack.c.l.b16 %v1346
    %v3660 = vunpack.c.h.b16 %v1346
    %v3661 = vunpack.c.l.b16 %v1347
    %v3662 = vunpack.c.h.b16 %v1347
    %v3663 = vunpack.c.l.b16 %v1348
    %v3664 = vunpack.c.h.b16 %v1348
    %v3665 = vunpack.c.l.b16 %v1349
    %v3666 = vunpack.c.h.b16 %v1349
    %v3667 = vunpack.c.l.b16 %v1350
    %v3668 = vunpack.c.h.b16 %v1350
    %v3669 = vunpack.c.l.b16 %v1351
    %v3670 = vunpack.c.h.b16 %v1351
    %v3671 = vunpack.c.l.b16 %v1352
    %v3672 = vunpack.c.h.b16 %v1352
    %v3673 = vunpack.c.l.b16 %v1353
    %v3674 = vunpack.c.h.b16 %v1353
    %v3675 = vunpack.c.l.b16 %v1354
    %v3676 = vunpack.c.h.b16 %v1354
    %v3677 = vunpack.c.l.b16 %v1355
    %v3678 = vunpack.c.h.b16 %v1355
    %v3679 = vunpack.c.l.b16 %v1356
    %v3680 = vunpack.c.h.b16 %v1356
    %v3681 = vunpack.c.l.b16 %v1357
    %v3682 = vunpack.c.h.b16 %v1357
    %v3683 = vunpack.c.l.b16 %v1358
    %v3684 = vunpack.c.h.b16 %v1358
    %v3685 = vunpack.c.l.b16 %v1359
    %v3686 = vunpack.c.h.b16 %v1359
    %v3687 = vunpack.c.l.b16 %v1360
    %v3688 = vunpack.c.h.b16 %v1360
    %v3689 = vunpack.c.l.b16 %v1361
    %v3690 = vunpack.c.h.b16 %v1361
    %v3691 = vunpack.c.l.b16 %v1362
    %v3692 = vunpack.c.h.b16 %v1362
    %v3693 = vunpack.c.l.b16 %v1363
    %v3694 = vunpack.c.h.b16 %v1363
    %v3695 = vunpack.c.l.b16 %v1364
    %v3696 = vunpack.c.h.b16 %v1364
    %v3697 = vunpack.c.l.b16 %v1365
    %v3698 = vunpack.c.h.b16 %v1365
    %v3699 = vunpack.c.l.b16 %v1366
    %v3700 = vunpack.c.h.b16 %v1366
    %v3701 = vunpack.c.l.b16 %v1367
    %v3702 = vunpack.c.h.b16 %v1367
    %v3703 = vunpack.c.l.b16 %v1368
    %v3704 = vunpack.c.h.b16 %v1368
    %v3705 = vunpack.c.l.b16 %v1369
    %v3706 = vunpack.c.h.b16 %v1369
    %v3707 = vunpack.c.l.b16 %v1370
    %v3708 = vunpack.c.h.b16 %v1370
    %v3709 = vunpack.c.l.b16 %v1371
    %v3710 = vunpack.c.h.b16 %v1371
    %v3711 = vunpack.c.l.b16 %v1372
    %v3712 = vunpack.c.h.b16 %v1372
    %v3713 = vunpack.c.l.b16 %v1373
    %v3714 = vunpack.c.h.b16 %v1373
    %v3715 = vunpack.c.l.b16 %v1374
    %v3716 = vunpack.c.h.b16 %v1374
    %v3717 = vunpack.c.l.b16 %v1375
    %v3718 = vunpack.c.h.b16 %v1375
    %v3719 = vunpack.c.l.b16 %v1376
    %v3720 = vunpack.c.h.b16 %v1376
    %v3721 = vunpack.c.l.b16 %v1377
    %v3722 = vunpack.c.h.b16 %v1377
    %v3723 = vunpack.c.l.b16 %v1378
    %v3724 = vunpack.c.h.b16 %v1378
    %v3725 = vunpack.c.l.b16 %v1379
    %v3726 = vunpack.c.h.b16 %v1379
    %v3727 = vunpack.c.l.b16 %v1380
    %v3728 = vunpack.c.h.b16 %v1380
    %v3729 = vunpack.c.l.b16 %v1381
    %v3730 = vunpack.c.h.b16 %v1381
    %v3731 = vunpack.c.l.b16 %v1382
    %v3732 = vunpack.c.h.b16 %v1382
    %v3733 = vunpack.c.l.b16 %v1383
    %v3734 = vunpack.c.h.b16 %v1383
    %v3735 = vunpack.c.l.b16 %v1384
    %v3736 = vunpack.c.h.b16 %v1384
    %v3737 = vunpack.c.l.b16 %v1385
    %v3738 = vunpack.c.h.b16 %v1385
    %v3739 = vunpack.c.l.b16 %v1386
    %v3740 = vunpack.c.h.b16 %v1386
    %v3741 = vunpack.c.l.b16 %v1387
    %v3742 = vunpack.c.h.b16 %v1387
    %v3743 = vunpack.c.l.b16 %v1388
    %v3744 = vunpack.c.h.b16 %v1388
    %v3745 = vunpack.c.l.b16 %v1389
    %v3746 = vunpack.c.h.b16 %v1389
    %v3747 = vunpack.c.l.b16 %v1390
    %v3748 = vunpack.c.h.b16 %v1390
    %v3749 = vunpack.c.l.b16 %v1391
    %v3750 = vunpack.c.h.b16 %v1391
    %v3751 = vunpack.c.l.b16 %v1392
    %v3752 = vunpack.c.h.b16 %v1392
    %v3753 = vunpack.c.l.b16 %v1393
    %v3754 = vunpack.c.h.b16 %v1393
    %v3755 = vunpack.c.l.b16 %v1394
    %v3756 = vunpack.c.h.b16 %v1394
    %v3757 = vunpack.c.l.b16 %v1395
    %v3758 = vunpack.c.h.b16 %v1395
    %v3759 = vunpack.c.l.b16 %v1396
    %v3760 = vunpack.c.h.b16 %v1396
    %v3761 = vunpack.c.l.b16 %v1397
    %v3762 = vunpack.c.h.b16 %v1397
    %v3763 = vunpack.c.l.b16 %v1398
    %v3764 = vunpack.c.h.b16 %v1398
    %v3765 = vunpack.c.l.b16 %v1399
    %v3766 = vunpack.c.h.b16 %v1399
    %v3767 = vunpack.c.l.b16 %v1400
    %v3768 = vunpack.c.h.b16 %v1400
    %v3769 = vunpack.c.l.b16 %v1401
    %v3770 = vunpack.c.h.b16 %v1401
    %v3771 = vunpack.c.l.b16 %v1402
    %v3772 = vunpack.c.h.b16 %v1402
    %v3773 = vunpack.c.l.b16 %v1403
    %v3774 = vunpack.c.h.b16 %v1403
    %v3775 = vunpack.c.l.b16 %v1404
    %v3776 = vunpack.c.h.b16 %v1404
    %v3777 = vunpack.c.l.b16 %v1405
    %v3778 = vunpack.c.h.b16 %v1405
    %v3779 = vunpack.c.l.b16 %v1406
    %v3780 = vunpack.c.h.b16 %v1406
    %v3781 = vunpack.c.l.b16 %v1407
    %v3782 = vunpack.c.h.b16 %v1407
    %v3783 = vunpack.c.l.b16 %v1408
    %v3784 = vunpack.c.h.b16 %v1408
    %v3785 = vunpack.c.l.b16 %v1409
    %v3786 = vunpack.c.h.b16 %v1409
    %v3787 = vunpack.c.l.b16 %v1410
    %v3788 = vunpack.c.h.b16 %v1410
    %v3789 = vunpack.c.l.b16 %v1411
    %v3790 = vunpack.c.h.b16 %v1411
    %v3791 = vunpack.c.l.b16 %v1412
    %v3792 = vunpack.c.h.b16 %v1412
    %v3793 = vunpack.c.l.b16 %v1413
    %v3794 = vunpack.c.h.b16 %v1413
    %v3795 = vunpack.c.l.b16 %v1414
    %v3796 = vunpack.c.h.b16 %v1414
    %v3797 = vunpack.c.l.b16 %v1415
    %v3798 = vunpack.c.h.b16 %v1415
    %v3799 = vunpack.c.l.b16 %v1416
    %v3800 = vunpack.c.h.b16 %v1416
    %v3801 = vunpack.c.l.b16 %v1417
    %v3802 = vunpack.c.h.b16 %v1417
    %v3803 = vunpack.c.l.b16 %v1418
    %v3804 = vunpack.c.h.b16 %v1418
    %v3805 = vunpack.c.l.b16 %v1419
    %v3806 = vunpack.c.h.b16 %v1419
    %v3807 = vunpack.c.l.b16 %v1420
    %v3808 = vunpack.c.h.b16 %v1420
    %v3809 = vunpack.c.l.b16 %v1421
    %v3810 = vunpack.c.h.b16 %v1421
    %v3811 = vunpack.c.l.b16 %v1422
    %v3812 = vunpack.c.h.b16 %v1422
    %v3813 = vunpack.c.l.b16 %v1423
    %v3814 = vunpack.c.h.b16 %v1423
    %v3815 = vunpack.c.l.b16 %v1424
    %v3816 = vunpack.c.h.b16 %v1424
    %v3817 = vunpack.c.l.b16 %v1425
    %v3818 = vunpack.c.h.b16 %v1425
    %v3819 = vunpack.c.l.b16 %v1426
    %v3820 = vunpack.c.h.b16 %v1426
    %v3821 = vunpack.c.l.b16 %v1427
    %v3822 = vunpack.c.h.b16 %v1427
    %v3823 = vunpack.c.l.b16 %v1428
    %v3824 = vunpack.c.h.b16 %v1428
    %v3825 = vunpack.c.l.b16 %v1429
    %v3826 = vunpack.c.h.b16 %v1429
    %v3827 = vunpack.c.l.b16 %v1430
    %v3828 = vunpack.c.h.b16 %v1430
    %v3829 = vunpack.c.l.b16 %v1431
    %v3830 = vunpack.c.h.b16 %v1431
    %v3831 = vunpack.c.l.b16 %v1432
    %v3832 = vunpack.c.h.b16 %v1432
    %v3833 = vunpack.c.l.b16 %v1433
    %v3834 = vunpack.c.h.b16 %v1433
    %v3835 = vunpack.c.l.b16 %v1434
    %v3836 = vunpack.c.h.b16 %v1434
    %v3837 = vunpack.c.l.b16 %v1435
    %v3838 = vunpack.c.h.b16 %v1435
    %v3839 = vunpack.c.l.b16 %v1436
    %v3840 = vunpack.c.h.b16 %v1436
    %v3841 = vunpack.c.l.b16 %v1437
    %v3842 = vunpack.c.h.b16 %v1437
    %v3843 = vunpack.c.l.b16 %v1438
    %v3844 = vunpack.c.h.b16 %v1438
    %v3845 = vunpack.c.l.b16 %v1439
    %v3846 = vunpack.c.h.b16 %v1439
    %v3847 = vunpack.c.l.b16 %v1440
    %v3848 = vunpack.c.h.b16 %v1440
    %v3849 = vunpack.c.l.b16 %v1441
    %v3850 = vunpack.c.h.b16 %v1441
    %v3851 = vunpack.c.l.b16 %v1442
    %v3852 = vunpack.c.h.b16 %v1442
    %v3853 = vunpack.c.l.b16 %v1443
    %v3854 = vunpack.c.h.b16 %v1443
    %v3855 = vunpack.c.l.b16 %v1444
    %v3856 = vunpack.c.h.b16 %v1444
    %v3857 = vunpack.c.l.b16 %v1445
    %v3858 = vunpack.c.h.b16 %v1445
    %v3859 = vunpack.c.l.b16 %v1446
    %v3860 = vunpack.c.h.b16 %v1446
    %v3861 = vunpack.c.l.b16 %v1447
    %v3862 = vunpack.c.h.b16 %v1447
    %v3863 = vunpack.c.l.b16 %v1448
    %v3864 = vunpack.c.h.b16 %v1448
    %v3865 = vunpack.c.l.b16 %v1449
    %v3866 = vunpack.c.h.b16 %v1449
    %v3867 = vunpack.c.l.b16 %v1450
    %v3868 = vunpack.c.h.b16 %v1450
    %v3869 = vunpack.c.l.b16 %v1451
    %v3870 = vunpack.c.h.b16 %v1451
    %v3871 = vunpack.c.l.b16 %v1452
    %v3872 = vunpack.c.h.b16 %v1452
    %v3873 = vunpack.c.l.b16 %v1453
    %v3874 = vunpack.c.h.b16 %v1453
    %v3875 = vunpack.c.l.b16 %v1454
    %v3876 = vunpack.c.h.b16 %v1454
    %v3877 = vunpack.c.l.b16 %v1455
    %v3878 = vunpack.c.h.b16 %v1455
    %v3879 = vunpack.c.l.b16 %v1456
    %v3880 = vunpack.c.h.b16 %v1456
    %v3881 = vunpack.c.l.b16 %v1457
    %v3882 = vunpack.c.h.b16 %v1457
    %v3883 = vunpack.c.l.b16 %v1458
    %v3884 = vunpack.c.h.b16 %v1458
    %v3885 = vunpack.c.l.b16 %v1459
    %v3886 = vunpack.c.h.b16 %v1459
    %v3887 = vunpack.c.l.b16 %v1460
    %v3888 = vunpack.c.h.b16 %v1460
    %v3889 = vunpack.c.l.b16 %v1461
    %v3890 = vunpack.c.h.b16 %v1461
    %v3891 = vunpack.c.l.b16 %v1462
    %v3892 = vunpack.c.h.b16 %v1462
    %v3893 = vunpack.c.l.b16 %v1463
    %v3894 = vunpack.c.h.b16 %v1463
    %v3895 = vunpack.c.l.b16 %v1464
    %v3896 = vunpack.c.h.b16 %v1464
    %v3897 = vunpack.c.l.b16 %v1465
    %v3898 = vunpack.c.h.b16 %v1465
    %v3899 = vunpack.c.l.b16 %v1466
    %v3900 = vunpack.c.h.b16 %v1466
    %v3901 = vunpack.c.l.b16 %v1467
    %v3902 = vunpack.c.h.b16 %v1467
    %v3903 = vunpack.c.l.b16 %v1468
    %v3904 = vunpack.c.h.b16 %v1468
    %v3905 = vunpack.c.l.b16 %v1469
    %v3906 = vunpack.c.h.b16 %v1469
    %v3907 = vunpack.c.l.b16 %v1470
    %v3908 = vunpack.c.h.b16 %v1470
    %v3909 = vunpack.c.l.b16 %v1471
    %v3910 = vunpack.c.h.b16 %v1471
    %v3911 = vunpack.c.l.b16 %v1472
    %v3912 = vunpack.c.h.b16 %v1472
    %v3913 = vunpack.c.l.b16 %v1473
    %v3914 = vunpack.c.h.b16 %v1473
    %v3915 = vunpack.c.l.b16 %v1474
    %v3916 = vunpack.c.h.b16 %v1474
    %v3917 = vunpack.c.l.b16 %v1475
    %v3918 = vunpack.c.h.b16 %v1475
    %v3919 = vunpack.c.l.b16 %v1476
    %v3920 = vunpack.c.h.b16 %v1476
    %v3921 = vunpack.c.l.b16 %v1477
    %v3922 = vunpack.c.h.b16 %v1477
    %v3923 = vunpack.c.l.b16 %v1478
    %v3924 = vunpack.c.h.b16 %v1478
    %v3925 = vunpack.c.l.b16 %v1479
    %v3926 = vunpack.c.h.b16 %v1479
    %v3927 = vunpack.c.l.b16 %v1480
    %v3928 = vunpack.c.h.b16 %v1480
    %v3929 = vunpack.c.l.b16 %v1481
    %v3930 = vunpack.c.h.b16 %v1481
    %v3931 = vunpack.c.l.b16 %v1482
    %v3932 = vunpack.c.h.b16 %v1482
    %v3933 = vunpack.c.l.b16 %v1483
    %v3934 = vunpack.c.h.b16 %v1483
    %v3935 = vunpack.c.l.b16 %v1484
    %v3936 = vunpack.c.h.b16 %v1484
    %v3937 = vunpack.c.l.b16 %v1485
    %v3938 = vunpack.c.h.b16 %v1485
    %v3939 = vunpack.c.l.b16 %v1486
    %v3940 = vunpack.c.h.b16 %v1486
    %v3941 = vunpack.c.l.b16 %v1487
    %v3942 = vunpack.c.h.b16 %v1487
    %v3943 = vunpack.c.l.b16 %v1488
    %v3944 = vunpack.c.h.b16 %v1488
    %v3945 = vunpack.c.l.b16 %v1489
    %v3946 = vunpack.c.h.b16 %v1489
    %v3947 = vunpack.c.l.b16 %v1490
    %v3948 = vunpack.c.h.b16 %v1490
    %v3949 = vunpack.c.l.b16 %v1491
    %v3950 = vunpack.c.h.b16 %v1491
    %v3951 = vunpack.c.l.b16 %v1492
    %v3952 = vunpack.c.h.b16 %v1492
    %v3953 = vunpack.c.l.b16 %v1493
    %v3954 = vunpack.c.h.b16 %v1493
    %v3955 = vunpack.c.l.b16 %v1494
    %v3956 = vunpack.c.h.b16 %v1494
    %v3957 = vunpack.c.l.b16 %v1495
    %v3958 = vunpack.c.h.b16 %v1495
    %v3959 = vunpack.c.l.b16 %v1496
    %v3960 = vunpack.c.h.b16 %v1496
    %v3961 = vunpack.c.l.b16 %v1497
    %v3962 = vunpack.c.h.b16 %v1497
    %v3963 = vunpack.c.l.b16 %v1498
    %v3964 = vunpack.c.h.b16 %v1498
    %v3965 = vunpack.c.l.b16 %v1499
    %v3966 = vunpack.c.h.b16 %v1499
    %v3967 = vunpack.c.l.b16 %v1500
    %v3968 = vunpack.c.h.b16 %v1500
    %v3969 = vunpack.c.l.b16 %v1501
    %v3970 = vunpack.c.h.b16 %v1501
    %v3971 = vunpack.c.l.b16 %v1502
    %v3972 = vunpack.c.h.b16 %v1502
    %v3973 = vunpack.c.l.b16 %v1503
    %v3974 = vunpack.c.h.b16 %v1503
    %v3975 = vunpack.c.l.b16 %v1504
    %v3976 = vunpack.c.h.b16 %v1504
    %v3977 = vunpack.c.l.b16 %v1505
    %v3978 = vunpack.c.h.b16 %v1505
    %v3979 = vunpack.c.l.b16 %v1506
    %v3980 = vunpack.c.h.b16 %v1506
    %v3981 = vunpack.c.l.b16 %v1507
    %v3982 = vunpack.c.h.b16 %v1507
    %v3983 = vunpack.c.l.b16 %v1508
    %v3984 = vunpack.c.h.b16 %v1508
    %v3985 = vunpack.c.l.b16 %v1509
    %v3986 = vunpack.c.h.b16 %v1509
    %v3987 = vunpack.c.l.b16 %v1510
    %v3988 = vunpack.c.h.b16 %v1510
    %v3989 = vunpack.c.l.b16 %v1511
    %v3990 = vunpack.c.h.b16 %v1511
    %v3991 = vunpack.c.l.b16 %v1512
    %v3992 = vunpack.c.h.b16 %v1512
    %v3993 = vunpack.c.l.b16 %v1513
    %v3994 = vunpack.c.h.b16 %v1513
    %v3995 = vunpack.c.l.b16 %v1514
    %v3996 = vunpack.c.h.b16 %v1514
    %v3997 = vunpack.c.l.b16 %v1515
    %v3998 = vunpack.c.h.b16 %v1515
    %v3999 = vunpack.c.l.b16 %v1516
    %v4000 = vunpack.c.h.b16 %v1516
    %v4001 = vunpack.c.l.b16 %v1517
    %v4002 = vunpack.c.h.b16 %v1517
    %v4003 = vunpack.c.l.b16 %v1518
    %v4004 = vunpack.c.h.b16 %v1518
    %v4005 = vunpack.c.l.b16 %v1519
    %v4006 = vunpack.c.h.b16 %v1519
    %v4007 = vunpack.c.l.b16 %v1520
    %v4008 = vunpack.c.h.b16 %v1520
    %v4009 = vunpack.c.l.b16 %v1521
    %v4010 = vunpack.c.h.b16 %v1521
    %v4011 = vunpack.c.l.b16 %v1522
    %v4012 = vunpack.c.h.b16 %v1522
    %v4013 = vunpack.c.l.b16 %v1523
    %v4014 = vunpack.c.h.b16 %v1523
    %v4015 = vunpack.c.l.b16 %v1524
    %v4016 = vunpack.c.h.b16 %v1524
    %v4017 = vunpack.c.l.b16 %v1525
    %v4018 = vunpack.c.h.b16 %v1525
    %v4019 = vunpack.c.l.b16 %v1526
    %v4020 = vunpack.c.h.b16 %v1526
    %v4021 = vunpack.c.l.b16 %v1527
    %v4022 = vunpack.c.h.b16 %v1527
    %v4023 = vunpack.c.l.b16 %v1528
    %v4024 = vunpack.c.h.b16 %v1528
    %v4025 = vunpack.c.l.b16 %v1529
    %v4026 = vunpack.c.h.b16 %v1529
    %v4027 = vunpack.c.l.b16 %v1530
    %v4028 = vunpack.c.h.b16 %v1530
    %v4029 = vunpack.c.l.b16 %v1531
    %v4030 = vunpack.c.h.b16 %v1531
    %v4031 = vunpack.c.l.b16 %v1532
    %v4032 = vunpack.c.h.b16 %v1532
    %v4033 = vunpack.c.l.b16 %v1533
    %v4034 = vunpack.c.h.b16 %v1533
    %v4035 = vunpack.c.l.b16 %v1534
    %v4036 = vunpack.c.h.b16 %v1534
    %v4037 = vunpack.c.l.b16 %v1535
    %v4038 = vunpack.c.h.b16 %v1535
    %v4039 = vunpack.c.l.b16 %v1536
    %v4040 = vunpack.c.h.b16 %v1536
    %v4041 = vunpack.c.l.b16 %v1537
    %v4042 = vunpack.c.h.b16 %v1537
    %v4043 = vunpack.c.l.b16 %v1538
    %v4044 = vunpack.c.h.b16 %v1538
    %v4045 = vunpack.c.l.b16 %v1539
    %v4046 = vunpack.c.h.b16 %v1539
    %v4047 = vunpack.c.l.b16 %v1540
    %v4048 = vunpack.c.h.b16 %v1540
    %v4049 = vunpack.c.l.b16 %v1541
    %v4050 = vunpack.c.h.b16 %v1541
    %v4051 = vunpack.c.l.b16 %v1542
    %v4052 = vunpack.c.h.b16 %v1542
    %v4053 = vunpack.c.l.b16 %v1543
    %v4054 = vunpack.c.h.b16 %v1543
    %v4055 = vunpack.c.l.b16 %v1544
    %v4056 = vunpack.c.h.b16 %v1544
    %v4057 = vunpack.c.l.b16 %v1545
    %v4058 = vunpack.c.h.b16 %v1545
    %v4059 = vunpack.c.l.b16 %v1546
    %v4060 = vunpack.c.h.b16 %v1546
    %v4061 = vunpack.c.l.b16 %v1547
    %v4062 = vunpack.c.h.b16 %v1547
    %v4063 = vunpack.c.l.b16 %v1548
    %v4064 = vunpack.c.h.b16 %v1548
    %v4065 = vunpack.c.l.b16 %v1549
    %v4066 = vunpack.c.h.b16 %v1549
    %v4067 = vunpack.c.l.b16 %v1550
    %v4068 = vunpack.c.h.b16 %v1550
    %v4069 = vunpack.c.l.b16 %v1551
    %v4070 = vunpack.c.h.b16 %v1551
    %v4071 = vunpack.c.l.b16 %v1552
    %v4072 = vunpack.c.h.b16 %v1552
    %v4073 = vunpack.c.l.b16 %v1553
    %v4074 = vunpack.c.h.b16 %v1553
    %v4075 = vunpack.c.l.b16 %v1554
    %v4076 = vunpack.c.h.b16 %v1554
    %v4077 = vunpack.c.l.b16 %v1555
    %v4078 = vunpack.c.h.b16 %v1555
    %v4079 = vunpack.c.l.b16 %v1556
    %v4080 = vunpack.c.h.b16 %v1556
    %v4081 = vunpack.c.l.b16 %v1557
    %v4082 = vunpack.c.h.b16 %v1557
    %v4083 = vunpack.c.l.b16 %v1558
    %v4084 = vunpack.c.h.b16 %v1558
    %v4085 = vunpack.c.l.b16 %v1559
    %v4086 = vunpack.c.h.b16 %v1559
    %v4087 = vunpack.c.l.b16 %v1560
    %v4088 = vunpack.c.h.b16 %v1560
    %v4089 = vunpack.c.l.b16 %v1561
    %v4090 = vunpack.c.h.b16 %v1561
    %v4091 = vunpack.c.l.b16 %v1562
    %v4092 = vunpack.c.h.b16 %v1562
    %v4093 = vunpack.c.l.b16 %v1563
    %v4094 = vunpack.c.h.b16 %v1563
    %v4095 = vunpack.c.l.b16 %v1564
    %v4096 = vunpack.c.h.b16 %v1564
    %v4097 = vunpack.c.l.b16 %v1565
    %v4098 = vunpack.c.h.b16 %v1565
    %v4099 = vunpack.c.l.b16 %v1566
    %v4100 = vunpack.c.h.b16 %v1566
    %v4101 = vunpack.c.l.b16 %v1567
    %v4102 = vunpack.c.h.b16 %v1567
    %v4103 = vunpack.c.l.b16 %v1568
    %v4104 = vunpack.c.h.b16 %v1568
    %v4105 = vunpack.c.l.b16 %v1569
    %v4106 = vunpack.c.h.b16 %v1569
    %v4107 = vunpack.c.l.b16 %v1570
    %v4108 = vunpack.c.h.b16 %v1570
    %v4109 = vunpack.c.l.b16 %v1571
    %v4110 = vunpack.c.h.b16 %v1571
    %v4111 = vunpack.c.l.b16 %v1572
    %v4112 = vunpack.c.h.b16 %v1572
    %v4113 = vunpack.c.l.b16 %v1573
    %v4114 = vunpack.c.h.b16 %v1573
    %v4115 = vunpack.c.l.b16 %v1574
    %v4116 = vunpack.c.h.b16 %v1574
    %v4117 = vunpack.c.l.b16 %v1575
    %v4118 = vunpack.c.h.b16 %v1575
    %v4119 = vunpack.c.l.b16 %v1576
    %v4120 = vunpack.c.h.b16 %v1576
    %v4121 = vunpack.c.l.b16 %v1577
    %v4122 = vunpack.c.h.b16 %v1577
    %v4123 = vunpack.c.l.b16 %v1578
    %v4124 = vunpack.c.h.b16 %v1578
    %v4125 = vunpack.c.l.b16 %v1579
    %v4126 = vunpack.c.h.b16 %v1579
    %v4127 = vunpack.c.l.b16 %v1580
    %v4128 = vunpack.c.h.b16 %v1580
    %v4129 = vunpack.c.l.b16 %v1581
    %v4130 = vunpack.c.h.b16 %v1581
    %v4131 = vunpack.c.l.b16 %v1582
    %v4132 = vunpack.c.h.b16 %v1582
    %v4133 = vunpack.c.l.b16 %v1583
    %v4134 = vunpack.c.h.b16 %v1583
    %v4135 = vunpack.c.l.b16 %v1584
    %v4136 = vunpack.c.h.b16 %v1584
    %v4137 = vunpack.c.l.b16 %v1585
    %v4138 = vunpack.c.h.b16 %v1585
    %v4139 = vunpack.c.l.b16 %v1586
    %v4140 = vunpack.c.h.b16 %v1586
    %v4141 = vunpack.c.l.b16 %v1587
    %v4142 = vunpack.c.h.b16 %v1587
    %v4143 = vunpack.c.l.b16 %v1588
    %v4144 = vunpack.c.h.b16 %v1588
    %v4145 = vunpack.c.l.b16 %v1589
    %v4146 = vunpack.c.h.b16 %v1589
    %v4147 = vunpack.c.l.b16 %v1590
    %v4148 = vunpack.c.h.b16 %v1590
    %v4149 = vunpack.c.l.b16 %v1591
    %v4150 = vunpack.c.h.b16 %v1591
    %v4151 = vunpack.c.l.b16 %v1592
    %v4152 = vunpack.c.h.b16 %v1592
    %v4153 = vunpack.c.l.b16 %v1593
    %v4154 = vunpack.c.h.b16 %v1593
    %v4155 = vunpack.c.l.b16 %v1594
    %v4156 = vunpack.c.h.b16 %v1594
    %v4157 = vunpack.c.l.b16 %v1595
    %v4158 = vunpack.c.h.b16 %v1595
    %v4159 = vunpack.c.l.b16 %v1596
    %v4160 = vunpack.c.h.b16 %v1596
    %v4161 = vunpack.c.l.b16 %v1597
    %v4162 = vunpack.c.h.b16 %v1597
    %v4163 = vunpack.c.l.b16 %v1598
    %v4164 = vunpack.c.h.b16 %v1598
    %v4165 = vunpack.c.l.b16 %v1599
    %v4166 = vunpack.c.h.b16 %v1599
    %v4167 = vunpack.c.l.b16 %v1600
    %v4168 = vunpack.c.h.b16 %v1600
    %v4169 = vunpack.c.l.b16 %v1601
    %v4170 = vunpack.c.h.b16 %v1601
    %v4171 = vunpack.c.l.b16 %v1602
    %v4172 = vunpack.c.h.b16 %v1602
    %v4173 = vunpack.c.l.b16 %v1603
    %v4174 = vunpack.c.h.b16 %v1603
    %v4175 = vunpack.c.l.b16 %v1604
    %v4176 = vunpack.c.h.b16 %v1604
    %v4177 = vunpack.c.l.b16 %v1605
    %v4178 = vunpack.c.h.b16 %v1605
    %v4179 = vunpack.c.l.b16 %v1606
    %v4180 = vunpack.c.h.b16 %v1606
    %v4181 = vunpack.c.l.b16 %v1607
    %v4182 = vunpack.c.h.b16 %v1607
    %v4183 = vunpack.c.l.b16 %v1608
    %v4184 = vunpack.c.h.b16 %v1608
    %v4185 = vunpack.c.l.b16 %v1609
    %v4186 = vunpack.c.h.b16 %v1609
    %v4187 = vunpack.c.l.b16 %v1610
    %v4188 = vunpack.c.h.b16 %v1610
    %v4189 = vunpack.c.l.b16 %v1611
    %v4190 = vunpack.c.h.b16 %v1611
    %v4191 = vunpack.c.l.b16 %v1612
    %v4192 = vunpack.c.h.b16 %v1612
    %v4193 = vunpack.c.l.b16 %v1613
    %v4194 = vunpack.c.h.b16 %v1613
    %v4195 = vunpack.c.l.b16 %v1614
    %v4196 = vunpack.c.h.b16 %v1614
    %v4197 = vunpack.c.l.b16 %v1615
    %v4198 = vunpack.c.h.b16 %v1615
    %v4199 = vunpack.c.l.b16 %v1616
    %v4200 = vunpack.c.h.b16 %v1616
    %v4201 = vunpack.c.l.b16 %v1617
    %v4202 = vunpack.c.h.b16 %v1617
    %v4203 = vunpack.c.l.b16 %v1618
    %v4204 = vunpack.c.h.b16 %v1618
    %v4205 = vunpack.c.l.b16 %v1619
    %v4206 = vunpack.c.h.b16 %v1619
    %v4207 = vunpack.c.l.b16 %v1620
    %v4208 = vunpack.c.h.b16 %v1620
    %v4209 = vunpack.c.l.b16 %v1621
    %v4210 = vunpack.c.h.b16 %v1621
    %v4211 = vunpack.c.l.b16 %v1622
    %v4212 = vunpack.c.h.b16 %v1622
    %v4213 = vunpack.c.l.b16 %v1623
    %v4214 = vunpack.c.h.b16 %v1623
    %v4215 = vunpack.c.l.b16 %v1624
    %v4216 = vunpack.c.h.b16 %v1624
    %v4217 = vunpack.c.l.b16 %v1625
    %v4218 = vunpack.c.h.b16 %v1625
    %v4219 = vunpack.c.l.b16 %v1626
    %v4220 = vunpack.c.h.b16 %v1626
    %v4221 = vunpack.c.l.b16 %v1627
    %v4222 = vunpack.c.h.b16 %v1627
    %v4223 = vunpack.c.l.b16 %v1628
    %v4224 = vunpack.c.h.b16 %v1628
    %v4225 = vunpack.c.l.b16 %v1629
    %v4226 = vunpack.c.h.b16 %v1629
    %v4227 = vunpack.c.l.b16 %v1630
    %v4228 = vunpack.c.h.b16 %v1630
    %v4229 = vunpack.c.l.b16 %v1631
    %v4230 = vunpack.c.h.b16 %v1631
    %v4231 = vunpack.c.l.b16 %v1632
    %v4232 = vunpack.c.h.b16 %v1632
    %v4233 = vunpack.c.l.b16 %v1633
    %v4234 = vunpack.c.h.b16 %v1633
    %v4235 = vunpack.c.l.b16 %v1634
    %v4236 = vunpack.c.h.b16 %v1634
    %v4237 = vunpack.c.l.b16 %v1635
    %v4238 = vunpack.c.h.b16 %v1635
    %v4239 = vunpack.c.l.b16 %v1636
    %v4240 = vunpack.c.h.b16 %v1636
    %v4241 = vunpack.c.l.b16 %v1637
    %v4242 = vunpack.c.h.b16 %v1637
    %v4243 = vunpack.c.l.b16 %v1638
    %v4244 = vunpack.c.h.b16 %v1638
    %v4245 = vunpack.c.l.b16 %v1639
    %v4246 = vunpack.c.h.b16 %v1639
    %v4247 = vunpack.c.l.b16 %v1640
    %v4248 = vunpack.c.h.b16 %v1640
    %v4249 = vunpack.c.l.b16 %v1641
    %v4250 = vunpack.c.h.b16 %v1641
    %v4251 = vunpack.c.l.b16 %v1642
    %v4252 = vunpack.c.h.b16 %v1642
    %v4253 = vunpack.c.l.b16 %v1643
    %v4254 = vunpack.c.h.b16 %v1643
    %v4255 = vunpack.c.l.b16 %v1644
    %v4256 = vunpack.c.h.b16 %v1644
    %v4257 = vunpack.c.l.b16 %v1645
    %v4258 = vunpack.c.h.b16 %v1645
    %v4259 = vunpack.c.l.b16 %v1646
    %v4260 = vunpack.c.h.b16 %v1646
    %v4261 = vunpack.c.l.b16 %v1647
    %v4262 = vunpack.c.h.b16 %v1647
    %v4263 = vunpack.c.l.b16 %v1648
    %v4264 = vunpack.c.h.b16 %v1648
    %v4265 = vunpack.c.l.b16 %v1649
    %v4266 = vunpack.c.h.b16 %v1649
    %v4267 = vunpack.c.l.b16 %v1650
    %v4268 = vunpack.c.h.b16 %v1650
    %v4269 = vunpack.c.l.b16 %v1651
    %v4270 = vunpack.c.h.b16 %v1651
    %v4271 = vunpack.c.l.b16 %v1652
    %v4272 = vunpack.c.h.b16 %v1652
    %v4273 = vunpack.c.l.b16 %v1653
    %v4274 = vunpack.c.h.b16 %v1653
    %v4275 = vunpack.c.l.b16 %v1654
    %v4276 = vunpack.c.h.b16 %v1654
    %v4277 = vunpack.c.l.b16 %v1655
    %v4278 = vunpack.c.h.b16 %v1655
    %v4279 = vunpack.c.l.b16 %v1656
    %v4280 = vunpack.c.h.b16 %v1656
    %v4281 = vunpack.c.l.b16 %v1657
    %v4282 = vunpack.c.h.b16 %v1657
    %v4283 = vunpack.c.l.b16 %v1658
    %v4284 = vunpack.c.h.b16 %v1658
    %v4285 = vunpack.c.l.b16 %v1659
    %v4286 = vunpack.c.h.b16 %v1659
    %v4287 = vunpack.c.l.b16 %v1660
    %v4288 = vunpack.c.h.b16 %v1660
    %v4289 = vunpack.c.l.b16 %v1661
    %v4290 = vunpack.c.h.b16 %v1661
    %v4291 = vunpack.c.l.b16 %v1662
    %v4292 = vunpack.c.h.b16 %v1662
    %v4293 = vunpack.c.l.b16 %v1663
    %v4294 = vunpack.c.h.b16 %v1663
    %v4295 = vunpack.c.l.b16 %v1664
    %v4296 = vunpack.c.h.b16 %v1664
    %v4297 = vunpack.c.l.b16 %v1665
    %v4298 = vunpack.c.h.b16 %v1665
    %v4299 = vunpack.c.l.b16 %v1666
    %v4300 = vunpack.c.h.b16 %v1666
    %v4301 = vunpack.c.l.b16 %v1667
    %v4302 = vunpack.c.h.b16 %v1667
    %v4303 = vunpack.c.l.b16 %v1668
    %v4304 = vunpack.c.h.b16 %v1668
    %v4305 = vunpack.c.l.b16 %v1669
    %v4306 = vunpack.c.h.b16 %v1669
    %v4307 = vunpack.c.l.b16 %v1670
    %v4308 = vunpack.c.h.b16 %v1670
    %v4309 = vunpack.c.l.b16 %v1671
    %v4310 = vunpack.c.h.b16 %v1671
    %v4311 = vunpack.c.l.b16 %v1672
    %v4312 = vunpack.c.h.b16 %v1672
    %v4313 = vunpack.c.l.b16 %v1673
    %v4314 = vunpack.c.h.b16 %v1673
    %v4315 = vunpack.c.l.b16 %v1674
    %v4316 = vunpack.c.h.b16 %v1674
    %v4317 = vunpack.c.l.b16 %v1675
    %v4318 = vunpack.c.h.b16 %v1675
    %v4319 = vunpack.c.l.b16 %v1676
    %v4320 = vunpack.c.h.b16 %v1676
    %v4321 = vunpack.c.l.b16 %v1677
    %v4322 = vunpack.c.h.b16 %v1677
    %v4323 = vunpack.c.l.b16 %v1678
    %v4324 = vunpack.c.h.b16 %v1678
    %v4325 = vunpack.c.l.b16 %v1679
    %v4326 = vunpack.c.h.b16 %v1679
    %v4327 = vunpack.c.l.b16 %v1680
    %v4328 = vunpack.c.h.b16 %v1680
    %v4329 = vunpack.c.l.b16 %v1681
    %v4330 = vunpack.c.h.b16 %v1681
    %v4331 = vunpack.c.l.b16 %v1682
    %v4332 = vunpack.c.h.b16 %v1682
    %v4333 = vunpack.c.l.b16 %v1683
    %v4334 = vunpack.c.h.b16 %v1683
    %v4335 = vunpack.c.l.b16 %v1684
    %v4336 = vunpack.c.h.b16 %v1684
    %v4337 = vunpack.c.l.b16 %v1685
    %v4338 = vunpack.c.h.b16 %v1685
    %v4339 = vunpack.c.l.b16 %v1686
    %v4340 = vunpack.c.h.b16 %v1686
    %v4341 = vunpack.c.l.b16 %v1687
    %v4342 = vunpack.c.h.b16 %v1687
    %v4343 = vunpack.c.l.b16 %v1688
    %v4344 = vunpack.c.h.b16 %v1688
    %v4345 = vunpack.c.l.b16 %v1689
    %v4346 = vunpack.c.h.b16 %v1689
    %v4347 = vunpack.c.l.b16 %v1690
    %v4348 = vunpack.c.h.b16 %v1690
    %v4349 = vunpack.c.l.b16 %v1691
    %v4350 = vunpack.c.h.b16 %v1691
    %v4351 = vunpack.c.l.b16 %v1692
    %v4352 = vunpack.c.h.b16 %v1692
    %v4353 = vunpack.c.l.b16 %v1693
    %v4354 = vunpack.c.h.b16 %v1693
    %v4355 = vunpack.c.l.b16 %v1694
    %v4356 = vunpack.c.h.b16 %v1694
    %v4357 = vunpack.c.l.b16 %v1695
    %v4358 = vunpack.c.h.b16 %v1695
    %v4359 = vunpack.c.l.b16 %v1696
    %v4360 = vunpack.c.h.b16 %v1696
    %v4361 = vunpack.c.l.b16 %v1697
    %v4362 = vunpack.c.h.b16 %v1697
    %v4363 = vunpack.c.l.b16 %v1698
    %v4364 = vunpack.c.h.b16 %v1698
    %v4365 = vunpack.c.l.b16 %v1699
    %v4366 = vunpack.c.h.b16 %v1699
    %v4367 = vunpack.c.l.b16 %v1700
    %v4368 = vunpack.c.h.b16 %v1700
    %v4369 = vunpack.c.l.b16 %v1701
    %v4370 = vunpack.c.h.b16 %v1701
    %v4371 = vunpack.c.l.b16 %v1702
    %v4372 = vunpack.c.h.b16 %v1702
    %v4373 = vunpack.c.l.b16 %v1703
    %v4374 = vunpack.c.h.b16 %v1703
    %v4375 = vunpack.c.l.b16 %v1704
    %v4376 = vunpack.c.h.b16 %v1704
    %v4377 = vunpack.c.l.b16 %v1705
    %v4378 = vunpack.c.h.b16 %v1705
    %v4379 = vunpack.c.l.b16 %v1706
    %v4380 = vunpack.c.h.b16 %v1706
    %v4381 = vunpack.c.l.b16 %v1707
    %v4382 = vunpack.c.h.b16 %v1707
    %v4383 = vunpack.c.l.b16 %v1708
    %v4384 = vunpack.c.h.b16 %v1708
    %v4385 = vunpack.c.l.b16 %v1709
    %v4386 = vunpack.c.h.b16 %v1709
    %v4387 = vunpack.c.l.b16 %v1710
    %v4388 = vunpack.c.h.b16 %v1710
    %v4389 = vunpack.c.l.b16 %v1711
    %v4390 = vunpack.c.h.b16 %v1711
    %v4391 = vunpack.c.l.b16 %v1712
    %v4392 = vunpack.c.h.b16 %v1712
    %v4393 = vunpack.c.l.b16 %v1713
    %v4394 = vunpack.c.h.b16 %v1713
    %v4395 = vunpack.c.l.b16 %v1714
    %v4396 = vunpack.c.h.b16 %v1714
    %v4397 = vunpack.c.l.b16 %v1715
    %v4398 = vunpack.c.h.b16 %v1715
    %v4399 = vunpack.c.l.b16 %v1716
    %v4400 = vunpack.c.h.b16 %v1716
    %v4401 = vunpack.c.l.b16 %v1717
    %v4402 = vunpack.c.h.b16 %v1717
    %v4403 = vunpack.c.l.b16 %v1718
    %v4404 = vunpack.c.h.b16 %v1718
    %v4405 = vunpack.c.l.b16 %v1719
    %v4406 = vunpack.c.h.b16 %v1719
    %v4407 = vunpack.c.l.b16 %v1720
    %v4408 = vunpack.c.h.b16 %v1720
    %v4409 = vunpack.c.l.b16 %v1721
    %v4410 = vunpack.c.h.b16 %v1721
    %v4411 = vunpack.c.l.b16 %v1722
    %v4412 = vunpack.c.h.b16 %v1722
    %v4413 = vunpack.c.l.b16 %v1723
    %v4414 = vunpack.c.h.b16 %v1723
    %v4415 = vunpack.c.l.b16 %v1724
    %v4416 = vunpack.c.h.b16 %v1724
    %v4417 = vunpack.c.l.b16 %v1725
    %v4418 = vunpack.c.h.b16 %v1725
    %v4419 = vunpack.c.l.b16 %v1726
    %v4420 = vunpack.c.h.b16 %v1726
    %v4421 = vunpack.c.l.b16 %v1727
    %v4422 = vunpack.c.h.b16 %v1727
    %v4423 = vunpack.c.l.b16 %v1728
    %v4424 = vunpack.c.h.b16 %v1728
    %v4425 = vunpack.c.l.b16 %v1729
    %v4426 = vunpack.c.h.b16 %v1729
    %v4427 = vunpack.c.l.b16 %v1730
    %v4428 = vunpack.c.h.b16 %v1730
    %v4429 = vunpack.c.l.b16 %v1731
    %v4430 = vunpack.c.h.b16 %v1731
    %v4431 = vunpack.c.l.b16 %v1732
    %v4432 = vunpack.c.h.b16 %v1732
    %v4433 = vunpack.c.l.b16 %v1733
    %v4434 = vunpack.c.h.b16 %v1733
    %v4435 = vunpack.c.l.b16 %v1734
    %v4436 = vunpack.c.h.b16 %v1734
    %v4437 = vunpack.c.l.b16 %v1735
    %v4438 = vunpack.c.h.b16 %v1735
    %v4439 = vunpack.c.l.b16 %v1736
    %v4440 = vunpack.c.h.b16 %v1736
    %v4441 = vunpack.c.l.b16 %v1737
    %v4442 = vunpack.c.h.b16 %v1737
    %v4443 = vunpack.c.l.b16 %v1738
    %v4444 = vunpack.c.h.b16 %v1738
    %v4445 = vunpack.c.l.b16 %v1739
    %v4446 = vunpack.c.h.b16 %v1739
    %v4447 = vunpack.c.l.b16 %v1740
    %v4448 = vunpack.c.h.b16 %v1740
    %v4449 = vunpack.c.l.b16 %v1741
    %v4450 = vunpack.c.h.b16 %v1741
    %v4451 = vunpack.c.l.b16 %v1742
    %v4452 = vunpack.c.h.b16 %v1742
    %v4453 = vunpack.c.l.b16 %v1743
    %v4454 = vunpack.c.h.b16 %v1743
    %v4455 = vunpack.c.l.b16 %v1744
    %v4456 = vunpack.c.h.b16 %v1744
    %v4457 = vunpack.c.l.b16 %v1745
    %v4458 = vunpack.c.h.b16 %v1745
    %v4459 = vunpack.c.l.b16 %v1746
    %v4460 = vunpack.c.h.b16 %v1746
    %v4461 = vunpack.c.l.b16 %v1747
    %v4462 = vunpack.c.h.b16 %v1747
    %v4463 = vunpack.c.l.b16 %v1748
    %v4464 = vunpack.c.h.b16 %v1748
    %v4465 = vunpack.c.l.b16 %v1749
    %v4466 = vunpack.c.h.b16 %v1749
    %v4467 = vunpack.c.l.b16 %v1750
    %v4468 = vunpack.c.h.b16 %v1750
    %v4469 = vunpack.c.l.b16 %v1751
    %v4470 = vunpack.c.h.b16 %v1751
    %v4471 = vunpack.c.l.b16 %v1752
    %v4472 = vunpack.c.h.b16 %v1752
    %v4473 = vunpack.c.l.b16 %v1753
    %v4474 = vunpack.c.h.b16 %v1753
    %v4475 = vunpack.c.l.b16 %v1754
    %v4476 = vunpack.c.h.b16 %v1754
    %v4477 = vunpack.c.l.b16 %v1755
    %v4478 = vunpack.c.h.b16 %v1755
    %v4479 = vunpack.c.l.b16 %v1756
    %v4480 = vunpack.c.h.b16 %v1756
    %v4481 = vunpack.c.l.b16 %v1757
    %v4482 = vunpack.c.h.b16 %v1757
    %v4483 = vunpack.c.l.b16 %v1758
    %v4484 = vunpack.c.h.b16 %v1758
    %v4485 = vunpack.c.l.b16 %v1759
    %v4486 = vunpack.c.h.b16 %v1759
    %v4487 = vunpack.c.l.b16 %v1760
    %v4488 = vunpack.c.h.b16 %v1760
    %v4489 = vunpack.c.l.b16 %v1761
    %v4490 = vunpack.c.h.b16 %v1761
    %v4491 = vunpack.c.l.b16 %v1762
    %v4492 = vunpack.c.h.b16 %v1762
    %v4493 = vunpack.c.l.b16 %v1763
    %v4494 = vunpack.c.h.b16 %v1763
    %v4495 = vunpack.c.l.b16 %v1764
    %v4496 = vunpack.c.h.b16 %v1764
    %v4497 = vunpack.c.l.b16 %v1765
    %v4498 = vunpack.c.h.b16 %v1765
    %v4499 = vunpack.c.l.b16 %v1766
    %v4500 = vunpack.c.h.b16 %v1766
    %v4501 = vunpack.c.l.b16 %v1767
    %v4502 = vunpack.c.h.b16 %v1767
    %v4503 = vunpack.c.l.b16 %v1768
    %v4504 = vunpack.c.h.b16 %v1768
    %v4505 = vunpack.c.l.b16 %v1769
    %v4506 = vunpack.c.h.b16 %v1769
    %v4507 = vunpack.c.l.b16 %v1770
    %v4508 = vunpack.c.h.b16 %v1770
    %v4509 = vunpack.c.l.b16 %v1771
    %v4510 = vunpack.c.h.b16 %v1771
    %v4511 = vunpack.c.l.b16 %v1772
    %v4512 = vunpack.c.h.b16 %v1772
    %v4513 = vunpack.c.l.b16 %v1773
    %v4514 = vunpack.c.h.b16 %v1773
    %v4515 = vunpack.c.l.b16 %v1774
    %v4516 = vunpack.c.h.b16 %v1774
    %v4517 = vunpack.c.l.b16 %v1775
    %v4518 = vunpack.c.h.b16 %v1775
    %v4519 = vunpack.c.l.b16 %v1776
    %v4520 = vunpack.c.h.b16 %v1776
    %v4521 = vunpack.c.l.b16 %v1777
    %v4522 = vunpack.c.h.b16 %v1777
    %v4523 = vunpack.c.l.b16 %v1778
    %v4524 = vunpack.c.h.b16 %v1778
    %v4525 = vunpack.c.l.b16 %v1779
    %v4526 = vunpack.c.h.b16 %v1779
    %v4527 = vunpack.c.l.b16 %v1780
    %v4528 = vunpack.c.h.b16 %v1780
    %v4529 = vunpack.c.l.b16 %v1781
    %v4530 = vunpack.c.h.b16 %v1781
    %v4531 = vunpack.c.l.b16 %v1782
    %v4532 = vunpack.c.h.b16 %v1782
    %v4533 = vunpack.c.l.b16 %v1783
    %v4534 = vunpack.c.h.b16 %v1783
    %v4535 = vunpack.c.l.b16 %v1784
    %v4536 = vunpack.c.h.b16 %v1784
    %v4537 = vunpack.c.l.b16 %v1785
    %v4538 = vunpack.c.h.b16 %v1785
    %v4539 = vunpack.c.l.b16 %v1786
    %v4540 = vunpack.c.h.b16 %v1786
    %v4541 = vunpack.c.l.b16 %v1787
    %v4542 = vunpack.c.h.b16 %v1787
    %v4543 = vunpack.c.l.b16 %v1788
    %v4544 = vunpack.c.h.b16 %v1788
    %v4545 = vunpack.c.l.b16 %v1789
    %v4546 = vunpack.c.h.b16 %v1789
    %v4547 = vunpack.c.l.b16 %v1790
    %v4548 = vunpack.c.h.b16 %v1790
    %v4549 = vunpack.c.l.b16 %v1791
    %v4550 = vunpack.c.h.b16 %v1791
    %v4551 = vunpack.c.l.b16 %v1792
    %v4552 = vunpack.c.h.b16 %v1792
    %v4553 = vunpack.c.l.b16 %v1793
    %v4554 = vunpack.c.h.b16 %v1793
    %v4555 = vunpack.c.l.b16 %v1794
    %v4556 = vunpack.c.h.b16 %v1794
    %v4557 = vunpack.c.l.b16 %v1795
    %v4558 = vunpack.c.h.b16 %v1795
    %v4559 = vunpack.c.l.b16 %v1796
    %v4560 = vunpack.c.h.b16 %v1796
    %v4561 = vunpack.c.l.b16 %v1797
    %v4562 = vunpack.c.h.b16 %v1797
    %v4563 = vunpack.c.l.b16 %v1798
    %v4564 = vunpack.c.h.b16 %v1798
    %v4565 = vunpack.c.l.b16 %v1799
    %v4566 = vunpack.c.h.b16 %v1799
    %v4567 = vunpack.c.l.b16 %v1800
    %v4568 = vunpack.c.h.b16 %v1800
    %v4569 = vunpack.c.l.b16 %v1801
    %v4570 = vunpack.c.h.b16 %v1801
    %v4571 = vunpack.c.l.b16 %v1802
    %v4572 = vunpack.c.h.b16 %v1802
    %v4573 = vunpack.c.l.b16 %v1803
    %v4574 = vunpack.c.h.b16 %v1803
    %v4575 = vunpack.c.l.b16 %v1804
    %v4576 = vunpack.c.h.b16 %v1804
    %v4577 = vunpack.c.l.b16 %v1805
    %v4578 = vunpack.c.h.b16 %v1805
    %v4579 = vunpack.c.l.b16 %v1806
    %v4580 = vunpack.c.h.b16 %v1806
    %v4581 = vunpack.c.l.b16 %v1807
    %v4582 = vunpack.c.h.b16 %v1807
    %v4583 = vunpack.c.l.b16 %v1808
    %v4584 = vunpack.c.h.b16 %v1808
    %v4585 = vunpack.c.l.b16 %v1809
    %v4586 = vunpack.c.h.b16 %v1809
    %v4587 = vunpack.c.l.b16 %v1810
    %v4588 = vunpack.c.h.b16 %v1810
    %v4589 = vunpack.c.l.b16 %v1811
    %v4590 = vunpack.c.h.b16 %v1811
    %v4591 = vunpack.c.l.b16 %v1812
    %v4592 = vunpack.c.h.b16 %v1812
    %v4593 = vunpack.c.l.b16 %v1813
    %v4594 = vunpack.c.h.b16 %v1813
    %v4595 = vunpack.c.l.b16 %v1814
    %v4596 = vunpack.c.h.b16 %v1814
    %v4597 = vunpack.c.l.b16 %v1815
    %v4598 = vunpack.c.h.b16 %v1815
    %v4599 = vunpack.c.l.b16 %v1816
    %v4600 = vunpack.c.h.b16 %v1816
    %v4601 = vunpack.c.l.b16 %v1817
    %v4602 = vunpack.c.h.b16 %v1817
    %v4603 = vunpack.c.l.b16 %v1818
    %v4604 = vunpack.c.h.b16 %v1818
    %v4605 = vunpack.c.l.b16 %v1819
    %v4606 = vunpack.c.h.b16 %v1819
    %v4607 = vunpack.c.l.b16 %v1820
    %v4608 = vunpack.c.h.b16 %v1820
    %v4609 = vunpack.c.l.b16 %v1821
    %v4610 = vunpack.c.h.b16 %v1821
    %v4611 = vunpack.c.l.b16 %v1822
    %v4612 = vunpack.c.h.b16 %v1822
    %v4613 = vunpack.c.l.b16 %v1823
    %v4614 = vunpack.c.h.b16 %v1823
    %v4615 = vunpack.c.l.b16 %v1824
    %v4616 = vunpack.c.h.b16 %v1824
    %v4617 = vunpack.c.l.b16 %v1825
    %v4618 = vunpack.c.h.b16 %v1825
    %v4619 = vunpack.c.l.b16 %v1826
    %v4620 = vunpack.c.h.b16 %v1826
    %v4621 = vunpack.c.l.b16 %v1827
    %v4622 = vunpack.c.h.b16 %v1827
    %v4623 = vunpack.c.l.b16 %v1828
    %v4624 = vunpack.c.h.b16 %v1828
    %v4625 = vunpack.c.l.b16 %v1829
    %v4626 = vunpack.c.h.b16 %v1829
    %v4627 = vunpack.c.l.b16 %v1830
    %v4628 = vunpack.c.h.b16 %v1830
    %v4629 = vunpack.c.l.b16 %v1831
    %v4630 = vunpack.c.h.b16 %v1831
    %v4631 = vunpack.c.l.b16 %v1832
    %v4632 = vunpack.c.h.b16 %v1832
    %v4633 = vunpack.c.l.b16 %v1833
    %v4634 = vunpack.c.h.b16 %v1833
    %v4635 = vunpack.c.l.b16 %v1834
    %v4636 = vunpack.c.h.b16 %v1834
    %v4637 = vunpack.c.l.b16 %v1835
    %v4638 = vunpack.c.h.b16 %v1835
    %v4639 = vunpack.c.l.b16 %v1836
    %v4640 = vunpack.c.h.b16 %v1836
    %v4641 = vunpack.c.l.b16 %v1837
    %v4642 = vunpack.c.h.b16 %v1837
    %v4643 = vunpack.c.l.b16 %v1838
    %v4644 = vunpack.c.h.b16 %v1838
    %v4645 = vunpack.c.l.b16 %v1839
    %v4646 = vunpack.c.h.b16 %v1839
    %v4647 = vunpack.c.l.b16 %v1840
    %v4648 = vunpack.c.h.b16 %v1840
    %v4649 = vunpack.c.l.b16 %v1841
    %v4650 = vunpack.c.h.b16 %v1841
    %v4651 = vunpack.c.l.b16 %v1842
    %v4652 = vunpack.c.h.b16 %v1842
    %v4653 = vunpack.c.l.b16 %v1843
    %v4654 = vunpack.c.h.b16 %v1843
    %v4655 = vunpack.c.l.b16 %v1844
    %v4656 = vunpack.c.h.b16 %v1844
    %v4657 = vunpack.c.l.b16 %v1845
    %v4658 = vunpack.c.h.b16 %v1845
    %v4659 = vunpack.c.l.b16 %v1846
    %v4660 = vunpack.c.h.b16 %v1846
    %v4661 = vunpack.c.l.b16 %v1847
    %v4662 = vunpack.c.h.b16 %v1847
    %v4663 = vunpack.c.l.b16 %v1848
    %v4664 = vunpack.c.h.b16 %v1848
    %v4665 = vunpack.c.l.b16 %v1849
    %v4666 = vunpack.c.h.b16 %v1849
    %v4667 = vunpack.c.l.b16 %v1850
    %v4668 = vunpack.c.h.b16 %v1850
    %v4669 = vunpack.c.l.b16 %v1851
    %v4670 = vunpack.c.h.b16 %v1851
    %v4671 = vunpack.c.l.b16 %v1852
    %v4672 = vunpack.c.h.b16 %v1852
    %v4673 = vunpack.c.l.b16 %v1853
    %v4674 = vunpack.c.h.b16 %v1853
    %v4675 = vunpack.c.l.b16 %v1854
    %v4676 = vunpack.c.h.b16 %v1854
    %v4677 = vunpack.c.l.b16 %v1855
    %v4678 = vunpack.c.h.b16 %v1855
    %v4679 = vunpack.c.l.b16 %v1856
    %v4680 = vunpack.c.h.b16 %v1856
    %v4681 = vunpack.c.l.b16 %v1857
    %v4682 = vunpack.c.h.b16 %v1857
    %v4683 = vunpack.c.l.b16 %v1858
    %v4684 = vunpack.c.h.b16 %v1858
    %v4685 = vunpack.c.l.b16 %v1859
    %v4686 = vunpack.c.h.b16 %v1859
    %v4687 = vunpack.c.l.b16 %v1860
    %v4688 = vunpack.c.h.b16 %v1860
    %v4689 = vunpack.c.l.b16 %v1861
    %v4690 = vunpack.c.h.b16 %v1861
    %v4691 = vunpack.c.l.b16 %v1862
    %v4692 = vunpack.c.h.b16 %v1862
    %v4693 = vunpack.c.l.b16 %v1863
    %v4694 = vunpack.c.h.b16 %v1863
    %v4695 = vunpack.c.l.b16 %v1864
    %v4696 = vunpack.c.h.b16 %v1864
    %v4697 = vunpack.c.l.b16 %v1865
    %v4698 = vunpack.c.h.b16 %v1865
    %v4699 = vunpack.c.l.b16 %v1866
    %v4700 = vunpack.c.h.b16 %v1866
    %v4701 = vunpack.c.l.b16 %v1867
    %v4702 = vunpack.c.h.b16 %v1867
    %v4703 = vunpack.c.l.b16 %v1868
    %v4704 = vunpack.c.h.b16 %v1868
    %v4705 = vunpack.c.l.b16 %v1869
    %v4706 = vunpack.c.h.b16 %v1869
    %v4707 = vunpack.c.l.b16 %v1870
    %v4708 = vunpack.c.h.b16 %v1870
    %v4709 = vunpack.c.l.b16 %v1871
    %v4710 = vunpack.c.h.b16 %v1871
    %v4711 = vunpack.c.l.b16 %v1872
    %v4712 = vunpack.c.h.b16 %v1872
    %v4713 = vunpack.c.l.b16 %v1873
    %v4714 = vunpack.c.h.b16 %v1873
    %v4715 = vunpack.c.l.b16 %v1874
    %v4716 = vunpack.c.h.b16 %v1874
    %v4717 = vunpack.c.l.b16 %v1875
    %v4718 = vunpack.c.h.b16 %v1875
    %v4719 = vunpack.c.l.b16 %v1876
    %v4720 = vunpack.c.h.b16 %v1876
    %v4721 = vunpack.c.l.b16 %v1877
    %v4722 = vunpack.c.h.b16 %v1877
    %v4723 = vunpack.c.l.b16 %v1878
    %v4724 = vunpack.c.h.b16 %v1878
    %v4725 = vunpack.c.l.b16 %v1879
    %v4726 = vunpack.c.h.b16 %v1879
    %v4727 = vunpack.c.l.b16 %v1880
    %v4728 = vunpack.c.h.b16 %v1880
    %v4729 = vunpack.c.l.b16 %v1881
    %v4730 = vunpack.c.h.b16 %v1881
    %v4731 = vunpack.c.l.b16 %v1882
    %v4732 = vunpack.c.h.b16 %v1882
    %v4733 = vunpack.c.l.b16 %v1883
    %v4734 = vunpack.c.h.b16 %v1883
    %v4735 = vunpack.c.l.b16 %v1884
    %v4736 = vunpack.c.h.b16 %v1884
    %v4737 = vunpack.c.l.b16 %v1885
    %v4738 = vunpack.c.h.b16 %v1885
    %v4739 = vunpack.c.l.b16 %v1886
    %v4740 = vunpack.c.h.b16 %v1886
    %v4741 = vunpack.c.l.b16 %v1887
    %v4742 = vunpack.c.h.b16 %v1887
    %v4743 = vunpack.c.l.b16 %v1888
    %v4744 = vunpack.c.h.b16 %v1888
    %v4745 = vunpack.c.l.b16 %v1889
    %v4746 = vunpack.c.h.b16 %v1889
    %v4747 = vunpack.c.l.b16 %v1890
    %v4748 = vunpack.c.h.b16 %v1890
    %v4749 = vunpack.c.l.b16 %v1891
    %v4750 = vunpack.c.h.b16 %v1891
    %v4751 = vunpack.c.l.b16 %v1892
    %v4752 = vunpack.c.h.b16 %v1892
    %v4753 = vunpack.c.l.b16 %v1893
    %v4754 = vunpack.c.h.b16 %v1893
    %v4755 = vunpack.c.l.b16 %v1894
    %v4756 = vunpack.c.h.b16 %v1894
    %v4757 = vunpack.c.l.b16 %v1895
    %v4758 = vunpack.c.h.b16 %v1895
    %v4759 = vunpack.c.l.b16 %v1896
    %v4760 = vunpack.c.h.b16 %v1896
    %v4761 = vunpack.c.l.b16 %v1897
    %v4762 = vunpack.c.h.b16 %v1897
    %v4763 = vunpack.c.l.b16 %v1898
    %v4764 = vunpack.c.h.b16 %v1898
    %v4765 = vunpack.c.l.b16 %v1899
    %v4766 = vunpack.c.h.b16 %v1899
    %v4767 = vunpack.c.l.b16 %v1900
    %v4768 = vunpack.c.h.b16 %v1900
    %v4769 = vunpack.c.l.b16 %v1901
    %v4770 = vunpack.c.h.b16 %v1901
    %v4771 = vunpack.c.l.b16 %v1902
    %v4772 = vunpack.c.h.b16 %v1902
    %v4773 = vunpack.c.l.b16 %v1903
    %v4774 = vunpack.c.h.b16 %v1903
    %v4775 = vunpack.c.l.b16 %v1904
    %v4776 = vunpack.c.h.b16 %v1904
    %v4777 = vunpack.c.l.b16 %v1905
    %v4778 = vunpack.c.h.b16 %v1905
    %v4779 = vunpack.c.l.b16 %v1906
    %v4780 = vunpack.c.h.b16 %v1906
    %v4781 = vunpack.c.l.b16 %v1907
    %v4782 = vunpack.c.h.b16 %v1907
    %v4783 = vunpack.c.l.b16 %v1908
    %v4784 = vunpack.c.h.b16 %v1908
    %v4785 = vunpack.c.l.b16 %v1909
    %v4786 = vunpack.c.h.b16 %v1909
    %v4787 = vunpack.c.l.b16 %v1910
    %v4788 = vunpack.c.h.b16 %v1910
    %v4789 = vunpack.c.l.b16 %v1911
    %v4790 = vunpack.c.h.b16 %v1911
    %v4791 = vunpack.c.l.b16 %v1912
    %v4792 = vunpack.c.h.b16 %v1912
    %v4793 = vunpack.c.l.b16 %v1913
    %v4794 = vunpack.c.h.b16 %v1913
    %v4795 = vunpack.c.l.b16 %v1914
    %v4796 = vunpack.c.h.b16 %v1914
    %v4797 = vunpack.c.l.b16 %v1915
    %v4798 = vunpack.c.h.b16 %v1915
    %v4799 = vunpack.c.l.b16 %v1916
    %v4800 = vunpack.c.h.b16 %v1916
    %v4801 = vunpack.c.l.b16 %v1917
    %v4802 = vunpack.c.h.b16 %v1917
    %v4803 = vunpack.c.l.b16 %v1918
    %v4804 = vunpack.c.h.b16 %v1918
    %v4805 = vunpack.c.l.b16 %v1919
    %v4806 = vunpack.c.h.b16 %v1919
    %v4807 = vunpack.c.l.b16 %v1920
    %v4808 = vunpack.c.h.b16 %v1920
    %v4809 = vunpack.c.l.b16 %v1921
    %v4810 = vunpack.c.h.b16 %v1921
    %v4811 = vunpack.c.l.b16 %v1922
    %v4812 = vunpack.c.h.b16 %v1922
    %v4813 = vunpack.c.l.b16 %v1923
    %v4814 = vunpack.c.h.b16 %v1923
    %v4815 = vunpack.c.l.b16 %v1924
    %v4816 = vunpack.c.h.b16 %v1924
    %v4817 = vunpack.c.l.b16 %v1925
    %v4818 = vunpack.c.h.b16 %v1925
    %v4819 = vunpack.c.l.b16 %v1926
    %v4820 = vunpack.c.h.b16 %v1926
    %v4821 = vunpack.c.l.b16 %v1927
    %v4822 = vunpack.c.h.b16 %v1927
    %v4823 = vunpack.c.l.b16 %v1928
    %v4824 = vunpack.c.h.b16 %v1928
    %v4825 = vunpack.c.l.b16 %v1929
    %v4826 = vunpack.c.h.b16 %v1929
    %v4827 = vunpack.c.l.b16 %v1930
    %v4828 = vunpack.c.h.b16 %v1930
    %v4829 = vunpack.c.l.b16 %v1931
    %v4830 = vunpack.c.h.b16 %v1931
    %v4831 = vunpack.c.l.b16 %v1932
    %v4832 = vunpack.c.h.b16 %v1932
    %v4833 = vunpack.c.l.b16 %v1933
    %v4834 = vunpack.c.h.b16 %v1933
    %v4835 = vunpack.c.l.b16 %v1934
    %v4836 = vunpack.c.h.b16 %v1934
    %v4837 = vunpack.c.l.b16 %v1935
    %v4838 = vunpack.c.h.b16 %v1935
    %v4839 = vunpack.c.l.b16 %v1936
    %v4840 = vunpack.c.h.b16 %v1936
    %v4841 = vunpack.c.l.b16 %v1937
    %v4842 = vunpack.c.h.b16 %v1937
    %v4843 = vunpack.c.l.b16 %v1938
    %v4844 = vunpack.c.h.b16 %v1938
    %v4845 = vunpack.c.l.b16 %v1939
    %v4846 = vunpack.c.h.b16 %v1939
    %v4847 = vunpack.c.l.b16 %v1940
    %v4848 = vunpack.c.h.b16 %v1940
    %v4849 = vunpack.c.l.b16 %v1941
    %v4850 = vunpack.c.h.b16 %v1941
    %v4851 = vunpack.c.l.b16 %v1942
    %v4852 = vunpack.c.h.b16 %v1942
    %v4853 = vunpack.c.l.b16 %v1943
    %v4854 = vunpack.c.h.b16 %v1943
    %v4855 = vunpack.c.l.b16 %v1944
    %v4856 = vunpack.c.h.b16 %v1944
    %v4857 = vunpack.c.l.b16 %v1945
    %v4858 = vunpack.c.h.b16 %v1945
    %v4859 = vunpack.c.l.b16 %v1946
    %v4860 = vunpack.c.h.b16 %v1946
    %v4861 = vunpack.c.l.b16 %v1947
    %v4862 = vunpack.c.h.b16 %v1947
    %v4863 = vunpack.c.l.b16 %v1948
    %v4864 = vunpack.c.h.b16 %v1948
    %v4865 = vunpack.c.l.b16 %v1949
    %v4866 = vunpack.c.h.b16 %v1949
    %v4867 = vunpack.c.l.b16 %v1950
    %v4868 = vunpack.c.h.b16 %v1950
    %v4869 = vunpack.c.l.b16 %v1951
    %v4870 = vunpack.c.h.b16 %v1951
    %v4871 = vunpack.c.l.b16 %v1952
    %v4872 = vunpack.c.h.b16 %v1952
    %v4873 = vunpack.c.l.b16 %v1953
    %v4874 = vunpack.c.h.b16 %v1953
    %v4875 = vunpack.c.l.b16 %v1954
    %v4876 = vunpack.c.h.b16 %v1954
    %v4877 = vunpack.c.l.b16 %v1955
    %v4878 = vunpack.c.h.b16 %v1955
    %v4879 = vunpack.c.l.b16 %v1956
    %v4880 = vunpack.c.h.b16 %v1956
    %v4881 = vunpack.c.l.b16 %v1957
    %v4882 = vunpack.c.h.b16 %v1957
    %v4883 = vunpack.c.l.b16 %v1958
    %v4884 = vunpack.c.h.b16 %v1958
    %v4885 = vunpack.c.l.b16 %v1959
    %v4886 = vunpack.c.h.b16 %v1959
    %v4887 = vunpack.c.l.b16 %v1960
    %v4888 = vunpack.c.h.b16 %v1960
    %v4889 = vunpack.c.l.b16 %v1961
    %v4890 = vunpack.c.h.b16 %v1961
    %v4891 = vunpack.c.l.b16 %v1962
    %v4892 = vunpack.c.h.b16 %v1962
    %v4893 = vunpack.c.l.b16 %v1963
    %v4894 = vunpack.c.h.b16 %v1963
    %v4895 = vunpack.c.l.b16 %v1964
    %v4896 = vunpack.c.h.b16 %v1964
    %v4897 = vunpack.c.l.b16 %v1965
    %v4898 = vunpack.c.h.b16 %v1965
    %v4899 = vunpack.c.l.b16 %v1966
    %v4900 = vunpack.c.h.b16 %v1966
    %v4901 = vunpack.c.l.b16 %v1967
    %v4902 = vunpack.c.h.b16 %v1967
    %v4903 = vunpack.c.l.b16 %v1968
    %v4904 = vunpack.c.h.b16 %v1968
    %v4905 = vunpack.c.l.b16 %v1969
    %v4906 = vunpack.c.h.b16 %v1969
    %v4907 = vunpack.c.l.b16 %v1970
    %v4908 = vunpack.c.h.b16 %v1970
    %v4909 = vunpack.c.l.b16 %v1971
    %v4910 = vunpack.c.h.b16 %v1971
    %v4911 = vunpack.c.l.b16 %v1972
    %v4912 = vunpack.c.h.b16 %v1972
    %v4913 = vunpack.c.l.b16 %v1973
    %v4914 = vunpack.c.h.b16 %v1973
    %v4915 = vunpack.c.l.b16 %v1974
    %v4916 = vunpack.c.h.b16 %v1974
    %v4917 = vunpack.c.l.b16 %v1975
    %v4918 = vunpack.c.h.b16 %v1975
    %v4919 = vunpack.c.l.b16 %v1976
    %v4920 = vunpack.c.h.b16 %v1976
    %v4921 = vunpack.c.l.b16 %v1977
    %v4922 = vunpack.c.h.b16 %v1977
    %v4923 = vunpack.c.l.b16 %v1978
    %v4924 = vunpack.c.h.b16 %v1978
    %v4925 = vunpack.c.l.b16 %v1979
    %v4926 = vunpack.c.h.b16 %v1979
    %v4927 = vunpack.c.l.b16 %v1980
    %v4928 = vunpack.c.h.b16 %v1980
    %v4929 = vunpack.c.l.b16 %v1981
    %v4930 = vunpack.c.h.b16 %v1981
    %v4931 = vunpack.c.l.b16 %v1982
    %v4932 = vunpack.c.h.b16 %v1982
    %v4933 = vunpack.c.l.b16 %v1983
    %v4934 = vunpack.c.h.b16 %v1983
    %v4935 = vunpack.c.l.b16 %v1984
    %v4936 = vunpack.c.h.b16 %v1984
    %v4937 = vunpack.c.l.b16 %v1985
    %v4938 = vunpack.c.h.b16 %v1985
    %v4939 = vunpack.c.l.b16 %v1986
    %v4940 = vunpack.c.h.b16 %v1986
    %v4941 = vunpack.c.l.b16 %v1987
    %v4942 = vunpack.c.h.b16 %v1987
    %v4943 = vunpack.c.l.b16 %v1988
    %v4944 = vunpack.c.h.b16 %v1988
    %v4945 = vunpack.c.l.b16 %v1989
    %v4946 = vunpack.c.h.b16 %v1989
    %v4947 = vunpack.c.l.b16 %v1990
    %v4948 = vunpack.c.h.b16 %v1990
    %v4949 = vunpack.c.l.b16 %v1991
    %v4950 = vunpack.c.h.b16 %v1991
    %v4951 = vunpack.c.l.b16 %v1992
    %v4952 = vunpack.c.h.b16 %v1992
    %v4953 = vunpack.c.l.b16 %v1993
    %v4954 = vunpack.c.h.b16 %v1993
    %v4955 = vunpack.c.l.b16 %v1994
    %v4956 = vunpack.c.h.b16 %v1994
    %v4957 = vunpack.c.l.b16 %v1995
    %v4958 = vunpack.c.h.b16 %v1995
    %v4959 = vunpack.c.l.b16 %v1996
    %v4960 = vunpack.c.h.b16 %v1996
    %v4961 = vunpack.c.l.b16 %v1997
    %v4962 = vunpack.c.h.b16 %v1997
    %v4963 = vunpack.c.l.b16 %v1998
    %v4964 = vunpack.c.h.b16 %v1998
    %v4965 = vunpack.c.l.b16 %v1999
    %v4966 = vunpack.c.h.b16 %v1999
    %v4967 = vunpack.c.l.b16 %v2000
    %v4968 = vunpack.c.h.b16 %v2000
    %v4969 = vunpack.c.l.b16 %v2001
    %v4970 = vunpack.c.h.b16 %v2001
    %v4971 = vunpack.c.l.b16 %v2002
    %v4972 = vunpack.c.h.b16 %v2002
    %v4973 = vunpack.c.l.b16 %v2003
    %v4974 = vunpack.c.h.b16 %v2003
    %v4975 = vunpack.c.l.b16 %v2004
    %v4976 = vunpack.c.h.b16 %v2004
    %v4977 = vunpack.c.l.b16 %v2005
    %v4978 = vunpack.c.h.b16 %v2005
    %v4979 = vunpack.c.l.b16 %v2006
    %v4980 = vunpack.c.h.b16 %v2006
    %v4981 = vunpack.c.l.b16 %v2007
    %v4982 = vunpack.c.h.b16 %v2007
    %v4983 = vunpack.c.l.b16 %v2008
    %v4984 = vunpack.c.h.b16 %v2008
    %v4985 = vunpack.c.l.b16 %v2009
    %v4986 = vunpack.c.h.b16 %v2009
    %v4987 = vunpack.c.l.b16 %v2010
    %v4988 = vunpack.c.h.b16 %v2010
    %v4989 = vunpack.c.l.b16 %v2011
    %v4990 = vunpack.c.h.b16 %v2011
    %v4991 = vunpack.c.l.b16 %v2012
    %v4992 = vunpack.c.h.b16 %v2012
    %v4993 = vunpack.c.l.b16 %v2013
    %v4994 = vunpack.c.h.b16 %v2013
    %v4995 = vunpack.c.l.b16 %v2014
    %v4996 = vunpack.c.h.b16 %v2014
    %v4997 = vunpack.c.l.b16 %v2015
    %v4998 = vunpack.c.h.b16 %v2015
    %v4999 = vunpack.c.l.b16 %v2016
    %v5000 = vunpack.c.h.b16 %v2016
    %v5001 = vunpack.c.l.b16 %v2017
    %v5002 = vunpack.c.h.b16 %v2017
    %v5003 = vunpack.c.l.b16 %v2018
    %v5004 = vunpack.c.h.b16 %v2018
    %v5005 = vunpack.c.l.b16 %v2019
    %v5006 = vunpack.c.h.b16 %v2019
    %v5007 = vunpack.c.l.b16 %v2020
    %v5008 = vunpack.c.h.b16 %v2020
    %v5009 = vunpack.c.l.b16 %v2021
    %v5010 = vunpack.c.h.b16 %v2021
    %v5011 = vunpack.c.l.b16 %v2022
    %v5012 = vunpack.c.h.b16 %v2022
    %v5013 = vunpack.c.l.b16 %v2023
    %v5014 = vunpack.c.h.b16 %v2023
    %v5015 = vunpack.c.l.b16 %v2024
    %v5016 = vunpack.c.h.b16 %v2024
    %v5017 = vunpack.c.l.b16 %v2025
    %v5018 = vunpack.c.h.b16 %v2025
    %v5019 = vunpack.c.l.b16 %v2026
    %v5020 = vunpack.c.h.b16 %v2026
    %v5021 = vunpack.c.l.b16 %v2027
    %v5022 = vunpack.c.h.b16 %v2027
    %v5023 = vunpack.c.l.b16 %v2028
    %v5024 = vunpack.c.h.b16 %v2028
    %v5025 = vunpack.c.l.b16 %v2029
    %v5026 = vunpack.c.h.b16 %v2029
    %v5027 = vunpack.c.l.b16 %v2030
    %v5028 = vunpack.c.h.b16 %v2030
    %v5029 = vunpack.c.l.b16 %v2031
    %v5030 = vunpack.c.h.b16 %v2031
    %v5031 = vunpack.c.l.b16 %v2032
    %v5032 = vunpack.c.h.b16 %v2032
    %v5033 = vunpack.c.l.b16 %v2033
    %v5034 = vunpack.c.h.b16 %v2033
    %v5035 = vunpack.c.l.b16 %v2034
    %v5036 = vunpack.c.h.b16 %v2034
    %v5037 = vunpack.c.l.b16 %v2035
    %v5038 = vunpack.c.h.b16 %v2035
    %v5039 = vunpack.c.l.b16 %v2036
    %v5040 = vunpack.c.h.b16 %v2036
    %v5041 = vunpack.c.l.b16 %v2037
    %v5042 = vunpack.c.h.b16 %v2037
    %v5043 = vunpack.c.l.b16 %v2038
    %v5044 = vunpack.c.h.b16 %v2038
    %v5045 = vunpack.c.l.b16 %v2039
    %v5046 = vunpack.c.h.b16 %v2039
    %v5047 = vunpack.c.l.b16 %v2040
    %v5048 = vunpack.c.h.b16 %v2040
    %v5049 = vunpack.c.l.b16 %v2041
    %v5050 = vunpack.c.h.b16 %v2041
    %v5051 = vunpack.c.l.b16 %v2042
    %v5052 = vunpack.c.h.b16 %v2042
    %v5053 = vunpack.c.l.b16 %v2043
    %v5054 = vunpack.c.h.b16 %v2043
    %v5055 = vunpack.c.l.b16 %v2044
    %v5056 = vunpack.c.h.b16 %v2044
    %v5057 = vunpack.c.l.b16 %v2045
    %v5058 = vunpack.c.h.b16 %v2045
    %v5059 = vunpack.c.l.b16 %v2046
    %v5060 = vunpack.c.h.b16 %v2046
    %v5061 = vunpack.c.l.b16 %v2047
    %v5062 = vunpack.c.h.b16 %v2047
    %v5063 = vunpack.c.l.b16 %v2048
    %v5064 = vunpack.c.h.b16 %v2048
    %v5065 = vunpack.c.l.b16 %v2049
    %v5066 = vunpack.c.h.b16 %v2049
    %v5067 = vunpack.c.l.b16 %v2050
    %v5068 = vunpack.c.h.b16 %v2050
    %v5069 = vunpack.c.l.b16 %v2051
    %v5070 = vunpack.c.h.b16 %v2051
    %v5071 = vunpack.c.l.b16 %v2052
    %v5072 = vunpack.c.h.b16 %v2052
    %v5073 = vunpack.c.l.b16 %v2053
    %v5074 = vunpack.c.h.b16 %v2053
    %v5075 = vunpack.c.l.b16 %v2054
    %v5076 = vunpack.c.h.b16 %v2054
    %v5077 = vunpack.c.l.b16 %v2055
    %v5078 = vunpack.c.h.b16 %v2055
    %v5079 = vunpack.c.l.b16 %v2056
    %v5080 = vunpack.c.h.b16 %v2056
    %v5081 = vunpack.c.l.b16 %v2057
    %v5082 = vunpack.c.h.b16 %v2057
    %v5083 = vunpack.c.l.b16 %v2058
    %v5084 = vunpack.c.h.b16 %v2058
    %v5085 = vunpack.c.l.b16 %v2059
    %v5086 = vunpack.c.h.b16 %v2059
    %v5087 = vunpack.c.l.b16 %v2060
    %v5088 = vunpack.c.h.b16 %v2060
    %v5089 = vunpack.c.l.b16 %v2061
    %v5090 = vunpack.c.h.b16 %v2061
    %v5091 = vunpack.c.l.b16 %v2062
    %v5092 = vunpack.c.h.b16 %v2062
    %v5093 = vunpack.c.l.b16 %v2063
    %v5094 = vunpack.c.h.b16 %v2063
    %v5095 = vunpack.c.l.b16 %v2064
    %v5096 = vunpack.c.h.b16 %v2064
    %v5097 = vunpack.c.l.b16 %v2065
    %v5098 = vunpack.c.h.b16 %v2065
    %v5099 = vunpack.c.l.b16 %v2066
    %v5100 = vunpack.c.h.b16 %v2066
    %v5101 = vunpack.c.l.b16 %v2067
    %v5102 = vunpack.c.h.b16 %v2067
    %v5103 = vunpack.c.l.b16 %v2068
    %v5104 = vunpack.c.h.b16 %v2068
    %v5105 = vunpack.c.l.b16 %v2069
    %v5106 = vunpack.c.h.b16 %v2069
    %v5107 = vunpack.c.l.b16 %v2070
    %v5108 = vunpack.c.h.b16 %v2070
    %v5109 = vunpack.c.l.b16 %v2071
    %v5110 = vunpack.c.h.b16 %v2071
    %v5111 = vunpack.c.l.b16 %v2072
    %v5112 = vunpack.c.h.b16 %v2072
    %v5113 = vunpack.c.l.b16 %v2073
    %v5114 = vunpack.c.h.b16 %v2073
    %v5115 = vunpack.c.l.b16 %v2074
    %v5116 = vunpack.c.h.b16 %v2074
    %v5117 = vunpack.c.l.b16 %v2075
    %v5118 = vunpack.c.h.b16 %v2075
    %v5119 = vunpack.c.l.b16 %v2076
    %v5120 = vunpack.c.h.b16 %v2076
    %v5121 = vunpack.c.l.b16 %v2077
    %v5122 = vunpack.c.h.b16 %v2077
    %v5123 = vunpack.c.l.b16 %v2078
    %v5124 = vunpack.c.h.b16 %v2078
    %v5125 = vunpack.c.l.b16 %v2079
    %v5126 = vunpack.c.h.b16 %v2079
    %v5127 = vunpack.c.l.b16 %v2080
    %v5128 = vunpack.c.h.b16 %v2080
    %v5129 = vunpack.c.l.b16 %v2081
    %v5130 = vunpack.c.h.b16 %v2081
    %v5131 = vunpack.c.l.b16 %v2082
    %v5132 = vunpack.c.h.b16 %v2082
    %v5133 = vunpack.c.l.b16 %v2083
    %v5134 = vunpack.c.h.b16 %v2083
    %v5135 = vunpack.c.l.b16 %v2084
    %v5136 = vunpack.c.h.b16 %v2084
    %v5137 = vunpack.c.l.b16 %v2085
    %v5138 = vunpack.c.h.b16 %v2085
    %v5139 = vunpack.c.l.b16 %v2086
    %v5140 = vunpack.c.h.b16 %v2086
    %v5141 = vunpack.c.l.b16 %v2087
    %v5142 = vunpack.c.h.b16 %v2087
    %v5143 = vunpack.c.l.b16 %v2088
    %v5144 = vunpack.c.h.b16 %v2088
    %v5145 = vunpack.c.l.b16 %v2089
    %v5146 = vunpack.c.h.b16 %v2089
    %v5147 = vunpack.c.l.b16 %v2090
    %v5148 = vunpack.c.h.b16 %v2090
    %v5149 = vunpack.c.l.b16 %v2091
    %v5150 = vunpack.c.h.b16 %v2091
    %v5151 = vunpack.c.l.b16 %v2092
    %v5152 = vunpack.c.h.b16 %v2092
    %v5153 = vunpack.c.l.b16 %v2093
    %v5154 = vunpack.c.h.b16 %v2093
    %v5155 = vunpack.c.l.b16 %v2094
    %v5156 = vunpack.c.h.b16 %v2094
    %v5157 = vunpack.c.l.b16 %v2095
    %v5158 = vunpack.c.h.b16 %v2095
    %v5159 = vunpack.c.l.b16 %v2096
    %v5160 = vunpack.c.h.b16 %v2096
    %v5161 = vunpack.c.l.b16 %v2097
    %v5162 = vunpack.c.h.b16 %v2097
    %v5163 = vunpack.c.l.b16 %v2098
    %v5164 = vunpack.c.h.b16 %v2098
    %v5165 = vunpack.c.l.b16 %v2099
    %v5166 = vunpack.c.h.b16 %v2099
    %v5167 = vunpack.c.l.b16 %v2100
    %v5168 = vunpack.c.h.b16 %v2100
    %v5169 = vunpack.c.l.b16 %v2101
    %v5170 = vunpack.c.h.b16 %v2101
    %v5171 = vunpack.c.l.b16 %v2102
    %v5172 = vunpack.c.h.b16 %v2102
    %v5173 = vunpack.c.l.b16 %v2103
    %v5174 = vunpack.c.h.b16 %v2103
    %v5175 = vunpack.c.l.b16 %v2104
    %v5176 = vunpack.c.h.b16 %v2104
    %v5177 = vpack.c.b16 %v3137, %v3129
    %v5178 = vpack.c.b16 %v3138, %v3130
    %v5179 = vpack.c.b16 %v3139, %v3131
    %v5180 = vpack.c.b16 %v3140, %v3132
    %v5181 = vpack.c.b16 %v3141, %v3133
    %v5182 = vpack.c.b16 %v3142, %v3134
    %v5183 = vpack.c.b16 %v3143, %v3135
    %v5184 = vpack.c.b16 %v3144, %v3136
    %v5185 = vpack.c.b16 %v3153, %v3145
    %v5186 = vpack.c.b16 %v3154, %v3146
    %v5187 = vpack.c.b16 %v3155, %v3147
    %v5188 = vpack.c.b16 %v3156, %v3148
    %v5189 = vpack.c.b16 %v3157, %v3149
    %v5190 = vpack.c.b16 %v3158, %v3150
    %v5191 = vpack.c.b16 %v3159, %v3151
    %v5192 = vpack.c.b16 %v3160, %v3152
    %v5193 = vpack.c.b16 %v3169, %v3161
    %v5194 = vpack.c.b16 %v3170, %v3162
    %v5195 = vpack.c.b16 %v3171, %v3163
    %v5196 = vpack.c.b16 %v3172, %v3164
    %v5197 = vpack.c.b16 %v3173, %v3165
    %v5198 = vpack.c.b16 %v3174, %v3166
    %v5199 = vpack.c.b16 %v3175, %v3167
    %v5200 = vpack.c.b16 %v3176, %v3168
    %v5201 = vpack.c.b16 %v3185, %v3177
    %v5202 = vpack.c.b16 %v3186, %v3178
    %v5203 = vpack.c.b16 %v3187, %v3179
    %v5204 = vpack.c.b16 %v3188, %v3180
    %v5205 = vpack.c.b16 %v3189, %v3181
    %v5206 = vpack.c.b16 %v3190, %v3182
    %v5207 = vpack.c.b16 %v3191, %v3183
    %v5208 = vpack.c.b16 %v3192, %v3184
    %v5209 = vpack.c.b16 %v3201, %v3193
    %v5210 = vpack.c.b16 %v3202, %v3194
    %v5211 = vpack.c.b16 %v3203, %v3195
    %v5212 = vpack.c.b16 %v3204, %v3196
    %v5213 = vpack.c.b16 %v3205, %v3197
    %v5214 = vpack.c.b16 %v3206, %v3198
    %v5215 = vpack.c.b16 %v3207, %v3199
    %v5216 = vpack.c.b16 %v3208, %v3200
    %v5217 = vpack.c.b16 %v3217, %v3209
    %v5218 = vpack.c.b16 %v3218, %v3210
    %v5219 = vpack.c.b16 %v3219, %v3211
    %v5220 = vpack.c.b16 %v3220, %v3212
    %v5221 = vpack.c.b16 %v3221, %v3213
    %v5222 = vpack.c.b16 %v3222, %v3214
    %v5223 = vpack.c.b16 %v3223, %v3215
    %v5224 = vpack.c.b16 %v3224, %v3216
    %v5225 = vpack.c.b16 %v3233, %v3225
    %v5226 = vpack.c.b16 %v3234, %v3226
    %v5227 = vpack.c.b16 %v3235, %v3227
    %v5228 = vpack.c.b16 %v3236, %v3228
    %v5229 = vpack.c.b16 %v3237, %v3229
    %v5230 = vpack.c.b16 %v3238, %v3230
    %v5231 = vpack.c.b16 %v3239, %v3231
    %v5232 = vpack.c.b16 %v3240, %v3232
    %v5233 = vpack.c.b16 %v3249, %v3241
    %v5234 = vpack.c.b16 %v3250, %v3242
    %v5235 = vpack.c.b16 %v3251, %v3243
    %v5236 = vpack.c.b16 %v3252, %v3244
    %v5237 = vpack.c.b16 %v3253, %v3245
    %v5238 = vpack.c.b16 %v3254, %v3246
    %v5239 = vpack.c.b16 %v3255, %v3247
    %v5240 = vpack.c.b16 %v3256, %v3248
    %v5241 = vpack.c.b16 %v3265, %v3257
    %v5242 = vpack.c.b16 %v3266, %v3258
    %v5243 = vpack.c.b16 %v3267, %v3259
    %v5244 = vpack.c.b16 %v3268, %v3260
    %v5245 = vpack.c.b16 %v3269, %v3261
    %v5246 = vpack.c.b16 %v3270, %v3262
    %v5247 = vpack.c.b16 %v3271, %v3263
    %v5248 = vpack.c.b16 %v3272, %v3264
    %v5249 = vpack.c.b16 %v3281, %v3273
    %v5250 = vpack.c.b16 %v3282, %v3274
    %v5251 = vpack.c.b16 %v3283, %v3275
    %v5252 = vpack.c.b16 %v3284, %v3276
    %v5253 = vpack.c.b16 %v3285, %v3277
    %v5254 = vpack.c.b16 %v3286, %v3278
    %v5255 = vpack.c.b16 %v3287, %v3279
    %v5256 = vpack.c.b16 %v3288, %v3280
    %v5257 = vpack.c.b16 %v3297, %v3289
    %v5258 = vpack.c.b16 %v3298, %v3290
    %v5259 = vpack.c.b16 %v3299, %v3291
    %v5260 = vpack.c.b16 %v3300, %v3292
    %v5261 = vpack.c.b16 %v3301, %v3293
    %v5262 = vpack.c.b16 %v3302, %v3294
    %v5263 = vpack.c.b16 %v3303, %v3295
    %v5264 = vpack.c.b16 %v3304, %v3296
    %v5265 = vpack.c.b16 %v3313, %v3305
    %v5266 = vpack.c.b16 %v3314, %v3306
    %v5267 = vpack.c.b16 %v3315, %v3307
    %v5268 = vpack.c.b16 %v3316, %v3308
    %v5269 = vpack.c.b16 %v3317, %v3309
    %v5270 = vpack.c.b16 %v3318, %v3310
    %v5271 = vpack.c.b16 %v3319, %v3311
    %v5272 = vpack.c.b16 %v3320, %v3312
    %v5273 = vpack.c.b16 %v3329, %v3321
    %v5274 = vpack.c.b16 %v3330, %v3322
    %v5275 = vpack.c.b16 %v3331, %v3323
    %v5276 = vpack.c.b16 %v3332, %v3324
    %v5277 = vpack.c.b16 %v3333, %v3325
    %v5278 = vpack.c.b16 %v3334, %v3326
    %v5279 = vpack.c.b16 %v3335, %v3327
    %v5280 = vpack.c.b16 %v3336, %v3328
    %v5281 = vpack.c.b16 %v3345, %v3337
    %v5282 = vpack.c.b16 %v3346, %v3338
    %v5283 = vpack.c.b16 %v3347, %v3339
    %v5284 = vpack.c.b16 %v3348, %v3340
    %v5285 = vpack.c.b16 %v3349, %v3341
    %v5286 = vpack.c.b16 %v3350, %v3342
    %v5287 = vpack.c.b16 %v3351, %v3343
    %v5288 = vpack.c.b16 %v3352, %v3344
    %v5289 = vpack.c.b16 %v3361, %v3353
    %v5290 = vpack.c.b16 %v3362, %v3354
    %v5291 = vpack.c.b16 %v3363, %v3355
    %v5292 = vpack.c.b16 %v3364, %v3356
    %v5293 = vpack.c.b16 %v3365, %v3357
    %v5294 = vpack.c.b16 %v3366, %v3358
    %v5295 = vpack.c.b16 %v3367, %v3359
    %v5296 = vpack.c.b16 %v3368, %v3360
    %v5297 = vpack.c.b16 %v3377, %v3369
    %v5298 = vpack.c.b16 %v3378, %v3370
    %v5299 = vpack.c.b16 %v3379, %v3371
    %v5300 = vpack.c.b16 %v3380, %v3372
    %v5301 = vpack.c.b16 %v3381, %v3373
    %v5302 = vpack.c.b16 %v3382, %v3374
    %v5303 = vpack.c.b16 %v3383, %v3375
    %v5304 = vpack.c.b16 %v3384, %v3376
    %v5305 = vpack.c.b16 %v3393, %v3385
    %v5306 = vpack.c.b16 %v3394, %v3386
    %v5307 = vpack.c.b16 %v3395, %v3387
    %v5308 = vpack.c.b16 %v3396, %v3388
    %v5309 = vpack.c.b16 %v3397, %v3389
    %v5310 = vpack.c.b16 %v3398, %v3390
    %v5311 = vpack.c.b16 %v3399, %v3391
    %v5312 = vpack.c.b16 %v3400, %v3392
    %v5313 = vpack.c.b16 %v3409, %v3401
    %v5314 = vpack.c.b16 %v3410, %v3402
    %v5315 = vpack.c.b16 %v3411, %v3403
    %v5316 = vpack.c.b16 %v3412, %v3404
    %v5317 = vpack.c.b16 %v3413, %v3405
    %v5318 = vpack.c.b16 %v3414, %v3406
    %v5319 = vpack.c.b16 %v3415, %v3407
    %v5320 = vpack.c.b16 %v3416, %v3408
    %v5321 = vpack.c.b16 %v3425, %v3417
    %v5322 = vpack.c.b16 %v3426, %v3418
    %v5323 = vpack.c.b16 %v3427, %v3419
    %v5324 = vpack.c.b16 %v3428, %v3420
    %v5325 = vpack.c.b16 %v3429, %v3421
    %v5326 = vpack.c.b16 %v3430, %v3422
    %v5327 = vpack.c.b16 %v3431, %v3423
    %v5328 = vpack.c.b16 %v3432, %v3424
    %v5329 = vpack.c.b16 %v3441, %v3433
    %v5330 = vpack.c.b16 %v3442, %v3434
    %v5331 = vpack.c.b16 %v3443, %v3435
    %v5332 = vpack.c.b16 %v3444, %v3436
    %v5333 = vpack.c.b16 %v3445, %v3437
    %v5334 = vpack.c.b16 %v3446, %v3438
    %v5335 = vpack.c.b16 %v3447, %v3439
    %v5336 = vpack.c.b16 %v3448, %v3440
    %v5337 = vpack.c.b16 %v3457, %v3449
    %v5338 = vpack.c.b16 %v3458, %v3450
    %v5339 = vpack.c.b16 %v3459, %v3451
    %v5340 = vpack.c.b16 %v3460, %v3452
    %v5341 = vpack.c.b16 %v3461, %v3453
    %v5342 = vpack.c.b16 %v3462, %v3454
    %v5343 = vpack.c.b16 %v3463, %v3455
    %v5344 = vpack.c.b16 %v3464, %v3456
    %v5345 = vpack.c.b16 %v3473, %v3465
    %v5346 = vpack.c.b16 %v3474, %v3466
    %v5347 = vpack.c.b16 %v3475, %v3467
    %v5348 = vpack.c.b16 %v3476, %v3468
    %v5349 = vpack.c.b16 %v3477, %v3469
    %v5350 = vpack.c.b16 %v3478, %v3470
    %v5351 = vpack.c.b16 %v3479, %v3471
    %v5352 = vpack.c.b16 %v3480, %v3472
    %v5353 = vpack.c.b16 %v3489, %v3481
    %v5354 = vpack.c.b16 %v3490, %v3482
    %v5355 = vpack.c.b16 %v3491, %v3483
    %v5356 = vpack.c.b16 %v3492, %v3484
    %v5357 = vpack.c.b16 %v3493, %v3485
    %v5358 = vpack.c.b16 %v3494, %v3486
    %v5359 = vpack.c.b16 %v3495, %v3487
    %v5360 = vpack.c.b16 %v3496, %v3488
    %v5361 = vpack.c.b16 %v3505, %v3497
    %v5362 = vpack.c.b16 %v3506, %v3498
    %v5363 = vpack.c.b16 %v3507, %v3499
    %v5364 = vpack.c.b16 %v3508, %v3500
    %v5365 = vpack.c.b16 %v3509, %v3501
    %v5366 = vpack.c.b16 %v3510, %v3502
    %v5367 = vpack.c.b16 %v3511, %v3503
    %v5368 = vpack.c.b16 %v3512, %v3504
    %v5369 = vpack.c.b16 %v3521, %v3513
    %v5370 = vpack.c.b16 %v3522, %v3514
    %v5371 = vpack.c.b16 %v3523, %v3515
    %v5372 = vpack.c.b16 %v3524, %v3516
    %v5373 = vpack.c.b16 %v3525, %v3517
    %v5374 = vpack.c.b16 %v3526, %v3518
    %v5375 = vpack.c.b16 %v3527, %v3519
    %v5376 = vpack.c.b16 %v3528, %v3520
    %v5377 = vpack.c.b16 %v3537, %v3529
    %v5378 = vpack.c.b16 %v3538, %v3530
    %v5379 = vpack.c.b16 %v3539, %v3531
    %v5380 = vpack.c.b16 %v3540, %v3532
    %v5381 = vpack.c.b16 %v3541, %v3533
    %v5382 = vpack.c.b16 %v3542, %v3534
    %v5383 = vpack.c.b16 %v3543, %v3535
    %v5384 = vpack.c.b16 %v3544, %v3536
    %v5385 = vpack.c.b16 %v3553, %v3545
    %v5386 = vpack.c.b16 %v3554, %v3546
    %v5387 = vpack.c.b16 %v3555, %v3547
    %v5388 = vpack.c.b16 %v3556, %v3548
    %v5389 = vpack.c.b16 %v3557, %v3549
    %v5390 = vpack.c.b16 %v3558, %v3550
    %v5391 = vpack.c.b16 %v3559, %v3551
    %v5392 = vpack.c.b16 %v3560, %v3552
    %v5393 = vpack.c.b16 %v3569, %v3561
    %v5394 = vpack.c.b16 %v3570, %v3562
    %v5395 = vpack.c.b16 %v3571, %v3563
    %v5396 = vpack.c.b16 %v3572, %v3564
    %v5397 = vpack.c.b16 %v3573, %v3565
    %v5398 = vpack.c.b16 %v3574, %v3566
    %v5399 = vpack.c.b16 %v3575, %v3567
    %v5400 = vpack.c.b16 %v3576, %v3568
    %v5401 = vpack.c.b16 %v3585, %v3577
    %v5402 = vpack.c.b16 %v3586, %v3578
    %v5403 = vpack.c.b16 %v3587, %v3579
    %v5404 = vpack.c.b16 %v3588, %v3580
    %v5405 = vpack.c.b16 %v3589, %v3581
    %v5406 = vpack.c.b16 %v3590, %v3582
    %v5407 = vpack.c.b16 %v3591, %v3583
    %v5408 = vpack.c.b16 %v3592, %v3584
    %v5409 = vpack.c.b16 %v3601, %v3593
    %v5410 = vpack.c.b16 %v3602, %v3594
    %v5411 = vpack.c.b16 %v3603, %v3595
    %v5412 = vpack.c.b16 %v3604, %v3596
    %v5413 = vpack.c.b16 %v3605, %v3597
    %v5414 = vpack.c.b16 %v3606, %v3598
    %v5415 = vpack.c.b16 %v3607, %v3599
    %v5416 = vpack.c.b16 %v3608, %v3600
    %v5417 = vpack.c.b16 %v3617, %v3609
    %v5418 = vpack.c.b16 %v3618, %v3610
    %v5419 = vpack.c.b16 %v3619, %v3611
    %v5420 = vpack.c.b16 %v3620, %v3612
    %v5421 = vpack.c.b16 %v3621, %v3613
    %v5422 = vpack.c.b16 %v3622, %v3614
    %v5423 = vpack.c.b16 %v3623, %v3615
    %v5424 = vpack.c.b16 %v3624, %v3616
    %v5425 = vpack.c.b16 %v3633, %v3625
    %v5426 = vpack.c.b16 %v3634, %v3626
    %v5427 = vpack.c.b16 %v3635, %v3627
    %v5428 = vpack.c.b16 %v3636, %v3628
    %v5429 = vpack.c.b16 %v3637, %v3629
    %v5430 = vpack.c.b16 %v3638, %v3630
    %v5431 = vpack.c.b16 %v3639, %v3631
    %v5432 = vpack.c.b16 %v3640, %v3632
    %v5433 = vpack.c.b16 %v3649, %v3641
    %v5434 = vpack.c.b16 %v3650, %v3642
    %v5435 = vpack.c.b16 %v3651, %v3643
    %v5436 = vpack.c.b16 %v3652, %v3644
    %v5437 = vpack.c.b16 %v3653, %v3645
    %v5438 = vpack.c.b16 %v3654, %v3646
    %v5439 = vpack.c.b16 %v3655, %v3647
    %v5440 = vpack.c.b16 %v3656, %v3648
    %v5441 = vpack.c.b16 %v3665, %v3657
    %v5442 = vpack.c.b16 %v3666, %v3658
    %v5443 = vpack.c.b16 %v3667, %v3659
    %v5444 = vpack.c.b16 %v3668, %v3660
    %v5445 = vpack.c.b16 %v3669, %v3661
    %v5446 = vpack.c.b16 %v3670, %v3662
    %v5447 = vpack.c.b16 %v3671, %v3663
    %v5448 = vpack.c.b16 %v3672, %v3664
    %v5449 = vpack.c.b16 %v3681, %v3673
    %v5450 = vpack.c.b16 %v3682, %v3674
    %v5451 = vpack.c.b16 %v3683, %v3675
    %v5452 = vpack.c.b16 %v3684, %v3676
    %v5453 = vpack.c.b16 %v3685, %v3677
    %v5454 = vpack.c.b16 %v3686, %v3678
    %v5455 = vpack.c.b16 %v3687, %v3679
    %v5456 = vpack.c.b16 %v3688, %v3680
    %v5457 = vpack.c.b16 %v3697, %v3689
    %v5458 = vpack.c.b16 %v3698, %v3690
    %v5459 = vpack.c.b16 %v3699, %v3691
    %v5460 = vpack.c.b16 %v3700, %v3692
    %v5461 = vpack.c.b16 %v3701, %v3693
    %v5462 = vpack.c.b16 %v3702, %v3694
    %v5463 = vpack.c.b16 %v3703, %v3695
    %v5464 = vpack.c.b16 %v3704, %v3696
    %v5465 = vpack.c.b16 %v3713, %v3705
    %v5466 = vpack.c.b16 %v3714, %v3706
    %v5467 = vpack.c.b16 %v3715, %v3707
    %v5468 = vpack.c.b16 %v3716, %v3708
    %v5469 = vpack.c.b16 %v3717, %v3709
    %v5470 = vpack.c.b16 %v3718, %v3710
    %v5471 = vpack.c.b16 %v3719, %v3711
    %v5472 = vpack.c.b16 %v3720, %v3712
    %v5473 = vpack.c.b16 %v3729, %v3721
    %v5474 = vpack.c.b16 %v3730, %v3722
    %v5475 = vpack.c.b16 %v3731, %v3723
    %v5476 = vpack.c.b16 %v3732, %v3724
    %v5477 = vpack.c.b16 %v3733, %v3725
    %v5478 = vpack.c.b16 %v3734, %v3726
    %v5479 = vpack.c.b16 %v3735, %v3727
    %v5480 = vpack.c.b16 %v3736, %v3728
    %v5481 = vpack.c.b16 %v3745, %v3737
    %v5482 = vpack.c.b16 %v3746, %v3738
    %v5483 = vpack.c.b16 %v3747, %v3739
    %v5484 = vpack.c.b16 %v3748, %v3740
    %v5485 = vpack.c.b16 %v3749, %v3741
    %v5486 = vpack.c.b16 %v3750, %v3742
    %v5487 = vpack.c.b16 %v3751, %v3743
    %v5488 = vpack.c.b16 %v3752, %v3744
    %v5489 = vpack.c.b16 %v3761, %v3753
    %v5490 = vpack.c.b16 %v3762, %v3754
    %v5491 = vpack.c.b16 %v3763, %v3755
    %v5492 = vpack.c.b16 %v3764, %v3756
    %v5493 = vpack.c.b16 %v3765, %v3757
    %v5494 = vpack.c.b16 %v3766, %v3758
    %v5495 = vpack.c.b16 %v3767, %v3759
    %v5496 = vpack.c.b16 %v3768, %v3760
    %v5497 = vpack.c.b16 %v3777, %v3769
    %v5498 = vpack.c.b16 %v3778, %v3770
    %v5499 = vpack.c.b16 %v3779, %v3771
    %v5500 = vpack.c.b16 %v3780, %v3772
    %v5501 = vpack.c.b16 %v3781, %v3773
    %v5502 = vpack.c.b16 %v3782, %v3774
    %v5503 = vpack.c.b16 %v3783, %v3775
    %v5504 = vpack.c.b16 %v3784, %v3776
    %v5505 = vpack.c.b16 %v3793, %v3785
    %v5506 = vpack.c.b16 %v3794, %v3786
    %v5507 = vpack.c.b16 %v3795, %v3787
    %v5508 = vpack.c.b16 %v3796, %v3788
    %v5509 = vpack.c.b16 %v3797, %v3789
    %v5510 = vpack.c.b16 %v3798, %v3790
    %v5511 = vpack.c.b16 %v3799, %v3791
    %v5512 = vpack.c.b16 %v3800, %v3792
    %v5513 = vpack.c.b16 %v3809, %v3801
    %v5514 = vpack.c.b16 %v3810, %v3802
    %v5515 = vpack.c.b16 %v3811, %v3803
    %v5516 = vpack.c.b16 %v3812, %v3804
    %v5517 = vpack.c.b16 %v3813, %v3805
    %v5518 = vpack.c.b16 %v3814, %v3806
    %v5519 = vpack.c.b16 %v3815, %v3807
    %v5520 = vpack.c.b16 %v3816, %v3808
    %v5521 = vpack.c.b16 %v3825, %v3817
    %v5522 = vpack.c.b16 %v3826, %v3818
    %v5523 = vpack.c.b16 %v3827, %v3819
    %v5524 = vpack.c.b16 %v3828, %v3820
    %v5525 = vpack.c.b16 %v3829, %v3821
    %v5526 = vpack.c.b16 %v3830, %v3822
    %v5527 = vpack.c.b16 %v3831, %v3823
    %v5528 = vpack.c.b16 %v3832, %v3824
    %v5529 = vpack.c.b16 %v3841, %v3833
    %v5530 = vpack.c.b16 %v3842, %v3834
    %v5531 = vpack.c.b16 %v3843, %v3835
    %v5532 = vpack.c.b16 %v3844, %v3836
    %v5533 = vpack.c.b16 %v3845, %v3837
    %v5534 = vpack.c.b16 %v3846, %v3838
    %v5535 = vpack.c.b16 %v3847, %v3839
    %v5536 = vpack.c.b16 %v3848, %v3840
    %v5537 = vpack.c.b16 %v3857, %v3849
    %v5538 = vpack.c.b16 %v3858, %v3850
    %v5539 = vpack.c.b16 %v3859, %v3851
    %v5540 = vpack.c.b16 %v3860, %v3852
    %v5541 = vpack.c.b16 %v3861, %v3853
    %v5542 = vpack.c.b16 %v3862, %v3854
    %v5543 = vpack.c.b16 %v3863, %v3855
    %v5544 = vpack.c.b16 %v3864, %v3856
    %v5545 = vpack.c.b16 %v3873, %v3865
    %v5546 = vpack.c.b16 %v3874, %v3866
    %v5547 = vpack.c.b16 %v3875, %v3867
    %v5548 = vpack.c.b16 %v3876, %v3868
    %v5549 = vpack.c.b16 %v3877, %v3869
    %v5550 = vpack.c.b16 %v3878, %v3870
    %v5551 = vpack.c.b16 %v3879, %v3871
    %v5552 = vpack.c.b16 %v3880, %v3872
    %v5553 = vpack.c.b16 %v3889, %v3881
    %v5554 = vpack.c.b16 %v3890, %v3882
    %v5555 = vpack.c.b16 %v3891, %v3883
    %v5556 = vpack.c.b16 %v3892, %v3884
    %v5557 = vpack.c.b16 %v3893, %v3885
    %v5558 = vpack.c.b16 %v3894, %v3886
    %v5559 = vpack.c.b16 %v3895, %v3887
    %v5560 = vpack.c.b16 %v3896, %v3888
    %v5561 = vpack.c.b16 %v3905, %v3897
    %v5562 = vpack.c.b16 %v3906, %v3898
    %v5563 = vpack.c.b16 %v3907, %v3899
    %v5564 = vpack.c.b16 %v3908, %v3900
    %v5565 = vpack.c.b16 %v3909, %v3901
    %v5566 = vpack.c.b16 %v3910, %v3902
    %v5567 = vpack.c.b16 %v3911, %v3903
    %v5568 = vpack.c.b16 %v3912, %v3904
    %v5569 = vpack.c.b16 %v3921, %v3913
    %v5570 = vpack.c.b16 %v3922, %v3914
    %v5571 = vpack.c.b16 %v3923, %v3915
    %v5572 = vpack.c.b16 %v3924, %v3916
    %v5573 = vpack.c.b16 %v3925, %v3917
    %v5574 = vpack.c.b16 %v3926, %v3918
    %v5575 = vpack.c.b16 %v3927, %v3919
    %v5576 = vpack.c.b16 %v3928, %v3920
    %v5577 = vpack.c.b16 %v3937, %v3929
    %v5578 = vpack.c.b16 %v3938, %v3930
    %v5579 = vpack.c.b16 %v3939, %v3931
    %v5580 = vpack.c.b16 %v3940, %v3932
    %v5581 = vpack.c.b16 %v3941, %v3933
    %v5582 = vpack.c.b16 %v3942, %v3934
    %v5583 = vpack.c.b16 %v3943, %v3935
    %v5584 = vpack.c.b16 %v3944, %v3936
    %v5585 = vpack.c.b16 %v3953, %v3945
    %v5586 = vpack.c.b16 %v3954, %v3946
    %v5587 = vpack.c.b16 %v3955, %v3947
    %v5588 = vpack.c.b16 %v3956, %v3948
    %v5589 = vpack.c.b16 %v3957, %v3949
    %v5590 = vpack.c.b16 %v3958, %v3950
    %v5591 = vpack.c.b16 %v3959, %v3951
    %v5592 = vpack.c.b16 %v3960, %v3952
    %v5593 = vpack.c.b16 %v3969, %v3961
    %v5594 = vpack.c.b16 %v3970, %v3962
    %v5595 = vpack.c.b16 %v3971, %v3963
    %v5596 = vpack.c.b16 %v3972, %v3964
    %v5597 = vpack.c.b16 %v3973, %v3965
    %v5598 = vpack.c.b16 %v3974, %v3966
    %v5599 = vpack.c.b16 %v3975, %v3967
    %v5600 = vpack.c.b16 %v3976, %v3968
    %v5601 = vpack.c.b16 %v3985, %v3977
    %v5602 = vpack.c.b16 %v3986, %v3978
    %v5603 = vpack.c.b16 %v3987, %v3979
    %v5604 = vpack.c.b16 %v3988, %v3980
    %v5605 = vpack.c.b16 %v3989, %v3981
    %v5606 = vpack.c.b16 %v3990, %v3982
    %v5607 = vpack.c.b16 %v3991, %v3983
    %v5608 = vpack.c.b16 %v3992, %v3984
    %v5609 = vpack.c.b16 %v4001, %v3993
    %v5610 = vpack.c.b16 %v4002, %v3994
    %v5611 = vpack.c.b16 %v4003, %v3995
    %v5612 = vpack.c.b16 %v4004, %v3996
    %v5613 = vpack.c.b16 %v4005, %v3997
    %v5614 = vpack.c.b16 %v4006, %v3998
    %v5615 = vpack.c.b16 %v4007, %v3999
    %v5616 = vpack.c.b16 %v4008, %v4000
    %v5617 = vpack.c.b16 %v4017, %v4009
    %v5618 = vpack.c.b16 %v4018, %v4010
    %v5619 = vpack.c.b16 %v4019, %v4011
    %v5620 = vpack.c.b16 %v4020, %v4012
    %v5621 = vpack.c.b16 %v4021, %v4013
    %v5622 = vpack.c.b16 %v4022, %v4014
    %v5623 = vpack.c.b16 %v4023, %v4015
    %v5624 = vpack.c.b16 %v4024, %v4016
    %v5625 = vpack.c.b16 %v4033, %v4025
    %v5626 = vpack.c.b16 %v4034, %v4026
    %v5627 = vpack.c.b16 %v4035, %v4027
    %v5628 = vpack.c.b16 %v4036, %v4028
    %v5629 = vpack.c.b16 %v4037, %v4029
    %v5630 = vpack.c.b16 %v4038, %v4030
    %v5631 = vpack.c.b16 %v4039, %v4031
    %v5632 = vpack.c.b16 %v4040, %v4032
    %v5633 = vpack.c.b16 %v4049, %v4041
    %v5634 = vpack.c.b16 %v4050, %v4042
    %v5635 = vpack.c.b16 %v4051, %v4043
    %v5636 = vpack.c.b16 %v4052, %v4044
    %v5637 = vpack.c.b16 %v4053, %v4045
    %v5638 = vpack.c.b16 %v4054, %v4046
    %v5639 = vpack.c.b16 %v4055, %v4047
    %v5640 = vpack.c.b16 %v4056, %v4048
    %v5641 = vpack.c.b16 %v4065, %v4057
    %v5642 = vpack.c.b16 %v4066, %v4058
    %v5643 = vpack.c.b16 %v4067, %v4059
    %v5644 = vpack.c.b16 %v4068, %v4060
    %v5645 = vpack.c.b16 %v4069, %v4061
    %v5646 = vpack.c.b16 %v4070, %v4062
    %v5647 = vpack.c.b16 %v4071, %v4063
    %v5648 = vpack.c.b16 %v4072, %v4064
    %v5649 = vpack.c.b16 %v4081, %v4073
    %v5650 = vpack.c.b16 %v4082, %v4074
    %v5651 = vpack.c.b16 %v4083, %v4075
    %v5652 = vpack.c.b16 %v4084, %v4076
    %v5653 = vpack.c.b16 %v4085, %v4077
    %v5654 = vpack.c.b16 %v4086, %v4078
    %v5655 = vpack.c.b16 %v4087, %v4079
    %v5656 = vpack.c.b16 %v4088, %v4080
    %v5657 = vpack.c.b16 %v4097, %v4089
    %v5658 = vpack.c.b16 %v4098, %v4090
    %v5659 = vpack.c.b16 %v4099, %v4091
    %v5660 = vpack.c.b16 %v4100, %v4092
    %v5661 = vpack.c.b16 %v4101, %v4093
    %v5662 = vpack.c.b16 %v4102, %v4094
    %v5663 = vpack.c.b16 %v4103, %v4095
    %v5664 = vpack.c.b16 %v4104, %v4096
    %v5665 = vpack.c.b16 %v4113, %v4105
    %v5666 = vpack.c.b16 %v4114, %v4106
    %v5667 = vpack.c.b16 %v4115, %v4107
    %v5668 = vpack.c.b16 %v4116, %v4108
    %v5669 = vpack.c.b16 %v4117, %v4109
    %v5670 = vpack.c.b16 %v4118, %v4110
    %v5671 = vpack.c.b16 %v4119, %v4111
    %v5672 = vpack.c.b16 %v4120, %v4112
    %v5673 = vpack.c.b16 %v4129, %v4121
    %v5674 = vpack.c.b16 %v4130, %v4122
    %v5675 = vpack.c.b16 %v4131, %v4123
    %v5676 = vpack.c.b16 %v4132, %v4124
    %v5677 = vpack.c.b16 %v4133, %v4125
    %v5678 = vpack.c.b16 %v4134, %v4126
    %v5679 = vpack.c.b16 %v4135, %v4127
    %v5680 = vpack.c.b16 %v4136, %v4128
    %v5681 = vpack.c.b16 %v4145, %v4137
    %v5682 = vpack.c.b16 %v4146, %v4138
    %v5683 = vpack.c.b16 %v4147, %v4139
    %v5684 = vpack.c.b16 %v4148, %v4140
    %v5685 = vpack.c.b16 %v4149, %v4141
    %v5686 = vpack.c.b16 %v4150, %v4142
    %v5687 = vpack.c.b16 %v4151, %v4143
    %v5688 = vpack.c.b16 %v4152, %v4144
    %v5689 = vpack.c.b16 %v4161, %v4153
    %v5690 = vpack.c.b16 %v4162, %v4154
    %v5691 = vpack.c.b16 %v4163, %v4155
    %v5692 = vpack.c.b16 %v4164, %v4156
    %v5693 = vpack.c.b16 %v4165, %v4157
    %v5694 = vpack.c.b16 %v4166, %v4158
    %v5695 = vpack.c.b16 %v4167, %v4159
    %v5696 = vpack.c.b16 %v4168, %v4160
    %v5697 = vpack.c.b16 %v4177, %v4169
    %v5698 = vpack.c.b16 %v4178, %v4170
    %v5699 = vpack.c.b16 %v4179, %v4171
    %v5700 = vpack.c.b16 %v4180, %v4172
    %v5701 = vpack.c.b16 %v4181, %v4173
    %v5702 = vpack.c.b16 %v4182, %v4174
    %v5703 = vpack.c.b16 %v4183, %v4175
    %v5704 = vpack.c.b16 %v4184, %v4176
    %v5705 = vpack.c.b16 %v4193, %v4185
    %v5706 = vpack.c.b16 %v4194, %v4186
    %v5707 = vpack.c.b16 %v4195, %v4187
    %v5708 = vpack.c.b16 %v4196, %v4188
    %v5709 = vpack.c.b16 %v4197, %v4189
    %v5710 = vpack.c.b16 %v4198, %v4190
    %v5711 = vpack.c.b16 %v4199, %v4191
    %v5712 = vpack.c.b16 %v4200, %v4192
    %v5713 = vpack.c.b16 %v4209, %v4201
    %v5714 = vpack.c.b16 %v4210, %v4202
    %v5715 = vpack.c.b16 %v4211, %v4203
    %v5716 = vpack.c.b16 %v4212, %v4204
    %v5717 = vpack.c.b16 %v4213, %v4205
    %v5718 = vpack.c.b16 %v4214, %v4206
    %v5719 = vpack.c.b16 %v4215, %v4207
    %v5720 = vpack.c.b16 %v4216, %v4208
    %v5721 = vpack.c.b16 %v4225, %v4217
    %v5722 = vpack.c.b16 %v4226, %v4218
    %v5723 = vpack.c.b16 %v4227, %v4219
    %v5724 = vpack.c.b16 %v4228, %v4220
    %v5725 = vpack.c.b16 %v4229, %v4221
    %v5726 = vpack.c.b16 %v4230, %v4222
    %v5727 = vpack.c.b16 %v4231, %v4223
    %v5728 = vpack.c.b16 %v4232, %v4224
    %v5729 = vpack.c.b16 %v4241, %v4233
    %v5730 = vpack.c.b16 %v4242, %v4234
    %v5731 = vpack.c.b16 %v4243, %v4235
    %v5732 = vpack.c.b16 %v4244, %v4236
    %v5733 = vpack.c.b16 %v4245, %v4237
    %v5734 = vpack.c.b16 %v4246, %v4238
    %v5735 = vpack.c.b16 %v4247, %v4239
    %v5736 = vpack.c.b16 %v4248, %v4240
    %v5737 = vpack.c.b16 %v4257, %v4249
    %v5738 = vpack.c.b16 %v4258, %v4250
    %v5739 = vpack.c.b16 %v4259, %v4251
    %v5740 = vpack.c.b16 %v4260, %v4252
    %v5741 = vpack.c.b16 %v4261, %v4253
    %v5742 = vpack.c.b16 %v4262, %v4254
    %v5743 = vpack.c.b16 %v4263, %v4255
    %v5744 = vpack.c.b16 %v4264, %v4256
    %v5745 = vpack.c.b16 %v4273, %v4265
    %v5746 = vpack.c.b16 %v4274, %v4266
    %v5747 = vpack.c.b16 %v4275, %v4267
    %v5748 = vpack.c.b16 %v4276, %v4268
    %v5749 = vpack.c.b16 %v4277, %v4269
    %v5750 = vpack.c.b16 %v4278, %v4270
    %v5751 = vpack.c.b16 %v4279, %v4271
    %v5752 = vpack.c.b16 %v4280, %v4272
    %v5753 = vpack.c.b16 %v4289, %v4281
    %v5754 = vpack.c.b16 %v4290, %v4282
    %v5755 = vpack.c.b16 %v4291, %v4283
    %v5756 = vpack.c.b16 %v4292, %v4284
    %v5757 = vpack.c.b16 %v4293, %v4285
    %v5758 = vpack.c.b16 %v4294, %v4286
    %v5759 = vpack.c.b16 %v4295, %v4287
    %v5760 = vpack.c.b16 %v4296, %v4288
    %v5761 = vpack.c.b16 %v4305, %v4297
    %v5762 = vpack.c.b16 %v4306, %v4298
    %v5763 = vpack.c.b16 %v4307, %v4299
    %v5764 = vpack.c.b16 %v4308, %v4300
    %v5765 = vpack.c.b16 %v4309, %v4301
    %v5766 = vpack.c.b16 %v4310, %v4302
    %v5767 = vpack.c.b16 %v4311, %v4303
    %v5768 = vpack.c.b16 %v4312, %v4304
    %v5769 = vpack.c.b16 %v4321, %v4313
    %v5770 = vpack.c.b16 %v4322, %v4314
    %v5771 = vpack.c.b16 %v4323, %v4315
    %v5772 = vpack.c.b16 %v4324, %v4316
    %v5773 = vpack.c.b16 %v4325, %v4317
    %v5774 = vpack.c.b16 %v4326, %v4318
    %v5775 = vpack.c.b16 %v4327, %v4319
    %v5776 = vpack.c.b16 %v4328, %v4320
    %v5777 = vpack.c.b16 %v4337, %v4329
    %v5778 = vpack.c.b16 %v4338, %v4330
    %v5779 = vpack.c.b16 %v4339, %v4331
    %v5780 = vpack.c.b16 %v4340, %v4332
    %v5781 = vpack.c.b16 %v4341, %v4333
    %v5782 = vpack.c.b16 %v4342, %v4334
    %v5783 = vpack.c.b16 %v4343, %v4335
    %v5784 = vpack.c.b16 %v4344, %v4336
    %v5785 = vpack.c.b16 %v4353, %v4345
    %v5786 = vpack.c.b16 %v4354, %v4346
    %v5787 = vpack.c.b16 %v4355, %v4347
    %v5788 = vpack.c.b16 %v4356, %v4348
    %v5789 = vpack.c.b16 %v4357, %v4349
    %v5790 = vpack.c.b16 %v4358, %v4350
    %v5791 = vpack.c.b16 %v4359, %v4351
    %v5792 = vpack.c.b16 %v4360, %v4352
    %v5793 = vpack.c.b16 %v4369, %v4361
    %v5794 = vpack.c.b16 %v4370, %v4362
    %v5795 = vpack.c.b16 %v4371, %v4363
    %v5796 = vpack.c.b16 %v4372, %v4364
    %v5797 = vpack.c.b16 %v4373, %v4365
    %v5798 = vpack.c.b16 %v4374, %v4366
    %v5799 = vpack.c.b16 %v4375, %v4367
    %v5800 = vpack.c.b16 %v4376, %v4368
    %v5801 = vpack.c.b16 %v4385, %v4377
    %v5802 = vpack.c.b16 %v4386, %v4378
    %v5803 = vpack.c.b16 %v4387, %v4379
    %v5804 = vpack.c.b16 %v4388, %v4380
    %v5805 = vpack.c.b16 %v4389, %v4381
    %v5806 = vpack.c.b16 %v4390, %v4382
    %v5807 = vpack.c.b16 %v4391, %v4383
    %v5808 = vpack.c.b16 %v4392, %v4384
    %v5809 = vpack.c.b16 %v4401, %v4393
    %v5810 = vpack.c.b16 %v4402, %v4394
    %v5811 = vpack.c.b16 %v4403, %v4395
    %v5812 = vpack.c.b16 %v4404, %v4396
    %v5813 = vpack.c.b16 %v4405, %v4397
    %v5814 = vpack.c.b16 %v4406, %v4398
    %v5815 = vpack.c.b16 %v4407, %v4399
    %v5816 = vpack.c.b16 %v4408, %v4400
    %v5817 = vpack.c.b16 %v4417, %v4409
    %v5818 = vpack.c.b16 %v4418, %v4410
    %v5819 = vpack.c.b16 %v4419, %v4411
    %v5820 = vpack.c.b16 %v4420, %v4412
    %v5821 = vpack.c.b16 %v4421, %v4413
    %v5822 = vpack.c.b16 %v4422, %v4414
    %v5823 = vpack.c.b16 %v4423, %v4415
    %v5824 = vpack.c.b16 %v4424, %v4416
    %v5825 = vpack.c.b16 %v4433, %v4425
    %v5826 = vpack.c.b16 %v4434, %v4426
    %v5827 = vpack.c.b16 %v4435, %v4427
    %v5828 = vpack.c.b16 %v4436, %v4428
    %v5829 = vpack.c.b16 %v4437, %v4429
    %v5830 = vpack.c.b16 %v4438, %v4430
    %v5831 = vpack.c.b16 %v4439, %v4431
    %v5832 = vpack.c.b16 %v4440, %v4432
    %v5833 = vpack.c.b16 %v4449, %v4441
    %v5834 = vpack.c.b16 %v4450, %v4442
    %v5835 = vpack.c.b16 %v4451, %v4443
    %v5836 = vpack.c.b16 %v4452, %v4444
    %v5837 = vpack.c.b16 %v4453, %v4445
    %v5838 = vpack.c.b16 %v4454, %v4446
    %v5839 = vpack.c.b16 %v4455, %v4447
    %v5840 = vpack.c.b16 %v4456, %v4448
    %v5841 = vpack.c.b16 %v4465, %v4457
    %v5842 = vpack.c.b16 %v4466, %v4458
    %v5843 = vpack.c.b16 %v4467, %v4459
    %v5844 = vpack.c.b16 %v4468, %v4460
    %v5845 = vpack.c.b16 %v4469, %v4461
    %v5846 = vpack.c.b16 %v4470, %v4462
    %v5847 = vpack.c.b16 %v4471, %v4463
    %v5848 = vpack.c.b16 %v4472, %v4464
    %v5849 = vpack.c.b16 %v4481, %v4473
    %v5850 = vpack.c.b16 %v4482, %v4474
    %v5851 = vpack.c.b16 %v4483, %v4475
    %v5852 = vpack.c.b16 %v4484, %v4476
    %v5853 = vpack.c.b16 %v4485, %v4477
    %v5854 = vpack.c.b16 %v4486, %v4478
    %v5855 = vpack.c.b16 %v4487, %v4479
    %v5856 = vpack.c.b16 %v4488, %v4480
    %v5857 = vpack.c.b16 %v4497, %v4489
    %v5858 = vpack.c.b16 %v4498, %v4490
    %v5859 = vpack.c.b16 %v4499, %v4491
    %v5860 = vpack.c.b16 %v4500, %v4492
    %v5861 = vpack.c.b16 %v4501, %v4493
    %v5862 = vpack.c.b16 %v4502, %v4494
    %v5863 = vpack.c.b16 %v4503, %v4495
    %v5864 = vpack.c.b16 %v4504, %v4496
    %v5865 = vpack.c.b16 %v4513, %v4505
    %v5866 = vpack.c.b16 %v4514, %v4506
    %v5867 = vpack.c.b16 %v4515, %v4507
    %v5868 = vpack.c.b16 %v4516, %v4508
    %v5869 = vpack.c.b16 %v4517, %v4509
    %v5870 = vpack.c.b16 %v4518, %v4510
    %v5871 = vpack.c.b16 %v4519, %v4511
    %v5872 = vpack.c.b16 %v4520, %v4512
    %v5873 = vpack.c.b16 %v4529, %v4521
    %v5874 = vpack.c.b16 %v4530, %v4522
    %v5875 = vpack.c.b16 %v4531, %v4523
    %v5876 = vpack.c.b16 %v4532, %v4524
    %v5877 = vpack.c.b16 %v4533, %v4525
    %v5878 = vpack.c.b16 %v4534, %v4526
    %v5879 = vpack.c.b16 %v4535, %v4527
    %v5880 = vpack.c.b16 %v4536, %v4528
    %v5881 = vpack.c.b16 %v4545, %v4537
    %v5882 = vpack.c.b16 %v4546, %v4538
    %v5883 = vpack.c.b16 %v4547, %v4539
    %v5884 = vpack.c.b16 %v4548, %v4540
    %v5885 = vpack.c.b16 %v4549, %v4541
    %v5886 = vpack.c.b16 %v4550, %v4542
    %v5887 = vpack.c.b16 %v4551, %v4543
    %v5888 = vpack.c.b16 %v4552, %v4544
    %v5889 = vpack.c.b16 %v4561, %v4553
    %v5890 = vpack.c.b16 %v4562, %v4554
    %v5891 = vpack.c.b16 %v4563, %v4555
    %v5892 = vpack.c.b16 %v4564, %v4556
    %v5893 = vpack.c.b16 %v4565, %v4557
    %v5894 = vpack.c.b16 %v4566, %v4558
    %v5895 = vpack.c.b16 %v4567, %v4559
    %v5896 = vpack.c.b16 %v4568, %v4560
    %v5897 = vpack.c.b16 %v4577, %v4569
    %v5898 = vpack.c.b16 %v4578, %v4570
    %v5899 = vpack.c.b16 %v4579, %v4571
    %v5900 = vpack.c.b16 %v4580, %v4572
    %v5901 = vpack.c.b16 %v4581, %v4573
    %v5902 = vpack.c.b16 %v4582, %v4574
    %v5903 = vpack.c.b16 %v4583, %v4575
    %v5904 = vpack.c.b16 %v4584, %v4576
    %v5905 = vpack.c.b16 %v4593, %v4585
    %v5906 = vpack.c.b16 %v4594, %v4586
    %v5907 = vpack.c.b16 %v4595, %v4587
    %v5908 = vpack.c.b16 %v4596, %v4588
    %v5909 = vpack.c.b16 %v4597, %v4589
    %v5910 = vpack.c.b16 %v4598, %v4590
    %v5911 = vpack.c.b16 %v4599, %v4591
    %v5912 = vpack.c.b16 %v4600, %v4592
    %v5913 = vpack.c.b16 %v4609, %v4601
    %v5914 = vpack.c.b16 %v4610, %v4602
    %v5915 = vpack.c.b16 %v4611, %v4603
    %v5916 = vpack.c.b16 %v4612, %v4604
    %v5917 = vpack.c.b16 %v4613, %v4605
    %v5918 = vpack.c.b16 %v4614, %v4606
    %v5919 = vpack.c.b16 %v4615, %v4607
    %v5920 = vpack.c.b16 %v4616, %v4608
    %v5921 = vpack.c.b16 %v4625, %v4617
    %v5922 = vpack.c.b16 %v4626, %v4618
    %v5923 = vpack.c.b16 %v4627, %v4619
    %v5924 = vpack.c.b16 %v4628, %v4620
    %v5925 = vpack.c.b16 %v4629, %v4621
    %v5926 = vpack.c.b16 %v4630, %v4622
    %v5927 = vpack.c.b16 %v4631, %v4623
    %v5928 = vpack.c.b16 %v4632, %v4624
    %v5929 = vpack.c.b16 %v4641, %v4633
    %v5930 = vpack.c.b16 %v4642, %v4634
    %v5931 = vpack.c.b16 %v4643, %v4635
    %v5932 = vpack.c.b16 %v4644, %v4636
    %v5933 = vpack.c.b16 %v4645, %v4637
    %v5934 = vpack.c.b16 %v4646, %v4638
    %v5935 = vpack.c.b16 %v4647, %v4639
    %v5936 = vpack.c.b16 %v4648, %v4640
    %v5937 = vpack.c.b16 %v4657, %v4649
    %v5938 = vpack.c.b16 %v4658, %v4650
    %v5939 = vpack.c.b16 %v4659, %v4651
    %v5940 = vpack.c.b16 %v4660, %v4652
    %v5941 = vpack.c.b16 %v4661, %v4653
    %v5942 = vpack.c.b16 %v4662, %v4654
    %v5943 = vpack.c.b16 %v4663, %v4655
    %v5944 = vpack.c.b16 %v4664, %v4656
    %v5945 = vpack.c.b16 %v4673, %v4665
    %v5946 = vpack.c.b16 %v4674, %v4666
    %v5947 = vpack.c.b16 %v4675, %v4667
    %v5948 = vpack.c.b16 %v4676, %v4668
    %v5949 = vpack.c.b16 %v4677, %v4669
    %v5950 = vpack.c.b16 %v4678, %v4670
    %v5951 = vpack.c.b16 %v4679, %v4671
    %v5952 = vpack.c.b16 %v4680, %v4672
    %v5953 = vpack.c.b16 %v4689, %v4681
    %v5954 = vpack.c.b16 %v4690, %v4682
    %v5955 = vpack.c.b16 %v4691, %v4683
    %v5956 = vpack.c.b16 %v4692, %v4684
    %v5957 = vpack.c.b16 %v4693, %v4685
    %v5958 = vpack.c.b16 %v4694, %v4686
    %v5959 = vpack.c.b16 %v4695, %v4687
    %v5960 = vpack.c.b16 %v4696, %v4688
    %v5961 = vpack.c.b16 %v4705, %v4697
    %v5962 = vpack.c.b16 %v4706, %v4698
    %v5963 = vpack.c.b16 %v4707, %v4699
    %v5964 = vpack.c.b16 %v4708, %v4700
    %v5965 = vpack.c.b16 %v4709, %v4701
    %v5966 = vpack.c.b16 %v4710, %v4702
    %v5967 = vpack.c.b16 %v4711, %v4703
    %v5968 = vpack.c.b16 %v4712, %v4704
    %v5969 = vpack.c.b16 %v4721, %v4713
    %v5970 = vpack.c.b16 %v4722, %v4714
    %v5971 = vpack.c.b16 %v4723, %v4715
    %v5972 = vpack.c.b16 %v4724, %v4716
    %v5973 = vpack.c.b16 %v4725, %v4717
    %v5974 = vpack.c.b16 %v4726, %v4718
    %v5975 = vpack.c.b16 %v4727, %v4719
    %v5976 = vpack.c.b16 %v4728, %v4720
    %v5977 = vpack.c.b16 %v4737, %v4729
    %v5978 = vpack.c.b16 %v4738, %v4730
    %v5979 = vpack.c.b16 %v4739, %v4731
    %v5980 = vpack.c.b16 %v4740, %v4732
    %v5981 = vpack.c.b16 %v4741, %v4733
    %v5982 = vpack.c.b16 %v4742, %v4734
    %v5983 = vpack.c.b16 %v4743, %v4735
    %v5984 = vpack.c.b16 %v4744, %v4736
    %v5985 = vpack.c.b16 %v4753, %v4745
    %v5986 = vpack.c.b16 %v4754, %v4746
    %v5987 = vpack.c.b16 %v4755, %v4747
    %v5988 = vpack.c.b16 %v4756, %v4748
    %v5989 = vpack.c.b16 %v4757, %v4749
    %v5990 = vpack.c.b16 %v4758, %v4750
    %v5991 = vpack.c.b16 %v4759, %v4751
    %v5992 = vpack.c.b16 %v4760, %v4752
    %v5993 = vpack.c.b16 %v4769, %v4761
    %v5994 = vpack.c.b16 %v4770, %v4762
    %v5995 = vpack.c.b16 %v4771, %v4763
    %v5996 = vpack.c.b16 %v4772, %v4764
    %v5997 = vpack.c.b16 %v4773, %v4765
    %v5998 = vpack.c.b16 %v4774, %v4766
    %v5999 = vpack.c.b16 %v4775, %v4767
    %v6000 = vpack.c.b16 %v4776, %v4768
    %v6001 = vpack.c.b16 %v4785, %v4777
    %v6002 = vpack.c.b16 %v4786, %v4778
    %v6003 = vpack.c.b16 %v4787, %v4779
    %v6004 = vpack.c.b16 %v4788, %v4780
    %v6005 = vpack.c.b16 %v4789, %v4781
    %v6006 = vpack.c.b16 %v4790, %v4782
    %v6007 = vpack.c.b16 %v4791, %v4783
    %v6008 = vpack.c.b16 %v4792, %v4784
    %v6009 = vpack.c.b16 %v4801, %v4793
    %v6010 = vpack.c.b16 %v4802, %v4794
    %v6011 = vpack.c.b16 %v4803, %v4795
    %v6012 = vpack.c.b16 %v4804, %v4796
    %v6013 = vpack.c.b16 %v4805, %v4797
    %v6014 = vpack.c.b16 %v4806, %v4798
    %v6015 = vpack.c.b16 %v4807, %v4799
    %v6016 = vpack.c.b16 %v4808, %v4800
    %v6017 = vpack.c.b16 %v4817, %v4809
    %v6018 = vpack.c.b16 %v4818, %v4810
    %v6019 = vpack.c.b16 %v4819, %v4811
    %v6020 = vpack.c.b16 %v4820, %v4812
    %v6021 = vpack.c.b16 %v4821, %v4813
    %v6022 = vpack.c.b16 %v4822, %v4814
    %v6023 = vpack.c.b16 %v4823, %v4815
    %v6024 = vpack.c.b16 %v4824, %v4816
    %v6025 = vpack.c.b16 %v4833, %v4825
    %v6026 = vpack.c.b16 %v4834, %v4826
    %v6027 = vpack.c.b16 %v4835, %v4827
    %v6028 = vpack.c.b16 %v4836, %v4828
    %v6029 = vpack.c.b16 %v4837, %v4829
    %v6030 = vpack.c.b16 %v4838, %v4830
    %v6031 = vpack.c.b16 %v4839, %v4831
    %v6032 = vpack.c.b16 %v4840, %v4832
    %v6033 = vpack.c.b16 %v4849, %v4841
    %v6034 = vpack.c.b16 %v4850, %v4842
    %v6035 = vpack.c.b16 %v4851, %v4843
    %v6036 = vpack.c.b16 %v4852, %v4844
    %v6037 = vpack.c.b16 %v4853, %v4845
    %v6038 = vpack.c.b16 %v4854, %v4846
    %v6039 = vpack.c.b16 %v4855, %v4847
    %v6040 = vpack.c.b16 %v4856, %v4848
    %v6041 = vpack.c.b16 %v4865, %v4857
    %v6042 = vpack.c.b16 %v4866, %v4858
    %v6043 = vpack.c.b16 %v4867, %v4859
    %v6044 = vpack.c.b16 %v4868, %v4860
    %v6045 = vpack.c.b16 %v4869, %v4861
    %v6046 = vpack.c.b16 %v4870, %v4862
    %v6047 = vpack.c.b16 %v4871, %v4863
    %v6048 = vpack.c.b16 %v4872, %v4864
    %v6049 = vpack.c.b16 %v4881, %v4873
    %v6050 = vpack.c.b16 %v4882, %v4874
    %v6051 = vpack.c.b16 %v4883, %v4875
    %v6052 = vpack.c.b16 %v4884, %v4876
    %v6053 = vpack.c.b16 %v4885, %v4877
    %v6054 = vpack.c.b16 %v4886, %v4878
    %v6055 = vpack.c.b16 %v4887, %v4879
    %v6056 = vpack.c.b16 %v4888, %v4880
    %v6057 = vpack.c.b16 %v4897, %v4889
    %v6058 = vpack.c.b16 %v4898, %v4890
    %v6059 = vpack.c.b16 %v4899, %v4891
    %v6060 = vpack.c.b16 %v4900, %v4892
    %v6061 = vpack.c.b16 %v4901, %v4893
    %v6062 = vpack.c.b16 %v4902, %v4894
    %v6063 = vpack.c.b16 %v4903, %v4895
    %v6064 = vpack.c.b16 %v4904, %v4896
    %v6065 = vpack.c.b16 %v4913, %v4905
    %v6066 = vpack.c.b16 %v4914, %v4906
    %v6067 = vpack.c.b16 %v4915, %v4907
    %v6068 = vpack.c.b16 %v4916, %v4908
    %v6069 = vpack.c.b16 %v4917, %v4909
    %v6070 = vpack.c.b16 %v4918, %v4910
    %v6071 = vpack.c.b16 %v4919, %v4911
    %v6072 = vpack.c.b16 %v4920, %v4912
    %v6073 = vpack.c.b16 %v4929, %v4921
    %v6074 = vpack.c.b16 %v4930, %v4922
    %v6075 = vpack.c.b16 %v4931, %v4923
    %v6076 = vpack.c.b16 %v4932, %v4924
    %v6077 = vpack.c.b16 %v4933, %v4925
    %v6078 = vpack.c.b16 %v4934, %v4926
    %v6079 = vpack.c.b16 %v4935, %v4927
    %v6080 = vpack.c.b16 %v4936, %v4928
    %v6081 = vpack.c.b16 %v4945, %v4937
    %v6082 = vpack.c.b16 %v4946, %v4938
    %v6083 = vpack.c.b16 %v4947, %v4939
    %v6084 = vpack.c.b16 %v4948, %v4940
    %v6085 = vpack.c.b16 %v4949, %v4941
    %v6086 = vpack.c.b16 %v4950, %v4942
    %v6087 = vpack.c.b16 %v4951, %v4943
    %v6088 = vpack.c.b16 %v4952, %v4944
    %v6089 = vpack.c.b16 %v4961, %v4953
    %v6090 = vpack.c.b16 %v4962, %v4954
    %v6091 = vpack.c.b16 %v4963, %v4955
    %v6092 = vpack.c.b16 %v4964, %v4956
    %v6093 = vpack.c.b16 %v4965, %v4957
    %v6094 = vpack.c.b16 %v4966, %v4958
    %v6095 = vpack.c.b16 %v4967, %v4959
    %v6096 = vpack.c.b16 %v4968, %v4960
    %v6097 = vpack.c.b16 %v4977, %v4969
    %v6098 = vpack.c.b16 %v4978, %v4970
    %v6099 = vpack.c.b16 %v4979, %v4971
    %v6100 = vpack.c.b16 %v4980, %v4972
    %v6101 = vpack.c.b16 %v4981, %v4973
    %v6102 = vpack.c.b16 %v4982, %v4974
    %v6103 = vpack.c.b16 %v4983, %v4975
    %v6104 = vpack.c.b16 %v4984, %v4976
    %v6105 = vpack.c.b16 %v4993, %v4985
    %v6106 = vpack.c.b16 %v4994, %v4986
    %v6107 = vpack.c.b16 %v4995, %v4987
    %v6108 = vpack.c.b16 %v4996, %v4988
    %v6109 = vpack.c.b16 %v4997, %v4989
    %v6110 = vpack.c.b16 %v4998, %v4990
    %v6111 = vpack.c.b16 %v4999, %v4991
    %v6112 = vpack.c.b16 %v5000, %v4992
    %v6113 = vpack.c.b16 %v5009, %v5001
    %v6114 = vpack.c.b16 %v5010, %v5002
    %v6115 = vpack.c.b16 %v5011, %v5003
    %v6116 = vpack.c.b16 %v5012, %v5004
    %v6117 = vpack.c.b16 %v5013, %v5005
    %v6118 = vpack.c.b16 %v5014, %v5006
    %v6119 = vpack.c.b16 %v5015, %v5007
    %v6120 = vpack.c.b16 %v5016, %v5008
    %v6121 = vpack.c.b16 %v5025, %v5017
    %v6122 = vpack.c.b16 %v5026, %v5018
    %v6123 = vpack.c.b16 %v5027, %v5019
    %v6124 = vpack.c.b16 %v5028, %v5020
    %v6125 = vpack.c.b16 %v5029, %v5021
    %v6126 = vpack.c.b16 %v5030, %v5022
    %v6127 = vpack.c.b16 %v5031, %v5023
    %v6128 = vpack.c.b16 %v5032, %v5024
    %v6129 = vpack.c.b16 %v5041, %v5033
    %v6130 = vpack.c.b16 %v5042, %v5034
    %v6131 = vpack.c.b16 %v5043, %v5035
    %v6132 = vpack.c.b16 %v5044, %v5036
    %v6133 = vpack.c.b16 %v5045, %v5037
    %v6134 = vpack.c.b16 %v5046, %v5038
    %v6135 = vpack.c.b16 %v5047, %v5039
    %v6136 = vpack.c.b16 %v5048, %v5040
    %v6137 = vpack.c.b16 %v5057, %v5049
    %v6138 = vpack.c.b16 %v5058, %v5050
    %v6139 = vpack.c.b16 %v5059, %v5051
    %v6140 = vpack.c.b16 %v5060, %v5052
    %v6141 = vpack.c.b16 %v5061, %v5053
    %v6142 = vpack.c.b16 %v5062, %v5054
    %v6143 = vpack.c.b16 %v5063, %v5055
    %v6144 = vpack.c.b16 %v5064, %v5056
    %v6145 = vpack.c.b16 %v5073, %v5065
    %v6146 = vpack.c.b16 %v5074, %v5066
    %v6147 = vpack.c.b16 %v5075, %v5067
    %v6148 = vpack.c.b16 %v5076, %v5068
    %v6149 = vpack.c.b16 %v5077, %v5069
    %v6150 = vpack.c.b16 %v5078, %v5070
    %v6151 = vpack.c.b16 %v5079, %v5071
    %v6152 = vpack.c.b16 %v5080, %v5072
    %v6153 = vpack.c.b16 %v5089, %v5081
    %v6154 = vpack.c.b16 %v5090, %v5082
    %v6155 = vpack.c.b16 %v5091, %v5083
    %v6156 = vpack.c.b16 %v5092, %v5084
    %v6157 = vpack.c.b16 %v5093, %v5085
    %v6158 = vpack.c.b16 %v5094, %v5086
    %v6159 = vpack.c.b16 %v5095, %v5087
    %v6160 = vpack.c.b16 %v5096, %v5088
    %v6161 = vpack.c.b16 %v5105, %v5097
    %v6162 = vpack.c.b16 %v5106, %v5098
    %v6163 = vpack.c.b16 %v5107, %v5099
    %v6164 = vpack.c.b16 %v5108, %v5100
    %v6165 = vpack.c.b16 %v5109, %v5101
    %v6166 = vpack.c.b16 %v5110, %v5102
    %v6167 = vpack.c.b16 %v5111, %v5103
    %v6168 = vpack.c.b16 %v5112, %v5104
    %v6169 = vpack.c.b16 %v5121, %v5113
    %v6170 = vpack.c.b16 %v5122, %v5114
    %v6171 = vpack.c.b16 %v5123, %v5115
    %v6172 = vpack.c.b16 %v5124, %v5116
    %v6173 = vpack.c.b16 %v5125, %v5117
    %v6174 = vpack.c.b16 %v5126, %v5118
    %v6175 = vpack.c.b16 %v5127, %v5119
    %v6176 = vpack.c.b16 %v5128, %v5120
    %v6177 = vpack.c.b16 %v5137, %v5129
    %v6178 = vpack.c.b16 %v5138, %v5130
    %v6179 = vpack.c.b16 %v5139, %v5131
    %v6180 = vpack.c.b16 %v5140, %v5132
    %v6181 = vpack.c.b16 %v5141, %v5133
    %v6182 = vpack.c.b16 %v5142, %v5134
    %v6183 = vpack.c.b16 %v5143, %v5135
    %v6184 = vpack.c.b16 %v5144, %v5136
    %v6185 = vpack.c.b16 %v5153, %v5145
    %v6186 = vpack.c.b16 %v5154, %v5146
    %v6187 = vpack.c.b16 %v5155, %v5147
    %v6188 = vpack.c.b16 %v5156, %v5148
    %v6189 = vpack.c.b16 %v5157, %v5149
    %v6190 = vpack.c.b16 %v5158, %v5150
    %v6191 = vpack.c.b16 %v5159, %v5151
    %v6192 = vpack.c.b16 %v5160, %v5152
    %v6193 = vpack.c.b16 %v5169, %v5161
    %v6194 = vpack.c.b16 %v5170, %v5162
    %v6195 = vpack.c.b16 %v5171, %v5163
    %v6196 = vpack.c.b16 %v5172, %v5164
    %v6197 = vpack.c.b16 %v5173, %v5165
    %v6198 = vpack.c.b16 %v5174, %v5166
    %v6199 = vpack.c.b16 %v5175, %v5167
    %v6200 = vpack.c.b16 %v5176, %v5168
    %7225 = vmatprep.subr.bf16.mxu0 %v5234
    %7226 = vmatpush1.bf16.msra.mxu0 %v5233
    %7227 = vmatprep.subr.bf16.mxu0 %v5226
    %7228 = vmatpush1.bf16.msra.mxu0 %v5225
    %7229 = vmatprep.subr.bf16.mxu0 %v5218
    %7230 = vmatpush1.bf16.msra.mxu0 %v5217
    %7231 = vmatprep.subr.bf16.mxu0 %v5210
    %7232 = vmatpush1.bf16.msra.mxu0 %v5209
    %7233 = vmatprep.subr.bf16.mxu0 %v5202
    %7234 = vmatpush1.bf16.msra.mxu0 %v5201
    %7235 = vmatprep.subr.bf16.mxu0 %v5194
    %7236 = vmatpush1.bf16.msra.mxu0 %v5193
    %7237 = vmatprep.subr.bf16.mxu0 %v5186
    %7238 = vmatpush1.bf16.msra.mxu0 %v5185
    %7239 = vmatprep.subr.bf16.mxu0 %v5178
    %7240 = vmatpush1.bf16.msra.mxu0 %v5177
    %7241 = vmatprep.subr.bf16.mxu0 %v5298
    %7242 = vmatpush2.bf16.msra.mxu0 %v5297
    %7243 = vmatprep.subr.bf16.mxu0 %v5290
    %7244 = vmatpush2.bf16.msra.mxu0 %v5289
    %7245 = vmatprep.subr.bf16.mxu0 %v5282
    %7246 = vmatpush2.bf16.msra.mxu0 %v5281
    %7247 = vmatprep.subr.bf16.mxu0 %v5274
    %7248 = vmatpush2.bf16.msra.mxu0 %v5273
    %7249 = vmatprep.subr.bf16.mxu0 %v5266
    %7250 = vmatpush2.bf16.msra.mxu0 %v5265
    %7251 = vmatprep.subr.bf16.mxu0 %v5258
    %7252 = vmatpush2.bf16.msra.mxu0 %v5257
    %7253 = vmatprep.subr.bf16.mxu0 %v5250
    %7254 = vmatpush2.bf16.msra.mxu0 %v5249
    %7255 = vmatprep.subr.bf16.mxu0 %v5242
    %7256 = vmatpush2.bf16.msra.mxu0 %v5241
    %7257 = vmatprep.mubr.bf16.mxu0 %v1066
    %7258 = vmatmul.mubr.bf16.gmra.mxu0 %v1065
    %v7259 = vpop.f32.mrf.mxu0
    %v7260 = vadd.f32 0.0, %v7259
    %v7261 = vpop.f32.mrf.mxu0
    %v7262 = vadd.f32 0.0, %v7261
    %v7263 = vpop.f32.mrf.mxu0
    %v7264 = vpop.f32.mrf.mxu0
    %7265 = vdwg.mxu0
    %7266 = vmatprep.subr.bf16.mxu0 %v5362
    %7267 = vmatpush1.bf16.msra.mxu0 %v5361
    %7268 = vmatprep.subr.bf16.mxu0 %v5354
    %7269 = vmatpush1.bf16.msra.mxu0 %v5353
    %7270 = vmatprep.subr.bf16.mxu0 %v5346
    %7271 = vmatpush1.bf16.msra.mxu0 %v5345
    %7272 = vmatprep.subr.bf16.mxu0 %v5338
    %7273 = vmatpush1.bf16.msra.mxu0 %v5337
    %7274 = vmatprep.subr.bf16.mxu0 %v5330
    %7275 = vmatpush1.bf16.msra.mxu0 %v5329
    %7276 = vmatprep.subr.bf16.mxu0 %v5322
    %7277 = vmatpush1.bf16.msra.mxu0 %v5321
    %7278 = vmatprep.subr.bf16.mxu0 %v5314
    %7279 = vmatpush1.bf16.msra.mxu0 %v5313
    %7280 = vmatprep.subr.bf16.mxu0 %v5306
    %7281 = vmatpush1.bf16.msra.mxu0 %v5305
    %7282 = vmatprep.subr.bf16.mxu0 %v5426
    %7283 = vmatpush2.bf16.msra.mxu0 %v5425
    %7284 = vmatprep.subr.bf16.mxu0 %v5418
    %7285 = vmatpush2.bf16.msra.mxu0 %v5417
    %7286 = vmatprep.subr.bf16.mxu0 %v5410
    %7287 = vmatpush2.bf16.msra.mxu0 %v5409
    %7288 = vmatprep.subr.bf16.mxu0 %v5402
    %7289 = vmatpush2.bf16.msra.mxu0 %v5401
    %7290 = vmatprep.subr.bf16.mxu0 %v5394
    %7291 = vmatpush2.bf16.msra.mxu0 %v5393
    %7292 = vmatprep.subr.bf16.mxu0 %v5386
    %7293 = vmatpush2.bf16.msra.mxu0 %v5385
    %7294 = vmatprep.subr.bf16.mxu0 %v5378
    %7295 = vmatpush2.bf16.msra.mxu0 %v5377
    %7296 = vmatprep.subr.bf16.mxu0 %v5370
    %7297 = vmatpush2.bf16.msra.mxu0 %v5369
    %7298 = vmatprep.mubr.bf16.mxu0 %v1068
    %7299 = vmatmul.mubr.bf16.gmra.mxu0 %v1067
    %v7300 = vpop.f32.mrf.mxu0
    %v7301 = vadd.f32 %v7260, %v7300
    %v7302 = vpop.f32.mrf.mxu0
    %v7303 = vadd.f32 %v7262, %v7302
    %v7304 = vpop.f32.mrf.mxu0
    %v7305 = vpop.f32.mrf.mxu0
    %7306 = vdwg.mxu0
    %7307 = vmatprep.subr.bf16.mxu0 %v5490
    %7308 = vmatpush1.bf16.msra.mxu0 %v5489
    %7309 = vmatprep.subr.bf16.mxu0 %v5482
    %7310 = vmatpush1.bf16.msra.mxu0 %v5481
    %7311 = vmatprep.subr.bf16.mxu0 %v5474
    %7312 = vmatpush1.bf16.msra.mxu0 %v5473
    %7313 = vmatprep.subr.bf16.mxu0 %v5466
    %7314 = vmatpush1.bf16.msra.mxu0 %v5465
    %7315 = vmatprep.subr.bf16.mxu0 %v5458
    %7316 = vmatpush1.bf16.msra.mxu0 %v5457
    %7317 = vmatprep.subr.bf16.mxu0 %v5450
    %7318 = vmatpush1.bf16.msra.mxu0 %v5449
    %7319 = vmatprep.subr.bf16.mxu0 %v5442
    %7320 = vmatpush1.bf16.msra.mxu0 %v5441
    %7321 = vmatprep.subr.bf16.mxu0 %v5434
    %7322 = vmatpush1.bf16.msra.mxu0 %v5433
    %7323 = vmatprep.subr.bf16.mxu0 %v5554
    %7324 = vmatpush2.bf16.msra.mxu0 %v5553
    %7325 = vmatprep.subr.bf16.mxu0 %v5546
    %7326 = vmatpush2.bf16.msra.mxu0 %v5545
    %7327 = vmatprep.subr.bf16.mxu0 %v5538
    %7328 = vmatpush2.bf16.msra.mxu0 %v5537
    %7329 = vmatprep.subr.bf16.mxu0 %v5530
    %7330 = vmatpush2.bf16.msra.mxu0 %v5529
    %7331 = vmatprep.subr.bf16.mxu0 %v5522
    %7332 = vmatpush2.bf16.msra.mxu0 %v5521
    %7333 = vmatprep.subr.bf16.mxu0 %v5514
    %7334 = vmatpush2.bf16.msra.mxu0 %v5513
    %7335 = vmatprep.subr.bf16.mxu0 %v5506
    %7336 = vmatpush2.bf16.msra.mxu0 %v5505
    %7337 = vmatprep.subr.bf16.mxu0 %v5498
    %7338 = vmatpush2.bf16.msra.mxu0 %v5497
    %7339 = vmatprep.mubr.bf16.mxu0 %v1070
    %7340 = vmatmul.mubr.bf16.gmra.mxu0 %v1069
    %v7341 = vpop.f32.mrf.mxu0
    %v7342 = vadd.f32 %v7301, %v7341
    %v7343 = vpop.f32.mrf.mxu0
    %v7344 = vadd.f32 %v7303, %v7343
    %v7345 = vpop.f32.mrf.mxu0
    %v7346 = vpop.f32.mrf.mxu0
    %7347 = vdwg.mxu0
    %7348 = vmatprep.subr.bf16.mxu0 %v5618
    %7349 = vmatpush1.bf16.msra.mxu0 %v5617
    %7350 = vmatprep.subr.bf16.mxu0 %v5610
    %7351 = vmatpush1.bf16.msra.mxu0 %v5609
    %7352 = vmatprep.subr.bf16.mxu0 %v5602
    %7353 = vmatpush1.bf16.msra.mxu0 %v5601
    %7354 = vmatprep.subr.bf16.mxu0 %v5594
    %7355 = vmatpush1.bf16.msra.mxu0 %v5593
    %7356 = vmatprep.subr.bf16.mxu0 %v5586
    %7357 = vmatpush1.bf16.msra.mxu0 %v5585
    %7358 = vmatprep.subr.bf16.mxu0 %v5578
    %7359 = vmatpush1.bf16.msra.mxu0 %v5577
    %7360 = vmatprep.subr.bf16.mxu0 %v5570
    %7361 = vmatpush1.bf16.msra.mxu0 %v5569
    %7362 = vmatprep.subr.bf16.mxu0 %v5562
    %7363 = vmatpush1.bf16.msra.mxu0 %v5561
    %7364 = vmatprep.subr.bf16.mxu0 %v5682
    %7365 = vmatpush2.bf16.msra.mxu0 %v5681
    %7366 = vmatprep.subr.bf16.mxu0 %v5674
    %7367 = vmatpush2.bf16.msra.mxu0 %v5673
    %7368 = vmatprep.subr.bf16.mxu0 %v5666
    %7369 = vmatpush2.bf16.msra.mxu0 %v5665
    %7370 = vmatprep.subr.bf16.mxu0 %v5658
    %7371 = vmatpush2.bf16.msra.mxu0 %v5657
    %7372 = vmatprep.subr.bf16.mxu0 %v5650
    %7373 = vmatpush2.bf16.msra.mxu0 %v5649
    %7374 = vmatprep.subr.bf16.mxu0 %v5642
    %7375 = vmatpush2.bf16.msra.mxu0 %v5641
    %7376 = vmatprep.subr.bf16.mxu0 %v5634
    %7377 = vmatpush2.bf16.msra.mxu0 %v5633
    %7378 = vmatprep.subr.bf16.mxu0 %v5626
    %7379 = vmatpush2.bf16.msra.mxu0 %v5625
    %7380 = vmatprep.mubr.bf16.mxu0 %v1072
    %7381 = vmatmul.mubr.bf16.gmra.mxu0 %v1071
    %v7382 = vpop.f32.mrf.mxu0
    %v7383 = vadd.f32 %v7342, %v7382
    %v7384 = vpop.f32.mrf.mxu0
    %v7385 = vadd.f32 %v7344, %v7384
    %v7386 = vpop.f32.mrf.mxu0
    %v7387 = vpop.f32.mrf.mxu0
    %7388 = vdwg.mxu0
    %7389 = vmatprep.subr.bf16.mxu0 %v5746
    %7390 = vmatpush1.bf16.msra.mxu0 %v5745
    %7391 = vmatprep.subr.bf16.mxu0 %v5738
    %7392 = vmatpush1.bf16.msra.mxu0 %v5737
    %7393 = vmatprep.subr.bf16.mxu0 %v5730
    %7394 = vmatpush1.bf16.msra.mxu0 %v5729
    %7395 = vmatprep.subr.bf16.mxu0 %v5722
    %7396 = vmatpush1.bf16.msra.mxu0 %v5721
    %7397 = vmatprep.subr.bf16.mxu0 %v5714
    %7398 = vmatpush1.bf16.msra.mxu0 %v5713
    %7399 = vmatprep.subr.bf16.mxu0 %v5706
    %7400 = vmatpush1.bf16.msra.mxu0 %v5705
    %7401 = vmatprep.subr.bf16.mxu0 %v5698
    %7402 = vmatpush1.bf16.msra.mxu0 %v5697
    %7403 = vmatprep.subr.bf16.mxu0 %v5690
    %7404 = vmatpush1.bf16.msra.mxu0 %v5689
    %7405 = vmatprep.subr.bf16.mxu0 %v5810
    %7406 = vmatpush2.bf16.msra.mxu0 %v5809
    %7407 = vmatprep.subr.bf16.mxu0 %v5802
    %7408 = vmatpush2.bf16.msra.mxu0 %v5801
    %7409 = vmatprep.subr.bf16.mxu0 %v5794
    %7410 = vmatpush2.bf16.msra.mxu0 %v5793
    %7411 = vmatprep.subr.bf16.mxu0 %v5786
    %7412 = vmatpush2.bf16.msra.mxu0 %v5785
    %7413 = vmatprep.subr.bf16.mxu0 %v5778
    %7414 = vmatpush2.bf16.msra.mxu0 %v5777
    %7415 = vmatprep.subr.bf16.mxu0 %v5770
    %7416 = vmatpush2.bf16.msra.mxu0 %v5769
    %7417 = vmatprep.subr.bf16.mxu0 %v5762
    %7418 = vmatpush2.bf16.msra.mxu0 %v5761
    %7419 = vmatprep.subr.bf16.mxu0 %v5754
    %7420 = vmatpush2.bf16.msra.mxu0 %v5753
    %7421 = vmatprep.mubr.bf16.mxu0 %v1074
    %7422 = vmatmul.mubr.bf16.gmra.mxu0 %v1073
    %v7423 = vpop.f32.mrf.mxu0
    %v7424 = vadd.f32 %v7383, %v7423
    %v7425 = vpop.f32.mrf.mxu0
    %v7426 = vadd.f32 %v7385, %v7425
    %v7427 = vpop.f32.mrf.mxu0
    %v7428 = vpop.f32.mrf.mxu0
    %7429 = vdwg.mxu0
    %7430 = vmatprep.subr.bf16.mxu0 %v5874
    %7431 = vmatpush1.bf16.msra.mxu0 %v5873
    %7432 = vmatprep.subr.bf16.mxu0 %v5866
    %7433 = vmatpush1.bf16.msra.mxu0 %v5865
    %7434 = vmatprep.subr.bf16.mxu0 %v5858
    %7435 = vmatpush1.bf16.msra.mxu0 %v5857
    %7436 = vmatprep.subr.bf16.mxu0 %v5850
    %7437 = vmatpush1.bf16.msra.mxu0 %v5849
    %7438 = vmatprep.subr.bf16.mxu0 %v5842
    %7439 = vmatpush1.bf16.msra.mxu0 %v5841
    %7440 = vmatprep.subr.bf16.mxu0 %v5834
    %7441 = vmatpush1.bf16.msra.mxu0 %v5833
    %7442 = vmatprep.subr.bf16.mxu0 %v5826
    %7443 = vmatpush1.bf16.msra.mxu0 %v5825
    %7444 = vmatprep.subr.bf16.mxu0 %v5818
    %7445 = vmatpush1.bf16.msra.mxu0 %v5817
    %7446 = vmatprep.subr.bf16.mxu0 %v5938
    %7447 = vmatpush2.bf16.msra.mxu0 %v5937
    %7448 = vmatprep.subr.bf16.mxu0 %v5930
    %7449 = vmatpush2.bf16.msra.mxu0 %v5929
    %7450 = vmatprep.subr.bf16.mxu0 %v5922
    %7451 = vmatpush2.bf16.msra.mxu0 %v5921
    %7452 = vmatprep.subr.bf16.mxu0 %v5914
    %7453 = vmatpush2.bf16.msra.mxu0 %v5913
    %7454 = vmatprep.subr.bf16.mxu0 %v5906
    %7455 = vmatpush2.bf16.msra.mxu0 %v5905
    %7456 = vmatprep.subr.bf16.mxu0 %v5898
    %7457 = vmatpush2.bf16.msra.mxu0 %v5897
    %7458 = vmatprep.subr.bf16.mxu0 %v5890
    %7459 = vmatpush2.bf16.msra.mxu0 %v5889
    %7460 = vmatprep.subr.bf16.mxu0 %v5882
    %7461 = vmatpush2.bf16.msra.mxu0 %v5881
    %7462 = vmatprep.mubr.bf16.mxu0 %v1076
    %7463 = vmatmul.mubr.bf16.gmra.mxu0 %v1075
    %v7464 = vpop.f32.mrf.mxu0
    %v7465 = vadd.f32 %v7424, %v7464
    %v7466 = vpop.f32.mrf.mxu0
    %v7467 = vadd.f32 %v7426, %v7466
    %v7468 = vpop.f32.mrf.mxu0
    %v7469 = vpop.f32.mrf.mxu0
    %7470 = vdwg.mxu0
    %7471 = vmatprep.subr.bf16.mxu0 %v6002
    %7472 = vmatpush1.bf16.msra.mxu0 %v6001
    %7473 = vmatprep.subr.bf16.mxu0 %v5994
    %7474 = vmatpush1.bf16.msra.mxu0 %v5993
    %7475 = vmatprep.subr.bf16.mxu0 %v5986
    %7476 = vmatpush1.bf16.msra.mxu0 %v5985
    %7477 = vmatprep.subr.bf16.mxu0 %v5978
    %7478 = vmatpush1.bf16.msra.mxu0 %v5977
    %7479 = vmatprep.subr.bf16.mxu0 %v5970
    %7480 = vmatpush1.bf16.msra.mxu0 %v5969
    %7481 = vmatprep.subr.bf16.mxu0 %v5962
    %7482 = vmatpush1.bf16.msra.mxu0 %v5961
    %7483 = vmatprep.subr.bf16.mxu0 %v5954
    %7484 = vmatpush1.bf16.msra.mxu0 %v5953
    %7485 = vmatprep.subr.bf16.mxu0 %v5946
    %7486 = vmatpush1.bf16.msra.mxu0 %v5945
    %7487 = vmatprep.subr.bf16.mxu0 %v6066
    %7488 = vmatpush2.bf16.msra.mxu0 %v6065
    %7489 = vmatprep.subr.bf16.mxu0 %v6058
    %7490 = vmatpush2.bf16.msra.mxu0 %v6057
    %7491 = vmatprep.subr.bf16.mxu0 %v6050
    %7492 = vmatpush2.bf16.msra.mxu0 %v6049
    %7493 = vmatprep.subr.bf16.mxu0 %v6042
    %7494 = vmatpush2.bf16.msra.mxu0 %v6041
    %7495 = vmatprep.subr.bf16.mxu0 %v6034
    %7496 = vmatpush2.bf16.msra.mxu0 %v6033
    %7497 = vmatprep.subr.bf16.mxu0 %v6026
    %7498 = vmatpush2.bf16.msra.mxu0 %v6025
    %7499 = vmatprep.subr.bf16.mxu0 %v6018
    %7500 = vmatpush2.bf16.msra.mxu0 %v6017
    %7501 = vmatprep.subr.bf16.mxu0 %v6010
    %7502 = vmatpush2.bf16.msra.mxu0 %v6009
    %7503 = vmatprep.mubr.bf16.mxu0 %v1078
    %7504 = vmatmul.mubr.bf16.gmra.mxu0 %v1077
    %v7505 = vpop.f32.mrf.mxu0
    %v7506 = vadd.f32 %v7465, %v7505
    %v7507 = vpop.f32.mrf.mxu0
    %v7508 = vadd.f32 %v7467, %v7507
    %v7509 = vpop.f32.mrf.mxu0
    %v7510 = vpop.f32.mrf.mxu0
    %7511 = vdwg.mxu0
    %7512 = vmatprep.subr.bf16.mxu0 %v6130
    %7513 = vmatpush1.bf16.msra.mxu0 %v6129
    %7514 = vmatprep.subr.bf16.mxu0 %v6122
    %7515 = vmatpush1.bf16.msra.mxu0 %v6121
    %7516 = vmatprep.subr.bf16.mxu0 %v6114
    %7517 = vmatpush1.bf16.msra.mxu0 %v6113
    %7518 = vmatprep.subr.bf16.mxu0 %v6106
    %7519 = vmatpush1.bf16.msra.mxu0 %v6105
    %7520 = vmatprep.subr.bf16.mxu0 %v6098
    %7521 = vmatpush1.bf16.msra.mxu0 %v6097
    %7522 = vmatprep.subr.bf16.mxu0 %v6090
    %7523 = vmatpush1.bf16.msra.mxu0 %v6089
    %7524 = vmatprep.subr.bf16.mxu0 %v6082
    %7525 = vmatpush1.bf16.msra.mxu0 %v6081
    %7526 = vmatprep.subr.bf16.mxu0 %v6074
    %7527 = vmatpush1.bf16.msra.mxu0 %v6073
    %7528 = vmatprep.subr.bf16.mxu0 %v6194
    %7529 = vmatpush2.bf16.msra.mxu0 %v6193
    %7530 = vmatprep.subr.bf16.mxu0 %v6186
    %7531 = vmatpush2.bf16.msra.mxu0 %v6185
    %7532 = vmatprep.subr.bf16.mxu0 %v6178
    %7533 = vmatpush2.bf16.msra.mxu0 %v6177
    %7534 = vmatprep.subr.bf16.mxu0 %v6170
    %7535 = vmatpush2.bf16.msra.mxu0 %v6169
    %7536 = vmatprep.subr.bf16.mxu0 %v6162
    %7537 = vmatpush2.bf16.msra.mxu0 %v6161
    %7538 = vmatprep.subr.bf16.mxu0 %v6154
    %7539 = vmatpush2.bf16.msra.mxu0 %v6153
    %7540 = vmatprep.subr.bf16.mxu0 %v6146
    %7541 = vmatpush2.bf16.msra.mxu0 %v6145
    %7542 = vmatprep.subr.bf16.mxu0 %v6138
    %7543 = vmatpush2.bf16.msra.mxu0 %v6137
    %7544 = vmatprep.mubr.bf16.mxu0 %v1080
    %7545 = vmatmul.mubr.bf16.gmra.mxu0 %v1079
    %v7546 = vpop.f32.mrf.mxu0
    %v7547 = vadd.f32 %v7506, %v7546
    %v7548 = vpop.f32.mrf.mxu0
    %v7549 = vadd.f32 %v7508, %v7548
    %v7550 = vpop.f32.mrf.mxu0
    %v7551 = vpop.f32.mrf.mxu0
    %7552 = vdwg.mxu0
    %7553 = vmatprep.subr.bf16.mxu0 %v5236
    %7554 = vmatpush1.bf16.msra.mxu0 %v5235
    %7555 = vmatprep.subr.bf16.mxu0 %v5228
    %7556 = vmatpush1.bf16.msra.mxu0 %v5227
    %7557 = vmatprep.subr.bf16.mxu0 %v5220
    %7558 = vmatpush1.bf16.msra.mxu0 %v5219
    %7559 = vmatprep.subr.bf16.mxu0 %v5212
    %7560 = vmatpush1.bf16.msra.mxu0 %v5211
    %7561 = vmatprep.subr.bf16.mxu0 %v5204
    %7562 = vmatpush1.bf16.msra.mxu0 %v5203
    %7563 = vmatprep.subr.bf16.mxu0 %v5196
    %7564 = vmatpush1.bf16.msra.mxu0 %v5195
    %7565 = vmatprep.subr.bf16.mxu0 %v5188
    %7566 = vmatpush1.bf16.msra.mxu0 %v5187
    %7567 = vmatprep.subr.bf16.mxu0 %v5180
    %7568 = vmatpush1.bf16.msra.mxu0 %v5179
    %7569 = vmatprep.subr.bf16.mxu0 %v5300
    %7570 = vmatpush2.bf16.msra.mxu0 %v5299
    %7571 = vmatprep.subr.bf16.mxu0 %v5292
    %7572 = vmatpush2.bf16.msra.mxu0 %v5291
    %7573 = vmatprep.subr.bf16.mxu0 %v5284
    %7574 = vmatpush2.bf16.msra.mxu0 %v5283
    %7575 = vmatprep.subr.bf16.mxu0 %v5276
    %7576 = vmatpush2.bf16.msra.mxu0 %v5275
    %7577 = vmatprep.subr.bf16.mxu0 %v5268
    %7578 = vmatpush2.bf16.msra.mxu0 %v5267
    %7579 = vmatprep.subr.bf16.mxu0 %v5260
    %7580 = vmatpush2.bf16.msra.mxu0 %v5259
    %7581 = vmatprep.subr.bf16.mxu0 %v5252
    %7582 = vmatpush2.bf16.msra.mxu0 %v5251
    %7583 = vmatprep.subr.bf16.mxu0 %v5244
    %7584 = vmatpush2.bf16.msra.mxu0 %v5243
    %7585 = vmatprep.mubr.bf16.mxu0 %v1066
    %7586 = vmatmul.mubr.bf16.gmra.mxu0 %v1065
    %v7587 = vpop.f32.mrf.mxu0
    %v7588 = vadd.f32 0.0, %v7587
    %v7589 = vpop.f32.mrf.mxu0
    %v7590 = vadd.f32 0.0, %v7589
    %v7591 = vpop.f32.mrf.mxu0
    %v7592 = vpop.f32.mrf.mxu0
    %7593 = vdwg.mxu0
    %7594 = vmatprep.subr.bf16.mxu0 %v5364
    %7595 = vmatpush1.bf16.msra.mxu0 %v5363
    %7596 = vmatprep.subr.bf16.mxu0 %v5356
    %7597 = vmatpush1.bf16.msra.mxu0 %v5355
    %7598 = vmatprep.subr.bf16.mxu0 %v5348
    %7599 = vmatpush1.bf16.msra.mxu0 %v5347
    %7600 = vmatprep.subr.bf16.mxu0 %v5340
    %7601 = vmatpush1.bf16.msra.mxu0 %v5339
    %7602 = vmatprep.subr.bf16.mxu0 %v5332
    %7603 = vmatpush1.bf16.msra.mxu0 %v5331
    %7604 = vmatprep.subr.bf16.mxu0 %v5324
    %7605 = vmatpush1.bf16.msra.mxu0 %v5323
    %7606 = vmatprep.subr.bf16.mxu0 %v5316
    %7607 = vmatpush1.bf16.msra.mxu0 %v5315
    %7608 = vmatprep.subr.bf16.mxu0 %v5308
    %7609 = vmatpush1.bf16.msra.mxu0 %v5307
    %7610 = vmatprep.subr.bf16.mxu0 %v5428
    %7611 = vmatpush2.bf16.msra.mxu0 %v5427
    %7612 = vmatprep.subr.bf16.mxu0 %v5420
    %7613 = vmatpush2.bf16.msra.mxu0 %v5419
    %7614 = vmatprep.subr.bf16.mxu0 %v5412
    %7615 = vmatpush2.bf16.msra.mxu0 %v5411
    %7616 = vmatprep.subr.bf16.mxu0 %v5404
    %7617 = vmatpush2.bf16.msra.mxu0 %v5403
    %7618 = vmatprep.subr.bf16.mxu0 %v5396
    %7619 = vmatpush2.bf16.msra.mxu0 %v5395
    %7620 = vmatprep.subr.bf16.mxu0 %v5388
    %7621 = vmatpush2.bf16.msra.mxu0 %v5387
    %7622 = vmatprep.subr.bf16.mxu0 %v5380
    %7623 = vmatpush2.bf16.msra.mxu0 %v5379
    %7624 = vmatprep.subr.bf16.mxu0 %v5372
    %7625 = vmatpush2.bf16.msra.mxu0 %v5371
    %7626 = vmatprep.mubr.bf16.mxu0 %v1068
    %7627 = vmatmul.mubr.bf16.gmra.mxu0 %v1067
    %v7628 = vpop.f32.mrf.mxu0
    %v7629 = vadd.f32 %v7588, %v7628
    %v7630 = vpop.f32.mrf.mxu0
    %v7631 = vadd.f32 %v7590, %v7630
    %v7632 = vpop.f32.mrf.mxu0
    %v7633 = vpop.f32.mrf.mxu0
    %7634 = vdwg.mxu0
    %7635 = vmatprep.subr.bf16.mxu0 %v5492
    %7636 = vmatpush1.bf16.msra.mxu0 %v5491
    %7637 = vmatprep.subr.bf16.mxu0 %v5484
    %7638 = vmatpush1.bf16.msra.mxu0 %v5483
    %7639 = vmatprep.subr.bf16.mxu0 %v5476
    %7640 = vmatpush1.bf16.msra.mxu0 %v5475
    %7641 = vmatprep.subr.bf16.mxu0 %v5468
    %7642 = vmatpush1.bf16.msra.mxu0 %v5467
    %7643 = vmatprep.subr.bf16.mxu0 %v5460
    %7644 = vmatpush1.bf16.msra.mxu0 %v5459
    %7645 = vmatprep.subr.bf16.mxu0 %v5452
    %7646 = vmatpush1.bf16.msra.mxu0 %v5451
    %7647 = vmatprep.subr.bf16.mxu0 %v5444
    %7648 = vmatpush1.bf16.msra.mxu0 %v5443
    %7649 = vmatprep.subr.bf16.mxu0 %v5436
    %7650 = vmatpush1.bf16.msra.mxu0 %v5435
    %7651 = vmatprep.subr.bf16.mxu0 %v5556
    %7652 = vmatpush2.bf16.msra.mxu0 %v5555
    %7653 = vmatprep.subr.bf16.mxu0 %v5548
    %7654 = vmatpush2.bf16.msra.mxu0 %v5547
    %7655 = vmatprep.subr.bf16.mxu0 %v5540
    %7656 = vmatpush2.bf16.msra.mxu0 %v5539
    %7657 = vmatprep.subr.bf16.mxu0 %v5532
    %7658 = vmatpush2.bf16.msra.mxu0 %v5531
    %7659 = vmatprep.subr.bf16.mxu0 %v5524
    %7660 = vmatpush2.bf16.msra.mxu0 %v5523
    %7661 = vmatprep.subr.bf16.mxu0 %v5516
    %7662 = vmatpush2.bf16.msra.mxu0 %v5515
    %7663 = vmatprep.subr.bf16.mxu0 %v5508
    %7664 = vmatpush2.bf16.msra.mxu0 %v5507
    %7665 = vmatprep.subr.bf16.mxu0 %v5500
    %7666 = vmatpush2.bf16.msra.mxu0 %v5499
    %7667 = vmatprep.mubr.bf16.mxu0 %v1070
    %7668 = vmatmul.mubr.bf16.gmra.mxu0 %v1069
    %v7669 = vpop.f32.mrf.mxu0
    %v7670 = vadd.f32 %v7629, %v7669
    %v7671 = vpop.f32.mrf.mxu0
    %v7672 = vadd.f32 %v7631, %v7671
    %v7673 = vpop.f32.mrf.mxu0
    %v7674 = vpop.f32.mrf.mxu0
    %7675 = vdwg.mxu0
    %7676 = vmatprep.subr.bf16.mxu0 %v5620
    %7677 = vmatpush1.bf16.msra.mxu0 %v5619
    %7678 = vmatprep.subr.bf16.mxu0 %v5612
    %7679 = vmatpush1.bf16.msra.mxu0 %v5611
    %7680 = vmatprep.subr.bf16.mxu0 %v5604
    %7681 = vmatpush1.bf16.msra.mxu0 %v5603
    %7682 = vmatprep.subr.bf16.mxu0 %v5596
    %7683 = vmatpush1.bf16.msra.mxu0 %v5595
    %7684 = vmatprep.subr.bf16.mxu0 %v5588
    %7685 = vmatpush1.bf16.msra.mxu0 %v5587
    %7686 = vmatprep.subr.bf16.mxu0 %v5580
    %7687 = vmatpush1.bf16.msra.mxu0 %v5579
    %7688 = vmatprep.subr.bf16.mxu0 %v5572
    %7689 = vmatpush1.bf16.msra.mxu0 %v5571
    %7690 = vmatprep.subr.bf16.mxu0 %v5564
    %7691 = vmatpush1.bf16.msra.mxu0 %v5563
    %7692 = vmatprep.subr.bf16.mxu0 %v5684
    %7693 = vmatpush2.bf16.msra.mxu0 %v5683
    %7694 = vmatprep.subr.bf16.mxu0 %v5676
    %7695 = vmatpush2.bf16.msra.mxu0 %v5675
    %7696 = vmatprep.subr.bf16.mxu0 %v5668
    %7697 = vmatpush2.bf16.msra.mxu0 %v5667
    %7698 = vmatprep.subr.bf16.mxu0 %v5660
    %7699 = vmatpush2.bf16.msra.mxu0 %v5659
    %7700 = vmatprep.subr.bf16.mxu0 %v5652
    %7701 = vmatpush2.bf16.msra.mxu0 %v5651
    %7702 = vmatprep.subr.bf16.mxu0 %v5644
    %7703 = vmatpush2.bf16.msra.mxu0 %v5643
    %7704 = vmatprep.subr.bf16.mxu0 %v5636
    %7705 = vmatpush2.bf16.msra.mxu0 %v5635
    %7706 = vmatprep.subr.bf16.mxu0 %v5628
    %7707 = vmatpush2.bf16.msra.mxu0 %v5627
    %7708 = vmatprep.mubr.bf16.mxu0 %v1072
    %7709 = vmatmul.mubr.bf16.gmra.mxu0 %v1071
    %v7710 = vpop.f32.mrf.mxu0
    %v7711 = vadd.f32 %v7670, %v7710
    %v7712 = vpop.f32.mrf.mxu0
    %v7713 = vadd.f32 %v7672, %v7712
    %v7714 = vpop.f32.mrf.mxu0
    %v7715 = vpop.f32.mrf.mxu0
    %7716 = vdwg.mxu0
    %7717 = vmatprep.subr.bf16.mxu0 %v5748
    %7718 = vmatpush1.bf16.msra.mxu0 %v5747
    %7719 = vmatprep.subr.bf16.mxu0 %v5740
    %7720 = vmatpush1.bf16.msra.mxu0 %v5739
    %7721 = vmatprep.subr.bf16.mxu0 %v5732
    %7722 = vmatpush1.bf16.msra.mxu0 %v5731
    %7723 = vmatprep.subr.bf16.mxu0 %v5724
    %7724 = vmatpush1.bf16.msra.mxu0 %v5723
    %7725 = vmatprep.subr.bf16.mxu0 %v5716
    %7726 = vmatpush1.bf16.msra.mxu0 %v5715
    %7727 = vmatprep.subr.bf16.mxu0 %v5708
    %7728 = vmatpush1.bf16.msra.mxu0 %v5707
    %7729 = vmatprep.subr.bf16.mxu0 %v5700
    %7730 = vmatpush1.bf16.msra.mxu0 %v5699
    %7731 = vmatprep.subr.bf16.mxu0 %v5692
    %7732 = vmatpush1.bf16.msra.mxu0 %v5691
    %7733 = vmatprep.subr.bf16.mxu0 %v5812
    %7734 = vmatpush2.bf16.msra.mxu0 %v5811
    %7735 = vmatprep.subr.bf16.mxu0 %v5804
    %7736 = vmatpush2.bf16.msra.mxu0 %v5803
    %7737 = vmatprep.subr.bf16.mxu0 %v5796
    %7738 = vmatpush2.bf16.msra.mxu0 %v5795
    %7739 = vmatprep.subr.bf16.mxu0 %v5788
    %7740 = vmatpush2.bf16.msra.mxu0 %v5787
    %7741 = vmatprep.subr.bf16.mxu0 %v5780
    %7742 = vmatpush2.bf16.msra.mxu0 %v5779
    %7743 = vmatprep.subr.bf16.mxu0 %v5772
    %7744 = vmatpush2.bf16.msra.mxu0 %v5771
    %7745 = vmatprep.subr.bf16.mxu0 %v5764
    %7746 = vmatpush2.bf16.msra.mxu0 %v5763
    %7747 = vmatprep.subr.bf16.mxu0 %v5756
    %7748 = vmatpush2.bf16.msra.mxu0 %v5755
    %7749 = vmatprep.mubr.bf16.mxu0 %v1074
    %7750 = vmatmul.mubr.bf16.gmra.mxu0 %v1073
    %v7751 = vpop.f32.mrf.mxu0
    %v7752 = vadd.f32 %v7711, %v7751
    %v7753 = vpop.f32.mrf.mxu0
    %v7754 = vadd.f32 %v7713, %v7753
    %v7755 = vpop.f32.mrf.mxu0
    %v7756 = vpop.f32.mrf.mxu0
    %7757 = vdwg.mxu0
    %7758 = vmatprep.subr.bf16.mxu0 %v5876
    %7759 = vmatpush1.bf16.msra.mxu0 %v5875
    %7760 = vmatprep.subr.bf16.mxu0 %v5868
    %7761 = vmatpush1.bf16.msra.mxu0 %v5867
    %7762 = vmatprep.subr.bf16.mxu0 %v5860
    %7763 = vmatpush1.bf16.msra.mxu0 %v5859
    %7764 = vmatprep.subr.bf16.mxu0 %v5852
    %7765 = vmatpush1.bf16.msra.mxu0 %v5851
    %7766 = vmatprep.subr.bf16.mxu0 %v5844
    %7767 = vmatpush1.bf16.msra.mxu0 %v5843
    %7768 = vmatprep.subr.bf16.mxu0 %v5836
    %7769 = vmatpush1.bf16.msra.mxu0 %v5835
    %7770 = vmatprep.subr.bf16.mxu0 %v5828
    %7771 = vmatpush1.bf16.msra.mxu0 %v5827
    %7772 = vmatprep.subr.bf16.mxu0 %v5820
    %7773 = vmatpush1.bf16.msra.mxu0 %v5819
    %7774 = vmatprep.subr.bf16.mxu0 %v5940
    %7775 = vmatpush2.bf16.msra.mxu0 %v5939
    %7776 = vmatprep.subr.bf16.mxu0 %v5932
    %7777 = vmatpush2.bf16.msra.mxu0 %v5931
    %7778 = vmatprep.subr.bf16.mxu0 %v5924
    %7779 = vmatpush2.bf16.msra.mxu0 %v5923
    %7780 = vmatprep.subr.bf16.mxu0 %v5916
    %7781 = vmatpush2.bf16.msra.mxu0 %v5915
    %7782 = vmatprep.subr.bf16.mxu0 %v5908
    %7783 = vmatpush2.bf16.msra.mxu0 %v5907
    %7784 = vmatprep.subr.bf16.mxu0 %v5900
    %7785 = vmatpush2.bf16.msra.mxu0 %v5899
    %7786 = vmatprep.subr.bf16.mxu0 %v5892
    %7787 = vmatpush2.bf16.msra.mxu0 %v5891
    %7788 = vmatprep.subr.bf16.mxu0 %v5884
    %7789 = vmatpush2.bf16.msra.mxu0 %v5883
    %7790 = vmatprep.mubr.bf16.mxu0 %v1076
    %7791 = vmatmul.mubr.bf16.gmra.mxu0 %v1075
    %v7792 = vpop.f32.mrf.mxu0
    %v7793 = vadd.f32 %v7752, %v7792
    %v7794 = vpop.f32.mrf.mxu0
    %v7795 = vadd.f32 %v7754, %v7794
    %v7796 = vpop.f32.mrf.mxu0
    %v7797 = vpop.f32.mrf.mxu0
    %7798 = vdwg.mxu0
    %7799 = vmatprep.subr.bf16.mxu0 %v6004
    %7800 = vmatpush1.bf16.msra.mxu0 %v6003
    %7801 = vmatprep.subr.bf16.mxu0 %v5996
    %7802 = vmatpush1.bf16.msra.mxu0 %v5995
    %7803 = vmatprep.subr.bf16.mxu0 %v5988
    %7804 = vmatpush1.bf16.msra.mxu0 %v5987
    %7805 = vmatprep.subr.bf16.mxu0 %v5980
    %7806 = vmatpush1.bf16.msra.mxu0 %v5979
    %7807 = vmatprep.subr.bf16.mxu0 %v5972
    %7808 = vmatpush1.bf16.msra.mxu0 %v5971
    %7809 = vmatprep.subr.bf16.mxu0 %v5964
    %7810 = vmatpush1.bf16.msra.mxu0 %v5963
    %7811 = vmatprep.subr.bf16.mxu0 %v5956
    %7812 = vmatpush1.bf16.msra.mxu0 %v5955
    %7813 = vmatprep.subr.bf16.mxu0 %v5948
    %7814 = vmatpush1.bf16.msra.mxu0 %v5947
    %7815 = vmatprep.subr.bf16.mxu0 %v6068
    %7816 = vmatpush2.bf16.msra.mxu0 %v6067
    %7817 = vmatprep.subr.bf16.mxu0 %v6060
    %7818 = vmatpush2.bf16.msra.mxu0 %v6059
    %7819 = vmatprep.subr.bf16.mxu0 %v6052
    %7820 = vmatpush2.bf16.msra.mxu0 %v6051
    %7821 = vmatprep.subr.bf16.mxu0 %v6044
    %7822 = vmatpush2.bf16.msra.mxu0 %v6043
    %7823 = vmatprep.subr.bf16.mxu0 %v6036
    %7824 = vmatpush2.bf16.msra.mxu0 %v6035
    %7825 = vmatprep.subr.bf16.mxu0 %v6028
    %7826 = vmatpush2.bf16.msra.mxu0 %v6027
    %7827 = vmatprep.subr.bf16.mxu0 %v6020
    %7828 = vmatpush2.bf16.msra.mxu0 %v6019
    %7829 = vmatprep.subr.bf16.mxu0 %v6012
    %7830 = vmatpush2.bf16.msra.mxu0 %v6011
    %7831 = vmatprep.mubr.bf16.mxu0 %v1078
    %7832 = vmatmul.mubr.bf16.gmra.mxu0 %v1077
    %v7833 = vpop.f32.mrf.mxu0
    %v7834 = vadd.f32 %v7793, %v7833
    %v7835 = vpop.f32.mrf.mxu0
    %v7836 = vadd.f32 %v7795, %v7835
    %v7837 = vpop.f32.mrf.mxu0
    %v7838 = vpop.f32.mrf.mxu0
    %7839 = vdwg.mxu0
    %7840 = vmatprep.subr.bf16.mxu0 %v6132
    %7841 = vmatpush1.bf16.msra.mxu0 %v6131
    %7842 = vmatprep.subr.bf16.mxu0 %v6124
    %7843 = vmatpush1.bf16.msra.mxu0 %v6123
    %7844 = vmatprep.subr.bf16.mxu0 %v6116
    %7845 = vmatpush1.bf16.msra.mxu0 %v6115
    %7846 = vmatprep.subr.bf16.mxu0 %v6108
    %7847 = vmatpush1.bf16.msra.mxu0 %v6107
    %7848 = vmatprep.subr.bf16.mxu0 %v6100
    %7849 = vmatpush1.bf16.msra.mxu0 %v6099
    %7850 = vmatprep.subr.bf16.mxu0 %v6092
    %7851 = vmatpush1.bf16.msra.mxu0 %v6091
    %7852 = vmatprep.subr.bf16.mxu0 %v6084
    %7853 = vmatpush1.bf16.msra.mxu0 %v6083
    %7854 = vmatprep.subr.bf16.mxu0 %v6076
    %7855 = vmatpush1.bf16.msra.mxu0 %v6075
    %7856 = vmatprep.subr.bf16.mxu0 %v6196
    %7857 = vmatpush2.bf16.msra.mxu0 %v6195
    %7858 = vmatprep.subr.bf16.mxu0 %v6188
    %7859 = vmatpush2.bf16.msra.mxu0 %v6187
    %7860 = vmatprep.subr.bf16.mxu0 %v6180
    %7861 = vmatpush2.bf16.msra.mxu0 %v6179
    %7862 = vmatprep.subr.bf16.mxu0 %v6172
    %7863 = vmatpush2.bf16.msra.mxu0 %v6171
    %7864 = vmatprep.subr.bf16.mxu0 %v6164
    %7865 = vmatpush2.bf16.msra.mxu0 %v6163
    %7866 = vmatprep.subr.bf16.mxu0 %v6156
    %7867 = vmatpush2.bf16.msra.mxu0 %v6155
    %7868 = vmatprep.subr.bf16.mxu0 %v6148
    %7869 = vmatpush2.bf16.msra.mxu0 %v6147
    %7870 = vmatprep.subr.bf16.mxu0 %v6140
    %7871 = vmatpush2.bf16.msra.mxu0 %v6139
    %7872 = vmatprep.mubr.bf16.mxu0 %v1080
    %7873 = vmatmul.mubr.bf16.gmra.mxu0 %v1079
    %v7874 = vpop.f32.mrf.mxu0
    %v7875 = vadd.f32 %v7834, %v7874
    %v7876 = vpop.f32.mrf.mxu0
    %v7877 = vadd.f32 %v7836, %v7876
    %v7878 = vpop.f32.mrf.mxu0
    %v7879 = vpop.f32.mrf.mxu0
    %7880 = vdwg.mxu0
    %7881 = vmatprep.subr.bf16.mxu0 %v5238
    %7882 = vmatpush1.bf16.msra.mxu0 %v5237
    %7883 = vmatprep.subr.bf16.mxu0 %v5230
    %7884 = vmatpush1.bf16.msra.mxu0 %v5229
    %7885 = vmatprep.subr.bf16.mxu0 %v5222
    %7886 = vmatpush1.bf16.msra.mxu0 %v5221
    %7887 = vmatprep.subr.bf16.mxu0 %v5214
    %7888 = vmatpush1.bf16.msra.mxu0 %v5213
    %7889 = vmatprep.subr.bf16.mxu0 %v5206
    %7890 = vmatpush1.bf16.msra.mxu0 %v5205
    %7891 = vmatprep.subr.bf16.mxu0 %v5198
    %7892 = vmatpush1.bf16.msra.mxu0 %v5197
    %7893 = vmatprep.subr.bf16.mxu0 %v5190
    %7894 = vmatpush1.bf16.msra.mxu0 %v5189
    %7895 = vmatprep.subr.bf16.mxu0 %v5182
    %7896 = vmatpush1.bf16.msra.mxu0 %v5181
    %7897 = vmatprep.subr.bf16.mxu0 %v5302
    %7898 = vmatpush2.bf16.msra.mxu0 %v5301
    %7899 = vmatprep.subr.bf16.mxu0 %v5294
    %7900 = vmatpush2.bf16.msra.mxu0 %v5293
    %7901 = vmatprep.subr.bf16.mxu0 %v5286
    %7902 = vmatpush2.bf16.msra.mxu0 %v5285
    %7903 = vmatprep.subr.bf16.mxu0 %v5278
    %7904 = vmatpush2.bf16.msra.mxu0 %v5277
    %7905 = vmatprep.subr.bf16.mxu0 %v5270
    %7906 = vmatpush2.bf16.msra.mxu0 %v5269
    %7907 = vmatprep.subr.bf16.mxu0 %v5262
    %7908 = vmatpush2.bf16.msra.mxu0 %v5261
    %7909 = vmatprep.subr.bf16.mxu0 %v5254
    %7910 = vmatpush2.bf16.msra.mxu0 %v5253
    %7911 = vmatprep.subr.bf16.mxu0 %v5246
    %7912 = vmatpush2.bf16.msra.mxu0 %v5245
    %7913 = vmatprep.mubr.bf16.mxu0 %v1066
    %7914 = vmatmul.mubr.bf16.gmra.mxu0 %v1065
    %v7915 = vpop.f32.mrf.mxu0
    %v7916 = vadd.f32 0.0, %v7915
    %v7917 = vpop.f32.mrf.mxu0
    %v7918 = vadd.f32 0.0, %v7917
    %v7919 = vpop.f32.mrf.mxu0
    %v7920 = vpop.f32.mrf.mxu0
    %7921 = vdwg.mxu0
    %7922 = vmatprep.subr.bf16.mxu0 %v5366
    %7923 = vmatpush1.bf16.msra.mxu0 %v5365
    %7924 = vmatprep.subr.bf16.mxu0 %v5358
    %7925 = vmatpush1.bf16.msra.mxu0 %v5357
    %7926 = vmatprep.subr.bf16.mxu0 %v5350
    %7927 = vmatpush1.bf16.msra.mxu0 %v5349
    %7928 = vmatprep.subr.bf16.mxu0 %v5342
    %7929 = vmatpush1.bf16.msra.mxu0 %v5341
    %7930 = vmatprep.subr.bf16.mxu0 %v5334
    %7931 = vmatpush1.bf16.msra.mxu0 %v5333
    %7932 = vmatprep.subr.bf16.mxu0 %v5326
    %7933 = vmatpush1.bf16.msra.mxu0 %v5325
    %7934 = vmatprep.subr.bf16.mxu0 %v5318
    %7935 = vmatpush1.bf16.msra.mxu0 %v5317
    %7936 = vmatprep.subr.bf16.mxu0 %v5310
    %7937 = vmatpush1.bf16.msra.mxu0 %v5309
    %7938 = vmatprep.subr.bf16.mxu0 %v5430
    %7939 = vmatpush2.bf16.msra.mxu0 %v5429
    %7940 = vmatprep.subr.bf16.mxu0 %v5422
    %7941 = vmatpush2.bf16.msra.mxu0 %v5421
    %7942 = vmatprep.subr.bf16.mxu0 %v5414
    %7943 = vmatpush2.bf16.msra.mxu0 %v5413
    %7944 = vmatprep.subr.bf16.mxu0 %v5406
    %7945 = vmatpush2.bf16.msra.mxu0 %v5405
    %7946 = vmatprep.subr.bf16.mxu0 %v5398
    %7947 = vmatpush2.bf16.msra.mxu0 %v5397
    %7948 = vmatprep.subr.bf16.mxu0 %v5390
    %7949 = vmatpush2.bf16.msra.mxu0 %v5389
    %7950 = vmatprep.subr.bf16.mxu0 %v5382
    %7951 = vmatpush2.bf16.msra.mxu0 %v5381
    %7952 = vmatprep.subr.bf16.mxu0 %v5374
    %7953 = vmatpush2.bf16.msra.mxu0 %v5373
    %7954 = vmatprep.mubr.bf16.mxu0 %v1068
    %7955 = vmatmul.mubr.bf16.gmra.mxu0 %v1067
    %v7956 = vpop.f32.mrf.mxu0
    %v7957 = vadd.f32 %v7916, %v7956
    %v7958 = vpop.f32.mrf.mxu0
    %v7959 = vadd.f32 %v7918, %v7958
    %v7960 = vpop.f32.mrf.mxu0
    %v7961 = vpop.f32.mrf.mxu0
    %7962 = vdwg.mxu0
    %7963 = vmatprep.subr.bf16.mxu0 %v5494
    %7964 = vmatpush1.bf16.msra.mxu0 %v5493
    %7965 = vmatprep.subr.bf16.mxu0 %v5486
    %7966 = vmatpush1.bf16.msra.mxu0 %v5485
    %7967 = vmatprep.subr.bf16.mxu0 %v5478
    %7968 = vmatpush1.bf16.msra.mxu0 %v5477
    %7969 = vmatprep.subr.bf16.mxu0 %v5470
    %7970 = vmatpush1.bf16.msra.mxu0 %v5469
    %7971 = vmatprep.subr.bf16.mxu0 %v5462
    %7972 = vmatpush1.bf16.msra.mxu0 %v5461
    %7973 = vmatprep.subr.bf16.mxu0 %v5454
    %7974 = vmatpush1.bf16.msra.mxu0 %v5453
    %7975 = vmatprep.subr.bf16.mxu0 %v5446
    %7976 = vmatpush1.bf16.msra.mxu0 %v5445
    %7977 = vmatprep.subr.bf16.mxu0 %v5438
    %7978 = vmatpush1.bf16.msra.mxu0 %v5437
    %7979 = vmatprep.subr.bf16.mxu0 %v5558
    %7980 = vmatpush2.bf16.msra.mxu0 %v5557
    %7981 = vmatprep.subr.bf16.mxu0 %v5550
    %7982 = vmatpush2.bf16.msra.mxu0 %v5549
    %7983 = vmatprep.subr.bf16.mxu0 %v5542
    %7984 = vmatpush2.bf16.msra.mxu0 %v5541
    %7985 = vmatprep.subr.bf16.mxu0 %v5534
    %7986 = vmatpush2.bf16.msra.mxu0 %v5533
    %7987 = vmatprep.subr.bf16.mxu0 %v5526
    %7988 = vmatpush2.bf16.msra.mxu0 %v5525
    %7989 = vmatprep.subr.bf16.mxu0 %v5518
    %7990 = vmatpush2.bf16.msra.mxu0 %v5517
    %7991 = vmatprep.subr.bf16.mxu0 %v5510
    %7992 = vmatpush2.bf16.msra.mxu0 %v5509
    %7993 = vmatprep.subr.bf16.mxu0 %v5502
    %7994 = vmatpush2.bf16.msra.mxu0 %v5501
    %7995 = vmatprep.mubr.bf16.mxu0 %v1070
    %7996 = vmatmul.mubr.bf16.gmra.mxu0 %v1069
    %v7997 = vpop.f32.mrf.mxu0
    %v7998 = vadd.f32 %v7957, %v7997
    %v7999 = vpop.f32.mrf.mxu0
    %v8000 = vadd.f32 %v7959, %v7999
    %v8001 = vpop.f32.mrf.mxu0
    %v8002 = vpop.f32.mrf.mxu0
    %8003 = vdwg.mxu0
    %8004 = vmatprep.subr.bf16.mxu0 %v5622
    %8005 = vmatpush1.bf16.msra.mxu0 %v5621
    %8006 = vmatprep.subr.bf16.mxu0 %v5614
    %8007 = vmatpush1.bf16.msra.mxu0 %v5613
    %8008 = vmatprep.subr.bf16.mxu0 %v5606
    %8009 = vmatpush1.bf16.msra.mxu0 %v5605
    %8010 = vmatprep.subr.bf16.mxu0 %v5598
    %8011 = vmatpush1.bf16.msra.mxu0 %v5597
    %8012 = vmatprep.subr.bf16.mxu0 %v5590
    %8013 = vmatpush1.bf16.msra.mxu0 %v5589
    %8014 = vmatprep.subr.bf16.mxu0 %v5582
    %8015 = vmatpush1.bf16.msra.mxu0 %v5581
    %8016 = vmatprep.subr.bf16.mxu0 %v5574
    %8017 = vmatpush1.bf16.msra.mxu0 %v5573
    %8018 = vmatprep.subr.bf16.mxu0 %v5566
    %8019 = vmatpush1.bf16.msra.mxu0 %v5565
    %8020 = vmatprep.subr.bf16.mxu0 %v5686
    %8021 = vmatpush2.bf16.msra.mxu0 %v5685
    %8022 = vmatprep.subr.bf16.mxu0 %v5678
    %8023 = vmatpush2.bf16.msra.mxu0 %v5677
    %8024 = vmatprep.subr.bf16.mxu0 %v5670
    %8025 = vmatpush2.bf16.msra.mxu0 %v5669
    %8026 = vmatprep.subr.bf16.mxu0 %v5662
    %8027 = vmatpush2.bf16.msra.mxu0 %v5661
    %8028 = vmatprep.subr.bf16.mxu0 %v5654
    %8029 = vmatpush2.bf16.msra.mxu0 %v5653
    %8030 = vmatprep.subr.bf16.mxu0 %v5646
    %8031 = vmatpush2.bf16.msra.mxu0 %v5645
    %8032 = vmatprep.subr.bf16.mxu0 %v5638
    %8033 = vmatpush2.bf16.msra.mxu0 %v5637
    %8034 = vmatprep.subr.bf16.mxu0 %v5630
    %8035 = vmatpush2.bf16.msra.mxu0 %v5629
    %8036 = vmatprep.mubr.bf16.mxu0 %v1072
    %8037 = vmatmul.mubr.bf16.gmra.mxu0 %v1071
    %v8038 = vpop.f32.mrf.mxu0
    %v8039 = vadd.f32 %v7998, %v8038
    %v8040 = vpop.f32.mrf.mxu0
    %v8041 = vadd.f32 %v8000, %v8040
    %v8042 = vpop.f32.mrf.mxu0
    %v8043 = vpop.f32.mrf.mxu0
    %8044 = vdwg.mxu0
    %8045 = vmatprep.subr.bf16.mxu0 %v5750
    %8046 = vmatpush1.bf16.msra.mxu0 %v5749
    %8047 = vmatprep.subr.bf16.mxu0 %v5742
    %8048 = vmatpush1.bf16.msra.mxu0 %v5741
    %8049 = vmatprep.subr.bf16.mxu0 %v5734
    %8050 = vmatpush1.bf16.msra.mxu0 %v5733
    %8051 = vmatprep.subr.bf16.mxu0 %v5726
    %8052 = vmatpush1.bf16.msra.mxu0 %v5725
    %8053 = vmatprep.subr.bf16.mxu0 %v5718
    %8054 = vmatpush1.bf16.msra.mxu0 %v5717
    %8055 = vmatprep.subr.bf16.mxu0 %v5710
    %8056 = vmatpush1.bf16.msra.mxu0 %v5709
    %8057 = vmatprep.subr.bf16.mxu0 %v5702
    %8058 = vmatpush1.bf16.msra.mxu0 %v5701
    %8059 = vmatprep.subr.bf16.mxu0 %v5694
    %8060 = vmatpush1.bf16.msra.mxu0 %v5693
    %8061 = vmatprep.subr.bf16.mxu0 %v5814
    %8062 = vmatpush2.bf16.msra.mxu0 %v5813
    %8063 = vmatprep.subr.bf16.mxu0 %v5806
    %8064 = vmatpush2.bf16.msra.mxu0 %v5805
    %8065 = vmatprep.subr.bf16.mxu0 %v5798
    %8066 = vmatpush2.bf16.msra.mxu0 %v5797
    %8067 = vmatprep.subr.bf16.mxu0 %v5790
    %8068 = vmatpush2.bf16.msra.mxu0 %v5789
    %8069 = vmatprep.subr.bf16.mxu0 %v5782
    %8070 = vmatpush2.bf16.msra.mxu0 %v5781
    %8071 = vmatprep.subr.bf16.mxu0 %v5774
    %8072 = vmatpush2.bf16.msra.mxu0 %v5773
    %8073 = vmatprep.subr.bf16.mxu0 %v5766
    %8074 = vmatpush2.bf16.msra.mxu0 %v5765
    %8075 = vmatprep.subr.bf16.mxu0 %v5758
    %8076 = vmatpush2.bf16.msra.mxu0 %v5757
    %8077 = vmatprep.mubr.bf16.mxu0 %v1074
    %8078 = vmatmul.mubr.bf16.gmra.mxu0 %v1073
    %v8079 = vpop.f32.mrf.mxu0
    %v8080 = vadd.f32 %v8039, %v8079
    %v8081 = vpop.f32.mrf.mxu0
    %v8082 = vadd.f32 %v8041, %v8081
    %v8083 = vpop.f32.mrf.mxu0
    %v8084 = vpop.f32.mrf.mxu0
    %8085 = vdwg.mxu0
    %8086 = vmatprep.subr.bf16.mxu0 %v5878
    %8087 = vmatpush1.bf16.msra.mxu0 %v5877
    %8088 = vmatprep.subr.bf16.mxu0 %v5870
    %8089 = vmatpush1.bf16.msra.mxu0 %v5869
    %8090 = vmatprep.subr.bf16.mxu0 %v5862
    %8091 = vmatpush1.bf16.msra.mxu0 %v5861
    %8092 = vmatprep.subr.bf16.mxu0 %v5854
    %8093 = vmatpush1.bf16.msra.mxu0 %v5853
    %8094 = vmatprep.subr.bf16.mxu0 %v5846
    %8095 = vmatpush1.bf16.msra.mxu0 %v5845
    %8096 = vmatprep.subr.bf16.mxu0 %v5838
    %8097 = vmatpush1.bf16.msra.mxu0 %v5837
    %8098 = vmatprep.subr.bf16.mxu0 %v5830
    %8099 = vmatpush1.bf16.msra.mxu0 %v5829
    %8100 = vmatprep.subr.bf16.mxu0 %v5822
    %8101 = vmatpush1.bf16.msra.mxu0 %v5821
    %8102 = vmatprep.subr.bf16.mxu0 %v5942
    %8103 = vmatpush2.bf16.msra.mxu0 %v5941
    %8104 = vmatprep.subr.bf16.mxu0 %v5934
    %8105 = vmatpush2.bf16.msra.mxu0 %v5933
    %8106 = vmatprep.subr.bf16.mxu0 %v5926
    %8107 = vmatpush2.bf16.msra.mxu0 %v5925
    %8108 = vmatprep.subr.bf16.mxu0 %v5918
    %8109 = vmatpush2.bf16.msra.mxu0 %v5917
    %8110 = vmatprep.subr.bf16.mxu0 %v5910
    %8111 = vmatpush2.bf16.msra.mxu0 %v5909
    %8112 = vmatprep.subr.bf16.mxu0 %v5902
    %8113 = vmatpush2.bf16.msra.mxu0 %v5901
    %8114 = vmatprep.subr.bf16.mxu0 %v5894
    %8115 = vmatpush2.bf16.msra.mxu0 %v5893
    %8116 = vmatprep.subr.bf16.mxu0 %v5886
    %8117 = vmatpush2.bf16.msra.mxu0 %v5885
    %8118 = vmatprep.mubr.bf16.mxu0 %v1076
    %8119 = vmatmul.mubr.bf16.gmra.mxu0 %v1075
    %v8120 = vpop.f32.mrf.mxu0
    %v8121 = vadd.f32 %v8080, %v8120
    %v8122 = vpop.f32.mrf.mxu0
    %v8123 = vadd.f32 %v8082, %v8122
    %v8124 = vpop.f32.mrf.mxu0
    %v8125 = vpop.f32.mrf.mxu0
    %8126 = vdwg.mxu0
    %8127 = vmatprep.subr.bf16.mxu0 %v6006
    %8128 = vmatpush1.bf16.msra.mxu0 %v6005
    %8129 = vmatprep.subr.bf16.mxu0 %v5998
    %8130 = vmatpush1.bf16.msra.mxu0 %v5997
    %8131 = vmatprep.subr.bf16.mxu0 %v5990
    %8132 = vmatpush1.bf16.msra.mxu0 %v5989
    %8133 = vmatprep.subr.bf16.mxu0 %v5982
    %8134 = vmatpush1.bf16.msra.mxu0 %v5981
    %8135 = vmatprep.subr.bf16.mxu0 %v5974
    %8136 = vmatpush1.bf16.msra.mxu0 %v5973
    %8137 = vmatprep.subr.bf16.mxu0 %v5966
    %8138 = vmatpush1.bf16.msra.mxu0 %v5965
    %8139 = vmatprep.subr.bf16.mxu0 %v5958
    %8140 = vmatpush1.bf16.msra.mxu0 %v5957
    %8141 = vmatprep.subr.bf16.mxu0 %v5950
    %8142 = vmatpush1.bf16.msra.mxu0 %v5949
    %8143 = vmatprep.subr.bf16.mxu0 %v6070
    %8144 = vmatpush2.bf16.msra.mxu0 %v6069
    %8145 = vmatprep.subr.bf16.mxu0 %v6062
    %8146 = vmatpush2.bf16.msra.mxu0 %v6061
    %8147 = vmatprep.subr.bf16.mxu0 %v6054
    %8148 = vmatpush2.bf16.msra.mxu0 %v6053
    %8149 = vmatprep.subr.bf16.mxu0 %v6046
    %8150 = vmatpush2.bf16.msra.mxu0 %v6045
    %8151 = vmatprep.subr.bf16.mxu0 %v6038
    %8152 = vmatpush2.bf16.msra.mxu0 %v6037
    %8153 = vmatprep.subr.bf16.mxu0 %v6030
    %8154 = vmatpush2.bf16.msra.mxu0 %v6029
    %8155 = vmatprep.subr.bf16.mxu0 %v6022
    %8156 = vmatpush2.bf16.msra.mxu0 %v6021
    %8157 = vmatprep.subr.bf16.mxu0 %v6014
    %8158 = vmatpush2.bf16.msra.mxu0 %v6013
    %8159 = vmatprep.mubr.bf16.mxu0 %v1078
    %8160 = vmatmul.mubr.bf16.gmra.mxu0 %v1077
    %v8161 = vpop.f32.mrf.mxu0
    %v8162 = vadd.f32 %v8121, %v8161
    %v8163 = vpop.f32.mrf.mxu0
    %v8164 = vadd.f32 %v8123, %v8163
    %v8165 = vpop.f32.mrf.mxu0
    %v8166 = vpop.f32.mrf.mxu0
    %8167 = vdwg.mxu0
    %8168 = vmatprep.subr.bf16.mxu0 %v6134
    %8169 = vmatpush1.bf16.msra.mxu0 %v6133
    %8170 = vmatprep.subr.bf16.mxu0 %v6126
    %8171 = vmatpush1.bf16.msra.mxu0 %v6125
    %8172 = vmatprep.subr.bf16.mxu0 %v6118
    %8173 = vmatpush1.bf16.msra.mxu0 %v6117
    %8174 = vmatprep.subr.bf16.mxu0 %v6110
    %8175 = vmatpush1.bf16.msra.mxu0 %v6109
    %8176 = vmatprep.subr.bf16.mxu0 %v6102
    %8177 = vmatpush1.bf16.msra.mxu0 %v6101
    %8178 = vmatprep.subr.bf16.mxu0 %v6094
    %8179 = vmatpush1.bf16.msra.mxu0 %v6093
    %8180 = vmatprep.subr.bf16.mxu0 %v6086
    %8181 = vmatpush1.bf16.msra.mxu0 %v6085
    %8182 = vmatprep.subr.bf16.mxu0 %v6078
    %8183 = vmatpush1.bf16.msra.mxu0 %v6077
    %8184 = vmatprep.subr.bf16.mxu0 %v6198
    %8185 = vmatpush2.bf16.msra.mxu0 %v6197
    %8186 = vmatprep.subr.bf16.mxu0 %v6190
    %8187 = vmatpush2.bf16.msra.mxu0 %v6189
    %8188 = vmatprep.subr.bf16.mxu0 %v6182
    %8189 = vmatpush2.bf16.msra.mxu0 %v6181
    %8190 = vmatprep.subr.bf16.mxu0 %v6174
    %8191 = vmatpush2.bf16.msra.mxu0 %v6173
    %8192 = vmatprep.subr.bf16.mxu0 %v6166
    %8193 = vmatpush2.bf16.msra.mxu0 %v6165
    %8194 = vmatprep.subr.bf16.mxu0 %v6158
    %8195 = vmatpush2.bf16.msra.mxu0 %v6157
    %8196 = vmatprep.subr.bf16.mxu0 %v6150
    %8197 = vmatpush2.bf16.msra.mxu0 %v6149
    %8198 = vmatprep.subr.bf16.mxu0 %v6142
    %8199 = vmatpush2.bf16.msra.mxu0 %v6141
    %8200 = vmatprep.mubr.bf16.mxu0 %v1080
    %8201 = vmatmul.mubr.bf16.gmra.mxu0 %v1079
    %v8202 = vpop.f32.mrf.mxu0
    %v8203 = vadd.f32 %v8162, %v8202
    %v8204 = vpop.f32.mrf.mxu0
    %v8205 = vadd.f32 %v8164, %v8204
    %v8206 = vpop.f32.mrf.mxu0
    %v8207 = vpop.f32.mrf.mxu0
    %8208 = vdwg.mxu0
    %8209 = vmatprep.subr.bf16.mxu0 %v5240
    %8210 = vmatpush1.bf16.msra.mxu0 %v5239
    %8211 = vmatprep.subr.bf16.mxu0 %v5232
    %8212 = vmatpush1.bf16.msra.mxu0 %v5231
    %8213 = vmatprep.subr.bf16.mxu0 %v5224
    %8214 = vmatpush1.bf16.msra.mxu0 %v5223
    %8215 = vmatprep.subr.bf16.mxu0 %v5216
    %8216 = vmatpush1.bf16.msra.mxu0 %v5215
    %8217 = vmatprep.subr.bf16.mxu0 %v5208
    %8218 = vmatpush1.bf16.msra.mxu0 %v5207
    %8219 = vmatprep.subr.bf16.mxu0 %v5200
    %8220 = vmatpush1.bf16.msra.mxu0 %v5199
    %8221 = vmatprep.subr.bf16.mxu0 %v5192
    %8222 = vmatpush1.bf16.msra.mxu0 %v5191
    %8223 = vmatprep.subr.bf16.mxu0 %v5184
    %8224 = vmatpush1.bf16.msra.mxu0 %v5183
    %8225 = vmatprep.subr.bf16.mxu0 %v5304
    %8226 = vmatpush2.bf16.msra.mxu0 %v5303
    %8227 = vmatprep.subr.bf16.mxu0 %v5296
    %8228 = vmatpush2.bf16.msra.mxu0 %v5295
    %8229 = vmatprep.subr.bf16.mxu0 %v5288
    %8230 = vmatpush2.bf16.msra.mxu0 %v5287
    %8231 = vmatprep.subr.bf16.mxu0 %v5280
    %8232 = vmatpush2.bf16.msra.mxu0 %v5279
    %8233 = vmatprep.subr.bf16.mxu0 %v5272
    %8234 = vmatpush2.bf16.msra.mxu0 %v5271
    %8235 = vmatprep.subr.bf16.mxu0 %v5264
    %8236 = vmatpush2.bf16.msra.mxu0 %v5263
    %8237 = vmatprep.subr.bf16.mxu0 %v5256
    %8238 = vmatpush2.bf16.msra.mxu0 %v5255
    %8239 = vmatprep.subr.bf16.mxu0 %v5248
    %8240 = vmatpush2.bf16.msra.mxu0 %v5247
    %8241 = vmatprep.mubr.bf16.mxu0 %v1066
    %8242 = vmatmul.mubr.bf16.gmra.mxu0 %v1065
    %v8243 = vpop.f32.mrf.mxu0
    %v8244 = vadd.f32 0.0, %v8243
    %v8245 = vpop.f32.mrf.mxu0
    %v8246 = vadd.f32 0.0, %v8245
    %v8247 = vpop.f32.mrf.mxu0
    %v8248 = vpop.f32.mrf.mxu0
    %8249 = vdwg.mxu0
    %8250 = vmatprep.subr.bf16.mxu0 %v5368
    %8251 = vmatpush1.bf16.msra.mxu0 %v5367
    %8252 = vmatprep.subr.bf16.mxu0 %v5360
    %8253 = vmatpush1.bf16.msra.mxu0 %v5359
    %8254 = vmatprep.subr.bf16.mxu0 %v5352
    %8255 = vmatpush1.bf16.msra.mxu0 %v5351
    %8256 = vmatprep.subr.bf16.mxu0 %v5344
    %8257 = vmatpush1.bf16.msra.mxu0 %v5343
    %8258 = vmatprep.subr.bf16.mxu0 %v5336
    %8259 = vmatpush1.bf16.msra.mxu0 %v5335
    %8260 = vmatprep.subr.bf16.mxu0 %v5328
    %8261 = vmatpush1.bf16.msra.mxu0 %v5327
    %8262 = vmatprep.subr.bf16.mxu0 %v5320
    %8263 = vmatpush1.bf16.msra.mxu0 %v5319
    %8264 = vmatprep.subr.bf16.mxu0 %v5312
    %8265 = vmatpush1.bf16.msra.mxu0 %v5311
    %8266 = vmatprep.subr.bf16.mxu0 %v5432
    %8267 = vmatpush2.bf16.msra.mxu0 %v5431
    %8268 = vmatprep.subr.bf16.mxu0 %v5424
    %8269 = vmatpush2.bf16.msra.mxu0 %v5423
    %8270 = vmatprep.subr.bf16.mxu0 %v5416
    %8271 = vmatpush2.bf16.msra.mxu0 %v5415
    %8272 = vmatprep.subr.bf16.mxu0 %v5408
    %8273 = vmatpush2.bf16.msra.mxu0 %v5407
    %8274 = vmatprep.subr.bf16.mxu0 %v5400
    %8275 = vmatpush2.bf16.msra.mxu0 %v5399
    %8276 = vmatprep.subr.bf16.mxu0 %v5392
    %8277 = vmatpush2.bf16.msra.mxu0 %v5391
    %8278 = vmatprep.subr.bf16.mxu0 %v5384
    %8279 = vmatpush2.bf16.msra.mxu0 %v5383
    %8280 = vmatprep.subr.bf16.mxu0 %v5376
    %8281 = vmatpush2.bf16.msra.mxu0 %v5375
    %8282 = vmatprep.mubr.bf16.mxu0 %v1068
    %8283 = vmatmul.mubr.bf16.gmra.mxu0 %v1067
    %v8284 = vpop.f32.mrf.mxu0
    %v8285 = vadd.f32 %v8244, %v8284
    %v8286 = vpop.f32.mrf.mxu0
    %v8287 = vadd.f32 %v8246, %v8286
    %v8288 = vpop.f32.mrf.mxu0
    %v8289 = vpop.f32.mrf.mxu0
    %8290 = vdwg.mxu0
    %8291 = vmatprep.subr.bf16.mxu0 %v5496
    %8292 = vmatpush1.bf16.msra.mxu0 %v5495
    %8293 = vmatprep.subr.bf16.mxu0 %v5488
    %8294 = vmatpush1.bf16.msra.mxu0 %v5487
    %8295 = vmatprep.subr.bf16.mxu0 %v5480
    %8296 = vmatpush1.bf16.msra.mxu0 %v5479
    %8297 = vmatprep.subr.bf16.mxu0 %v5472
    %8298 = vmatpush1.bf16.msra.mxu0 %v5471
    %8299 = vmatprep.subr.bf16.mxu0 %v5464
    %8300 = vmatpush1.bf16.msra.mxu0 %v5463
    %8301 = vmatprep.subr.bf16.mxu0 %v5456
    %8302 = vmatpush1.bf16.msra.mxu0 %v5455
    %8303 = vmatprep.subr.bf16.mxu0 %v5448
    %8304 = vmatpush1.bf16.msra.mxu0 %v5447
    %8305 = vmatprep.subr.bf16.mxu0 %v5440
    %8306 = vmatpush1.bf16.msra.mxu0 %v5439
    %8307 = vmatprep.subr.bf16.mxu0 %v5560
    %8308 = vmatpush2.bf16.msra.mxu0 %v5559
    %8309 = vmatprep.subr.bf16.mxu0 %v5552
    %8310 = vmatpush2.bf16.msra.mxu0 %v5551
    %8311 = vmatprep.subr.bf16.mxu0 %v5544
    %8312 = vmatpush2.bf16.msra.mxu0 %v5543
    %8313 = vmatprep.subr.bf16.mxu0 %v5536
    %8314 = vmatpush2.bf16.msra.mxu0 %v5535
    %8315 = vmatprep.subr.bf16.mxu0 %v5528
    %8316 = vmatpush2.bf16.msra.mxu0 %v5527
    %8317 = vmatprep.subr.bf16.mxu0 %v5520
    %8318 = vmatpush2.bf16.msra.mxu0 %v5519
    %8319 = vmatprep.subr.bf16.mxu0 %v5512
    %8320 = vmatpush2.bf16.msra.mxu0 %v5511
    %8321 = vmatprep.subr.bf16.mxu0 %v5504
    %8322 = vmatpush2.bf16.msra.mxu0 %v5503
    %8323 = vmatprep.mubr.bf16.mxu0 %v1070
    %8324 = vmatmul.mubr.bf16.gmra.mxu0 %v1069
    %v8325 = vpop.f32.mrf.mxu0
    %v8326 = vadd.f32 %v8285, %v8325
    %v8327 = vpop.f32.mrf.mxu0
    %v8328 = vadd.f32 %v8287, %v8327
    %v8329 = vpop.f32.mrf.mxu0
    %v8330 = vpop.f32.mrf.mxu0
    %8331 = vdwg.mxu0
    %8332 = vmatprep.subr.bf16.mxu0 %v5624
    %8333 = vmatpush1.bf16.msra.mxu0 %v5623
    %8334 = vmatprep.subr.bf16.mxu0 %v5616
    %8335 = vmatpush1.bf16.msra.mxu0 %v5615
    %8336 = vmatprep.subr.bf16.mxu0 %v5608
    %8337 = vmatpush1.bf16.msra.mxu0 %v5607
    %8338 = vmatprep.subr.bf16.mxu0 %v5600
    %8339 = vmatpush1.bf16.msra.mxu0 %v5599
    %8340 = vmatprep.subr.bf16.mxu0 %v5592
    %8341 = vmatpush1.bf16.msra.mxu0 %v5591
    %8342 = vmatprep.subr.bf16.mxu0 %v5584
    %8343 = vmatpush1.bf16.msra.mxu0 %v5583
    %8344 = vmatprep.subr.bf16.mxu0 %v5576
    %8345 = vmatpush1.bf16.msra.mxu0 %v5575
    %8346 = vmatprep.subr.bf16.mxu0 %v5568
    %8347 = vmatpush1.bf16.msra.mxu0 %v5567
    %8348 = vmatprep.subr.bf16.mxu0 %v5688
    %8349 = vmatpush2.bf16.msra.mxu0 %v5687
    %8350 = vmatprep.subr.bf16.mxu0 %v5680
    %8351 = vmatpush2.bf16.msra.mxu0 %v5679
    %8352 = vmatprep.subr.bf16.mxu0 %v5672
    %8353 = vmatpush2.bf16.msra.mxu0 %v5671
    %8354 = vmatprep.subr.bf16.mxu0 %v5664
    %8355 = vmatpush2.bf16.msra.mxu0 %v5663
    %8356 = vmatprep.subr.bf16.mxu0 %v5656
    %8357 = vmatpush2.bf16.msra.mxu0 %v5655
    %8358 = vmatprep.subr.bf16.mxu0 %v5648
    %8359 = vmatpush2.bf16.msra.mxu0 %v5647
    %8360 = vmatprep.subr.bf16.mxu0 %v5640
    %8361 = vmatpush2.bf16.msra.mxu0 %v5639
    %8362 = vmatprep.subr.bf16.mxu0 %v5632
    %8363 = vmatpush2.bf16.msra.mxu0 %v5631
    %8364 = vmatprep.mubr.bf16.mxu0 %v1072
    %8365 = vmatmul.mubr.bf16.gmra.mxu0 %v1071
    %v8366 = vpop.f32.mrf.mxu0
    %v8367 = vadd.f32 %v8326, %v8366
    %v8368 = vpop.f32.mrf.mxu0
    %v8369 = vadd.f32 %v8328, %v8368
    %v8370 = vpop.f32.mrf.mxu0
    %v8371 = vpop.f32.mrf.mxu0
    %8372 = vdwg.mxu0
    %8373 = vmatprep.subr.bf16.mxu0 %v5752
    %8374 = vmatpush1.bf16.msra.mxu0 %v5751
    %8375 = vmatprep.subr.bf16.mxu0 %v5744
    %8376 = vmatpush1.bf16.msra.mxu0 %v5743
    %8377 = vmatprep.subr.bf16.mxu0 %v5736
    %8378 = vmatpush1.bf16.msra.mxu0 %v5735
    %8379 = vmatprep.subr.bf16.mxu0 %v5728
    %8380 = vmatpush1.bf16.msra.mxu0 %v5727
    %8381 = vmatprep.subr.bf16.mxu0 %v5720
    %8382 = vmatpush1.bf16.msra.mxu0 %v5719
    %8383 = vmatprep.subr.bf16.mxu0 %v5712
    %8384 = vmatpush1.bf16.msra.mxu0 %v5711
    %8385 = vmatprep.subr.bf16.mxu0 %v5704
    %8386 = vmatpush1.bf16.msra.mxu0 %v5703
    %8387 = vmatprep.subr.bf16.mxu0 %v5696
    %8388 = vmatpush1.bf16.msra.mxu0 %v5695
    %8389 = vmatprep.subr.bf16.mxu0 %v5816
    %8390 = vmatpush2.bf16.msra.mxu0 %v5815
    %8391 = vmatprep.subr.bf16.mxu0 %v5808
    %8392 = vmatpush2.bf16.msra.mxu0 %v5807
    %8393 = vmatprep.subr.bf16.mxu0 %v5800
    %8394 = vmatpush2.bf16.msra.mxu0 %v5799
    %8395 = vmatprep.subr.bf16.mxu0 %v5792
    %8396 = vmatpush2.bf16.msra.mxu0 %v5791
    %8397 = vmatprep.subr.bf16.mxu0 %v5784
    %8398 = vmatpush2.bf16.msra.mxu0 %v5783
    %8399 = vmatprep.subr.bf16.mxu0 %v5776
    %8400 = vmatpush2.bf16.msra.mxu0 %v5775
    %8401 = vmatprep.subr.bf16.mxu0 %v5768
    %8402 = vmatpush2.bf16.msra.mxu0 %v5767
    %8403 = vmatprep.subr.bf16.mxu0 %v5760
    %8404 = vmatpush2.bf16.msra.mxu0 %v5759
    %8405 = vmatprep.mubr.bf16.mxu0 %v1074
    %8406 = vmatmul.mubr.bf16.gmra.mxu0 %v1073
    %v8407 = vpop.f32.mrf.mxu0
    %v8408 = vadd.f32 %v8367, %v8407
    %v8409 = vpop.f32.mrf.mxu0
    %v8410 = vadd.f32 %v8369, %v8409
    %v8411 = vpop.f32.mrf.mxu0
    %v8412 = vpop.f32.mrf.mxu0
    %8413 = vdwg.mxu0
    %8414 = vmatprep.subr.bf16.mxu0 %v5880
    %8415 = vmatpush1.bf16.msra.mxu0 %v5879
    %8416 = vmatprep.subr.bf16.mxu0 %v5872
    %8417 = vmatpush1.bf16.msra.mxu0 %v5871
    %8418 = vmatprep.subr.bf16.mxu0 %v5864
    %8419 = vmatpush1.bf16.msra.mxu0 %v5863
    %8420 = vmatprep.subr.bf16.mxu0 %v5856
    %8421 = vmatpush1.bf16.msra.mxu0 %v5855
    %8422 = vmatprep.subr.bf16.mxu0 %v5848
    %8423 = vmatpush1.bf16.msra.mxu0 %v5847
    %8424 = vmatprep.subr.bf16.mxu0 %v5840
    %8425 = vmatpush1.bf16.msra.mxu0 %v5839
    %8426 = vmatprep.subr.bf16.mxu0 %v5832
    %8427 = vmatpush1.bf16.msra.mxu0 %v5831
    %8428 = vmatprep.subr.bf16.mxu0 %v5824
    %8429 = vmatpush1.bf16.msra.mxu0 %v5823
    %8430 = vmatprep.subr.bf16.mxu0 %v5944
    %8431 = vmatpush2.bf16.msra.mxu0 %v5943
    %8432 = vmatprep.subr.bf16.mxu0 %v5936
    %8433 = vmatpush2.bf16.msra.mxu0 %v5935
    %8434 = vmatprep.subr.bf16.mxu0 %v5928
    %8435 = vmatpush2.bf16.msra.mxu0 %v5927
    %8436 = vmatprep.subr.bf16.mxu0 %v5920
    %8437 = vmatpush2.bf16.msra.mxu0 %v5919
    %8438 = vmatprep.subr.bf16.mxu0 %v5912
    %8439 = vmatpush2.bf16.msra.mxu0 %v5911
    %8440 = vmatprep.subr.bf16.mxu0 %v5904
    %8441 = vmatpush2.bf16.msra.mxu0 %v5903
    %8442 = vmatprep.subr.bf16.mxu0 %v5896
    %8443 = vmatpush2.bf16.msra.mxu0 %v5895
    %8444 = vmatprep.subr.bf16.mxu0 %v5888
    %8445 = vmatpush2.bf16.msra.mxu0 %v5887
    %8446 = vmatprep.mubr.bf16.mxu0 %v1076
    %8447 = vmatmul.mubr.bf16.gmra.mxu0 %v1075
    %v8448 = vpop.f32.mrf.mxu0
    %v8449 = vadd.f32 %v8408, %v8448
    %v8450 = vpop.f32.mrf.mxu0
    %v8451 = vadd.f32 %v8410, %v8450
    %v8452 = vpop.f32.mrf.mxu0
    %v8453 = vpop.f32.mrf.mxu0
    %8454 = vdwg.mxu0
    %8455 = vmatprep.subr.bf16.mxu0 %v6008
    %8456 = vmatpush1.bf16.msra.mxu0 %v6007
    %8457 = vmatprep.subr.bf16.mxu0 %v6000
    %8458 = vmatpush1.bf16.msra.mxu0 %v5999
    %8459 = vmatprep.subr.bf16.mxu0 %v5992
    %8460 = vmatpush1.bf16.msra.mxu0 %v5991
    %8461 = vmatprep.subr.bf16.mxu0 %v5984
    %8462 = vmatpush1.bf16.msra.mxu0 %v5983
    %8463 = vmatprep.subr.bf16.mxu0 %v5976
    %8464 = vmatpush1.bf16.msra.mxu0 %v5975
    %8465 = vmatprep.subr.bf16.mxu0 %v5968
    %8466 = vmatpush1.bf16.msra.mxu0 %v5967
    %8467 = vmatprep.subr.bf16.mxu0 %v5960
    %8468 = vmatpush1.bf16.msra.mxu0 %v5959
    %8469 = vmatprep.subr.bf16.mxu0 %v5952
    %8470 = vmatpush1.bf16.msra.mxu0 %v5951
    %8471 = vmatprep.subr.bf16.mxu0 %v6072
    %8472 = vmatpush2.bf16.msra.mxu0 %v6071
    %8473 = vmatprep.subr.bf16.mxu0 %v6064
    %8474 = vmatpush2.bf16.msra.mxu0 %v6063
    %8475 = vmatprep.subr.bf16.mxu0 %v6056
    %8476 = vmatpush2.bf16.msra.mxu0 %v6055
    %8477 = vmatprep.subr.bf16.mxu0 %v6048
    %8478 = vmatpush2.bf16.msra.mxu0 %v6047
    %8479 = vmatprep.subr.bf16.mxu0 %v6040
    %8480 = vmatpush2.bf16.msra.mxu0 %v6039
    %8481 = vmatprep.subr.bf16.mxu0 %v6032
    %8482 = vmatpush2.bf16.msra.mxu0 %v6031
    %8483 = vmatprep.subr.bf16.mxu0 %v6024
    %8484 = vmatpush2.bf16.msra.mxu0 %v6023
    %8485 = vmatprep.subr.bf16.mxu0 %v6016
    %8486 = vmatpush2.bf16.msra.mxu0 %v6015
    %8487 = vmatprep.mubr.bf16.mxu0 %v1078
    %8488 = vmatmul.mubr.bf16.gmra.mxu0 %v1077
    %v8489 = vpop.f32.mrf.mxu0
    %v8490 = vadd.f32 %v8449, %v8489
    %v8491 = vpop.f32.mrf.mxu0
    %v8492 = vadd.f32 %v8451, %v8491
    %v8493 = vpop.f32.mrf.mxu0
    %v8494 = vpop.f32.mrf.mxu0
    %8495 = vdwg.mxu0
    %8496 = vmatprep.subr.bf16.mxu0 %v6136
    %8497 = vmatpush1.bf16.msra.mxu0 %v6135
    %8498 = vmatprep.subr.bf16.mxu0 %v6128
    %8499 = vmatpush1.bf16.msra.mxu0 %v6127
    %8500 = vmatprep.subr.bf16.mxu0 %v6120
    %8501 = vmatpush1.bf16.msra.mxu0 %v6119
    %8502 = vmatprep.subr.bf16.mxu0 %v6112
    %8503 = vmatpush1.bf16.msra.mxu0 %v6111
    %8504 = vmatprep.subr.bf16.mxu0 %v6104
    %8505 = vmatpush1.bf16.msra.mxu0 %v6103
    %8506 = vmatprep.subr.bf16.mxu0 %v6096
    %8507 = vmatpush1.bf16.msra.mxu0 %v6095
    %8508 = vmatprep.subr.bf16.mxu0 %v6088
    %8509 = vmatpush1.bf16.msra.mxu0 %v6087
    %8510 = vmatprep.subr.bf16.mxu0 %v6080
    %8511 = vmatpush1.bf16.msra.mxu0 %v6079
    %8512 = vmatprep.subr.bf16.mxu0 %v6200
    %8513 = vmatpush2.bf16.msra.mxu0 %v6199
    %8514 = vmatprep.subr.bf16.mxu0 %v6192
    %8515 = vmatpush2.bf16.msra.mxu0 %v6191
    %8516 = vmatprep.subr.bf16.mxu0 %v6184
    %8517 = vmatpush2.bf16.msra.mxu0 %v6183
    %8518 = vmatprep.subr.bf16.mxu0 %v6176
    %8519 = vmatpush2.bf16.msra.mxu0 %v6175
    %8520 = vmatprep.subr.bf16.mxu0 %v6168
    %8521 = vmatpush2.bf16.msra.mxu0 %v6167
    %8522 = vmatprep.subr.bf16.mxu0 %v6160
    %8523 = vmatpush2.bf16.msra.mxu0 %v6159
    %8524 = vmatprep.subr.bf16.mxu0 %v6152
    %8525 = vmatpush2.bf16.msra.mxu0 %v6151
    %8526 = vmatprep.subr.bf16.mxu0 %v6144
    %8527 = vmatpush2.bf16.msra.mxu0 %v6143
    %8528 = vmatprep.mubr.bf16.mxu0 %v1080
    %8529 = vmatmul.mubr.bf16.gmra.mxu0 %v1079
    %v8530 = vpop.f32.mrf.mxu0
    %v8531 = vadd.f32 %v8490, %v8530
    %v8532 = vpop.f32.mrf.mxu0
    %v8533 = vadd.f32 %v8492, %v8532
    %v8534 = vpop.f32.mrf.mxu0
    %v8535 = vpop.f32.mrf.mxu0
    %8536 = vdwg.mxu0
    %v8537 = vld [vmem:[#allocation6 + $0x20] sm:$0xff]
    %v8538 = vld [vmem:[#allocation6 + $0x28] sm:$0xff]
    %v8539 = vrot.slane %v7547, 4
    %v8540 = vadd.f32 %v7547, %v8539
    %v8541 = vrot.slane %v8540, 2
    %v8542 = vadd.f32 %v8540, %v8541
    %v8543 = vrot.slane %v8542, 1
    %v8544 = vadd.f32 %v8542, %v8543
    %v8545 = vrot.slane %v7549, 4
    %v8546 = vadd.f32 %v7549, %v8545
    %v8547 = vrot.slane %v8546, 2
    %v8548 = vadd.f32 %v8546, %v8547
    %v8549 = vrot.slane %v8548, 1
    %v8550 = vadd.f32 %v8548, %v8549
    %v8551 = vrot.slane %v7875, 4
    %v8552 = vadd.f32 %v7875, %v8551
    %v8553 = vrot.slane %v8552, 2
    %v8554 = vadd.f32 %v8552, %v8553
    %v8555 = vrot.slane %v8554, 1
    %v8556 = vadd.f32 %v8554, %v8555
    %v8557 = vrot.slane %v7877, 4
    %v8558 = vadd.f32 %v7877, %v8557
    %v8559 = vrot.slane %v8558, 2
    %v8560 = vadd.f32 %v8558, %v8559
    %v8561 = vrot.slane %v8560, 1
    %v8562 = vadd.f32 %v8560, %v8561
    %v8563 = vrot.slane %v8203, 4
    %v8564 = vadd.f32 %v8203, %v8563
    %v8565 = vrot.slane %v8564, 2
    %v8566 = vadd.f32 %v8564, %v8565
    %v8567 = vrot.slane %v8566, 1
    %v8568 = vadd.f32 %v8566, %v8567
    %v8569 = vrot.slane %v8205, 4
    %v8570 = vadd.f32 %v8205, %v8569
    %v8571 = vrot.slane %v8570, 2
    %v8572 = vadd.f32 %v8570, %v8571
    %v8573 = vrot.slane %v8572, 1
    %v8574 = vadd.f32 %v8572, %v8573
    %v8575 = vrot.slane %v8531, 4
    %v8576 = vadd.f32 %v8531, %v8575
    %v8577 = vrot.slane %v8576, 2
    %v8578 = vadd.f32 %v8576, %v8577
    %v8579 = vrot.slane %v8578, 1
    %v8580 = vadd.f32 %v8578, %v8579
    %v8581 = vrot.slane %v8533, 4
    %v8582 = vadd.f32 %v8533, %v8581
    %v8583 = vrot.slane %v8582, 2
    %v8584 = vadd.f32 %v8582, %v8583
    %v8585 = vrot.slane %v8584, 1
    %v8586 = vadd.f32 %v8584, %v8585
    %v8587 = vmul.f32 %v8544, %v640
    %v8588 = vmul.f32 %v8550, %v640
    %v8589 = vmul.f32 %v8556, %v640
    %v8590 = vmul.f32 %v8562, %v640
    %v8591 = vmul.f32 %v8568, %v640
    %v8592 = vmul.f32 %v8574, %v640
    %v8593 = vmul.f32 %v8580, %v640
    %v8594 = vmul.f32 %v8586, %v640
    %v8595 = vsub.f32 %v7547, %v8587
    %v8596 = vsub.f32 %v7549, %v8588
    %v8597 = vsub.f32 %v7875, %v8589
    %v8598 = vsub.f32 %v7877, %v8590
    %v8599 = vsub.f32 %v8203, %v8591
    %v8600 = vsub.f32 %v8205, %v8592
    %v8601 = vsub.f32 %v8531, %v8593
    %v8602 = vsub.f32 %v8533, %v8594
    %v8603 = vmul.f32 %v8595, %v8595
    %v8604 = vmul.f32 %v8596, %v8596
    %v8605 = vmul.f32 %v8597, %v8597
    %v8606 = vmul.f32 %v8598, %v8598
    %v8607 = vmul.f32 %v8599, %v8599
    %v8608 = vmul.f32 %v8600, %v8600
    %v8609 = vmul.f32 %v8601, %v8601
    %v8610 = vmul.f32 %v8602, %v8602
    %v8611 = vrot.slane %v8603, 4
    %v8612 = vadd.f32 %v8603, %v8611
    %v8613 = vrot.slane %v8612, 2
    %v8614 = vadd.f32 %v8612, %v8613
    %v8615 = vrot.slane %v8614, 1
    %v8616 = vadd.f32 %v8614, %v8615
    %v8617 = vrot.slane %v8604, 4
    %v8618 = vadd.f32 %v8604, %v8617
    %v8619 = vrot.slane %v8618, 2
    %v8620 = vadd.f32 %v8618, %v8619
    %v8621 = vrot.slane %v8620, 1
    %v8622 = vadd.f32 %v8620, %v8621
    %v8623 = vrot.slane %v8605, 4
    %v8624 = vadd.f32 %v8605, %v8623
    %v8625 = vrot.slane %v8624, 2
    %v8626 = vadd.f32 %v8624, %v8625
    %v8627 = vrot.slane %v8626, 1
    %v8628 = vadd.f32 %v8626, %v8627
    %v8629 = vrot.slane %v8606, 4
    %v8630 = vadd.f32 %v8606, %v8629
    %v8631 = vrot.slane %v8630, 2
    %v8632 = vadd.f32 %v8630, %v8631
    %v8633 = vrot.slane %v8632, 1
    %v8634 = vadd.f32 %v8632, %v8633
    %v8635 = vrot.slane %v8607, 4
    %v8636 = vadd.f32 %v8607, %v8635
    %v8637 = vrot.slane %v8636, 2
    %v8638 = vadd.f32 %v8636, %v8637
    %v8639 = vrot.slane %v8638, 1
    %v8640 = vadd.f32 %v8638, %v8639
    %v8641 = vrot.slane %v8608, 4
    %v8642 = vadd.f32 %v8608, %v8641
    %v8643 = vrot.slane %v8642, 2
    %v8644 = vadd.f32 %v8642, %v8643
    %v8645 = vrot.slane %v8644, 1
    %v8646 = vadd.f32 %v8644, %v8645
    %v8647 = vrot.slane %v8609, 4
    %v8648 = vadd.f32 %v8609, %v8647
    %v8649 = vrot.slane %v8648, 2
    %v8650 = vadd.f32 %v8648, %v8649
    %v8651 = vrot.slane %v8650, 1
    %v8652 = vadd.f32 %v8650, %v8651
    %v8653 = vrot.slane %v8610, 4
    %v8654 = vadd.f32 %v8610, %v8653
    %v8655 = vrot.slane %v8654, 2
    %v8656 = vadd.f32 %v8654, %v8655
    %v8657 = vrot.slane %v8656, 1
    %v8658 = vadd.f32 %v8656, %v8657
    %v8659 = vmul.f32 %v8616, %v640
    %v8660 = vmul.f32 %v8622, %v640
    %v8661 = vmul.f32 %v8628, %v640
    %v8662 = vmul.f32 %v8634, %v640
    %v8663 = vmul.f32 %v8640, %v640
    %v8664 = vmul.f32 %v8646, %v640
    %v8665 = vmul.f32 %v8652, %v640
    %v8666 = vmul.f32 %v8658, %v640
    %v8667 = vadd.f32 %v8659, 1e-05
    %v8668 = vadd.f32 %v8660, 1e-05
    %v8669 = vadd.f32 %v8661, 1e-05
    %v8670 = vadd.f32 %v8662, 1e-05
    %v8671 = vadd.f32 %v8663, 1e-05
    %v8672 = vadd.f32 %v8664, 1e-05
    %v8673 = vadd.f32 %v8665, 1e-05
    %v8674 = vadd.f32 %v8666, 1e-05
    %v8675 = vrsqrt.pop %v8667
    %v8676 = vrsqrt.pop %v8668
    %v8677 = vrsqrt.pop %v8669
    %v8678 = vrsqrt.pop %v8670
    %v8679 = vrsqrt.pop %v8671
    %v8680 = vrsqrt.pop %v8672
    %v8681 = vrsqrt.pop %v8673
    %v8682 = vrsqrt.pop %v8674
    %v8683 = vmul.f32 %v8595, %v8675
    %v8684 = vmul.f32 %v8596, %v8676
    %v8685 = vmul.f32 %v8597, %v8677
    %v8686 = vmul.f32 %v8598, %v8678
    %v8687 = vmul.f32 %v8599, %v8679
    %v8688 = vmul.f32 %v8600, %v8680
    %v8689 = vmul.f32 %v8601, %v8681
    %v8690 = vmul.f32 %v8602, %v8682
    %v8692 = vlaneseq
    %v8693 = vshrl.u32 %v8692, 7
    %v8694 = vsub.s32 0, %v8693
    %v8695 = vrot.slane %v8537, %v8694
    %v8696 = vlaneseq
    %v8697 = vshrl.u32 %v8696, 7
    %v8698 = vsub.s32 1, %v8697
    %v8699 = vrot.slane %v8537, %v8698
    %v8700 = vlaneseq
    %v8701 = vshrl.u32 %v8700, 7
    %v8702 = vsub.s32 2, %v8701
    %v8703 = vrot.slane %v8537, %v8702
    %v8704 = vlaneseq
    %v8705 = vshrl.u32 %v8704, 7
    %v8706 = vsub.s32 3, %v8705
    %v8707 = vrot.slane %v8537, %v8706
    %v8708 = vlaneseq
    %v8709 = vshrl.u32 %v8708, 7
    %v8710 = vsub.s32 4, %v8709
    %v8711 = vrot.slane %v8537, %v8710
    %v8712 = vlaneseq
    %v8713 = vshrl.u32 %v8712, 7
    %v8714 = vsub.s32 5, %v8713
    %v8715 = vrot.slane %v8537, %v8714
    %v8716 = vlaneseq
    %v8717 = vshrl.u32 %v8716, 7
    %v8718 = vsub.s32 6, %v8717
    %v8719 = vrot.slane %v8537, %v8718
    %v8720 = vlaneseq
    %v8721 = vshrl.u32 %v8720, 7
    %v8722 = vsub.s32 7, %v8721
    %v8723 = vrot.slane %v8537, %v8722
    %v8732 = vmul.f32 %v8683, %v8695
    %v8733 = vmul.f32 %v8684, %v8699
    %v8734 = vmul.f32 %v8685, %v8703
    %v8735 = vmul.f32 %v8686, %v8707
    %v8736 = vmul.f32 %v8687, %v8711
    %v8737 = vmul.f32 %v8688, %v8715
    %v8738 = vmul.f32 %v8689, %v8719
    %v8739 = vmul.f32 %v8690, %v8723
    %v8741 = vlaneseq
    %v8742 = vshrl.u32 %v8741, 7
    %v8743 = vsub.s32 0, %v8742
    %v8744 = vrot.slane %v8538, %v8743
    %v8745 = vlaneseq
    %v8746 = vshrl.u32 %v8745, 7
    %v8747 = vsub.s32 1, %v8746
    %v8748 = vrot.slane %v8538, %v8747
    %v8749 = vlaneseq
    %v8750 = vshrl.u32 %v8749, 7
    %v8751 = vsub.s32 2, %v8750
    %v8752 = vrot.slane %v8538, %v8751
    %v8753 = vlaneseq
    %v8754 = vshrl.u32 %v8753, 7
    %v8755 = vsub.s32 3, %v8754
    %v8756 = vrot.slane %v8538, %v8755
    %v8757 = vlaneseq
    %v8758 = vshrl.u32 %v8757, 7
    %v8759 = vsub.s32 4, %v8758
    %v8760 = vrot.slane %v8538, %v8759
    %v8761 = vlaneseq
    %v8762 = vshrl.u32 %v8761, 7
    %v8763 = vsub.s32 5, %v8762
    %v8764 = vrot.slane %v8538, %v8763
    %v8765 = vlaneseq
    %v8766 = vshrl.u32 %v8765, 7
    %v8767 = vsub.s32 6, %v8766
    %v8768 = vrot.slane %v8538, %v8767
    %v8769 = vlaneseq
    %v8770 = vshrl.u32 %v8769, 7
    %v8771 = vsub.s32 7, %v8770
    %v8772 = vrot.slane %v8538, %v8771
    %v8781 = vadd.f32 %v8732, %v8744
    %v8782 = vadd.f32 %v8733, %v8748
    %v8783 = vadd.f32 %v8734, %v8752
    %v8784 = vadd.f32 %v8735, %v8756
    %v8785 = vadd.f32 %v8736, %v8760
    %v8786 = vadd.f32 %v8737, %v8764
    %v8787 = vadd.f32 %v8738, %v8768
    %v8788 = vadd.f32 %v8739, %v8772
    %v8789 = vmax.f32 %v8781, 0.0
    %v8790 = vmax.f32 %v8782, 0.0
    %v8791 = vmax.f32 %v8783, 0.0
    %v8792 = vmax.f32 %v8784, 0.0
    %v8793 = vmax.f32 %v8785, 0.0
    %v8794 = vmax.f32 %v8786, 0.0
    %v8795 = vmax.f32 %v8787, 0.0
    %v8796 = vmax.f32 %v8788, 0.0
    %s8797 = smul.u32 4, 128
    %s8798 = smul.u32 %s8797, 4
    %s8799 = sshll.u32 %s8798, 4
    %8800 = dma.done %s54, %s8799
    %v8801 = vpack.c.bf16 %v8789, %v8789
    %v8802 = vpack.c.bf16 %v8790, %v8790
    %v8803 = vpack.c.bf16 %v8791, %v8791
    %v8804 = vpack.c.bf16 %v8792, %v8792
    %v8805 = vpack.c.bf16 %v8793, %v8793
    %v8806 = vpack.c.bf16 %v8794, %v8794
    %v8807 = vpack.c.bf16 %v8795, %v8795
    %v8808 = vpack.c.bf16 %v8796, %v8796
    %v8809 = vld [vmem:[#allocation3] sm:$0xff]
    %v8810 = vld [vmem:[#allocation3 + $0x8] sm:$0xff]
    %v8811 = vld [vmem:[#allocation3 + $0x10] sm:$0xff]
    %v8812 = vld [vmem:[#allocation3 + $0x18] sm:$0xff]
    %v8813 = vld [vmem:[#allocation3 + $0x20] sm:$0xff]
    %v8814 = vld [vmem:[#allocation3 + $0x28] sm:$0xff]
    %v8815 = vld [vmem:[#allocation3 + $0x30] sm:$0xff]
    %v8816 = vld [vmem:[#allocation3 + $0x38] sm:$0xff]
    %v8817 = vld [vmem:[#allocation3 + $0x40] sm:$0xff]
    %v8818 = vld [vmem:[#allocation3 + $0x48] sm:$0xff]
    %v8819 = vld [vmem:[#allocation3 + $0x50] sm:$0xff]
    %v8820 = vld [vmem:[#allocation3 + $0x58] sm:$0xff]
    %v8821 = vld [vmem:[#allocation3 + $0x60] sm:$0xff]
    %v8822 = vld [vmem:[#allocation3 + $0x68] sm:$0xff]
    %v8823 = vld [vmem:[#allocation3 + $0x70] sm:$0xff]
    %v8824 = vld [vmem:[#allocation3 + $0x78] sm:$0xff]
    %v8825 = vld [vmem:[#allocation3 + $0x80] sm:$0xff]
    %v8826 = vld [vmem:[#allocation3 + $0x88] sm:$0xff]
    %v8827 = vld [vmem:[#allocation3 + $0x90] sm:$0xff]
    %v8828 = vld [vmem:[#allocation3 + $0x98] sm:$0xff]
    %v8829 = vld [vmem:[#allocation3 + $0xa0] sm:$0xff]
    %v8830 = vld [vmem:[#allocation3 + $0xa8] sm:$0xff]
    %v8831 = vld [vmem:[#allocation3 + $0xb0] sm:$0xff]
    %v8832 = vld [vmem:[#allocation3 + $0xb8] sm:$0xff]
    %v8833 = vld [vmem:[#allocation3 + $0xc0] sm:$0xff]
    %v8834 = vld [vmem:[#allocation3 + $0xc8] sm:$0xff]
    %v8835 = vld [vmem:[#allocation3 + $0xd0] sm:$0xff]
    %v8836 = vld [vmem:[#allocation3 + $0xd8] sm:$0xff]
    %v8837 = vld [vmem:[#allocation3 + $0xe0] sm:$0xff]
    %v8838 = vld [vmem:[#allocation3 + $0xe8] sm:$0xff]
    %v8839 = vld [vmem:[#allocation3 + $0xf0] sm:$0xff]
    %v8840 = vld [vmem:[#allocation3 + $0xf8] sm:$0xff]
    %v8841 = vld [vmem:[#allocation3 + $0x100] sm:$0xff]
    %v8842 = vld [vmem:[#allocation3 + $0x108] sm:$0xff]
    %v8843 = vld [vmem:[#allocation3 + $0x110] sm:$0xff]
    %v8844 = vld [vmem:[#allocation3 + $0x118] sm:$0xff]
    %v8845 = vld [vmem:[#allocation3 + $0x120] sm:$0xff]
    %v8846 = vld [vmem:[#allocation3 + $0x128] sm:$0xff]
    %v8847 = vld [vmem:[#allocation3 + $0x130] sm:$0xff]
    %v8848 = vld [vmem:[#allocation3 + $0x138] sm:$0xff]
    %v8849 = vld [vmem:[#allocation3 + $0x140] sm:$0xff]
    %v8850 = vld [vmem:[#allocation3 + $0x148] sm:$0xff]
    %v8851 = vld [vmem:[#allocation3 + $0x150] sm:$0xff]
    %v8852 = vld [vmem:[#allocation3 + $0x158] sm:$0xff]
    %v8853 = vld [vmem:[#allocation3 + $0x160] sm:$0xff]
    %v8854 = vld [vmem:[#allocation3 + $0x168] sm:$0xff]
    %v8855 = vld [vmem:[#allocation3 + $0x170] sm:$0xff]
    %v8856 = vld [vmem:[#allocation3 + $0x178] sm:$0xff]
    %v8857 = vld [vmem:[#allocation3 + $0x180] sm:$0xff]
    %v8858 = vld [vmem:[#allocation3 + $0x188] sm:$0xff]
    %v8859 = vld [vmem:[#allocation3 + $0x190] sm:$0xff]
    %v8860 = vld [vmem:[#allocation3 + $0x198] sm:$0xff]
    %v8861 = vld [vmem:[#allocation3 + $0x1a0] sm:$0xff]
    %v8862 = vld [vmem:[#allocation3 + $0x1a8] sm:$0xff]
    %v8863 = vld [vmem:[#allocation3 + $0x1b0] sm:$0xff]
    %v8864 = vld [vmem:[#allocation3 + $0x1b8] sm:$0xff]
    %v8865 = vld [vmem:[#allocation3 + $0x1c0] sm:$0xff]
    %v8866 = vld [vmem:[#allocation3 + $0x1c8] sm:$0xff]
    %v8867 = vld [vmem:[#allocation3 + $0x1d0] sm:$0xff]
    %v8868 = vld [vmem:[#allocation3 + $0x1d8] sm:$0xff]
    %v8869 = vld [vmem:[#allocation3 + $0x1e0] sm:$0xff]
    %v8870 = vld [vmem:[#allocation3 + $0x1e8] sm:$0xff]
    %v8871 = vld [vmem:[#allocation3 + $0x1f0] sm:$0xff]
    %v8872 = vld [vmem:[#allocation3 + $0x1f8] sm:$0xff]
    %v8873 = vld [vmem:[#allocation3 + $0x200] sm:$0xff]
    %v8874 = vld [vmem:[#allocation3 + $0x208] sm:$0xff]
    %v8875 = vld [vmem:[#allocation3 + $0x210] sm:$0xff]
    %v8876 = vld [vmem:[#allocation3 + $0x218] sm:$0xff]
    %v8877 = vld [vmem:[#allocation3 + $0x220] sm:$0xff]
    %v8878 = vld [vmem:[#allocation3 + $0x228] sm:$0xff]
    %v8879 = vld [vmem:[#allocation3 + $0x230] sm:$0xff]
    %v8880 = vld [vmem:[#allocation3 + $0x238] sm:$0xff]
    %v8881 = vld [vmem:[#allocation3 + $0x240] sm:$0xff]
    %v8882 = vld [vmem:[#allocation3 + $0x248] sm:$0xff]
    %v8883 = vld [vmem:[#allocation3 + $0x250] sm:$0xff]
    %v8884 = vld [vmem:[#allocation3 + $0x258] sm:$0xff]
    %v8885 = vld [vmem:[#allocation3 + $0x260] sm:$0xff]
    %v8886 = vld [vmem:[#allocation3 + $0x268] sm:$0xff]
    %v8887 = vld [vmem:[#allocation3 + $0x270] sm:$0xff]
    %v8888 = vld [vmem:[#allocation3 + $0x278] sm:$0xff]
    %v8889 = vld [vmem:[#allocation3 + $0x280] sm:$0xff]
    %v8890 = vld [vmem:[#allocation3 + $0x288] sm:$0xff]
    %v8891 = vld [vmem:[#allocation3 + $0x290] sm:$0xff]
    %v8892 = vld [vmem:[#allocation3 + $0x298] sm:$0xff]
    %v8893 = vld [vmem:[#allocation3 + $0x2a0] sm:$0xff]
    %v8894 = vld [vmem:[#allocation3 + $0x2a8] sm:$0xff]
    %v8895 = vld [vmem:[#allocation3 + $0x2b0] sm:$0xff]
    %v8896 = vld [vmem:[#allocation3 + $0x2b8] sm:$0xff]
    %v8897 = vld [vmem:[#allocation3 + $0x2c0] sm:$0xff]
    %v8898 = vld [vmem:[#allocation3 + $0x2c8] sm:$0xff]
    %v8899 = vld [vmem:[#allocation3 + $0x2d0] sm:$0xff]
    %v8900 = vld [vmem:[#allocation3 + $0x2d8] sm:$0xff]
    %v8901 = vld [vmem:[#allocation3 + $0x2e0] sm:$0xff]
    %v8902 = vld [vmem:[#allocation3 + $0x2e8] sm:$0xff]
    %v8903 = vld [vmem:[#allocation3 + $0x2f0] sm:$0xff]
    %v8904 = vld [vmem:[#allocation3 + $0x2f8] sm:$0xff]
    %v8905 = vld [vmem:[#allocation3 + $0x300] sm:$0xff]
    %v8906 = vld [vmem:[#allocation3 + $0x308] sm:$0xff]
    %v8907 = vld [vmem:[#allocation3 + $0x310] sm:$0xff]
    %v8908 = vld [vmem:[#allocation3 + $0x318] sm:$0xff]
    %v8909 = vld [vmem:[#allocation3 + $0x320] sm:$0xff]
    %v8910 = vld [vmem:[#allocation3 + $0x328] sm:$0xff]
    %v8911 = vld [vmem:[#allocation3 + $0x330] sm:$0xff]
    %v8912 = vld [vmem:[#allocation3 + $0x338] sm:$0xff]
    %v8913 = vld [vmem:[#allocation3 + $0x340] sm:$0xff]
    %v8914 = vld [vmem:[#allocation3 + $0x348] sm:$0xff]
    %v8915 = vld [vmem:[#allocation3 + $0x350] sm:$0xff]
    %v8916 = vld [vmem:[#allocation3 + $0x358] sm:$0xff]
    %v8917 = vld [vmem:[#allocation3 + $0x360] sm:$0xff]
    %v8918 = vld [vmem:[#allocation3 + $0x368] sm:$0xff]
    %v8919 = vld [vmem:[#allocation3 + $0x370] sm:$0xff]
    %v8920 = vld [vmem:[#allocation3 + $0x378] sm:$0xff]
    %v8921 = vld [vmem:[#allocation3 + $0x380] sm:$0xff]
    %v8922 = vld [vmem:[#allocation3 + $0x388] sm:$0xff]
    %v8923 = vld [vmem:[#allocation3 + $0x390] sm:$0xff]
    %v8924 = vld [vmem:[#allocation3 + $0x398] sm:$0xff]
    %v8925 = vld [vmem:[#allocation3 + $0x3a0] sm:$0xff]
    %v8926 = vld [vmem:[#allocation3 + $0x3a8] sm:$0xff]
    %v8927 = vld [vmem:[#allocation3 + $0x3b0] sm:$0xff]
    %v8928 = vld [vmem:[#allocation3 + $0x3b8] sm:$0xff]
    %v8929 = vld [vmem:[#allocation3 + $0x3c0] sm:$0xff]
    %v8930 = vld [vmem:[#allocation3 + $0x3c8] sm:$0xff]
    %v8931 = vld [vmem:[#allocation3 + $0x3d0] sm:$0xff]
    %v8932 = vld [vmem:[#allocation3 + $0x3d8] sm:$0xff]
    %v8933 = vld [vmem:[#allocation3 + $0x3e0] sm:$0xff]
    %v8934 = vld [vmem:[#allocation3 + $0x3e8] sm:$0xff]
    %v8935 = vld [vmem:[#allocation3 + $0x3f0] sm:$0xff]
    %v8936 = vld [vmem:[#allocation3 + $0x3f8] sm:$0xff]
    %v8937 = vld [vmem:[#allocation3 + $0x400] sm:$0xff]
    %v8938 = vld [vmem:[#allocation3 + $0x408] sm:$0xff]
    %v8939 = vld [vmem:[#allocation3 + $0x410] sm:$0xff]
    %v8940 = vld [vmem:[#allocation3 + $0x418] sm:$0xff]
    %v8941 = vld [vmem:[#allocation3 + $0x420] sm:$0xff]
    %v8942 = vld [vmem:[#allocation3 + $0x428] sm:$0xff]
    %v8943 = vld [vmem:[#allocation3 + $0x430] sm:$0xff]
    %v8944 = vld [vmem:[#allocation3 + $0x438] sm:$0xff]
    %v8945 = vld [vmem:[#allocation3 + $0x440] sm:$0xff]
    %v8946 = vld [vmem:[#allocation3 + $0x448] sm:$0xff]
    %v8947 = vld [vmem:[#allocation3 + $0x450] sm:$0xff]
    %v8948 = vld [vmem:[#allocation3 + $0x458] sm:$0xff]
    %v8949 = vld [vmem:[#allocation3 + $0x460] sm:$0xff]
    %v8950 = vld [vmem:[#allocation3 + $0x468] sm:$0xff]
    %v8951 = vld [vmem:[#allocation3 + $0x470] sm:$0xff]
    %v8952 = vld [vmem:[#allocation3 + $0x478] sm:$0xff]
    %v8953 = vld [vmem:[#allocation3 + $0x480] sm:$0xff]
    %v8954 = vld [vmem:[#allocation3 + $0x488] sm:$0xff]
    %v8955 = vld [vmem:[#allocation3 + $0x490] sm:$0xff]
    %v8956 = vld [vmem:[#allocation3 + $0x498] sm:$0xff]
    %v8957 = vld [vmem:[#allocation3 + $0x4a0] sm:$0xff]
    %v8958 = vld [vmem:[#allocation3 + $0x4a8] sm:$0xff]
    %v8959 = vld [vmem:[#allocation3 + $0x4b0] sm:$0xff]
    %v8960 = vld [vmem:[#allocation3 + $0x4b8] sm:$0xff]
    %v8961 = vld [vmem:[#allocation3 + $0x4c0] sm:$0xff]
    %v8962 = vld [vmem:[#allocation3 + $0x4c8] sm:$0xff]
    %v8963 = vld [vmem:[#allocation3 + $0x4d0] sm:$0xff]
    %v8964 = vld [vmem:[#allocation3 + $0x4d8] sm:$0xff]
    %v8965 = vld [vmem:[#allocation3 + $0x4e0] sm:$0xff]
    %v8966 = vld [vmem:[#allocation3 + $0x4e8] sm:$0xff]
    %v8967 = vld [vmem:[#allocation3 + $0x4f0] sm:$0xff]
    %v8968 = vld [vmem:[#allocation3 + $0x4f8] sm:$0xff]
    %v8969 = vld [vmem:[#allocation3 + $0x500] sm:$0xff]
    %v8970 = vld [vmem:[#allocation3 + $0x508] sm:$0xff]
    %v8971 = vld [vmem:[#allocation3 + $0x510] sm:$0xff]
    %v8972 = vld [vmem:[#allocation3 + $0x518] sm:$0xff]
    %v8973 = vld [vmem:[#allocation3 + $0x520] sm:$0xff]
    %v8974 = vld [vmem:[#allocation3 + $0x528] sm:$0xff]
    %v8975 = vld [vmem:[#allocation3 + $0x530] sm:$0xff]
    %v8976 = vld [vmem:[#allocation3 + $0x538] sm:$0xff]
    %v8977 = vld [vmem:[#allocation3 + $0x540] sm:$0xff]
    %v8978 = vld [vmem:[#allocation3 + $0x548] sm:$0xff]
    %v8979 = vld [vmem:[#allocation3 + $0x550] sm:$0xff]
    %v8980 = vld [vmem:[#allocation3 + $0x558] sm:$0xff]
    %v8981 = vld [vmem:[#allocation3 + $0x560] sm:$0xff]
    %v8982 = vld [vmem:[#allocation3 + $0x568] sm:$0xff]
    %v8983 = vld [vmem:[#allocation3 + $0x570] sm:$0xff]
    %v8984 = vld [vmem:[#allocation3 + $0x578] sm:$0xff]
    %v8985 = vld [vmem:[#allocation3 + $0x580] sm:$0xff]
    %v8986 = vld [vmem:[#allocation3 + $0x588] sm:$0xff]
    %v8987 = vld [vmem:[#allocation3 + $0x590] sm:$0xff]
    %v8988 = vld [vmem:[#allocation3 + $0x598] sm:$0xff]
    %v8989 = vld [vmem:[#allocation3 + $0x5a0] sm:$0xff]
    %v8990 = vld [vmem:[#allocation3 + $0x5a8] sm:$0xff]
    %v8991 = vld [vmem:[#allocation3 + $0x5b0] sm:$0xff]
    %v8992 = vld [vmem:[#allocation3 + $0x5b8] sm:$0xff]
    %v8993 = vld [vmem:[#allocation3 + $0x5c0] sm:$0xff]
    %v8994 = vld [vmem:[#allocation3 + $0x5c8] sm:$0xff]
    %v8995 = vld [vmem:[#allocation3 + $0x5d0] sm:$0xff]
    %v8996 = vld [vmem:[#allocation3 + $0x5d8] sm:$0xff]
    %v8997 = vld [vmem:[#allocation3 + $0x5e0] sm:$0xff]
    %v8998 = vld [vmem:[#allocation3 + $0x5e8] sm:$0xff]
    %v8999 = vld [vmem:[#allocation3 + $0x5f0] sm:$0xff]
    %v9000 = vld [vmem:[#allocation3 + $0x5f8] sm:$0xff]
    %v9001 = vld [vmem:[#allocation3 + $0x600] sm:$0xff]
    %v9002 = vld [vmem:[#allocation3 + $0x608] sm:$0xff]
    %v9003 = vld [vmem:[#allocation3 + $0x610] sm:$0xff]
    %v9004 = vld [vmem:[#allocation3 + $0x618] sm:$0xff]
    %v9005 = vld [vmem:[#allocation3 + $0x620] sm:$0xff]
    %v9006 = vld [vmem:[#allocation3 + $0x628] sm:$0xff]
    %v9007 = vld [vmem:[#allocation3 + $0x630] sm:$0xff]
    %v9008 = vld [vmem:[#allocation3 + $0x638] sm:$0xff]
    %v9009 = vld [vmem:[#allocation3 + $0x640] sm:$0xff]
    %v9010 = vld [vmem:[#allocation3 + $0x648] sm:$0xff]
    %v9011 = vld [vmem:[#allocation3 + $0x650] sm:$0xff]
    %v9012 = vld [vmem:[#allocation3 + $0x658] sm:$0xff]
    %v9013 = vld [vmem:[#allocation3 + $0x660] sm:$0xff]
    %v9014 = vld [vmem:[#allocation3 + $0x668] sm:$0xff]
    %v9015 = vld [vmem:[#allocation3 + $0x670] sm:$0xff]
    %v9016 = vld [vmem:[#allocation3 + $0x678] sm:$0xff]
    %v9017 = vld [vmem:[#allocation3 + $0x680] sm:$0xff]
    %v9018 = vld [vmem:[#allocation3 + $0x688] sm:$0xff]
    %v9019 = vld [vmem:[#allocation3 + $0x690] sm:$0xff]
    %v9020 = vld [vmem:[#allocation3 + $0x698] sm:$0xff]
    %v9021 = vld [vmem:[#allocation3 + $0x6a0] sm:$0xff]
    %v9022 = vld [vmem:[#allocation3 + $0x6a8] sm:$0xff]
    %v9023 = vld [vmem:[#allocation3 + $0x6b0] sm:$0xff]
    %v9024 = vld [vmem:[#allocation3 + $0x6b8] sm:$0xff]
    %v9025 = vld [vmem:[#allocation3 + $0x6c0] sm:$0xff]
    %v9026 = vld [vmem:[#allocation3 + $0x6c8] sm:$0xff]
    %v9027 = vld [vmem:[#allocation3 + $0x6d0] sm:$0xff]
    %v9028 = vld [vmem:[#allocation3 + $0x6d8] sm:$0xff]
    %v9029 = vld [vmem:[#allocation3 + $0x6e0] sm:$0xff]
    %v9030 = vld [vmem:[#allocation3 + $0x6e8] sm:$0xff]
    %v9031 = vld [vmem:[#allocation3 + $0x6f0] sm:$0xff]
    %v9032 = vld [vmem:[#allocation3 + $0x6f8] sm:$0xff]
    %v9033 = vld [vmem:[#allocation3 + $0x700] sm:$0xff]
    %v9034 = vld [vmem:[#allocation3 + $0x708] sm:$0xff]
    %v9035 = vld [vmem:[#allocation3 + $0x710] sm:$0xff]
    %v9036 = vld [vmem:[#allocation3 + $0x718] sm:$0xff]
    %v9037 = vld [vmem:[#allocation3 + $0x720] sm:$0xff]
    %v9038 = vld [vmem:[#allocation3 + $0x728] sm:$0xff]
    %v9039 = vld [vmem:[#allocation3 + $0x730] sm:$0xff]
    %v9040 = vld [vmem:[#allocation3 + $0x738] sm:$0xff]
    %v9041 = vld [vmem:[#allocation3 + $0x740] sm:$0xff]
    %v9042 = vld [vmem:[#allocation3 + $0x748] sm:$0xff]
    %v9043 = vld [vmem:[#allocation3 + $0x750] sm:$0xff]
    %v9044 = vld [vmem:[#allocation3 + $0x758] sm:$0xff]
    %v9045 = vld [vmem:[#allocation3 + $0x760] sm:$0xff]
    %v9046 = vld [vmem:[#allocation3 + $0x768] sm:$0xff]
    %v9047 = vld [vmem:[#allocation3 + $0x770] sm:$0xff]
    %v9048 = vld [vmem:[#allocation3 + $0x778] sm:$0xff]
    %v9049 = vld [vmem:[#allocation3 + $0x780] sm:$0xff]
    %v9050 = vld [vmem:[#allocation3 + $0x788] sm:$0xff]
    %v9051 = vld [vmem:[#allocation3 + $0x790] sm:$0xff]
    %v9052 = vld [vmem:[#allocation3 + $0x798] sm:$0xff]
    %v9053 = vld [vmem:[#allocation3 + $0x7a0] sm:$0xff]
    %v9054 = vld [vmem:[#allocation3 + $0x7a8] sm:$0xff]
    %v9055 = vld [vmem:[#allocation3 + $0x7b0] sm:$0xff]
    %v9056 = vld [vmem:[#allocation3 + $0x7b8] sm:$0xff]
    %v9057 = vld [vmem:[#allocation3 + $0x7c0] sm:$0xff]
    %v9058 = vld [vmem:[#allocation3 + $0x7c8] sm:$0xff]
    %v9059 = vld [vmem:[#allocation3 + $0x7d0] sm:$0xff]
    %v9060 = vld [vmem:[#allocation3 + $0x7d8] sm:$0xff]
    %v9061 = vld [vmem:[#allocation3 + $0x7e0] sm:$0xff]
    %v9062 = vld [vmem:[#allocation3 + $0x7e8] sm:$0xff]
    %v9063 = vld [vmem:[#allocation3 + $0x7f0] sm:$0xff]
    %v9064 = vld [vmem:[#allocation3 + $0x7f8] sm:$0xff]
    %v9321 = vunpack.c.l.b16 %v8809
    %v9322 = vunpack.c.h.b16 %v8809
    %v9323 = vunpack.c.l.b16 %v8810
    %v9324 = vunpack.c.h.b16 %v8810
    %v9325 = vunpack.c.l.b16 %v8811
    %v9326 = vunpack.c.h.b16 %v8811
    %v9327 = vunpack.c.l.b16 %v8812
    %v9328 = vunpack.c.h.b16 %v8812
    %v9329 = vunpack.c.l.b16 %v8813
    %v9330 = vunpack.c.h.b16 %v8813
    %v9331 = vunpack.c.l.b16 %v8814
    %v9332 = vunpack.c.h.b16 %v8814
    %v9333 = vunpack.c.l.b16 %v8815
    %v9334 = vunpack.c.h.b16 %v8815
    %v9335 = vunpack.c.l.b16 %v8816
    %v9336 = vunpack.c.h.b16 %v8816
    %v9337 = vunpack.c.l.b16 %v8817
    %v9338 = vunpack.c.h.b16 %v8817
    %v9339 = vunpack.c.l.b16 %v8818
    %v9340 = vunpack.c.h.b16 %v8818
    %v9341 = vunpack.c.l.b16 %v8819
    %v9342 = vunpack.c.h.b16 %v8819
    %v9343 = vunpack.c.l.b16 %v8820
    %v9344 = vunpack.c.h.b16 %v8820
    %v9345 = vunpack.c.l.b16 %v8821
    %v9346 = vunpack.c.h.b16 %v8821
    %v9347 = vunpack.c.l.b16 %v8822
    %v9348 = vunpack.c.h.b16 %v8822
    %v9349 = vunpack.c.l.b16 %v8823
    %v9350 = vunpack.c.h.b16 %v8823
    %v9351 = vunpack.c.l.b16 %v8824
    %v9352 = vunpack.c.h.b16 %v8824
    %v9353 = vunpack.c.l.b16 %v8825
    %v9354 = vunpack.c.h.b16 %v8825
    %v9355 = vunpack.c.l.b16 %v8826
    %v9356 = vunpack.c.h.b16 %v8826
    %v9357 = vunpack.c.l.b16 %v8827
    %v9358 = vunpack.c.h.b16 %v8827
    %v9359 = vunpack.c.l.b16 %v8828
    %v9360 = vunpack.c.h.b16 %v8828
    %v9361 = vunpack.c.l.b16 %v8829
    %v9362 = vunpack.c.h.b16 %v8829
    %v9363 = vunpack.c.l.b16 %v8830
    %v9364 = vunpack.c.h.b16 %v8830
    %v9365 = vunpack.c.l.b16 %v8831
    %v9366 = vunpack.c.h.b16 %v8831
    %v9367 = vunpack.c.l.b16 %v8832
    %v9368 = vunpack.c.h.b16 %v8832
    %v9369 = vunpack.c.l.b16 %v8833
    %v9370 = vunpack.c.h.b16 %v8833
    %v9371 = vunpack.c.l.b16 %v8834
    %v9372 = vunpack.c.h.b16 %v8834
    %v9373 = vunpack.c.l.b16 %v8835
    %v9374 = vunpack.c.h.b16 %v8835
    %v9375 = vunpack.c.l.b16 %v8836
    %v9376 = vunpack.c.h.b16 %v8836
    %v9377 = vunpack.c.l.b16 %v8837
    %v9378 = vunpack.c.h.b16 %v8837
    %v9379 = vunpack.c.l.b16 %v8838
    %v9380 = vunpack.c.h.b16 %v8838
    %v9381 = vunpack.c.l.b16 %v8839
    %v9382 = vunpack.c.h.b16 %v8839
    %v9383 = vunpack.c.l.b16 %v8840
    %v9384 = vunpack.c.h.b16 %v8840
    %v9385 = vunpack.c.l.b16 %v8841
    %v9386 = vunpack.c.h.b16 %v8841
    %v9387 = vunpack.c.l.b16 %v8842
    %v9388 = vunpack.c.h.b16 %v8842
    %v9389 = vunpack.c.l.b16 %v8843
    %v9390 = vunpack.c.h.b16 %v8843
    %v9391 = vunpack.c.l.b16 %v8844
    %v9392 = vunpack.c.h.b16 %v8844
    %v9393 = vunpack.c.l.b16 %v8845
    %v9394 = vunpack.c.h.b16 %v8845
    %v9395 = vunpack.c.l.b16 %v8846
    %v9396 = vunpack.c.h.b16 %v8846
    %v9397 = vunpack.c.l.b16 %v8847
    %v9398 = vunpack.c.h.b16 %v8847
    %v9399 = vunpack.c.l.b16 %v8848
    %v9400 = vunpack.c.h.b16 %v8848
    %v9401 = vunpack.c.l.b16 %v8849
    %v9402 = vunpack.c.h.b16 %v8849
    %v9403 = vunpack.c.l.b16 %v8850
    %v9404 = vunpack.c.h.b16 %v8850
    %v9405 = vunpack.c.l.b16 %v8851
    %v9406 = vunpack.c.h.b16 %v8851
    %v9407 = vunpack.c.l.b16 %v8852
    %v9408 = vunpack.c.h.b16 %v8852
    %v9409 = vunpack.c.l.b16 %v8853
    %v9410 = vunpack.c.h.b16 %v8853
    %v9411 = vunpack.c.l.b16 %v8854
    %v9412 = vunpack.c.h.b16 %v8854
    %v9413 = vunpack.c.l.b16 %v8855
    %v9414 = vunpack.c.h.b16 %v8855
    %v9415 = vunpack.c.l.b16 %v8856
    %v9416 = vunpack.c.h.b16 %v8856
    %v9417 = vunpack.c.l.b16 %v8857
    %v9418 = vunpack.c.h.b16 %v8857
    %v9419 = vunpack.c.l.b16 %v8858
    %v9420 = vunpack.c.h.b16 %v8858
    %v9421 = vunpack.c.l.b16 %v8859
    %v9422 = vunpack.c.h.b16 %v8859
    %v9423 = vunpack.c.l.b16 %v8860
    %v9424 = vunpack.c.h.b16 %v8860
    %v9425 = vunpack.c.l.b16 %v8861
    %v9426 = vunpack.c.h.b16 %v8861
    %v9427 = vunpack.c.l.b16 %v8862
    %v9428 = vunpack.c.h.b16 %v8862
    %v9429 = vunpack.c.l.b16 %v8863
    %v9430 = vunpack.c.h.b16 %v8863
    %v9431 = vunpack.c.l.b16 %v8864
    %v9432 = vunpack.c.h.b16 %v8864
    %v9433 = vunpack.c.l.b16 %v8865
    %v9434 = vunpack.c.h.b16 %v8865
    %v9435 = vunpack.c.l.b16 %v8866
    %v9436 = vunpack.c.h.b16 %v8866
    %v9437 = vunpack.c.l.b16 %v8867
    %v9438 = vunpack.c.h.b16 %v8867
    %v9439 = vunpack.c.l.b16 %v8868
    %v9440 = vunpack.c.h.b16 %v8868
    %v9441 = vunpack.c.l.b16 %v8869
    %v9442 = vunpack.c.h.b16 %v8869
    %v9443 = vunpack.c.l.b16 %v8870
    %v9444 = vunpack.c.h.b16 %v8870
    %v9445 = vunpack.c.l.b16 %v8871
    %v9446 = vunpack.c.h.b16 %v8871
    %v9447 = vunpack.c.l.b16 %v8872
    %v9448 = vunpack.c.h.b16 %v8872
    %v9449 = vunpack.c.l.b16 %v8873
    %v9450 = vunpack.c.h.b16 %v8873
    %v9451 = vunpack.c.l.b16 %v8874
    %v9452 = vunpack.c.h.b16 %v8874
    %v9453 = vunpack.c.l.b16 %v8875
    %v9454 = vunpack.c.h.b16 %v8875
    %v9455 = vunpack.c.l.b16 %v8876
    %v9456 = vunpack.c.h.b16 %v8876
    %v9457 = vunpack.c.l.b16 %v8877
    %v9458 = vunpack.c.h.b16 %v8877
    %v9459 = vunpack.c.l.b16 %v8878
    %v9460 = vunpack.c.h.b16 %v8878
    %v9461 = vunpack.c.l.b16 %v8879
    %v9462 = vunpack.c.h.b16 %v8879
    %v9463 = vunpack.c.l.b16 %v8880
    %v9464 = vunpack.c.h.b16 %v8880
    %v9465 = vunpack.c.l.b16 %v8881
    %v9466 = vunpack.c.h.b16 %v8881
    %v9467 = vunpack.c.l.b16 %v8882
    %v9468 = vunpack.c.h.b16 %v8882
    %v9469 = vunpack.c.l.b16 %v8883
    %v9470 = vunpack.c.h.b16 %v8883
    %v9471 = vunpack.c.l.b16 %v8884
    %v9472 = vunpack.c.h.b16 %v8884
    %v9473 = vunpack.c.l.b16 %v8885
    %v9474 = vunpack.c.h.b16 %v8885
    %v9475 = vunpack.c.l.b16 %v8886
    %v9476 = vunpack.c.h.b16 %v8886
    %v9477 = vunpack.c.l.b16 %v8887
    %v9478 = vunpack.c.h.b16 %v8887
    %v9479 = vunpack.c.l.b16 %v8888
    %v9480 = vunpack.c.h.b16 %v8888
    %v9481 = vunpack.c.l.b16 %v8889
    %v9482 = vunpack.c.h.b16 %v8889
    %v9483 = vunpack.c.l.b16 %v8890
    %v9484 = vunpack.c.h.b16 %v8890
    %v9485 = vunpack.c.l.b16 %v8891
    %v9486 = vunpack.c.h.b16 %v8891
    %v9487 = vunpack.c.l.b16 %v8892
    %v9488 = vunpack.c.h.b16 %v8892
    %v9489 = vunpack.c.l.b16 %v8893
    %v9490 = vunpack.c.h.b16 %v8893
    %v9491 = vunpack.c.l.b16 %v8894
    %v9492 = vunpack.c.h.b16 %v8894
    %v9493 = vunpack.c.l.b16 %v8895
    %v9494 = vunpack.c.h.b16 %v8895
    %v9495 = vunpack.c.l.b16 %v8896
    %v9496 = vunpack.c.h.b16 %v8896
    %v9497 = vunpack.c.l.b16 %v8897
    %v9498 = vunpack.c.h.b16 %v8897
    %v9499 = vunpack.c.l.b16 %v8898
    %v9500 = vunpack.c.h.b16 %v8898
    %v9501 = vunpack.c.l.b16 %v8899
    %v9502 = vunpack.c.h.b16 %v8899
    %v9503 = vunpack.c.l.b16 %v8900
    %v9504 = vunpack.c.h.b16 %v8900
    %v9505 = vunpack.c.l.b16 %v8901
    %v9506 = vunpack.c.h.b16 %v8901
    %v9507 = vunpack.c.l.b16 %v8902
    %v9508 = vunpack.c.h.b16 %v8902
    %v9509 = vunpack.c.l.b16 %v8903
    %v9510 = vunpack.c.h.b16 %v8903
    %v9511 = vunpack.c.l.b16 %v8904
    %v9512 = vunpack.c.h.b16 %v8904
    %v9513 = vunpack.c.l.b16 %v8905
    %v9514 = vunpack.c.h.b16 %v8905
    %v9515 = vunpack.c.l.b16 %v8906
    %v9516 = vunpack.c.h.b16 %v8906
    %v9517 = vunpack.c.l.b16 %v8907
    %v9518 = vunpack.c.h.b16 %v8907
    %v9519 = vunpack.c.l.b16 %v8908
    %v9520 = vunpack.c.h.b16 %v8908
    %v9521 = vunpack.c.l.b16 %v8909
    %v9522 = vunpack.c.h.b16 %v8909
    %v9523 = vunpack.c.l.b16 %v8910
    %v9524 = vunpack.c.h.b16 %v8910
    %v9525 = vunpack.c.l.b16 %v8911
    %v9526 = vunpack.c.h.b16 %v8911
    %v9527 = vunpack.c.l.b16 %v8912
    %v9528 = vunpack.c.h.b16 %v8912
    %v9529 = vunpack.c.l.b16 %v8913
    %v9530 = vunpack.c.h.b16 %v8913
    %v9531 = vunpack.c.l.b16 %v8914
    %v9532 = vunpack.c.h.b16 %v8914
    %v9533 = vunpack.c.l.b16 %v8915
    %v9534 = vunpack.c.h.b16 %v8915
    %v9535 = vunpack.c.l.b16 %v8916
    %v9536 = vunpack.c.h.b16 %v8916
    %v9537 = vunpack.c.l.b16 %v8917
    %v9538 = vunpack.c.h.b16 %v8917
    %v9539 = vunpack.c.l.b16 %v8918
    %v9540 = vunpack.c.h.b16 %v8918
    %v9541 = vunpack.c.l.b16 %v8919
    %v9542 = vunpack.c.h.b16 %v8919
    %v9543 = vunpack.c.l.b16 %v8920
    %v9544 = vunpack.c.h.b16 %v8920
    %v9545 = vunpack.c.l.b16 %v8921
    %v9546 = vunpack.c.h.b16 %v8921
    %v9547 = vunpack.c.l.b16 %v8922
    %v9548 = vunpack.c.h.b16 %v8922
    %v9549 = vunpack.c.l.b16 %v8923
    %v9550 = vunpack.c.h.b16 %v8923
    %v9551 = vunpack.c.l.b16 %v8924
    %v9552 = vunpack.c.h.b16 %v8924
    %v9553 = vunpack.c.l.b16 %v8925
    %v9554 = vunpack.c.h.b16 %v8925
    %v9555 = vunpack.c.l.b16 %v8926
    %v9556 = vunpack.c.h.b16 %v8926
    %v9557 = vunpack.c.l.b16 %v8927
    %v9558 = vunpack.c.h.b16 %v8927
    %v9559 = vunpack.c.l.b16 %v8928
    %v9560 = vunpack.c.h.b16 %v8928
    %v9561 = vunpack.c.l.b16 %v8929
    %v9562 = vunpack.c.h.b16 %v8929
    %v9563 = vunpack.c.l.b16 %v8930
    %v9564 = vunpack.c.h.b16 %v8930
    %v9565 = vunpack.c.l.b16 %v8931
    %v9566 = vunpack.c.h.b16 %v8931
    %v9567 = vunpack.c.l.b16 %v8932
    %v9568 = vunpack.c.h.b16 %v8932
    %v9569 = vunpack.c.l.b16 %v8933
    %v9570 = vunpack.c.h.b16 %v8933
    %v9571 = vunpack.c.l.b16 %v8934
    %v9572 = vunpack.c.h.b16 %v8934
    %v9573 = vunpack.c.l.b16 %v8935
    %v9574 = vunpack.c.h.b16 %v8935
    %v9575 = vunpack.c.l.b16 %v8936
    %v9576 = vunpack.c.h.b16 %v8936
    %v9577 = vunpack.c.l.b16 %v8937
    %v9578 = vunpack.c.h.b16 %v8937
    %v9579 = vunpack.c.l.b16 %v8938
    %v9580 = vunpack.c.h.b16 %v8938
    %v9581 = vunpack.c.l.b16 %v8939
    %v9582 = vunpack.c.h.b16 %v8939
    %v9583 = vunpack.c.l.b16 %v8940
    %v9584 = vunpack.c.h.b16 %v8940
    %v9585 = vunpack.c.l.b16 %v8941
    %v9586 = vunpack.c.h.b16 %v8941
    %v9587 = vunpack.c.l.b16 %v8942
    %v9588 = vunpack.c.h.b16 %v8942
    %v9589 = vunpack.c.l.b16 %v8943
    %v9590 = vunpack.c.h.b16 %v8943
    %v9591 = vunpack.c.l.b16 %v8944
    %v9592 = vunpack.c.h.b16 %v8944
    %v9593 = vunpack.c.l.b16 %v8945
    %v9594 = vunpack.c.h.b16 %v8945
    %v9595 = vunpack.c.l.b16 %v8946
    %v9596 = vunpack.c.h.b16 %v8946
    %v9597 = vunpack.c.l.b16 %v8947
    %v9598 = vunpack.c.h.b16 %v8947
    %v9599 = vunpack.c.l.b16 %v8948
    %v9600 = vunpack.c.h.b16 %v8948
    %v9601 = vunpack.c.l.b16 %v8949
    %v9602 = vunpack.c.h.b16 %v8949
    %v9603 = vunpack.c.l.b16 %v8950
    %v9604 = vunpack.c.h.b16 %v8950
    %v9605 = vunpack.c.l.b16 %v8951
    %v9606 = vunpack.c.h.b16 %v8951
    %v9607 = vunpack.c.l.b16 %v8952
    %v9608 = vunpack.c.h.b16 %v8952
    %v9609 = vunpack.c.l.b16 %v8953
    %v9610 = vunpack.c.h.b16 %v8953
    %v9611 = vunpack.c.l.b16 %v8954
    %v9612 = vunpack.c.h.b16 %v8954
    %v9613 = vunpack.c.l.b16 %v8955
    %v9614 = vunpack.c.h.b16 %v8955
    %v9615 = vunpack.c.l.b16 %v8956
    %v9616 = vunpack.c.h.b16 %v8956
    %v9617 = vunpack.c.l.b16 %v8957
    %v9618 = vunpack.c.h.b16 %v8957
    %v9619 = vunpack.c.l.b16 %v8958
    %v9620 = vunpack.c.h.b16 %v8958
    %v9621 = vunpack.c.l.b16 %v8959
    %v9622 = vunpack.c.h.b16 %v8959
    %v9623 = vunpack.c.l.b16 %v8960
    %v9624 = vunpack.c.h.b16 %v8960
    %v9625 = vunpack.c.l.b16 %v8961
    %v9626 = vunpack.c.h.b16 %v8961
    %v9627 = vunpack.c.l.b16 %v8962
    %v9628 = vunpack.c.h.b16 %v8962
    %v9629 = vunpack.c.l.b16 %v8963
    %v9630 = vunpack.c.h.b16 %v8963
    %v9631 = vunpack.c.l.b16 %v8964
    %v9632 = vunpack.c.h.b16 %v8964
    %v9633 = vunpack.c.l.b16 %v8965
    %v9634 = vunpack.c.h.b16 %v8965
    %v9635 = vunpack.c.l.b16 %v8966
    %v9636 = vunpack.c.h.b16 %v8966
    %v9637 = vunpack.c.l.b16 %v8967
    %v9638 = vunpack.c.h.b16 %v8967
    %v9639 = vunpack.c.l.b16 %v8968
    %v9640 = vunpack.c.h.b16 %v8968
    %v9641 = vunpack.c.l.b16 %v8969
    %v9642 = vunpack.c.h.b16 %v8969
    %v9643 = vunpack.c.l.b16 %v8970
    %v9644 = vunpack.c.h.b16 %v8970
    %v9645 = vunpack.c.l.b16 %v8971
    %v9646 = vunpack.c.h.b16 %v8971
    %v9647 = vunpack.c.l.b16 %v8972
    %v9648 = vunpack.c.h.b16 %v8972
    %v9649 = vunpack.c.l.b16 %v8973
    %v9650 = vunpack.c.h.b16 %v8973
    %v9651 = vunpack.c.l.b16 %v8974
    %v9652 = vunpack.c.h.b16 %v8974
    %v9653 = vunpack.c.l.b16 %v8975
    %v9654 = vunpack.c.h.b16 %v8975
    %v9655 = vunpack.c.l.b16 %v8976
    %v9656 = vunpack.c.h.b16 %v8976
    %v9657 = vunpack.c.l.b16 %v8977
    %v9658 = vunpack.c.h.b16 %v8977
    %v9659 = vunpack.c.l.b16 %v8978
    %v9660 = vunpack.c.h.b16 %v8978
    %v9661 = vunpack.c.l.b16 %v8979
    %v9662 = vunpack.c.h.b16 %v8979
    %v9663 = vunpack.c.l.b16 %v8980
    %v9664 = vunpack.c.h.b16 %v8980
    %v9665 = vunpack.c.l.b16 %v8981
    %v9666 = vunpack.c.h.b16 %v8981
    %v9667 = vunpack.c.l.b16 %v8982
    %v9668 = vunpack.c.h.b16 %v8982
    %v9669 = vunpack.c.l.b16 %v8983
    %v9670 = vunpack.c.h.b16 %v8983
    %v9671 = vunpack.c.l.b16 %v8984
    %v9672 = vunpack.c.h.b16 %v8984
    %v9673 = vunpack.c.l.b16 %v8985
    %v9674 = vunpack.c.h.b16 %v8985
    %v9675 = vunpack.c.l.b16 %v8986
    %v9676 = vunpack.c.h.b16 %v8986
    %v9677 = vunpack.c.l.b16 %v8987
    %v9678 = vunpack.c.h.b16 %v8987
    %v9679 = vunpack.c.l.b16 %v8988
    %v9680 = vunpack.c.h.b16 %v8988
    %v9681 = vunpack.c.l.b16 %v8989
    %v9682 = vunpack.c.h.b16 %v8989
    %v9683 = vunpack.c.l.b16 %v8990
    %v9684 = vunpack.c.h.b16 %v8990
    %v9685 = vunpack.c.l.b16 %v8991
    %v9686 = vunpack.c.h.b16 %v8991
    %v9687 = vunpack.c.l.b16 %v8992
    %v9688 = vunpack.c.h.b16 %v8992
    %v9689 = vunpack.c.l.b16 %v8993
    %v9690 = vunpack.c.h.b16 %v8993
    %v9691 = vunpack.c.l.b16 %v8994
    %v9692 = vunpack.c.h.b16 %v8994
    %v9693 = vunpack.c.l.b16 %v8995
    %v9694 = vunpack.c.h.b16 %v8995
    %v9695 = vunpack.c.l.b16 %v8996
    %v9696 = vunpack.c.h.b16 %v8996
    %v9697 = vunpack.c.l.b16 %v8997
    %v9698 = vunpack.c.h.b16 %v8997
    %v9699 = vunpack.c.l.b16 %v8998
    %v9700 = vunpack.c.h.b16 %v8998
    %v9701 = vunpack.c.l.b16 %v8999
    %v9702 = vunpack.c.h.b16 %v8999
    %v9703 = vunpack.c.l.b16 %v9000
    %v9704 = vunpack.c.h.b16 %v9000
    %v9705 = vunpack.c.l.b16 %v9001
    %v9706 = vunpack.c.h.b16 %v9001
    %v9707 = vunpack.c.l.b16 %v9002
    %v9708 = vunpack.c.h.b16 %v9002
    %v9709 = vunpack.c.l.b16 %v9003
    %v9710 = vunpack.c.h.b16 %v9003
    %v9711 = vunpack.c.l.b16 %v9004
    %v9712 = vunpack.c.h.b16 %v9004
    %v9713 = vunpack.c.l.b16 %v9005
    %v9714 = vunpack.c.h.b16 %v9005
    %v9715 = vunpack.c.l.b16 %v9006
    %v9716 = vunpack.c.h.b16 %v9006
    %v9717 = vunpack.c.l.b16 %v9007
    %v9718 = vunpack.c.h.b16 %v9007
    %v9719 = vunpack.c.l.b16 %v9008
    %v9720 = vunpack.c.h.b16 %v9008
    %v9721 = vunpack.c.l.b16 %v9009
    %v9722 = vunpack.c.h.b16 %v9009
    %v9723 = vunpack.c.l.b16 %v9010
    %v9724 = vunpack.c.h.b16 %v9010
    %v9725 = vunpack.c.l.b16 %v9011
    %v9726 = vunpack.c.h.b16 %v9011
    %v9727 = vunpack.c.l.b16 %v9012
    %v9728 = vunpack.c.h.b16 %v9012
    %v9729 = vunpack.c.l.b16 %v9013
    %v9730 = vunpack.c.h.b16 %v9013
    %v9731 = vunpack.c.l.b16 %v9014
    %v9732 = vunpack.c.h.b16 %v9014
    %v9733 = vunpack.c.l.b16 %v9015
    %v9734 = vunpack.c.h.b16 %v9015
    %v9735 = vunpack.c.l.b16 %v9016
    %v9736 = vunpack.c.h.b16 %v9016
    %v9737 = vunpack.c.l.b16 %v9017
    %v9738 = vunpack.c.h.b16 %v9017
    %v9739 = vunpack.c.l.b16 %v9018
    %v9740 = vunpack.c.h.b16 %v9018
    %v9741 = vunpack.c.l.b16 %v9019
    %v9742 = vunpack.c.h.b16 %v9019
    %v9743 = vunpack.c.l.b16 %v9020
    %v9744 = vunpack.c.h.b16 %v9020
    %v9745 = vunpack.c.l.b16 %v9021
    %v9746 = vunpack.c.h.b16 %v9021
    %v9747 = vunpack.c.l.b16 %v9022
    %v9748 = vunpack.c.h.b16 %v9022
    %v9749 = vunpack.c.l.b16 %v9023
    %v9750 = vunpack.c.h.b16 %v9023
    %v9751 = vunpack.c.l.b16 %v9024
    %v9752 = vunpack.c.h.b16 %v9024
    %v9753 = vunpack.c.l.b16 %v9025
    %v9754 = vunpack.c.h.b16 %v9025
    %v9755 = vunpack.c.l.b16 %v9026
    %v9756 = vunpack.c.h.b16 %v9026
    %v9757 = vunpack.c.l.b16 %v9027
    %v9758 = vunpack.c.h.b16 %v9027
    %v9759 = vunpack.c.l.b16 %v9028
    %v9760 = vunpack.c.h.b16 %v9028
    %v9761 = vunpack.c.l.b16 %v9029
    %v9762 = vunpack.c.h.b16 %v9029
    %v9763 = vunpack.c.l.b16 %v9030
    %v9764 = vunpack.c.h.b16 %v9030
    %v9765 = vunpack.c.l.b16 %v9031
    %v9766 = vunpack.c.h.b16 %v9031
    %v9767 = vunpack.c.l.b16 %v9032
    %v9768 = vunpack.c.h.b16 %v9032
    %v9769 = vunpack.c.l.b16 %v9033
    %v9770 = vunpack.c.h.b16 %v9033
    %v9771 = vunpack.c.l.b16 %v9034
    %v9772 = vunpack.c.h.b16 %v9034
    %v9773 = vunpack.c.l.b16 %v9035
    %v9774 = vunpack.c.h.b16 %v9035
    %v9775 = vunpack.c.l.b16 %v9036
    %v9776 = vunpack.c.h.b16 %v9036
    %v9777 = vunpack.c.l.b16 %v9037
    %v9778 = vunpack.c.h.b16 %v9037
    %v9779 = vunpack.c.l.b16 %v9038
    %v9780 = vunpack.c.h.b16 %v9038
    %v9781 = vunpack.c.l.b16 %v9039
    %v9782 = vunpack.c.h.b16 %v9039
    %v9783 = vunpack.c.l.b16 %v9040
    %v9784 = vunpack.c.h.b16 %v9040
    %v9785 = vunpack.c.l.b16 %v9041
    %v9786 = vunpack.c.h.b16 %v9041
    %v9787 = vunpack.c.l.b16 %v9042
    %v9788 = vunpack.c.h.b16 %v9042
    %v9789 = vunpack.c.l.b16 %v9043
    %v9790 = vunpack.c.h.b16 %v9043
    %v9791 = vunpack.c.l.b16 %v9044
    %v9792 = vunpack.c.h.b16 %v9044
    %v9793 = vunpack.c.l.b16 %v9045
    %v9794 = vunpack.c.h.b16 %v9045
    %v9795 = vunpack.c.l.b16 %v9046
    %v9796 = vunpack.c.h.b16 %v9046
    %v9797 = vunpack.c.l.b16 %v9047
    %v9798 = vunpack.c.h.b16 %v9047
    %v9799 = vunpack.c.l.b16 %v9048
    %v9800 = vunpack.c.h.b16 %v9048
    %v9801 = vunpack.c.l.b16 %v9049
    %v9802 = vunpack.c.h.b16 %v9049
    %v9803 = vunpack.c.l.b16 %v9050
    %v9804 = vunpack.c.h.b16 %v9050
    %v9805 = vunpack.c.l.b16 %v9051
    %v9806 = vunpack.c.h.b16 %v9051
    %v9807 = vunpack.c.l.b16 %v9052
    %v9808 = vunpack.c.h.b16 %v9052
    %v9809 = vunpack.c.l.b16 %v9053
    %v9810 = vunpack.c.h.b16 %v9053
    %v9811 = vunpack.c.l.b16 %v9054
    %v9812 = vunpack.c.h.b16 %v9054
    %v9813 = vunpack.c.l.b16 %v9055
    %v9814 = vunpack.c.h.b16 %v9055
    %v9815 = vunpack.c.l.b16 %v9056
    %v9816 = vunpack.c.h.b16 %v9056
    %v9817 = vunpack.c.l.b16 %v9057
    %v9818 = vunpack.c.h.b16 %v9057
    %v9819 = vunpack.c.l.b16 %v9058
    %v9820 = vunpack.c.h.b16 %v9058
    %v9821 = vunpack.c.l.b16 %v9059
    %v9822 = vunpack.c.h.b16 %v9059
    %v9823 = vunpack.c.l.b16 %v9060
    %v9824 = vunpack.c.h.b16 %v9060
    %v9825 = vunpack.c.l.b16 %v9061
    %v9826 = vunpack.c.h.b16 %v9061
    %v9827 = vunpack.c.l.b16 %v9062
    %v9828 = vunpack.c.h.b16 %v9062
    %v9829 = vunpack.c.l.b16 %v9063
    %v9830 = vunpack.c.h.b16 %v9063
    %v9831 = vunpack.c.l.b16 %v9064
    %v9832 = vunpack.c.h.b16 %v9064
    %v9833 = vpack.c.b16 %v9325, %v9321
    %v9834 = vpack.c.b16 %v9326, %v9322
    %v9835 = vpack.c.b16 %v9327, %v9323
    %v9836 = vpack.c.b16 %v9328, %v9324
    %v9837 = vpack.c.b16 %v9333, %v9329
    %v9838 = vpack.c.b16 %v9334, %v9330
    %v9839 = vpack.c.b16 %v9335, %v9331
    %v9840 = vpack.c.b16 %v9336, %v9332
    %v9841 = vpack.c.b16 %v9341, %v9337
    %v9842 = vpack.c.b16 %v9342, %v9338
    %v9843 = vpack.c.b16 %v9343, %v9339
    %v9844 = vpack.c.b16 %v9344, %v9340
    %v9845 = vpack.c.b16 %v9349, %v9345
    %v9846 = vpack.c.b16 %v9350, %v9346
    %v9847 = vpack.c.b16 %v9351, %v9347
    %v9848 = vpack.c.b16 %v9352, %v9348
    %v9849 = vpack.c.b16 %v9357, %v9353
    %v9850 = vpack.c.b16 %v9358, %v9354
    %v9851 = vpack.c.b16 %v9359, %v9355
    %v9852 = vpack.c.b16 %v9360, %v9356
    %v9853 = vpack.c.b16 %v9365, %v9361
    %v9854 = vpack.c.b16 %v9366, %v9362
    %v9855 = vpack.c.b16 %v9367, %v9363
    %v9856 = vpack.c.b16 %v9368, %v9364
    %v9857 = vpack.c.b16 %v9373, %v9369
    %v9858 = vpack.c.b16 %v9374, %v9370
    %v9859 = vpack.c.b16 %v9375, %v9371
    %v9860 = vpack.c.b16 %v9376, %v9372
    %v9861 = vpack.c.b16 %v9381, %v9377
    %v9862 = vpack.c.b16 %v9382, %v9378
    %v9863 = vpack.c.b16 %v9383, %v9379
    %v9864 = vpack.c.b16 %v9384, %v9380
    %v9865 = vpack.c.b16 %v9389, %v9385
    %v9866 = vpack.c.b16 %v9390, %v9386
    %v9867 = vpack.c.b16 %v9391, %v9387
    %v9868 = vpack.c.b16 %v9392, %v9388
    %v9869 = vpack.c.b16 %v9397, %v9393
    %v9870 = vpack.c.b16 %v9398, %v9394
    %v9871 = vpack.c.b16 %v9399, %v9395
    %v9872 = vpack.c.b16 %v9400, %v9396
    %v9873 = vpack.c.b16 %v9405, %v9401
    %v9874 = vpack.c.b16 %v9406, %v9402
    %v9875 = vpack.c.b16 %v9407, %v9403
    %v9876 = vpack.c.b16 %v9408, %v9404
    %v9877 = vpack.c.b16 %v9413, %v9409
    %v9878 = vpack.c.b16 %v9414, %v9410
    %v9879 = vpack.c.b16 %v9415, %v9411
    %v9880 = vpack.c.b16 %v9416, %v9412
    %v9881 = vpack.c.b16 %v9421, %v9417
    %v9882 = vpack.c.b16 %v9422, %v9418
    %v9883 = vpack.c.b16 %v9423, %v9419
    %v9884 = vpack.c.b16 %v9424, %v9420
    %v9885 = vpack.c.b16 %v9429, %v9425
    %v9886 = vpack.c.b16 %v9430, %v9426
    %v9887 = vpack.c.b16 %v9431, %v9427
    %v9888 = vpack.c.b16 %v9432, %v9428
    %v9889 = vpack.c.b16 %v9437, %v9433
    %v9890 = vpack.c.b16 %v9438, %v9434
    %v9891 = vpack.c.b16 %v9439, %v9435
    %v9892 = vpack.c.b16 %v9440, %v9436
    %v9893 = vpack.c.b16 %v9445, %v9441
    %v9894 = vpack.c.b16 %v9446, %v9442
    %v9895 = vpack.c.b16 %v9447, %v9443
    %v9896 = vpack.c.b16 %v9448, %v9444
    %v9897 = vpack.c.b16 %v9453, %v9449
    %v9898 = vpack.c.b16 %v9454, %v9450
    %v9899 = vpack.c.b16 %v9455, %v9451
    %v9900 = vpack.c.b16 %v9456, %v9452
    %v9901 = vpack.c.b16 %v9461, %v9457
    %v9902 = vpack.c.b16 %v9462, %v9458
    %v9903 = vpack.c.b16 %v9463, %v9459
    %v9904 = vpack.c.b16 %v9464, %v9460
    %v9905 = vpack.c.b16 %v9469, %v9465
    %v9906 = vpack.c.b16 %v9470, %v9466
    %v9907 = vpack.c.b16 %v9471, %v9467
    %v9908 = vpack.c.b16 %v9472, %v9468
    %v9909 = vpack.c.b16 %v9477, %v9473
    %v9910 = vpack.c.b16 %v9478, %v9474
    %v9911 = vpack.c.b16 %v9479, %v9475
    %v9912 = vpack.c.b16 %v9480, %v9476
    %v9913 = vpack.c.b16 %v9485, %v9481
    %v9914 = vpack.c.b16 %v9486, %v9482
    %v9915 = vpack.c.b16 %v9487, %v9483
    %v9916 = vpack.c.b16 %v9488, %v9484
    %v9917 = vpack.c.b16 %v9493, %v9489
    %v9918 = vpack.c.b16 %v9494, %v9490
    %v9919 = vpack.c.b16 %v9495, %v9491
    %v9920 = vpack.c.b16 %v9496, %v9492
    %v9921 = vpack.c.b16 %v9501, %v9497
    %v9922 = vpack.c.b16 %v9502, %v9498
    %v9923 = vpack.c.b16 %v9503, %v9499
    %v9924 = vpack.c.b16 %v9504, %v9500
    %v9925 = vpack.c.b16 %v9509, %v9505
    %v9926 = vpack.c.b16 %v9510, %v9506
    %v9927 = vpack.c.b16 %v9511, %v9507
    %v9928 = vpack.c.b16 %v9512, %v9508
    %v9929 = vpack.c.b16 %v9517, %v9513
    %v9930 = vpack.c.b16 %v9518, %v9514
    %v9931 = vpack.c.b16 %v9519, %v9515
    %v9932 = vpack.c.b16 %v9520, %v9516
    %v9933 = vpack.c.b16 %v9525, %v9521
    %v9934 = vpack.c.b16 %v9526, %v9522
    %v9935 = vpack.c.b16 %v9527, %v9523
    %v9936 = vpack.c.b16 %v9528, %v9524
    %v9937 = vpack.c.b16 %v9533, %v9529
    %v9938 = vpack.c.b16 %v9534, %v9530
    %v9939 = vpack.c.b16 %v9535, %v9531
    %v9940 = vpack.c.b16 %v9536, %v9532
    %v9941 = vpack.c.b16 %v9541, %v9537
    %v9942 = vpack.c.b16 %v9542, %v9538
    %v9943 = vpack.c.b16 %v9543, %v9539
    %v9944 = vpack.c.b16 %v9544, %v9540
    %v9945 = vpack.c.b16 %v9549, %v9545
    %v9946 = vpack.c.b16 %v9550, %v9546
    %v9947 = vpack.c.b16 %v9551, %v9547
    %v9948 = vpack.c.b16 %v9552, %v9548
    %v9949 = vpack.c.b16 %v9557, %v9553
    %v9950 = vpack.c.b16 %v9558, %v9554
    %v9951 = vpack.c.b16 %v9559, %v9555
    %v9952 = vpack.c.b16 %v9560, %v9556
    %v9953 = vpack.c.b16 %v9565, %v9561
    %v9954 = vpack.c.b16 %v9566, %v9562
    %v9955 = vpack.c.b16 %v9567, %v9563
    %v9956 = vpack.c.b16 %v9568, %v9564
    %v9957 = vpack.c.b16 %v9573, %v9569
    %v9958 = vpack.c.b16 %v9574, %v9570
    %v9959 = vpack.c.b16 %v9575, %v9571
    %v9960 = vpack.c.b16 %v9576, %v9572
    %v9961 = vpack.c.b16 %v9581, %v9577
    %v9962 = vpack.c.b16 %v9582, %v9578
    %v9963 = vpack.c.b16 %v9583, %v9579
    %v9964 = vpack.c.b16 %v9584, %v9580
    %v9965 = vpack.c.b16 %v9589, %v9585
    %v9966 = vpack.c.b16 %v9590, %v9586
    %v9967 = vpack.c.b16 %v9591, %v9587
    %v9968 = vpack.c.b16 %v9592, %v9588
    %v9969 = vpack.c.b16 %v9597, %v9593
    %v9970 = vpack.c.b16 %v9598, %v9594
    %v9971 = vpack.c.b16 %v9599, %v9595
    %v9972 = vpack.c.b16 %v9600, %v9596
    %v9973 = vpack.c.b16 %v9605, %v9601
    %v9974 = vpack.c.b16 %v9606, %v9602
    %v9975 = vpack.c.b16 %v9607, %v9603
    %v9976 = vpack.c.b16 %v9608, %v9604
    %v9977 = vpack.c.b16 %v9613, %v9609
    %v9978 = vpack.c.b16 %v9614, %v9610
    %v9979 = vpack.c.b16 %v9615, %v9611
    %v9980 = vpack.c.b16 %v9616, %v9612
    %v9981 = vpack.c.b16 %v9621, %v9617
    %v9982 = vpack.c.b16 %v9622, %v9618
    %v9983 = vpack.c.b16 %v9623, %v9619
    %v9984 = vpack.c.b16 %v9624, %v9620
    %v9985 = vpack.c.b16 %v9629, %v9625
    %v9986 = vpack.c.b16 %v9630, %v9626
    %v9987 = vpack.c.b16 %v9631, %v9627
    %v9988 = vpack.c.b16 %v9632, %v9628
    %v9989 = vpack.c.b16 %v9637, %v9633
    %v9990 = vpack.c.b16 %v9638, %v9634
    %v9991 = vpack.c.b16 %v9639, %v9635
    %v9992 = vpack.c.b16 %v9640, %v9636
    %v9993 = vpack.c.b16 %v9645, %v9641
    %v9994 = vpack.c.b16 %v9646, %v9642
    %v9995 = vpack.c.b16 %v9647, %v9643
    %v9996 = vpack.c.b16 %v9648, %v9644
    %v9997 = vpack.c.b16 %v9653, %v9649
    %v9998 = vpack.c.b16 %v9654, %v9650
    %v9999 = vpack.c.b16 %v9655, %v9651
    %v10000 = vpack.c.b16 %v9656, %v9652
    %v10001 = vpack.c.b16 %v9661, %v9657
    %v10002 = vpack.c.b16 %v9662, %v9658
    %v10003 = vpack.c.b16 %v9663, %v9659
    %v10004 = vpack.c.b16 %v9664, %v9660
    %v10005 = vpack.c.b16 %v9669, %v9665
    %v10006 = vpack.c.b16 %v9670, %v9666
    %v10007 = vpack.c.b16 %v9671, %v9667
    %v10008 = vpack.c.b16 %v9672, %v9668
    %v10009 = vpack.c.b16 %v9677, %v9673
    %v10010 = vpack.c.b16 %v9678, %v9674
    %v10011 = vpack.c.b16 %v9679, %v9675
    %v10012 = vpack.c.b16 %v9680, %v9676
    %v10013 = vpack.c.b16 %v9685, %v9681
    %v10014 = vpack.c.b16 %v9686, %v9682
    %v10015 = vpack.c.b16 %v9687, %v9683
    %v10016 = vpack.c.b16 %v9688, %v9684
    %v10017 = vpack.c.b16 %v9693, %v9689
    %v10018 = vpack.c.b16 %v9694, %v9690
    %v10019 = vpack.c.b16 %v9695, %v9691
    %v10020 = vpack.c.b16 %v9696, %v9692
    %v10021 = vpack.c.b16 %v9701, %v9697
    %v10022 = vpack.c.b16 %v9702, %v9698
    %v10023 = vpack.c.b16 %v9703, %v9699
    %v10024 = vpack.c.b16 %v9704, %v9700
    %v10025 = vpack.c.b16 %v9709, %v9705
    %v10026 = vpack.c.b16 %v9710, %v9706
    %v10027 = vpack.c.b16 %v9711, %v9707
    %v10028 = vpack.c.b16 %v9712, %v9708
    %v10029 = vpack.c.b16 %v9717, %v9713
    %v10030 = vpack.c.b16 %v9718, %v9714
    %v10031 = vpack.c.b16 %v9719, %v9715
    %v10032 = vpack.c.b16 %v9720, %v9716
    %v10033 = vpack.c.b16 %v9725, %v9721
    %v10034 = vpack.c.b16 %v9726, %v9722
    %v10035 = vpack.c.b16 %v9727, %v9723
    %v10036 = vpack.c.b16 %v9728, %v9724
    %v10037 = vpack.c.b16 %v9733, %v9729
    %v10038 = vpack.c.b16 %v9734, %v9730
    %v10039 = vpack.c.b16 %v9735, %v9731
    %v10040 = vpack.c.b16 %v9736, %v9732
    %v10041 = vpack.c.b16 %v9741, %v9737
    %v10042 = vpack.c.b16 %v9742, %v9738
    %v10043 = vpack.c.b16 %v9743, %v9739
    %v10044 = vpack.c.b16 %v9744, %v9740
    %v10045 = vpack.c.b16 %v9749, %v9745
    %v10046 = vpack.c.b16 %v9750, %v9746
    %v10047 = vpack.c.b16 %v9751, %v9747
    %v10048 = vpack.c.b16 %v9752, %v9748
    %v10049 = vpack.c.b16 %v9757, %v9753
    %v10050 = vpack.c.b16 %v9758, %v9754
    %v10051 = vpack.c.b16 %v9759, %v9755
    %v10052 = vpack.c.b16 %v9760, %v9756
    %v10053 = vpack.c.b16 %v9765, %v9761
    %v10054 = vpack.c.b16 %v9766, %v9762
    %v10055 = vpack.c.b16 %v9767, %v9763
    %v10056 = vpack.c.b16 %v9768, %v9764
    %v10057 = vpack.c.b16 %v9773, %v9769
    %v10058 = vpack.c.b16 %v9774, %v9770
    %v10059 = vpack.c.b16 %v9775, %v9771
    %v10060 = vpack.c.b16 %v9776, %v9772
    %v10061 = vpack.c.b16 %v9781, %v9777
    %v10062 = vpack.c.b16 %v9782, %v9778
    %v10063 = vpack.c.b16 %v9783, %v9779
    %v10064 = vpack.c.b16 %v9784, %v9780
    %v10065 = vpack.c.b16 %v9789, %v9785
    %v10066 = vpack.c.b16 %v9790, %v9786
    %v10067 = vpack.c.b16 %v9791, %v9787
    %v10068 = vpack.c.b16 %v9792, %v9788
    %v10069 = vpack.c.b16 %v9797, %v9793
    %v10070 = vpack.c.b16 %v9798, %v9794
    %v10071 = vpack.c.b16 %v9799, %v9795
    %v10072 = vpack.c.b16 %v9800, %v9796
    %v10073 = vpack.c.b16 %v9805, %v9801
    %v10074 = vpack.c.b16 %v9806, %v9802
    %v10075 = vpack.c.b16 %v9807, %v9803
    %v10076 = vpack.c.b16 %v9808, %v9804
    %v10077 = vpack.c.b16 %v9813, %v9809
    %v10078 = vpack.c.b16 %v9814, %v9810
    %v10079 = vpack.c.b16 %v9815, %v9811
    %v10080 = vpack.c.b16 %v9816, %v9812
    %v10081 = vpack.c.b16 %v9821, %v9817
    %v10082 = vpack.c.b16 %v9822, %v9818
    %v10083 = vpack.c.b16 %v9823, %v9819
    %v10084 = vpack.c.b16 %v9824, %v9820
    %v10085 = vpack.c.b16 %v9829, %v9825
    %v10086 = vpack.c.b16 %v9830, %v9826
    %v10087 = vpack.c.b16 %v9831, %v9827
    %v10088 = vpack.c.b16 %v9832, %v9828
    %10345 = vmatprep.subr.bf16.mxu0 %v9862
    %10346 = vmatpush1.bf16.msra.mxu0 %v9861
    %10347 = vmatprep.subr.bf16.mxu0 %v9858
    %10348 = vmatpush1.bf16.msra.mxu0 %v9857
    %10349 = vmatprep.subr.bf16.mxu0 %v9854
    %10350 = vmatpush1.bf16.msra.mxu0 %v9853
    %10351 = vmatprep.subr.bf16.mxu0 %v9850
    %10352 = vmatpush1.bf16.msra.mxu0 %v9849
    %10353 = vmatprep.subr.bf16.mxu0 %v9846
    %10354 = vmatpush1.bf16.msra.mxu0 %v9845
    %10355 = vmatprep.subr.bf16.mxu0 %v9842
    %10356 = vmatpush1.bf16.msra.mxu0 %v9841
    %10357 = vmatprep.subr.bf16.mxu0 %v9838
    %10358 = vmatpush1.bf16.msra.mxu0 %v9837
    %10359 = vmatprep.subr.bf16.mxu0 %v9834
    %10360 = vmatpush1.bf16.msra.mxu0 %v9833
    %10361 = vmatprep.subr.bf16.mxu0 %v9894
    %10362 = vmatpush2.bf16.msra.mxu0 %v9893
    %10363 = vmatprep.subr.bf16.mxu0 %v9890
    %10364 = vmatpush2.bf16.msra.mxu0 %v9889
    %10365 = vmatprep.subr.bf16.mxu0 %v9886
    %10366 = vmatpush2.bf16.msra.mxu0 %v9885
    %10367 = vmatprep.subr.bf16.mxu0 %v9882
    %10368 = vmatpush2.bf16.msra.mxu0 %v9881
    %10369 = vmatprep.subr.bf16.mxu0 %v9878
    %10370 = vmatpush2.bf16.msra.mxu0 %v9877
    %10371 = vmatprep.subr.bf16.mxu0 %v9874
    %10372 = vmatpush2.bf16.msra.mxu0 %v9873
    %10373 = vmatprep.subr.bf16.mxu0 %v9870
    %10374 = vmatpush2.bf16.msra.mxu0 %v9869
    %10375 = vmatprep.subr.bf16.mxu0 %v9866
    %10376 = vmatpush2.bf16.msra.mxu0 %v9865
    %10377 = vmatprep.mubr.bf16.mxu0 %v8802
    %10378 = vmatmul.mubr.bf16.gmra.mxu0 %v8801
    %v10379 = vpop.f32.mrf.mxu0
    %v10380 = vadd.f32 0.0, %v10379
    %v10381 = vpop.f32.mrf.mxu0
    %v10382 = vadd.f32 0.0, %v10381
    %v10383 = vpop.f32.mrf.mxu0
    %v10384 = vpop.f32.mrf.mxu0
    %10385 = vdwg.mxu0
    %10386 = vmatprep.subr.bf16.mxu0 %v9926
    %10387 = vmatpush1.bf16.msra.mxu0 %v9925
    %10388 = vmatprep.subr.bf16.mxu0 %v9922
    %10389 = vmatpush1.bf16.msra.mxu0 %v9921
    %10390 = vmatprep.subr.bf16.mxu0 %v9918
    %10391 = vmatpush1.bf16.msra.mxu0 %v9917
    %10392 = vmatprep.subr.bf16.mxu0 %v9914
    %10393 = vmatpush1.bf16.msra.mxu0 %v9913
    %10394 = vmatprep.subr.bf16.mxu0 %v9910
    %10395 = vmatpush1.bf16.msra.mxu0 %v9909
    %10396 = vmatprep.subr.bf16.mxu0 %v9906
    %10397 = vmatpush1.bf16.msra.mxu0 %v9905
    %10398 = vmatprep.subr.bf16.mxu0 %v9902
    %10399 = vmatpush1.bf16.msra.mxu0 %v9901
    %10400 = vmatprep.subr.bf16.mxu0 %v9898
    %10401 = vmatpush1.bf16.msra.mxu0 %v9897
    %10402 = vmatprep.subr.bf16.mxu0 %v9958
    %10403 = vmatpush2.bf16.msra.mxu0 %v9957
    %10404 = vmatprep.subr.bf16.mxu0 %v9954
    %10405 = vmatpush2.bf16.msra.mxu0 %v9953
    %10406 = vmatprep.subr.bf16.mxu0 %v9950
    %10407 = vmatpush2.bf16.msra.mxu0 %v9949
    %10408 = vmatprep.subr.bf16.mxu0 %v9946
    %10409 = vmatpush2.bf16.msra.mxu0 %v9945
    %10410 = vmatprep.subr.bf16.mxu0 %v9942
    %10411 = vmatpush2.bf16.msra.mxu0 %v9941
    %10412 = vmatprep.subr.bf16.mxu0 %v9938
    %10413 = vmatpush2.bf16.msra.mxu0 %v9937
    %10414 = vmatprep.subr.bf16.mxu0 %v9934
    %10415 = vmatpush2.bf16.msra.mxu0 %v9933
    %10416 = vmatprep.subr.bf16.mxu0 %v9930
    %10417 = vmatpush2.bf16.msra.mxu0 %v9929
    %10418 = vmatprep.mubr.bf16.mxu0 %v8804
    %10419 = vmatmul.mubr.bf16.gmra.mxu0 %v8803
    %v10420 = vpop.f32.mrf.mxu0
    %v10421 = vadd.f32 %v10380, %v10420
    %v10422 = vpop.f32.mrf.mxu0
    %v10423 = vadd.f32 %v10382, %v10422
    %v10424 = vpop.f32.mrf.mxu0
    %v10425 = vpop.f32.mrf.mxu0
    %10426 = vdwg.mxu0
    %10427 = vmatprep.subr.bf16.mxu0 %v9990
    %10428 = vmatpush1.bf16.msra.mxu0 %v9989
    %10429 = vmatprep.subr.bf16.mxu0 %v9986
    %10430 = vmatpush1.bf16.msra.mxu0 %v9985
    %10431 = vmatprep.subr.bf16.mxu0 %v9982
    %10432 = vmatpush1.bf16.msra.mxu0 %v9981
    %10433 = vmatprep.subr.bf16.mxu0 %v9978
    %10434 = vmatpush1.bf16.msra.mxu0 %v9977
    %10435 = vmatprep.subr.bf16.mxu0 %v9974
    %10436 = vmatpush1.bf16.msra.mxu0 %v9973
    %10437 = vmatprep.subr.bf16.mxu0 %v9970
    %10438 = vmatpush1.bf16.msra.mxu0 %v9969
    %10439 = vmatprep.subr.bf16.mxu0 %v9966
    %10440 = vmatpush1.bf16.msra.mxu0 %v9965
    %10441 = vmatprep.subr.bf16.mxu0 %v9962
    %10442 = vmatpush1.bf16.msra.mxu0 %v9961
    %10443 = vmatprep.subr.bf16.mxu0 %v10022
    %10444 = vmatpush2.bf16.msra.mxu0 %v10021
    %10445 = vmatprep.subr.bf16.mxu0 %v10018
    %10446 = vmatpush2.bf16.msra.mxu0 %v10017
    %10447 = vmatprep.subr.bf16.mxu0 %v10014
    %10448 = vmatpush2.bf16.msra.mxu0 %v10013
    %10449 = vmatprep.subr.bf16.mxu0 %v10010
    %10450 = vmatpush2.bf16.msra.mxu0 %v10009
    %10451 = vmatprep.subr.bf16.mxu0 %v10006
    %10452 = vmatpush2.bf16.msra.mxu0 %v10005
    %10453 = vmatprep.subr.bf16.mxu0 %v10002
    %10454 = vmatpush2.bf16.msra.mxu0 %v10001
    %10455 = vmatprep.subr.bf16.mxu0 %v9998
    %10456 = vmatpush2.bf16.msra.mxu0 %v9997
    %10457 = vmatprep.subr.bf16.mxu0 %v9994
    %10458 = vmatpush2.bf16.msra.mxu0 %v9993
    %10459 = vmatprep.mubr.bf16.mxu0 %v8806
    %10460 = vmatmul.mubr.bf16.gmra.mxu0 %v8805
    %v10461 = vpop.f32.mrf.mxu0
    %v10462 = vadd.f32 %v10421, %v10461
    %v10463 = vpop.f32.mrf.mxu0
    %v10464 = vadd.f32 %v10423, %v10463
    %v10465 = vpop.f32.mrf.mxu0
    %v10466 = vpop.f32.mrf.mxu0
    %10467 = vdwg.mxu0
    %10468 = vmatprep.subr.bf16.mxu0 %v10054
    %10469 = vmatpush1.bf16.msra.mxu0 %v10053
    %10470 = vmatprep.subr.bf16.mxu0 %v10050
    %10471 = vmatpush1.bf16.msra.mxu0 %v10049
    %10472 = vmatprep.subr.bf16.mxu0 %v10046
    %10473 = vmatpush1.bf16.msra.mxu0 %v10045
    %10474 = vmatprep.subr.bf16.mxu0 %v10042
    %10475 = vmatpush1.bf16.msra.mxu0 %v10041
    %10476 = vmatprep.subr.bf16.mxu0 %v10038
    %10477 = vmatpush1.bf16.msra.mxu0 %v10037
    %10478 = vmatprep.subr.bf16.mxu0 %v10034
    %10479 = vmatpush1.bf16.msra.mxu0 %v10033
    %10480 = vmatprep.subr.bf16.mxu0 %v10030
    %10481 = vmatpush1.bf16.msra.mxu0 %v10029
    %10482 = vmatprep.subr.bf16.mxu0 %v10026
    %10483 = vmatpush1.bf16.msra.mxu0 %v10025
    %10484 = vmatprep.subr.bf16.mxu0 %v10086
    %10485 = vmatpush2.bf16.msra.mxu0 %v10085
    %10486 = vmatprep.subr.bf16.mxu0 %v10082
    %10487 = vmatpush2.bf16.msra.mxu0 %v10081
    %10488 = vmatprep.subr.bf16.mxu0 %v10078
    %10489 = vmatpush2.bf16.msra.mxu0 %v10077
    %10490 = vmatprep.subr.bf16.mxu0 %v10074
    %10491 = vmatpush2.bf16.msra.mxu0 %v10073
    %10492 = vmatprep.subr.bf16.mxu0 %v10070
    %10493 = vmatpush2.bf16.msra.mxu0 %v10069
    %10494 = vmatprep.subr.bf16.mxu0 %v10066
    %10495 = vmatpush2.bf16.msra.mxu0 %v10065
    %10496 = vmatprep.subr.bf16.mxu0 %v10062
    %10497 = vmatpush2.bf16.msra.mxu0 %v10061
    %10498 = vmatprep.subr.bf16.mxu0 %v10058
    %10499 = vmatpush2.bf16.msra.mxu0 %v10057
    %10500 = vmatprep.mubr.bf16.mxu0 %v8808
    %10501 = vmatmul.mubr.bf16.gmra.mxu0 %v8807
    %v10502 = vpop.f32.mrf.mxu0
    %v10503 = vadd.f32 %v10462, %v10502
    %v10504 = vpop.f32.mrf.mxu0
    %v10505 = vadd.f32 %v10464, %v10504
    %v10506 = vpop.f32.mrf.mxu0
    %v10507 = vpop.f32.mrf.mxu0
    %10508 = vdwg.mxu0
    %10509 = vmatprep.subr.bf16.mxu0 %v9864
    %10510 = vmatpush1.bf16.msra.mxu0 %v9863
    %10511 = vmatprep.subr.bf16.mxu0 %v9860
    %10512 = vmatpush1.bf16.msra.mxu0 %v9859
    %10513 = vmatprep.subr.bf16.mxu0 %v9856
    %10514 = vmatpush1.bf16.msra.mxu0 %v9855
    %10515 = vmatprep.subr.bf16.mxu0 %v9852
    %10516 = vmatpush1.bf16.msra.mxu0 %v9851
    %10517 = vmatprep.subr.bf16.mxu0 %v9848
    %10518 = vmatpush1.bf16.msra.mxu0 %v9847
    %10519 = vmatprep.subr.bf16.mxu0 %v9844
    %10520 = vmatpush1.bf16.msra.mxu0 %v9843
    %10521 = vmatprep.subr.bf16.mxu0 %v9840
    %10522 = vmatpush1.bf16.msra.mxu0 %v9839
    %10523 = vmatprep.subr.bf16.mxu0 %v9836
    %10524 = vmatpush1.bf16.msra.mxu0 %v9835
    %10525 = vmatprep.subr.bf16.mxu0 %v9896
    %10526 = vmatpush2.bf16.msra.mxu0 %v9895
    %10527 = vmatprep.subr.bf16.mxu0 %v9892
    %10528 = vmatpush2.bf16.msra.mxu0 %v9891
    %10529 = vmatprep.subr.bf16.mxu0 %v9888
    %10530 = vmatpush2.bf16.msra.mxu0 %v9887
    %10531 = vmatprep.subr.bf16.mxu0 %v9884
    %10532 = vmatpush2.bf16.msra.mxu0 %v9883
    %10533 = vmatprep.subr.bf16.mxu0 %v9880
    %10534 = vmatpush2.bf16.msra.mxu0 %v9879
    %10535 = vmatprep.subr.bf16.mxu0 %v9876
    %10536 = vmatpush2.bf16.msra.mxu0 %v9875
    %10537 = vmatprep.subr.bf16.mxu0 %v9872
    %10538 = vmatpush2.bf16.msra.mxu0 %v9871
    %10539 = vmatprep.subr.bf16.mxu0 %v9868
    %10540 = vmatpush2.bf16.msra.mxu0 %v9867
    %10541 = vmatprep.mubr.bf16.mxu0 %v8802
    %10542 = vmatmul.mubr.bf16.gmra.mxu0 %v8801
    %v10543 = vpop.f32.mrf.mxu0
    %v10544 = vadd.f32 0.0, %v10543
    %v10545 = vpop.f32.mrf.mxu0
    %v10546 = vadd.f32 0.0, %v10545
    %v10547 = vpop.f32.mrf.mxu0
    %v10548 = vpop.f32.mrf.mxu0
    %10549 = vdwg.mxu0
    %10550 = vmatprep.subr.bf16.mxu0 %v9928
    %10551 = vmatpush1.bf16.msra.mxu0 %v9927
    %10552 = vmatprep.subr.bf16.mxu0 %v9924
    %10553 = vmatpush1.bf16.msra.mxu0 %v9923
    %10554 = vmatprep.subr.bf16.mxu0 %v9920
    %10555 = vmatpush1.bf16.msra.mxu0 %v9919
    %10556 = vmatprep.subr.bf16.mxu0 %v9916
    %10557 = vmatpush1.bf16.msra.mxu0 %v9915
    %10558 = vmatprep.subr.bf16.mxu0 %v9912
    %10559 = vmatpush1.bf16.msra.mxu0 %v9911
    %10560 = vmatprep.subr.bf16.mxu0 %v9908
    %10561 = vmatpush1.bf16.msra.mxu0 %v9907
    %10562 = vmatprep.subr.bf16.mxu0 %v9904
    %10563 = vmatpush1.bf16.msra.mxu0 %v9903
    %10564 = vmatprep.subr.bf16.mxu0 %v9900
    %10565 = vmatpush1.bf16.msra.mxu0 %v9899
    %10566 = vmatprep.subr.bf16.mxu0 %v9960
    %10567 = vmatpush2.bf16.msra.mxu0 %v9959
    %10568 = vmatprep.subr.bf16.mxu0 %v9956
    %10569 = vmatpush2.bf16.msra.mxu0 %v9955
    %10570 = vmatprep.subr.bf16.mxu0 %v9952
    %10571 = vmatpush2.bf16.msra.mxu0 %v9951
    %10572 = vmatprep.subr.bf16.mxu0 %v9948
    %10573 = vmatpush2.bf16.msra.mxu0 %v9947
    %10574 = vmatprep.subr.bf16.mxu0 %v9944
    %10575 = vmatpush2.bf16.msra.mxu0 %v9943
    %10576 = vmatprep.subr.bf16.mxu0 %v9940
    %10577 = vmatpush2.bf16.msra.mxu0 %v9939
    %10578 = vmatprep.subr.bf16.mxu0 %v9936
    %10579 = vmatpush2.bf16.msra.mxu0 %v9935
    %10580 = vmatprep.subr.bf16.mxu0 %v9932
    %10581 = vmatpush2.bf16.msra.mxu0 %v9931
    %10582 = vmatprep.mubr.bf16.mxu0 %v8804
    %10583 = vmatmul.mubr.bf16.gmra.mxu0 %v8803
    %v10584 = vpop.f32.mrf.mxu0
    %v10585 = vadd.f32 %v10544, %v10584
    %v10586 = vpop.f32.mrf.mxu0
    %v10587 = vadd.f32 %v10546, %v10586
    %v10588 = vpop.f32.mrf.mxu0
    %v10589 = vpop.f32.mrf.mxu0
    %10590 = vdwg.mxu0
    %10591 = vmatprep.subr.bf16.mxu0 %v9992
    %10592 = vmatpush1.bf16.msra.mxu0 %v9991
    %10593 = vmatprep.subr.bf16.mxu0 %v9988
    %10594 = vmatpush1.bf16.msra.mxu0 %v9987
    %10595 = vmatprep.subr.bf16.mxu0 %v9984
    %10596 = vmatpush1.bf16.msra.mxu0 %v9983
    %10597 = vmatprep.subr.bf16.mxu0 %v9980
    %10598 = vmatpush1.bf16.msra.mxu0 %v9979
    %10599 = vmatprep.subr.bf16.mxu0 %v9976
    %10600 = vmatpush1.bf16.msra.mxu0 %v9975
    %10601 = vmatprep.subr.bf16.mxu0 %v9972
    %10602 = vmatpush1.bf16.msra.mxu0 %v9971
    %10603 = vmatprep.subr.bf16.mxu0 %v9968
    %10604 = vmatpush1.bf16.msra.mxu0 %v9967
    %10605 = vmatprep.subr.bf16.mxu0 %v9964
    %10606 = vmatpush1.bf16.msra.mxu0 %v9963
    %10607 = vmatprep.subr.bf16.mxu0 %v10024
    %10608 = vmatpush2.bf16.msra.mxu0 %v10023
    %10609 = vmatprep.subr.bf16.mxu0 %v10020
    %10610 = vmatpush2.bf16.msra.mxu0 %v10019
    %10611 = vmatprep.subr.bf16.mxu0 %v10016
    %10612 = vmatpush2.bf16.msra.mxu0 %v10015
    %10613 = vmatprep.subr.bf16.mxu0 %v10012
    %10614 = vmatpush2.bf16.msra.mxu0 %v10011
    %10615 = vmatprep.subr.bf16.mxu0 %v10008
    %10616 = vmatpush2.bf16.msra.mxu0 %v10007
    %10617 = vmatprep.subr.bf16.mxu0 %v10004
    %10618 = vmatpush2.bf16.msra.mxu0 %v10003
    %10619 = vmatprep.subr.bf16.mxu0 %v10000
    %10620 = vmatpush2.bf16.msra.mxu0 %v9999
    %10621 = vmatprep.subr.bf16.mxu0 %v9996
    %10622 = vmatpush2.bf16.msra.mxu0 %v9995
    %10623 = vmatprep.mubr.bf16.mxu0 %v8806
    %10624 = vmatmul.mubr.bf16.gmra.mxu0 %v8805
    %v10625 = vpop.f32.mrf.mxu0
    %v10626 = vadd.f32 %v10585, %v10625
    %v10627 = vpop.f32.mrf.mxu0
    %v10628 = vadd.f32 %v10587, %v10627
    %v10629 = vpop.f32.mrf.mxu0
    %v10630 = vpop.f32.mrf.mxu0
    %10631 = vdwg.mxu0
    %10632 = vmatprep.subr.bf16.mxu0 %v10056
    %10633 = vmatpush1.bf16.msra.mxu0 %v10055
    %10634 = vmatprep.subr.bf16.mxu0 %v10052
    %10635 = vmatpush1.bf16.msra.mxu0 %v10051
    %10636 = vmatprep.subr.bf16.mxu0 %v10048
    %10637 = vmatpush1.bf16.msra.mxu0 %v10047
    %10638 = vmatprep.subr.bf16.mxu0 %v10044
    %10639 = vmatpush1.bf16.msra.mxu0 %v10043
    %10640 = vmatprep.subr.bf16.mxu0 %v10040
    %10641 = vmatpush1.bf16.msra.mxu0 %v10039
    %10642 = vmatprep.subr.bf16.mxu0 %v10036
    %10643 = vmatpush1.bf16.msra.mxu0 %v10035
    %10644 = vmatprep.subr.bf16.mxu0 %v10032
    %10645 = vmatpush1.bf16.msra.mxu0 %v10031
    %10646 = vmatprep.subr.bf16.mxu0 %v10028
    %10647 = vmatpush1.bf16.msra.mxu0 %v10027
    %10648 = vmatprep.subr.bf16.mxu0 %v10088
    %10649 = vmatpush2.bf16.msra.mxu0 %v10087
    %10650 = vmatprep.subr.bf16.mxu0 %v10084
    %10651 = vmatpush2.bf16.msra.mxu0 %v10083
    %10652 = vmatprep.subr.bf16.mxu0 %v10080
    %10653 = vmatpush2.bf16.msra.mxu0 %v10079
    %10654 = vmatprep.subr.bf16.mxu0 %v10076
    %10655 = vmatpush2.bf16.msra.mxu0 %v10075
    %10656 = vmatprep.subr.bf16.mxu0 %v10072
    %10657 = vmatpush2.bf16.msra.mxu0 %v10071
    %10658 = vmatprep.subr.bf16.mxu0 %v10068
    %10659 = vmatpush2.bf16.msra.mxu0 %v10067
    %10660 = vmatprep.subr.bf16.mxu0 %v10064
    %10661 = vmatpush2.bf16.msra.mxu0 %v10063
    %10662 = vmatprep.subr.bf16.mxu0 %v10060
    %10663 = vmatpush2.bf16.msra.mxu0 %v10059
    %10664 = vmatprep.mubr.bf16.mxu0 %v8808
    %10665 = vmatmul.mubr.bf16.gmra.mxu0 %v8807
    %v10666 = vpop.f32.mrf.mxu0
    %v10667 = vadd.f32 %v10626, %v10666
    %v10668 = vpop.f32.mrf.mxu0
    %v10669 = vadd.f32 %v10628, %v10668
    %v10670 = vpop.f32.mrf.mxu0
    %v10671 = vpop.f32.mrf.mxu0
    %10672 = vdwg.mxu0
    %v10673 = vld [vmem:[#allocation6 + $0x30] sm:$0xf]
    %v10674 = vld [vmem:[#allocation6 + $0x34] sm:$0xf]
    %v10675 = vrot.slane %v10503, 4
    %v10676 = vadd.f32 %v10503, %v10675
    %v10677 = vrot.slane %v10676, 2
    %v10678 = vadd.f32 %v10676, %v10677
    %v10679 = vrot.slane %v10678, 1
    %v10680 = vadd.f32 %v10678, %v10679
    %v10681 = vrot.slane %v10505, 4
    %v10682 = vadd.f32 %v10505, %v10681
    %v10683 = vrot.slane %v10682, 2
    %v10684 = vadd.f32 %v10682, %v10683
    %v10685 = vrot.slane %v10684, 1
    %v10686 = vadd.f32 %v10684, %v10685
    %v10687 = vrot.slane %v10667, 4
    %v10688 = vadd.f32 %v10667, %v10687
    %v10689 = vrot.slane %v10688, 2
    %v10690 = vadd.f32 %v10688, %v10689
    %v10691 = vrot.slane %v10690, 1
    %v10692 = vadd.f32 %v10690, %v10691
    %v10693 = vrot.slane %v10669, 4
    %v10694 = vadd.f32 %v10669, %v10693
    %v10695 = vrot.slane %v10694, 2
    %v10696 = vadd.f32 %v10694, %v10695
    %v10697 = vrot.slane %v10696, 1
    %v10698 = vadd.f32 %v10696, %v10697
    %v10699 = vmul.f32 %v10680, %v640
    %v10700 = vmul.f32 %v10686, %v640
    %v10701 = vmul.f32 %v10692, %v640
    %v10702 = vmul.f32 %v10698, %v640
    %v10703 = vsub.f32 %v10503, %v10699
    %v10704 = vsub.f32 %v10505, %v10700
    %v10705 = vsub.f32 %v10667, %v10701
    %v10706 = vsub.f32 %v10669, %v10702
    %v10707 = vmul.f32 %v10703, %v10703
    %v10708 = vmul.f32 %v10704, %v10704
    %v10709 = vmul.f32 %v10705, %v10705
    %v10710 = vmul.f32 %v10706, %v10706
    %v10711 = vrot.slane %v10707, 4
    %v10712 = vadd.f32 %v10707, %v10711
    %v10713 = vrot.slane %v10712, 2
    %v10714 = vadd.f32 %v10712, %v10713
    %v10715 = vrot.slane %v10714, 1
    %v10716 = vadd.f32 %v10714, %v10715
    %v10717 = vrot.slane %v10708, 4
    %v10718 = vadd.f32 %v10708, %v10717
    %v10719 = vrot.slane %v10718, 2
    %v10720 = vadd.f32 %v10718, %v10719
    %v10721 = vrot.slane %v10720, 1
    %v10722 = vadd.f32 %v10720, %v10721
    %v10723 = vrot.slane %v10709, 4
    %v10724 = vadd.f32 %v10709, %v10723
    %v10725 = vrot.slane %v10724, 2
    %v10726 = vadd.f32 %v10724, %v10725
    %v10727 = vrot.slane %v10726, 1
    %v10728 = vadd.f32 %v10726, %v10727
    %v10729 = vrot.slane %v10710, 4
    %v10730 = vadd.f32 %v10710, %v10729
    %v10731 = vrot.slane %v10730, 2
    %v10732 = vadd.f32 %v10730, %v10731
    %v10733 = vrot.slane %v10732, 1
    %v10734 = vadd.f32 %v10732, %v10733
    %v10735 = vmul.f32 %v10716, %v640
    %v10736 = vmul.f32 %v10722, %v640
    %v10737 = vmul.f32 %v10728, %v640
    %v10738 = vmul.f32 %v10734, %v640
    %v10739 = vadd.f32 %v10735, 1e-05
    %v10740 = vadd.f32 %v10736, 1e-05
    %v10741 = vadd.f32 %v10737, 1e-05
    %v10742 = vadd.f32 %v10738, 1e-05
    %v10743 = vrsqrt.pop %v10739
    %v10744 = vrsqrt.pop %v10740
    %v10745 = vrsqrt.pop %v10741
    %v10746 = vrsqrt.pop %v10742
    %v10747 = vmul.f32 %v10703, %v10743
    %v10748 = vmul.f32 %v10704, %v10744
    %v10749 = vmul.f32 %v10705, %v10745
    %v10750 = vmul.f32 %v10706, %v10746
    %v10752 = vlaneseq
    %v10753 = vshrl.u32 %v10752, 7
    %v10754 = vsub.s32 0, %v10753
    %v10755 = vrot.slane %v10673, %v10754
    %v10756 = vlaneseq
    %v10757 = vshrl.u32 %v10756, 7
    %v10758 = vsub.s32 1, %v10757
    %v10759 = vrot.slane %v10673, %v10758
    %v10760 = vlaneseq
    %v10761 = vshrl.u32 %v10760, 7
    %v10762 = vsub.s32 2, %v10761
    %v10763 = vrot.slane %v10673, %v10762
    %v10764 = vlaneseq
    %v10765 = vshrl.u32 %v10764, 7
    %v10766 = vsub.s32 3, %v10765
    %v10767 = vrot.slane %v10673, %v10766
    %v10772 = vmul.f32 %v10747, %v10755
    %v10773 = vmul.f32 %v10748, %v10759
    %v10774 = vmul.f32 %v10749, %v10763
    %v10775 = vmul.f32 %v10750, %v10767
    %v10777 = vlaneseq
    %v10778 = vshrl.u32 %v10777, 7
    %v10779 = vsub.s32 0, %v10778
    %v10780 = vrot.slane %v10674, %v10779
    %v10781 = vlaneseq
    %v10782 = vshrl.u32 %v10781, 7
    %v10783 = vsub.s32 1, %v10782
    %v10784 = vrot.slane %v10674, %v10783
    %v10785 = vlaneseq
    %v10786 = vshrl.u32 %v10785, 7
    %v10787 = vsub.s32 2, %v10786
    %v10788 = vrot.slane %v10674, %v10787
    %v10789 = vlaneseq
    %v10790 = vshrl.u32 %v10789, 7
    %v10791 = vsub.s32 3, %v10790
    %v10792 = vrot.slane %v10674, %v10791
    %v10797 = vadd.f32 %v10772, %v10780
    %v10798 = vadd.f32 %v10773, %v10784
    %v10799 = vadd.f32 %v10774, %v10788
    %v10800 = vadd.f32 %v10775, %v10792
    %v10801 = vmax.f32 %v10797, 0.0
    %v10802 = vmax.f32 %v10798, 0.0
    %v10803 = vmax.f32 %v10799, 0.0
    %v10804 = vmax.f32 %v10800, 0.0
    %s10805 = smul.u32 4, 64
    %s10806 = smul.u32 %s10805, 1
    %s10807 = sshll.u32 %s10806, 4
    %10808 = dma.done %s66, %s10807
    %v10809 = vpack.c.bf16 %v10801, %v10801
    %v10810 = vpack.c.bf16 %v10802, %v10802
    %v10811 = vpack.c.bf16 %v10803, %v10803
    %v10812 = vpack.c.bf16 %v10804, %v10804
    %v10813 = vld [vmem:[#allocation4] sm:$0xf]
    %v10814 = vld [vmem:[#allocation4 + $0x4] sm:$0xf]
    %v10815 = vld [vmem:[#allocation4 + $0x8] sm:$0xf]
    %v10816 = vld [vmem:[#allocation4 + $0xc] sm:$0xf]
    %v10817 = vld [vmem:[#allocation4 + $0x10] sm:$0xf]
    %v10818 = vld [vmem:[#allocation4 + $0x14] sm:$0xf]
    %v10819 = vld [vmem:[#allocation4 + $0x18] sm:$0xf]
    %v10820 = vld [vmem:[#allocation4 + $0x1c] sm:$0xf]
    %v10821 = vld [vmem:[#allocation4 + $0x20] sm:$0xf]
    %v10822 = vld [vmem:[#allocation4 + $0x24] sm:$0xf]
    %v10823 = vld [vmem:[#allocation4 + $0x28] sm:$0xf]
    %v10824 = vld [vmem:[#allocation4 + $0x2c] sm:$0xf]
    %v10825 = vld [vmem:[#allocation4 + $0x30] sm:$0xf]
    %v10826 = vld [vmem:[#allocation4 + $0x34] sm:$0xf]
    %v10827 = vld [vmem:[#allocation4 + $0x38] sm:$0xf]
    %v10828 = vld [vmem:[#allocation4 + $0x3c] sm:$0xf]
    %v10829 = vld [vmem:[#allocation4 + $0x40] sm:$0xf]
    %v10830 = vld [vmem:[#allocation4 + $0x44] sm:$0xf]
    %v10831 = vld [vmem:[#allocation4 + $0x48] sm:$0xf]
    %v10832 = vld [vmem:[#allocation4 + $0x4c] sm:$0xf]
    %v10833 = vld [vmem:[#allocation4 + $0x50] sm:$0xf]
    %v10834 = vld [vmem:[#allocation4 + $0x54] sm:$0xf]
    %v10835 = vld [vmem:[#allocation4 + $0x58] sm:$0xf]
    %v10836 = vld [vmem:[#allocation4 + $0x5c] sm:$0xf]
    %v10837 = vld [vmem:[#allocation4 + $0x60] sm:$0xf]
    %v10838 = vld [vmem:[#allocation4 + $0x64] sm:$0xf]
    %v10839 = vld [vmem:[#allocation4 + $0x68] sm:$0xf]
    %v10840 = vld [vmem:[#allocation4 + $0x6c] sm:$0xf]
    %v10841 = vld [vmem:[#allocation4 + $0x70] sm:$0xf]
    %v10842 = vld [vmem:[#allocation4 + $0x74] sm:$0xf]
    %v10843 = vld [vmem:[#allocation4 + $0x78] sm:$0xf]
    %v10844 = vld [vmem:[#allocation4 + $0x7c] sm:$0xf]
    %v10845 = vld [vmem:[#allocation4 + $0x80] sm:$0xf]
    %v10846 = vld [vmem:[#allocation4 + $0x84] sm:$0xf]
    %v10847 = vld [vmem:[#allocation4 + $0x88] sm:$0xf]
    %v10848 = vld [vmem:[#allocation4 + $0x8c] sm:$0xf]
    %v10849 = vld [vmem:[#allocation4 + $0x90] sm:$0xf]
    %v10850 = vld [vmem:[#allocation4 + $0x94] sm:$0xf]
    %v10851 = vld [vmem:[#allocation4 + $0x98] sm:$0xf]
    %v10852 = vld [vmem:[#allocation4 + $0x9c] sm:$0xf]
    %v10853 = vld [vmem:[#allocation4 + $0xa0] sm:$0xf]
    %v10854 = vld [vmem:[#allocation4 + $0xa4] sm:$0xf]
    %v10855 = vld [vmem:[#allocation4 + $0xa8] sm:$0xf]
    %v10856 = vld [vmem:[#allocation4 + $0xac] sm:$0xf]
    %v10857 = vld [vmem:[#allocation4 + $0xb0] sm:$0xf]
    %v10858 = vld [vmem:[#allocation4 + $0xb4] sm:$0xf]
    %v10859 = vld [vmem:[#allocation4 + $0xb8] sm:$0xf]
    %v10860 = vld [vmem:[#allocation4 + $0xbc] sm:$0xf]
    %v10861 = vld [vmem:[#allocation4 + $0xc0] sm:$0xf]
    %v10862 = vld [vmem:[#allocation4 + $0xc4] sm:$0xf]
    %v10863 = vld [vmem:[#allocation4 + $0xc8] sm:$0xf]
    %v10864 = vld [vmem:[#allocation4 + $0xcc] sm:$0xf]
    %v10865 = vld [vmem:[#allocation4 + $0xd0] sm:$0xf]
    %v10866 = vld [vmem:[#allocation4 + $0xd4] sm:$0xf]
    %v10867 = vld [vmem:[#allocation4 + $0xd8] sm:$0xf]
    %v10868 = vld [vmem:[#allocation4 + $0xdc] sm:$0xf]
    %v10869 = vld [vmem:[#allocation4 + $0xe0] sm:$0xf]
    %v10870 = vld [vmem:[#allocation4 + $0xe4] sm:$0xf]
    %v10871 = vld [vmem:[#allocation4 + $0xe8] sm:$0xf]
    %v10872 = vld [vmem:[#allocation4 + $0xec] sm:$0xf]
    %v10873 = vld [vmem:[#allocation4 + $0xf0] sm:$0xf]
    %v10874 = vld [vmem:[#allocation4 + $0xf4] sm:$0xf]
    %v10875 = vld [vmem:[#allocation4 + $0xf8] sm:$0xf]
    %v10876 = vld [vmem:[#allocation4 + $0xfc] sm:$0xf]
    %v10877 = vld [vmem:[#allocation6 + $0x38] sm:$0x1]
    %v10879 = vlaneseq
    %v10880 = vshrl.u32 %v10879, 7
    %v10881 = vsub.s32 0, %v10880
    %v10882 = vrot.slane %v10877, %v10881
    %v10948 = vunpack.c.l.b16 %v10813
    %v10949 = vunpack.c.l.b16 %v10814
    %v10950 = vunpack.c.l.b16 %v10815
    %v10951 = vunpack.c.l.b16 %v10816
    %v10952 = vunpack.c.l.b16 %v10817
    %v10953 = vunpack.c.l.b16 %v10818
    %v10954 = vunpack.c.l.b16 %v10819
    %v10955 = vunpack.c.l.b16 %v10820
    %v10956 = vunpack.c.l.b16 %v10821
    %v10957 = vunpack.c.l.b16 %v10822
    %v10958 = vunpack.c.l.b16 %v10823
    %v10959 = vunpack.c.l.b16 %v10824
    %v10960 = vunpack.c.l.b16 %v10825
    %v10961 = vunpack.c.l.b16 %v10826
    %v10962 = vunpack.c.l.b16 %v10827
    %v10963 = vunpack.c.l.b16 %v10828
    %v10964 = vunpack.c.l.b16 %v10829
    %v10965 = vunpack.c.l.b16 %v10830
    %v10966 = vunpack.c.l.b16 %v10831
    %v10967 = vunpack.c.l.b16 %v10832
    %v10968 = vunpack.c.l.b16 %v10833
    %v10969 = vunpack.c.l.b16 %v10834
    %v10970 = vunpack.c.l.b16 %v10835
    %v10971 = vunpack.c.l.b16 %v10836
    %v10972 = vunpack.c.l.b16 %v10837
    %v10973 = vunpack.c.l.b16 %v10838
    %v10974 = vunpack.c.l.b16 %v10839
    %v10975 = vunpack.c.l.b16 %v10840
    %v10976 = vunpack.c.l.b16 %v10841
    %v10977 = vunpack.c.l.b16 %v10842
    %v10978 = vunpack.c.l.b16 %v10843
    %v10979 = vunpack.c.l.b16 %v10844
    %v10980 = vunpack.c.l.b16 %v10845
    %v10981 = vunpack.c.l.b16 %v10846
    %v10982 = vunpack.c.l.b16 %v10847
    %v10983 = vunpack.c.l.b16 %v10848
    %v10984 = vunpack.c.l.b16 %v10849
    %v10985 = vunpack.c.l.b16 %v10850
    %v10986 = vunpack.c.l.b16 %v10851
    %v10987 = vunpack.c.l.b16 %v10852
    %v10988 = vunpack.c.l.b16 %v10853
    %v10989 = vunpack.c.l.b16 %v10854
    %v10990 = vunpack.c.l.b16 %v10855
    %v10991 = vunpack.c.l.b16 %v10856
    %v10992 = vunpack.c.l.b16 %v10857
    %v10993 = vunpack.c.l.b16 %v10858
    %v10994 = vunpack.c.l.b16 %v10859
    %v10995 = vunpack.c.l.b16 %v10860
    %v10996 = vunpack.c.l.b16 %v10861
    %v10997 = vunpack.c.l.b16 %v10862
    %v10998 = vunpack.c.l.b16 %v10863
    %v10999 = vunpack.c.l.b16 %v10864
    %v11000 = vunpack.c.l.b16 %v10865
    %v11001 = vunpack.c.l.b16 %v10866
    %v11002 = vunpack.c.l.b16 %v10867
    %v11003 = vunpack.c.l.b16 %v10868
    %v11004 = vunpack.c.l.b16 %v10869
    %v11005 = vunpack.c.l.b16 %v10870
    %v11006 = vunpack.c.l.b16 %v10871
    %v11007 = vunpack.c.l.b16 %v10872
    %v11008 = vunpack.c.l.b16 %v10873
    %v11009 = vunpack.c.l.b16 %v10874
    %v11010 = vunpack.c.l.b16 %v10875
    %v11011 = vunpack.c.l.b16 %v10876
    %v11012 = vpack.c.b16 %v10949, %v10948
    %v11013 = vpack.c.b16 %v10951, %v10950
    %v11014 = vpack.c.b16 %v10953, %v10952
    %v11015 = vpack.c.b16 %v10955, %v10954
    %v11016 = vpack.c.b16 %v10957, %v10956
    %v11017 = vpack.c.b16 %v10959, %v10958
    %v11018 = vpack.c.b16 %v10961, %v10960
    %v11019 = vpack.c.b16 %v10963, %v10962
    %v11020 = vpack.c.b16 %v10965, %v10964
    %v11021 = vpack.c.b16 %v10967, %v10966
    %v11022 = vpack.c.b16 %v10969, %v10968
    %v11023 = vpack.c.b16 %v10971, %v10970
    %v11024 = vpack.c.b16 %v10973, %v10972
    %v11025 = vpack.c.b16 %v10975, %v10974
    %v11026 = vpack.c.b16 %v10977, %v10976
    %v11027 = vpack.c.b16 %v10979, %v10978
    %v11028 = vpack.c.b16 %v10981, %v10980
    %v11029 = vpack.c.b16 %v10983, %v10982
    %v11030 = vpack.c.b16 %v10985, %v10984
    %v11031 = vpack.c.b16 %v10987, %v10986
    %v11032 = vpack.c.b16 %v10989, %v10988
    %v11033 = vpack.c.b16 %v10991, %v10990
    %v11034 = vpack.c.b16 %v10993, %v10992
    %v11035 = vpack.c.b16 %v10995, %v10994
    %v11036 = vpack.c.b16 %v10997, %v10996
    %v11037 = vpack.c.b16 %v10999, %v10998
    %v11038 = vpack.c.b16 %v11001, %v11000
    %v11039 = vpack.c.b16 %v11003, %v11002
    %v11040 = vpack.c.b16 %v11005, %v11004
    %v11041 = vpack.c.b16 %v11007, %v11006
    %v11042 = vpack.c.b16 %v11009, %v11008
    %v11043 = vpack.c.b16 %v11011, %v11010
    %11076 = vmatprep.subr.bf16.mxu0 0
    %11077 = vmatpush1.bf16.msra.mxu0 %v11019
    %11078 = vmatprep.subr.bf16.mxu0 0
    %11079 = vmatpush1.bf16.msra.mxu0 %v11018
    %11080 = vmatprep.subr.bf16.mxu0 0
    %11081 = vmatpush1.bf16.msra.mxu0 %v11017
    %11082 = vmatprep.subr.bf16.mxu0 0
    %11083 = vmatpush1.bf16.msra.mxu0 %v11016
    %11084 = vmatprep.subr.bf16.mxu0 0
    %11085 = vmatpush1.bf16.msra.mxu0 %v11015
    %11086 = vmatprep.subr.bf16.mxu0 0
    %11087 = vmatpush1.bf16.msra.mxu0 %v11014
    %11088 = vmatprep.subr.bf16.mxu0 0
    %11089 = vmatpush1.bf16.msra.mxu0 %v11013
    %11090 = vmatprep.subr.bf16.mxu0 0
    %11091 = vmatpush1.bf16.msra.mxu0 %v11012
    %11092 = vmatprep.subr.bf16.mxu0 0
    %11093 = vmatpush2.bf16.msra.mxu0 %v11027
    %11094 = vmatprep.subr.bf16.mxu0 0
    %11095 = vmatpush2.bf16.msra.mxu0 %v11026
    %11096 = vmatprep.subr.bf16.mxu0 0
    %11097 = vmatpush2.bf16.msra.mxu0 %v11025
    %11098 = vmatprep.subr.bf16.mxu0 0
    %11099 = vmatpush2.bf16.msra.mxu0 %v11024
    %11100 = vmatprep.subr.bf16.mxu0 0
    %11101 = vmatpush2.bf16.msra.mxu0 %v11023
    %11102 = vmatprep.subr.bf16.mxu0 0
    %11103 = vmatpush2.bf16.msra.mxu0 %v11022
    %11104 = vmatprep.subr.bf16.mxu0 0
    %11105 = vmatpush2.bf16.msra.mxu0 %v11021
    %11106 = vmatprep.subr.bf16.mxu0 0
    %11107 = vmatpush2.bf16.msra.mxu0 %v11020
    %11108 = vmatprep.mubr.bf16.mxu0 %v10810
    %11109 = vmatmul.mubr.bf16.gmra.mxu0 %v10809
    %v11110 = vpop.f32.mrf.mxu0
    %v11111 = vadd.f32 %v10882, %v11110
    %v11112 = vpop.f32.mrf.mxu0
    %v11113 = vpop.f32.mrf.mxu0
    %v11114 = vpop.f32.mrf.mxu0
    %11115 = vdwg.mxu0
    %11116 = vmatprep.subr.bf16.mxu0 0
    %11117 = vmatpush1.bf16.msra.mxu0 %v11035
    %11118 = vmatprep.subr.bf16.mxu0 0
    %11119 = vmatpush1.bf16.msra.mxu0 %v11034
    %11120 = vmatprep.subr.bf16.mxu0 0
    %11121 = vmatpush1.bf16.msra.mxu0 %v11033
    %11122 = vmatprep.subr.bf16.mxu0 0
    %11123 = vmatpush1.bf16.msra.mxu0 %v11032
    %11124 = vmatprep.subr.bf16.mxu0 0
    %11125 = vmatpush1.bf16.msra.mxu0 %v11031
    %11126 = vmatprep.subr.bf16.mxu0 0
    %11127 = vmatpush1.bf16.msra.mxu0 %v11030
    %11128 = vmatprep.subr.bf16.mxu0 0
    %11129 = vmatpush1.bf16.msra.mxu0 %v11029
    %11130 = vmatprep.subr.bf16.mxu0 0
    %11131 = vmatpush1.bf16.msra.mxu0 %v11028
    %11132 = vmatprep.subr.bf16.mxu0 0
    %11133 = vmatpush2.bf16.msra.mxu0 %v11043
    %11134 = vmatprep.subr.bf16.mxu0 0
    %11135 = vmatpush2.bf16.msra.mxu0 %v11042
    %11136 = vmatprep.subr.bf16.mxu0 0
    %11137 = vmatpush2.bf16.msra.mxu0 %v11041
    %11138 = vmatprep.subr.bf16.mxu0 0
    %11139 = vmatpush2.bf16.msra.mxu0 %v11040
    %11140 = vmatprep.subr.bf16.mxu0 0
    %11141 = vmatpush2.bf16.msra.mxu0 %v11039
    %11142 = vmatprep.subr.bf16.mxu0 0
    %11143 = vmatpush2.bf16.msra.mxu0 %v11038
    %11144 = vmatprep.subr.bf16.mxu0 0
    %11145 = vmatpush2.bf16.msra.mxu0 %v11037
    %11146 = vmatprep.subr.bf16.mxu0 0
    %11147 = vmatpush2.bf16.msra.mxu0 %v11036
    %11148 = vmatprep.mubr.bf16.mxu0 %v10812
    %11149 = vmatmul.mubr.bf16.gmra.mxu0 %v10811
    %v11150 = vpop.f32.mrf.mxu0
    %v11151 = vadd.f32 %v11111, %v11150
    %v11152 = vpop.f32.mrf.mxu0
    %v11153 = vpop.f32.mrf.mxu0
    %v11154 = vpop.f32.mrf.mxu0
    %11155 = vdwg.mxu0
    %11156 = vst [vmem:[#allocation11] sm:$0xff] %v11151
    // Predicated region
    $region34: #{tpu_custom_call.1} parent=1 // pred_check
      _
    $region35: #{tpu_custom_call.1} parent=1 // pred_check_branch
      %11158 = sbr.rel (0) target = $region37
    $region36: #{tpu_custom_call.1} parent=1 // pred_region
      %s11160 = ssub.s32 128, 128
      %11161 = vsyncadd [#allocation8], %s11160
      %s11163 = sshll.u32 [#allocation11], 4
      %s11164 = int_to_ptr.vmem [resolvable:$true] %s11163
      %11166 = dma.vmem_to_hbm [thread:$0]  %s11164, 128, %s6, [#allocation8]
    $region37: #{tpu_custom_call.1} parent=1 // pred_fallthru
      _
    // Predicated region
    $region38: #{tpu_custom_call.1} parent=1 // pred_check
      _
    $region39: #{tpu_custom_call.1} parent=1 // pred_check_branch
      %11168 = sbr.rel (0) target = $region41
    $region40: #{tpu_custom_call.1} parent=1 // pred_region
      %11169 = dma.done [#allocation8], 128
    $region41: #{tpu_custom_call.1} parent=1 // pred_fallthru
      _
    %11170 = vsyncpa [#allocation7], 1
    %11171 = vsyncpa [#allocation10], 1
    %11172 = vsyncpa [#allocation8], 1
  %11173 = vsyncmov [#allocation5]
  %s11174 = vpop.sfrf %11173
  %p11175 = scmp.eq.s32.totalorder %s11174, 0
  %p11176 = pneg %p11175
  %11178 = shalt.err (%p11176)
  %s11179 = scalar_lea.sflag [#allocation5], 1
  %11180 = vsyncmov %s11179
  %s11181 = vpop.sfrf %11180
  %p11182 = scmp.eq.s32.totalorder %s11181, 0
  %p11183 = pneg %p11182
  %11185 = shalt.err (%p11183)
  %s11186 = scalar_lea.sflag [#allocation5], 2
  %11187 = vsyncmov %s11186
  %s11188 = vpop.sfrf %11187
  %p11189 = scmp.eq.s32.totalorder %s11188, 0
  %p11190 = pneg %p11189
  %11192 = shalt.err (%p11190)

</llo_original>
